<compile_context>
chip_gen: v5e
topology: v5e:2x2
jax: 0.10.0
libtpu: 0.0.40
codegen_flags: <defaults>
</compile_context>

<pallas_src>
import functools

import jax
import jax.numpy as jnp
from jax.experimental import pallas as pl
from jax.experimental.pallas import tpu as pltpu

HEIGHT = 84
WIDTH = 84
BN_EPS = 1e-5
HIDDEN = 256
FC_OUT = 512
HEAD_PAD = 128            # lane-dense padding for the q / head output
# Safe on every generation (v5e scoped default is only 16 MiB); blocks are
# small now so no per-generation re-budgeting is needed.
_VMEM_LIMIT = 32 * 1024 * 1024


def _round_up(x, m):
    return (x + m - 1) // m * m


def _pick_row_tile(m, tm_max):
    """Largest multiple-of-8 row tile <= tm_max with < one-tile padding."""
    m8 = _round_up(m, 8)
    if m8 <= tm_max:
        return m8
    ntiles = -(-m8 // tm_max)
    return _round_up(-(-m8 // ntiles), 8)


# ----------------------------------------------------------------------------
# Pallas kernels
# ----------------------------------------------------------------------------
def _conv_bn_relu_kernel(x_ref, w_ref, s_ref, b_ref, o_ref):
    """o = relu((x @ w) * scale + bias); bf16 operands, f32 accumulate."""
    acc = jnp.dot(x_ref[...], w_ref[...], preferred_element_type=jnp.float32)
    o_ref[...] = jnp.maximum(acc * s_ref[...] + b_ref[...], 0.0).astype(o_ref.dtype)


def _fc_inproj_kernel(flat_ref, fcw_ref, fcb_ref, wih_ref, lb_ref, xp_ref):
    """xp = relu(flat @ fc_w + fc_b) @ W_ih^T + (b_ih + b_hh), per row tile."""
    fc = jnp.dot(flat_ref[...], fcw_ref[...], preferred_element_type=jnp.float32)
    fc = jnp.maximum(fc + fcb_ref[...], 0.0)
    xp_ref[...] = (jnp.dot(fc.astype(jnp.bfloat16), wih_ref[...],
                           preferred_element_type=jnp.float32) + lb_ref[...])


def _lstm_head_kernel(xp_ref, whh_ref, hw_ref, hb_ref, q_ref, h_ref, c_ref):
    """One LSTM step per grid iteration; head matmul fused into the last step.

    h_ref / c_ref have constant index maps, so they stay VMEM-resident across
    the grid and double as the recurrent state (written back once at the end).
    W_hh / head weights also stay resident (constant index maps).
    """
    t = pl.program_id(0)
    H = HIDDEN

    @pl.when(t == 0)
    def _():
        h_ref[...] = jnp.zeros_like(h_ref)
        c_ref[...] = jnp.zeros_like(c_ref)

    gates = xp_ref[0] + jnp.dot(h_ref[...].astype(jnp.bfloat16), whh_ref[...],
                                preferred_element_type=jnp.float32)   # (B, 4H)
    # PyTorch gate order: i, f, g, o
    i = jax.nn.sigmoid(gates[:, 0 * H:1 * H])
    f = jax.nn.sigmoid(gates[:, 1 * H:2 * H])
    g = jnp.tanh(gates[:, 2 * H:3 * H])
    o = jax.nn.sigmoid(gates[:, 3 * H:4 * H])
    c = f * c_ref[...] + i * g
    h = o * jnp.tanh(c)
    h_ref[...] = h
    c_ref[...] = c

    @pl.when(t == pl.num_programs(0) - 1)
    def _():
        # 128-lane-padded head -> unmasked lane-dense store; sliced outside.
        q_ref[...] = (jnp.dot(h.astype(jnp.bfloat16), hw_ref[...],
                              preferred_element_type=jnp.float32)
                      + hb_ref[...]).astype(q_ref.dtype)


# ----------------------------------------------------------------------------
# Pallas wrappers
# ----------------------------------------------------------------------------
def conv_bn_relu_mm(patches, w_mat, scale, bias, tm_max=512):
    m, k = patches.shape
    n = w_mat.shape[1]
    tm = _pick_row_tile(m, tm_max)
    m_pad = _round_up(m, tm)
    if m_pad != m:
        patches = jnp.pad(patches, ((0, m_pad - m), (0, 0)))
    out = pl.pallas_call(
        _conv_bn_relu_kernel,
        out_shape=jax.ShapeDtypeStruct((m_pad, n), jnp.bfloat16),
        grid=(m_pad // tm,),
        in_specs=[pl.BlockSpec((tm, k), lambda i: (i, 0)),
                  pl.BlockSpec((k, n), lambda i: (0, 0)),
                  pl.BlockSpec((1, n), lambda i: (0, 0)),
                  pl.BlockSpec((1, n), lambda i: (0, 0))],
        out_specs=pl.BlockSpec((tm, n), lambda i: (i, 0)),
        compiler_params=pltpu.CompilerParams(
            dimension_semantics=("parallel",),
            vmem_limit_bytes=_VMEM_LIMIT),
    )(patches, w_mat, scale, bias)
    return out[:m] if m_pad != m else out


def fc_inproj(flat, prep, tm_max=256):
    """relu(flat @ fc_w + fc_b) @ W_ih + lstm_bias, row-tiled over T*B."""
    m, k = flat.shape
    g4h = 4 * HIDDEN
    tm = _pick_row_tile(m, tm_max)
    m_pad = _round_up(m, tm)
    if m_pad != m:
        flat = jnp.pad(flat, ((0, m_pad - m), (0, 0)))
    xp = pl.pallas_call(
        _fc_inproj_kernel,
        out_shape=jax.ShapeDtypeStruct((m_pad, g4h), jnp.float32),
        grid=(m_pad // tm,),
        in_specs=[pl.BlockSpec((tm, k), lambda i: (i, 0)),
                  pl.BlockSpec((k, FC_OUT), lambda i: (0, 0)),
                  pl.BlockSpec((1, FC_OUT), lambda i: (0, 0)),
                  pl.BlockSpec((FC_OUT, g4h), lambda i: (0, 0)),
                  pl.BlockSpec((1, g4h), lambda i: (0, 0))],
        out_specs=pl.BlockSpec((tm, g4h), lambda i: (i, 0)),
        compiler_params=pltpu.CompilerParams(
            dimension_semantics=("parallel",),
            vmem_limit_bytes=_VMEM_LIMIT),
    )(flat, prep['fc_w'], prep['fc_b'], prep['lstm_wih_t'], prep['lstm_b'])
    return xp[:m] if m_pad != m else xp


def lstm_head(xp, prep, seq_len, batch):
    """LSTM recurrence (zero init state) + head, grid over time."""
    g4h = 4 * HIDDEN
    xp3 = xp.reshape(seq_len, batch, g4h)
    # TODO(synk): keeping W_hh in the MXU staging registers across steps
    # (matmul_push_rhs/acc_lhs/pop) would help for long sequences.
    q_pad, h_n, c_n = pl.pallas_call(
        _lstm_head_kernel,
        out_shape=(jax.ShapeDtypeStruct((batch, HEAD_PAD), jnp.float32),
                   jax.ShapeDtypeStruct((batch, HIDDEN), jnp.float32),
                   jax.ShapeDtypeStruct((batch, HIDDEN), jnp.float32)),
        grid=(seq_len,),
        in_specs=[pl.BlockSpec((1, batch, g4h), lambda t: (t, 0, 0)),
                  pl.BlockSpec((HIDDEN, g4h), lambda t: (0, 0)),
                  pl.BlockSpec((HIDDEN, HEAD_PAD), lambda t: (0, 0)),
                  pl.BlockSpec((1, HEAD_PAD), lambda t: (0, 0))],
        out_specs=(pl.BlockSpec((batch, HEAD_PAD), lambda t: (0, 0)),
                   pl.BlockSpec((batch, HIDDEN), lambda t: (0, 0)),
                   pl.BlockSpec((batch, HIDDEN), lambda t: (0, 0))),
        compiler_params=pltpu.CompilerParams(
            dimension_semantics=("arbitrary",),
            vmem_limit_bytes=_VMEM_LIMIT),
    )(xp3, prep['lstm_whh_t'], prep['head_w_t'], prep['head_b'])
    return q_pad, h_n, c_n


# ----------------------------------------------------------------------------
# JAX glue: im2col (patch extraction stays in XLA; everything else is Pallas)
# ----------------------------------------------------------------------------
def im2col(x_nhwc, k, stride):
    n, h, w, c = x_nhwc.shape
    oh = (h - k) // stride + 1
    ow = (w - k) // stride + 1
    cols = []
    for i in range(k):
        for j in range(k):
            cols.append(x_nhwc[:, i:i + stride * oh:stride,
                               j:j + stride * ow:stride, :])
    p = jnp.stack(cols, axis=3)                       # (n, oh, ow, k*k, c)
    return p.reshape(n * oh * ow, k * k * c), oh, ow


# ----------------------------------------------------------------------------
# One-time parameter transformation (BN folding, transposes, bf16)
# ----------------------------------------------------------------------------
def _fold_conv_bn(w_conv, b_conv, gamma, beta, mean, var):
    cout, cin, k, _ = w_conv.shape
    w = jnp.transpose(w_conv, (2, 3, 1, 0)).reshape(k * k * cin, cout)  # (kkc,cout)
    scale = gamma / jnp.sqrt(var + BN_EPS)
    bias = beta + (b_conv - mean) * scale
    return (w.astype(jnp.bfloat16),
            scale.reshape(1, cout).astype(jnp.float32),
            bias.reshape(1, cout).astype(jnp.float32))


def prepare_params(p):
    prep = {}
    prep['w1'], prep['s1'], prep['b1'] = _fold_conv_bn(
        p['conv1_w'], p['conv1_b'], p['bn1_g'], p['bn1_b'], p['bn1_m'], p['bn1_v'])
    prep['w2'], prep['s2'], prep['b2'] = _fold_conv_bn(
        p['conv2_w'], p['conv2_b'], p['bn2_g'], p['bn2_b'], p['bn2_m'], p['bn2_v'])
    prep['w3'], prep['s3'], prep['b3'] = _fold_conv_bn(
        p['conv3_w'], p['conv3_b'], p['bn3_g'], p['bn3_b'], p['bn3_m'], p['bn3_v'])

    # fc consumes NHWC-flattened (7,7,64) activations: permute the rows of the
    # PyTorch (C,H,W)-flattened weight once; no channel padding.
    fc_w = p['fc_w'].reshape(FC_OUT, 64, 7, 7)                    # (out,c,h,w)
    fc_w = jnp.transpose(fc_w, (2, 3, 1, 0))                      # (h,w,c,out)
    prep['fc_w'] = fc_w.reshape(7 * 7 * 64, FC_OUT).astype(jnp.bfloat16)
    prep['fc_b'] = p['fc_b'].reshape(1, FC_OUT).astype(jnp.float32)

    prep['lstm_wih_t'] = jnp.transpose(p['lstm_wih']).astype(jnp.bfloat16)
    prep['lstm_whh_t'] = jnp.transpose(p['lstm_whh']).astype(jnp.bfloat16)
    prep['lstm_b'] = (p['lstm_bih'] + p['lstm_bhh']).reshape(1, 4 * HIDDEN).astype(jnp.float32)

    # Head padded to 128 lanes so the q store is lane-dense; slice outside.
    act = p['head_w'].shape[0]
    hw = jnp.zeros((HIDDEN, HEAD_PAD), jnp.float32)
    hw = hw.at[:, :act].set(jnp.transpose(p['head_w']))
    hb = jnp.zeros((1, HEAD_PAD), jnp.float32).at[0, :act].set(p['head_b'])
    prep['head_w_t'] = hw.astype(jnp.bfloat16)
    prep['head_b'] = hb
    prep['action_size'] = int(act)
    return prep


# ----------------------------------------------------------------------------
# Full forward pass
# ----------------------------------------------------------------------------
def dqn_lstm_forward(prep, x):
    # x: (B, T, HEIGHT, WIDTH) float32 (PyTorch (batch, seq, H, W)).
    b, t = x.shape[0], x.shape[1]
    n = b * t
    # Time-major frame ordering so the LSTM stage reads contiguous
    # per-timestep row blocks; cast to bf16 once for all conv matmuls.
    imgs = (jnp.transpose(x, (1, 0, 2, 3))
            .reshape(n, HEIGHT, WIDTH, 1).astype(jnp.bfloat16))

    # conv1/bn1/relu  ->  (n, 20, 20, 32)
    p1, oh1, ow1 = im2col(imgs, 8, 4)
    y1 = conv_bn_relu_mm(p1, prep['w1'], prep['s1'], prep['b1'])
    y1 = y1.reshape(n, oh1, ow1, 32)

    # conv2/bn2/relu  ->  (n, 9, 9, 64)
    p2, oh2, ow2 = im2col(y1, 4, 2)
    y2 = conv_bn_relu_mm(p2, prep['w2'], prep['s2'], prep['b2'])
    y2 = y2.reshape(n, oh2, ow2, 64)

    # conv3/bn3/relu  ->  (n*7*7, 64)
    p3, oh3, ow3 = im2col(y2, 3, 1)
    y3 = conv_bn_relu_mm(p3, prep['w3'], prep['s3'], prep['b3'])

    # NHWC flatten; fc weight rows were pre-permuted to match this layout.
    flat = y3.reshape(n, oh3 * ow3 * 64)                           # (n, 3136)

    # fc + ReLU + LSTM input projection for all timesteps (row-tiled).
    xp = fc_inproj(flat, prep)                                     # (n, 1024)

    # LSTM recurrence (hidden=None -> zero initial state) + head.
    q_pad, h_n, c_n = lstm_head(xp, prep, t, b)
    q = q_pad[:, :prep['action_size']]

    return q, (h_n[None], c_n[None])


# ----------------------------------------------------------------------------
# Deterministic parameter init (synthetic; shapes match nn.Module __init__)
# ----------------------------------------------------------------------------
def init_params(key, action_size):
    ks = jax.random.split(key, 32)

    def nrm(k, shape, scale=0.05):
        return scale * jax.random.normal(k, shape, jnp.float32)

    return {
        'conv1_w': nrm(ks[0], (32, 1, 8, 8)),
        'conv1_b': nrm(ks[1], (32,)),
        'bn1_g': 1.0 + nrm(ks[2], (32,)),
        'bn1_b': nrm(ks[3], (32,)),
        'bn1_m': nrm(ks[4], (32,)),
        'bn1_v': 1.0 + 0.1 * jnp.abs(jax.random.normal(ks[5], (32,), jnp.float32)),
        'conv2_w': nrm(ks[6], (64, 32, 4, 4)),
        'conv2_b': nrm(ks[7], (64,)),
        'bn2_g': 1.0 + nrm(ks[8], (64,)),
        'bn2_b': nrm(ks[9], (64,)),
        'bn2_m': nrm(ks[10], (64,)),
        'bn2_v': 1.0 + 0.1 * jnp.abs(jax.random.normal(ks[11], (64,), jnp.float32)),
        'conv3_w': nrm(ks[12], (64, 64, 3, 3)),
        'conv3_b': nrm(ks[13], (64,)),
        'bn3_g': 1.0 + nrm(ks[14], (64,)),
        'bn3_b': nrm(ks[15], (64,)),
        'bn3_m': nrm(ks[16], (64,)),
        'bn3_v': 1.0 + 0.1 * jnp.abs(jax.random.normal(ks[17], (64,), jnp.float32)),
        'fc_w': nrm(ks[18], (FC_OUT, 3136), 0.02),
        'fc_b': nrm(ks[19], (FC_OUT,)),
        'lstm_wih': nrm(ks[20], (4 * HIDDEN, FC_OUT), 0.02),
        'lstm_whh': nrm(ks[21], (4 * HIDDEN, HIDDEN), 0.02),
        'lstm_bih': nrm(ks[22], (4 * HIDDEN,)),
        'lstm_bhh': nrm(ks[23], (4 * HIDDEN,)),
        'head_w': nrm(ks[24], (action_size, HIDDEN)),
        'head_b': nrm(ks[25], (action_size,)),
    }


if __name__ == "__main__":
    key = jax.random.PRNGKey(0)
    pkey, xkey = jax.random.split(key)
    action_size = 6
    batch, seq = 2, 4

    params = init_params(pkey, action_size)
    prep = prepare_params(params)          # one-time weight transformation
    x = jax.random.normal(xkey, (batch, seq, HEIGHT, WIDTH), jnp.float32)

    fwd = jax.jit(functools.partial(dqn_lstm_forward, prep))
    q, (h_n, c_n) = fwd(x)
    jax.block_until_ready((q, h_n, c_n))

    assert q.shape == (batch, action_size), q.shape
    assert h_n.shape == (1, batch, HIDDEN), h_n.shape
    assert c_n.shape == (1, batch, HIDDEN), c_n.shape
    assert jnp.all(jnp.isfinite(q)) and jnp.all(jnp.isfinite(h_n))
    assert jnp.all(jnp.isfinite(c_n))

    print("KERNEL_OK")
</pallas_src>

<mosaic_0001>
module attributes {stable_mosaic.version = 11 : i64} {
  func.func @_conv_bn_relu_kernel(%arg0: i32, %arg1: memref<464x64xbf16, #tpu.memory_space<vmem>>, %arg2: memref<64x32xbf16, #tpu.memory_space<vmem>>, %arg3: memref<1x32xf32, #tpu.memory_space<vmem>>, %arg4: memref<1x32xf32, #tpu.memory_space<vmem>>, %arg5: memref<464x32xbf16, #tpu.memory_space<vmem>>) attributes {dimension_semantics = [#tpu.dimension_semantics<parallel>], iteration_bounds = array<i64: 7>, scalar_prefetch = 0 : i64, scratch_operands = 0 : i64, tpu.core_type = #tpu.core_type<tc>, window_params = [{transform_indices = @transform_0, window_bounds = array<i64: 464, 64>}, {pipeline_mode = #tpu.pipeline_mode<synchronous>, transform_indices = @transform_1, window_bounds = array<i64: 64, 32>}, {pipeline_mode = #tpu.pipeline_mode<synchronous>, transform_indices = @transform_2, window_bounds = array<i64: 1, 32>}, {pipeline_mode = #tpu.pipeline_mode<synchronous>, transform_indices = @transform_3, window_bounds = array<i64: 1, 32>}, {transform_indices = @transform_4, window_bounds = array<i64: 464, 32>}]} {
    %c0 = arith.constant 0 : index
    %c0_0 = arith.constant 0 : index
    %0 = vector.load %arg1[%c0, %c0_0] : memref<464x64xbf16, #tpu.memory_space<vmem>>, vector<464x64xbf16>
    %c0_1 = arith.constant 0 : index
    %c0_2 = arith.constant 0 : index
    %1 = vector.load %arg2[%c0_1, %c0_2] : memref<64x32xbf16, #tpu.memory_space<vmem>>, vector<64x32xbf16>
    %cst = arith.constant dense<0.000000e+00> : vector<464x32xf32>
    %2 = tpu.matmul %0, %1, %cst {dimension_numbers = #tpu.dot_dimension_numbers<[1], [0], [0], [1], [0, 0, 1, 1], [], []>} : vector<464x64xbf16>, vector<64x32xbf16>, vector<464x32xf32> -> vector<464x32xf32>
    %c0_3 = arith.constant 0 : index
    %c0_4 = arith.constant 0 : index
    %3 = vector.load %arg3[%c0_3, %c0_4] : memref<1x32xf32, #tpu.memory_space<vmem>>, vector<1x32xf32>
    %4 = vector.broadcast %3 : vector<1x32xf32> to vector<464x32xf32>
    %5 = arith.mulf %2, %4 : vector<464x32xf32>
    %c0_5 = arith.constant 0 : index
    %c0_6 = arith.constant 0 : index
    %6 = vector.load %arg4[%c0_5, %c0_6] : memref<1x32xf32, #tpu.memory_space<vmem>>, vector<1x32xf32>
    %7 = vector.broadcast %6 : vector<1x32xf32> to vector<464x32xf32>
    %8 = arith.addf %5, %7 : vector<464x32xf32>
    %cst_7 = arith.constant 0.000000e+00 : f32
    %9 = vector.broadcast %cst_7 : f32 to vector<464x32xf32>
    %10 = arith.maximumf %8, %9 : vector<464x32xf32>
    %11 = arith.truncf %10 : vector<464x32xf32> to vector<464x32xbf16>
    %c0_8 = arith.constant 0 : index
    %c0_9 = arith.constant 0 : index
    %12 = vector.load %arg5[%c0_8, %c0_9] : memref<464x32xbf16, #tpu.memory_space<vmem>>, vector<464x32xbf16>
    tpu.vector_store %arg5[%c0_8, %c0_9], %11 {strides = array<i32>} : memref<464x32xbf16, #tpu.memory_space<vmem>>, vector<464x32xbf16>,
    return
  }
  func.func @transform_0(%arg0: i32) -> (i32, i32) {
    %c0_i32 = arith.constant 0 : i32
    %c0_i32_0 = arith.constant 0 : i32
    return %arg0, %c0_i32 : i32, i32
  }
  func.func @transform_1(%arg0: i32) -> (i32, i32) {
    %c0_i32 = arith.constant 0 : i32
    %c0_i32_0 = arith.constant 0 : i32
    %c0_i32_1 = arith.constant 0 : i32
    return %c0_i32, %c0_i32_0 : i32, i32
  }
  func.func @transform_2(%arg0: i32) -> (i32, i32) {
    %c0_i32 = arith.constant 0 : i32
    %c0_i32_0 = arith.constant 0 : i32
    %c0_i32_1 = arith.constant 0 : i32
    return %c0_i32, %c0_i32_0 : i32, i32
  }
  func.func @transform_3(%arg0: i32) -> (i32, i32) {
    %c0_i32 = arith.constant 0 : i32
    %c0_i32_0 = arith.constant 0 : i32
    %c0_i32_1 = arith.constant 0 : i32
    return %c0_i32, %c0_i32_0 : i32, i32
  }
  func.func @transform_4(%arg0: i32) -> (i32, i32) {
    %c0_i32 = arith.constant 0 : i32
    %c0_i32_0 = arith.constant 0 : i32
    return %arg0, %c0_i32 : i32, i32
  }
}

module attributes {stable_mosaic.version = 11 : i64} {
  func.func @_conv_bn_relu_kernel(%arg0: i32, %arg1: memref<328x512xbf16, #tpu.memory_space<vmem>>, %arg2: memref<512x64xbf16, #tpu.memory_space<vmem>>, %arg3: memref<1x64xf32, #tpu.memory_space<vmem>>, %arg4: memref<1x64xf32, #tpu.memory_space<vmem>>, %arg5: memref<328x64xbf16, #tpu.memory_space<vmem>>) attributes {dimension_semantics = [#tpu.dimension_semantics<parallel>], iteration_bounds = array<i64: 2>, scalar_prefetch = 0 : i64, scratch_operands = 0 : i64, tpu.core_type = #tpu.core_type<tc>, window_params = [{transform_indices = @transform_0, window_bounds = array<i64: 328, 512>}, {pipeline_mode = #tpu.pipeline_mode<synchronous>, transform_indices = @transform_1, window_bounds = array<i64: 512, 64>}, {pipeline_mode = #tpu.pipeline_mode<synchronous>, transform_indices = @transform_2, window_bounds = array<i64: 1, 64>}, {pipeline_mode = #tpu.pipeline_mode<synchronous>, transform_indices = @transform_3, window_bounds = array<i64: 1, 64>}, {transform_indices = @transform_4, window_bounds = array<i64: 328, 64>}]} {
    %c0 = arith.constant 0 : index
    %c0_0 = arith.constant 0 : index
    %0 = vector.load %arg1[%c0, %c0_0] : memref<328x512xbf16, #tpu.memory_space<vmem>>, vector<328x512xbf16>
    %c0_1 = arith.constant 0 : index
    %c0_2 = arith.constant 0 : index
    %1 = vector.load %arg2[%c0_1, %c0_2] : memref<512x64xbf16, #tpu.memory_space<vmem>>, vector<512x64xbf16>
    %cst = arith.constant dense<0.000000e+00> : vector<328x64xf32>
    %2 = tpu.matmul %0, %1, %cst {dimension_numbers = #tpu.dot_dimension_numbers<[1], [0], [0], [1], [0, 0, 1, 1], [], []>} : vector<328x512xbf16>, vector<512x64xbf16>, vector<328x64xf32> -> vector<328x64xf32>
    %c0_3 = arith.constant 0 : index
    %c0_4 = arith.constant 0 : index
    %3 = vector.load %arg3[%c0_3, %c0_4] : memref<1x64xf32, #tpu.memory_space<vmem>>, vector<1x64xf32>
    %4 = vector.broadcast %3 : vector<1x64xf32> to vector<328x64xf32>
    %5 = arith.mulf %2, %4 : vector<328x64xf32>
    %c0_5 = arith.constant 0 : index
    %c0_6 = arith.constant 0 : index
    %6 = vector.load %arg4[%c0_5, %c0_6] : memref<1x64xf32, #tpu.memory_space<vmem>>, vector<1x64xf32>
    %7 = vector.broadcast %6 : vector<1x64xf32> to vector<328x64xf32>
    %8 = arith.addf %5, %7 : vector<328x64xf32>
    %cst_7 = arith.constant 0.000000e+00 : f32
    %9 = vector.broadcast %cst_7 : f32 to vector<328x64xf32>
    %10 = arith.maximumf %8, %9 : vector<328x64xf32>
    %11 = arith.truncf %10 : vector<328x64xf32> to vector<328x64xbf16>
    %c0_8 = arith.constant 0 : index
    %c0_9 = arith.constant 0 : index
    %12 = vector.load %arg5[%c0_8, %c0_9] : memref<328x64xbf16, #tpu.memory_space<vmem>>, vector<328x64xbf16>
    tpu.vector_store %arg5[%c0_8, %c0_9], %11 {strides = array<i32>} : memref<328x64xbf16, #tpu.memory_space<vmem>>, vector<328x64xbf16>,
    return
  }
  func.func @transform_0(%arg0: i32) -> (i32, i32) {
    %c0_i32 = arith.constant 0 : i32
    %c0_i32_0 = arith.constant 0 : i32
    return %arg0, %c0_i32 : i32, i32
  }
  func.func @transform_1(%arg0: i32) -> (i32, i32) {
    %c0_i32 = arith.constant 0 : i32
    %c0_i32_0 = arith.constant 0 : i32
    %c0_i32_1 = arith.constant 0 : i32
    return %c0_i32, %c0_i32_0 : i32, i32
  }
  func.func @transform_2(%arg0: i32) -> (i32, i32) {
    %c0_i32 = arith.constant 0 : i32
    %c0_i32_0 = arith.constant 0 : i32
    %c0_i32_1 = arith.constant 0 : i32
    return %c0_i32, %c0_i32_0 : i32, i32
  }
  func.func @transform_3(%arg0: i32) -> (i32, i32) {
    %c0_i32 = arith.constant 0 : i32
    %c0_i32_0 = arith.constant 0 : i32
    %c0_i32_1 = arith.constant 0 : i32
    return %c0_i32, %c0_i32_0 : i32, i32
  }
  func.func @transform_4(%arg0: i32) -> (i32, i32) {
    %c0_i32 = arith.constant 0 : i32
    %c0_i32_0 = arith.constant 0 : i32
    return %arg0, %c0_i32 : i32, i32
  }
}

module attributes {stable_mosaic.version = 11 : i64} {
  func.func @_conv_bn_relu_kernel(%arg0: i32, %arg1: memref<392x576xbf16, #tpu.memory_space<vmem>>, %arg2: memref<576x64xbf16, #tpu.memory_space<vmem>>, %arg3: memref<1x64xf32, #tpu.memory_space<vmem>>, %arg4: memref<1x64xf32, #tpu.memory_space<vmem>>, %arg5: memref<392x64xbf16, #tpu.memory_space<vmem>>) attributes {dimension_semantics = [#tpu.dimension_semantics<parallel>], iteration_bounds = array<i64: 1>, scalar_prefetch = 0 : i64, scratch_operands = 0 : i64, tpu.core_type = #tpu.core_type<tc>, window_params = [{transform_indices = @transform_0, window_bounds = array<i64: 392, 576>}, {pipeline_mode = #tpu.pipeline_mode<synchronous>, transform_indices = @transform_1, window_bounds = array<i64: 576, 64>}, {pipeline_mode = #tpu.pipeline_mode<synchronous>, transform_indices = @transform_2, window_bounds = array<i64: 1, 64>}, {pipeline_mode = #tpu.pipeline_mode<synchronous>, transform_indices = @transform_3, window_bounds = array<i64: 1, 64>}, {transform_indices = @transform_4, window_bounds = array<i64: 392, 64>}]} {
    %c0 = arith.constant 0 : index
    %c0_0 = arith.constant 0 : index
    %0 = vector.load %arg1[%c0, %c0_0] : memref<392x576xbf16, #tpu.memory_space<vmem>>, vector<392x576xbf16>
    %c0_1 = arith.constant 0 : index
    %c0_2 = arith.constant 0 : index
    %1 = vector.load %arg2[%c0_1, %c0_2] : memref<576x64xbf16, #tpu.memory_space<vmem>>, vector<576x64xbf16>
    %cst = arith.constant dense<0.000000e+00> : vector<392x64xf32>
    %2 = tpu.matmul %0, %1, %cst {dimension_numbers = #tpu.dot_dimension_numbers<[1], [0], [0], [1], [0, 0, 1, 1], [], []>} : vector<392x576xbf16>, vector<576x64xbf16>, vector<392x64xf32> -> vector<392x64xf32>
    %c0_3 = arith.constant 0 : index
    %c0_4 = arith.constant 0 : index
    %3 = vector.load %arg3[%c0_3, %c0_4] : memref<1x64xf32, #tpu.memory_space<vmem>>, vector<1x64xf32>
    %4 = vector.broadcast %3 : vector<1x64xf32> to vector<392x64xf32>
    %5 = arith.mulf %2, %4 : vector<392x64xf32>
    %c0_5 = arith.constant 0 : index
    %c0_6 = arith.constant 0 : index
    %6 = vector.load %arg4[%c0_5, %c0_6] : memref<1x64xf32, #tpu.memory_space<vmem>>, vector<1x64xf32>
    %7 = vector.broadcast %6 : vector<1x64xf32> to vector<392x64xf32>
    %8 = arith.addf %5, %7 : vector<392x64xf32>
    %cst_7 = arith.constant 0.000000e+00 : f32
    %9 = vector.broadcast %cst_7 : f32 to vector<392x64xf32>
    %10 = arith.maximumf %8, %9 : vector<392x64xf32>
    %11 = arith.truncf %10 : vector<392x64xf32> to vector<392x64xbf16>
    %c0_8 = arith.constant 0 : index
    %c0_9 = arith.constant 0 : index
    %12 = vector.load %arg5[%c0_8, %c0_9] : memref<392x64xbf16, #tpu.memory_space<vmem>>, vector<392x64xbf16>
    tpu.vector_store %arg5[%c0_8, %c0_9], %11 {strides = array<i32>} : memref<392x64xbf16, #tpu.memory_space<vmem>>, vector<392x64xbf16>,
    return
  }
  func.func @transform_0(%arg0: i32) -> (i32, i32) {
    %c0_i32 = arith.constant 0 : i32
    %c0_i32_0 = arith.constant 0 : i32
    return %arg0, %c0_i32 : i32, i32
  }
  func.func @transform_1(%arg0: i32) -> (i32, i32) {
    %c0_i32 = arith.constant 0 : i32
    %c0_i32_0 = arith.constant 0 : i32
    %c0_i32_1 = arith.constant 0 : i32
    return %c0_i32, %c0_i32_0 : i32, i32
  }
  func.func @transform_2(%arg0: i32) -> (i32, i32) {
    %c0_i32 = arith.constant 0 : i32
    %c0_i32_0 = arith.constant 0 : i32
    %c0_i32_1 = arith.constant 0 : i32
    return %c0_i32, %c0_i32_0 : i32, i32
  }
  func.func @transform_3(%arg0: i32) -> (i32, i32) {
    %c0_i32 = arith.constant 0 : i32
    %c0_i32_0 = arith.constant 0 : i32
    %c0_i32_1 = arith.constant 0 : i32
    return %c0_i32, %c0_i32_0 : i32, i32
  }
  func.func @transform_4(%arg0: i32) -> (i32, i32) {
    %c0_i32 = arith.constant 0 : i32
    %c0_i32_0 = arith.constant 0 : i32
    return %arg0, %c0_i32 : i32, i32
  }
}

module attributes {stable_mosaic.version = 11 : i64} {
  func.func @_fc_inproj_kernel(%arg0: i32, %arg1: memref<8x3136xbf16, #tpu.memory_space<vmem>>, %arg2: memref<3136x512xbf16, #tpu.memory_space<vmem>>, %arg3: memref<1x512xf32, #tpu.memory_space<vmem>>, %arg4: memref<512x1024xbf16, #tpu.memory_space<vmem>>, %arg5: memref<1x1024xf32, #tpu.memory_space<vmem>>, %arg6: memref<8x1024xf32, #tpu.memory_space<vmem>>) attributes {dimension_semantics = [#tpu.dimension_semantics<parallel>], iteration_bounds = array<i64: 1>, scalar_prefetch = 0 : i64, scratch_operands = 0 : i64, tpu.core_type = #tpu.core_type<tc>, window_params = [{transform_indices = @transform_0, window_bounds = array<i64: 8, 3136>}, {pipeline_mode = #tpu.pipeline_mode<synchronous>, transform_indices = @transform_1, window_bounds = array<i64: 3136, 512>}, {pipeline_mode = #tpu.pipeline_mode<synchronous>, transform_indices = @transform_2, window_bounds = array<i64: 1, 512>}, {pipeline_mode = #tpu.pipeline_mode<synchronous>, transform_indices = @transform_3, window_bounds = array<i64: 512, 1024>}, {pipeline_mode = #tpu.pipeline_mode<synchronous>, transform_indices = @transform_4, window_bounds = array<i64: 1, 1024>}, {transform_indices = @transform_5, window_bounds = array<i64: 8, 1024>}]} {
    %c0 = arith.constant 0 : index
    %c0_0 = arith.constant 0 : index
    %0 = vector.load %arg1[%c0, %c0_0] : memref<8x3136xbf16, #tpu.memory_space<vmem>>, vector<8x3136xbf16>
    %c0_1 = arith.constant 0 : index
    %c0_2 = arith.constant 0 : index
    %1 = vector.load %arg2[%c0_1, %c0_2] : memref<3136x512xbf16, #tpu.memory_space<vmem>>, vector<3136x512xbf16>
    %cst = arith.constant dense<0.000000e+00> : vector<8x512xf32>
    %2 = tpu.matmul %0, %1, %cst {dimension_numbers = #tpu.dot_dimension_numbers<[1], [0], [0], [1], [0, 0, 1, 1], [], []>} : vector<8x3136xbf16>, vector<3136x512xbf16>, vector<8x512xf32> -> vector<8x512xf32>
    %c0_3 = arith.constant 0 : index
    %c0_4 = arith.constant 0 : index
    %3 = vector.load %arg3[%c0_3, %c0_4] : memref<1x512xf32, #tpu.memory_space<vmem>>, vector<1x512xf32>
    %4 = vector.broadcast %3 : vector<1x512xf32> to vector<8x512xf32>
    %5 = arith.addf %2, %4 : vector<8x512xf32>
    %cst_5 = arith.constant 0.000000e+00 : f32
    %6 = vector.broadcast %cst_5 : f32 to vector<8x512xf32>
    %7 = arith.maximumf %5, %6 : vector<8x512xf32>
    %8 = arith.truncf %7 : vector<8x512xf32> to vector<8x512xbf16>
    %c0_6 = arith.constant 0 : index
    %c0_7 = arith.constant 0 : index
    %9 = vector.load %arg4[%c0_6, %c0_7] : memref<512x1024xbf16, #tpu.memory_space<vmem>>, vector<512x1024xbf16>
    %cst_8 = arith.constant dense<0.000000e+00> : vector<8x1024xf32>
    %10 = tpu.matmul %8, %9, %cst_8 {dimension_numbers = #tpu.dot_dimension_numbers<[1], [0], [0], [1], [0, 0, 1, 1], [], []>} : vector<8x512xbf16>, vector<512x1024xbf16>, vector<8x1024xf32> -> vector<8x1024xf32>
    %c0_9 = arith.constant 0 : index
    %c0_10 = arith.constant 0 : index
    %11 = vector.load %arg5[%c0_9, %c0_10] : memref<1x1024xf32, #tpu.memory_space<vmem>>, vector<1x1024xf32>
    %12 = vector.broadcast %11 : vector<1x1024xf32> to vector<8x1024xf32>
    %13 = arith.addf %10, %12 : vector<8x1024xf32>
    %c0_11 = arith.constant 0 : index
    %c0_12 = arith.constant 0 : index
    %14 = vector.load %arg6[%c0_11, %c0_12] : memref<8x1024xf32, #tpu.memory_space<vmem>>, vector<8x1024xf32>
    tpu.vector_store %arg6[%c0_11, %c0_12], %13 {strides = array<i32>} : memref<8x1024xf32, #tpu.memory_space<vmem>>, vector<8x1024xf32>,
    return
  }
  func.func @transform_0(%arg0: i32) -> (i32, i32) {
    %c0_i32 = arith.constant 0 : i32
    %c0_i32_0 = arith.constant 0 : i32
    return %arg0, %c0_i32 : i32, i32
  }
  func.func @transform_1(%arg0: i32) -> (i32, i32) {
    %c0_i32 = arith.constant 0 : i32
    %c0_i32_0 = arith.constant 0 : i32
    %c0_i32_1 = arith.constant 0 : i32
    return %c0_i32, %c0_i32_0 : i32, i32
  }
  func.func @transform_2(%arg0: i32) -> (i32, i32) {
    %c0_i32 = arith.constant 0 : i32
    %c0_i32_0 = arith.constant 0 : i32
    %c0_i32_1 = arith.constant 0 : i32
    return %c0_i32, %c0_i32_0 : i32, i32
  }
  func.func @transform_3(%arg0: i32) -> (i32, i32) {
    %c0_i32 = arith.constant 0 : i32
    %c0_i32_0 = arith.constant 0 : i32
    %c0_i32_1 = arith.constant 0 : i32
    return %c0_i32, %c0_i32_0 : i32, i32
  }
  func.func @transform_4(%arg0: i32) -> (i32, i32) {
    %c0_i32 = arith.constant 0 : i32
    %c0_i32_0 = arith.constant 0 : i32
    %c0_i32_1 = arith.constant 0 : i32
    return %c0_i32, %c0_i32_0 : i32, i32
  }
  func.func @transform_5(%arg0: i32) -> (i32, i32) {
    %c0_i32 = arith.constant 0 : i32
    %c0_i32_0 = arith.constant 0 : i32
    return %arg0, %c0_i32 : i32, i32
  }
}

module attributes {stable_mosaic.version = 11 : i64} {
  func.func @_lstm_head_kernel(%arg0: i32, %arg1: memref<1x2x1024xf32, #tpu.memory_space<vmem>>, %arg2: memref<256x1024xbf16, #tpu.memory_space<vmem>>, %arg3: memref<256x128xbf16, #tpu.memory_space<vmem>>, %arg4: memref<1x128xf32, #tpu.memory_space<vmem>>, %arg5: memref<2x128xf32, #tpu.memory_space<vmem>>, %arg6: memref<2x256xf32, #tpu.memory_space<vmem>>, %arg7: memref<2x256xf32, #tpu.memory_space<vmem>>) attributes {dimension_semantics = [#tpu.dimension_semantics<arbitrary>], iteration_bounds = array<i64: 4>, scalar_prefetch = 0 : i64, scratch_operands = 0 : i64, tpu.core_type = #tpu.core_type<tc>, window_params = [{transform_indices = @transform_0, window_bounds = array<i64: 1, 2, 1024>}, {pipeline_mode = #tpu.pipeline_mode<synchronous>, transform_indices = @transform_1, window_bounds = array<i64: 256, 1024>}, {pipeline_mode = #tpu.pipeline_mode<synchronous>, transform_indices = @transform_2, window_bounds = array<i64: 256, 128>}, {pipeline_mode = #tpu.pipeline_mode<synchronous>, transform_indices = @transform_3, window_bounds = array<i64: 1, 128>}, {pipeline_mode = #tpu.pipeline_mode<synchronous>, transform_indices = @transform_4, window_bounds = array<i64: 2, 128>}, {pipeline_mode = #tpu.pipeline_mode<synchronous>, transform_indices = @transform_5, window_bounds = array<i64: 2, 256>}, {pipeline_mode = #tpu.pipeline_mode<synchronous>, transform_indices = @transform_6, window_bounds = array<i64: 2, 256>}]} {
    %c0_i32 = arith.constant 0 : i32
    %0 = arith.cmpi eq, %arg0, %c0_i32 : i32
    %1 = arith.extui %0 : i1 to i32
    %c0_i32_0 = arith.constant 0 : i32
    %2 = arith.cmpi ne, %1, %c0_i32_0 : i32
    scf.if %2 {
      %cst_17 = arith.constant 0.000000e+00 : f32
      %41 = vector.broadcast %cst_17 : f32 to vector<2x256xf32>
      %c0_18 = arith.constant 0 : index
      %c0_19 = arith.constant 0 : index
      %42 = vector.load %arg6[%c0_18, %c0_19] : memref<2x256xf32, #tpu.memory_space<vmem>>, vector<2x256xf32>
      tpu.vector_store %arg6[%c0_18, %c0_19], %41 {strides = array<i32>} : memref<2x256xf32, #tpu.memory_space<vmem>>, vector<2x256xf32>,
      %cst_20 = arith.constant 0.000000e+00 : f32
      %43 = vector.broadcast %cst_20 : f32 to vector<2x256xf32>
      %c0_21 = arith.constant 0 : index
      %c0_22 = arith.constant 0 : index
      %44 = vector.load %arg7[%c0_21, %c0_22] : memref<2x256xf32, #tpu.memory_space<vmem>>, vector<2x256xf32>
      tpu.vector_store %arg7[%c0_21, %c0_22], %43 {strides = array<i32>} : memref<2x256xf32, #tpu.memory_space<vmem>>, vector<2x256xf32>,
    } else {
    }
    %c0 = arith.constant 0 : index
    %c0_1 = arith.constant 0 : index
    %c0_2 = arith.constant 0 : index
    %3 = vector.load %arg1[%c0, %c0_1, %c0_2] : memref<1x2x1024xf32, #tpu.memory_space<vmem>>, vector<1x2x1024xf32>
    %4 = vector.shape_cast %3 : vector<1x2x1024xf32> to vector<2x1024xf32>
    %c0_3 = arith.constant 0 : index
    %c0_4 = arith.constant 0 : index
    %5 = vector.load %arg6[%c0_3, %c0_4] : memref<2x256xf32, #tpu.memory_space<vmem>>, vector<2x256xf32>
    %6 = arith.truncf %5 : vector<2x256xf32> to vector<2x256xbf16>
    %c0_5 = arith.constant 0 : index
    %c0_6 = arith.constant 0 : index
    %7 = vector.load %arg2[%c0_5, %c0_6] : memref<256x1024xbf16, #tpu.memory_space<vmem>>, vector<256x1024xbf16>
    %cst = arith.constant dense<0.000000e+00> : vector<2x1024xf32>
    %8 = tpu.matmul %6, %7, %cst {dimension_numbers = #tpu.dot_dimension_numbers<[1], [0], [0], [1], [0, 0, 1, 1], [], []>} : vector<2x256xbf16>, vector<256x1024xbf16>, vector<2x1024xf32> -> vector<2x1024xf32>
    %9 = arith.addf %4, %8 : vector<2x1024xf32>
    %10 = vector.extract_strided_slice %9 {offsets = [0, 0], sizes = [2, 256], strides = [1, 1]} : vector<2x1024xf32> to vector<2x256xf32>
    %11 = arith.negf %10 : vector<2x256xf32>
    %12 = math.exp %11 : vector<2x256xf32>
    %cst_7 = arith.constant 1.000000e+00 : f32
    %13 = vector.broadcast %cst_7 : f32 to vector<2x256xf32>
    %14 = arith.addf %13, %12 : vector<2x256xf32>
    %15 = arith.divf %13, %14 : vector<2x256xf32>
    %16 = vector.extract_strided_slice %9 {offsets = [0, 256], sizes = [2, 256], strides = [1, 1]} : vector<2x1024xf32> to vector<2x256xf32>
    %17 = arith.negf %16 : vector<2x256xf32>
    %18 = math.exp %17 : vector<2x256xf32>
    %cst_8 = arith.constant 1.000000e+00 : f32
    %19 = vector.broadcast %cst_8 : f32 to vector<2x256xf32>
    %20 = arith.addf %19, %18 : vector<2x256xf32>
    %21 = arith.divf %19, %20 : vector<2x256xf32>
    %22 = vector.extract_strided_slice %9 {offsets = [0, 512], sizes = [2, 256], strides = [1, 1]} : vector<2x1024xf32> to vector<2x256xf32>
    %23 = math.tanh %22 : vector<2x256xf32>
    %24 = vector.extract_strided_slice %9 {offsets = [0, 768], sizes = [2, 256], strides = [1, 1]} : vector<2x1024xf32> to vector<2x256xf32>
    %25 = arith.negf %24 : vector<2x256xf32>
    %26 = math.exp %25 : vector<2x256xf32>
    %cst_9 = arith.constant 1.000000e+00 : f32
    %27 = vector.broadcast %cst_9 : f32 to vector<2x256xf32>
    %28 = arith.addf %27, %26 : vector<2x256xf32>
    %29 = arith.divf %27, %28 : vector<2x256xf32>
    %c0_10 = arith.constant 0 : index
    %c0_11 = arith.constant 0 : index
    %30 = vector.load %arg7[%c0_10, %c0_11] : memref<2x256xf32, #tpu.memory_space<vmem>>, vector<2x256xf32>
    %31 = arith.mulf %21, %30 : vector<2x256xf32>
    %32 = arith.mulf %15, %23 : vector<2x256xf32>
    %33 = arith.addf %31, %32 : vector<2x256xf32>
    %34 = math.tanh %33 : vector<2x256xf32>
    %35 = arith.mulf %29, %34 : vector<2x256xf32>
    %c0_12 = arith.constant 0 : index
    %c0_13 = arith.constant 0 : index
    %36 = vector.load %arg6[%c0_12, %c0_13] : memref<2x256xf32, #tpu.memory_space<vmem>>, vector<2x256xf32>
    tpu.vector_store %arg6[%c0_12, %c0_13], %35 {strides = array<i32>} : memref<2x256xf32, #tpu.memory_space<vmem>>, vector<2x256xf32>,
    %c0_14 = arith.constant 0 : index
    %c0_15 = arith.constant 0 : index
    %37 = vector.load %arg7[%c0_14, %c0_15] : memref<2x256xf32, #tpu.memory_space<vmem>>, vector<2x256xf32>
    tpu.vector_store %arg7[%c0_14, %c0_15], %33 {strides = array<i32>} : memref<2x256xf32, #tpu.memory_space<vmem>>, vector<2x256xf32>,
    %c3_i32 = arith.constant 3 : i32
    %38 = arith.cmpi eq, %arg0, %c3_i32 : i32
    %39 = arith.extui %38 : i1 to i32
    %c0_i32_16 = arith.constant 0 : i32
    %40 = arith.cmpi ne, %39, %c0_i32_16 : i32
    scf.if %40 {
      %41 = arith.truncf %35 : vector<2x256xf32> to vector<2x256xbf16>
      %c0_17 = arith.constant 0 : index
      %c0_18 = arith.constant 0 : index
      %42 = vector.load %arg3[%c0_17, %c0_18] : memref<256x128xbf16, #tpu.memory_space<vmem>>, vector<256x128xbf16>
      %cst_19 = arith.constant dense<0.000000e+00> : vector<2x128xf32>
      %43 = tpu.matmul %41, %42, %cst_19 {dimension_numbers = #tpu.dot_dimension_numbers<[1], [0], [0], [1], [0, 0, 1, 1], [], []>} : vector<2x256xbf16>, vector<256x128xbf16>, vector<2x128xf32> -> vector<2x128xf32>
      %c0_20 = arith.constant 0 : index
      %c0_21 = arith.constant 0 : index
      %44 = vector.load %arg4[%c0_20, %c0_21] : memref<1x128xf32, #tpu.memory_space<vmem>>, vector<1x128xf32>
      %45 = vector.broadcast %44 : vector<1x128xf32> to vector<2x128xf32>
      %46 = arith.addf %43, %45 : vector<2x128xf32>
      %c0_22 = arith.constant 0 : index
      %c0_23 = arith.constant 0 : index
      %47 = vector.load %arg5[%c0_22, %c0_23] : memref<2x128xf32, #tpu.memory_space<vmem>>, vector<2x128xf32>
      tpu.vector_store %arg5[%c0_22, %c0_23], %46 {strides = array<i32>} : memref<2x128xf32, #tpu.memory_space<vmem>>, vector<2x128xf32>,
    } else {
    }
    return
  }
  func.func @transform_0(%arg0: i32) -> (i32, i32, i32) {
    %c0_i32 = arith.constant 0 : i32
    %c0_i32_0 = arith.constant 0 : i32
    %c0_i32_1 = arith.constant 0 : i32
    return %arg0, %c0_i32, %c0_i32_0 : i32, i32, i32
  }
  func.func @transform_1(%arg0: i32) -> (i32, i32) {
    %c0_i32 = arith.constant 0 : i32
    %c0_i32_0 = arith.constant 0 : i32
    %c0_i32_1 = arith.constant 0 : i32
    return %c0_i32, %c0_i32_0 : i32, i32
  }
  func.func @transform_2(%arg0: i32) -> (i32, i32) {
    %c0_i32 = arith.constant 0 : i32
    %c0_i32_0 = arith.constant 0 : i32
    %c0_i32_1 = arith.constant 0 : i32
    return %c0_i32, %c0_i32_0 : i32, i32
  }
  func.func @transform_3(%arg0: i32) -> (i32, i32) {
    %c0_i32 = arith.constant 0 : i32
    %c0_i32_0 = arith.constant 0 : i32
    %c0_i32_1 = arith.constant 0 : i32
    return %c0_i32, %c0_i32_0 : i32, i32
  }
  func.func @transform_4(%arg0: i32) -> (i32, i32) {
    %c0_i32 = arith.constant 0 : i32
    %c0_i32_0 = arith.constant 0 : i32
    %c0_i32_1 = arith.constant 0 : i32
    return %c0_i32, %c0_i32_0 : i32, i32
  }
  func.func @transform_5(%arg0: i32) -> (i32, i32) {
    %c0_i32 = arith.constant 0 : i32
    %c0_i32_0 = arith.constant 0 : i32
    %c0_i32_1 = arith.constant 0 : i32
    return %c0_i32, %c0_i32_0 : i32, i32
  }
  func.func @transform_6(%arg0: i32) -> (i32, i32) {
    %c0_i32 = arith.constant 0 : i32
    %c0_i32_0 = arith.constant 0 : i32
    %c0_i32_1 = arith.constant 0 : i32
    return %c0_i32, %c0_i32_0 : i32, i32
  }
}

</mosaic_0001>

<llo_original>
// kernel: dqn_lstm_forward.5
$region0: #{dqn_lstm_forward.5}
  #allocation0 [shape = 'u32[]', space=smem, size = 0x4, offset = 0x4, fixed_abs, tag = 'smem constant byte address 0x4 - core index']
  #allocation1 [shape = 'u32[72,128]{1,0:T(1,128)}', space=vmem, size = 0x9000, scoped, tag = 'internal scratch']
  %s0 = inlined_call_operand.vmem [shape: bf16[3248,64], index: 0, kind: input, shape index: {}]
  %s1 = inlined_call_operand.vmem [shape: bf16[64,32], index: 1, kind: input, shape index: {}]
  %s2 = inlined_call_operand.vmem [shape: f32[1,32], index: 2, kind: input, shape index: {}]
  %s3 = inlined_call_operand.vmem [shape: f32[1,32], index: 3, kind: input, shape index: {}]
  %s4 = inlined_call_operand.vmem [shape: bf16[3248,32], index: 4, kind: output, shape index: {}]
  %s5 = sld [smem:[#allocation0]]
  $region49: #{dqn_lstm_forward.5} parent=0
    _
  %s7 = ssub.s32 1, %s5
  %s8 = scalar_select 0, %s7, %s5
  loop: start=0, step=1, limit=9
  $region2: #{dqn_lstm_forward.5} parent=0 // loop_pre_header
    _
  $region3: #{dqn_lstm_forward.5} parent=0 // loop_header
    %s10 = sphi 0, %s14
    %p11 = scmp.ge.s32.totalorder %s10, 9
    %s20 = sphi 0, %s22
    %s23 = sphi 0, %s20
    %s24 = sphi 0, %s23
    %s40 = sphi 0, %s24
    %s44 = sphi 0, %s44
    %s46 = sphi 0, %s44
    %s47 = sphi 0, %s46
    %s61 = sphi 0, %s47
    %s65 = sphi 0, %s65
    %s67 = sphi 0, %s65
    %s68 = sphi 0, %s67
    %s82 = sphi 0, %s68
    %s86 = sphi 0, %s86
    %s88 = sphi 0, %s86
    %s89 = sphi 0, %s88
    %s103 = sphi 0, %s89
    %s109 = sphi 0, %s111
    %s112 = sphi 0, %s109
    %s113 = sphi 0, %s112
    %s129 = sphi 0, %s113
  $region4: #{dqn_lstm_forward.5} parent=0 // loop_header_branch
    %13 = sbr.rel (%p11) target = $region8
  $region5: #{dqn_lstm_forward.5} parent=0 // loop_body
    %s15 = ssub.s32 %s10, 1
    %s16 = ssub.s32 %s10, 2
    %s17 = sadd.s32 %s10, 1
    %s18 = ssub.s32 %s10, %s17
    %p19 = scmp.eq.s32.totalorder %s18, 0
    %s21 = sadd.s32 %s20, 1
    %s22 = scalar_select %p19, %s20, %s21
    %p25 = pneg %p19
    %p26 = scmp.eq.s32.totalorder %s10, 6
    %p27 = por %p25, %p26
    %p28 = scmp.ne.s32.totalorder %s20, %s23
    %p29 = scmp.eq.s32.totalorder %s10, 0
    %p30 = por %p28, %p29
    %p31 = scmp.ne.s32.totalorder %s20, %s23
    %p32 = scmp.eq.s32.totalorder %s15, 6
    %p33 = por %p31, %p32
    %p34 = scmp.ne.s32.totalorder %s23, %s24
    %p35 = scmp.eq.s32.totalorder %s15, 0
    %p36 = por %p34, %p35
    %p37 = scmp.ne.s32.totalorder %s23, %s24
    %p38 = scmp.eq.s32.totalorder %s16, 6
    %p39 = por %p37, %p38
    %p41 = scmp.ne.s32.totalorder %s24, %s40
    %p42 = scmp.eq.s32.totalorder %s16, 0
    %p43 = por %p41, %p42
    %s45 = sadd.s32 %s44, 1
    %p48 = scmp.eq.s32.totalorder %s10, 6
    %p49 = scmp.ne.s32.totalorder %s44, %s46
    %p50 = scmp.eq.s32.totalorder %s10, 0
    %p51 = por %p49, %p50
    %p52 = scmp.ne.s32.totalorder %s44, %s46
    %p53 = scmp.eq.s32.totalorder %s15, 6
    %p54 = por %p52, %p53
    %p55 = scmp.ne.s32.totalorder %s46, %s47
    %p56 = scmp.eq.s32.totalorder %s15, 0
    %p57 = por %p55, %p56
    %p58 = scmp.ne.s32.totalorder %s46, %s47
    %p59 = scmp.eq.s32.totalorder %s16, 6
    %p60 = por %p58, %p59
    %p62 = scmp.ne.s32.totalorder %s47, %s61
    %p63 = scmp.eq.s32.totalorder %s16, 0
    %p64 = por %p62, %p63
    %s66 = sadd.s32 %s65, 1
    %p69 = scmp.eq.s32.totalorder %s10, 6
    %p70 = scmp.ne.s32.totalorder %s65, %s67
    %p71 = scmp.eq.s32.totalorder %s10, 0
    %p72 = por %p70, %p71
    %p73 = scmp.ne.s32.totalorder %s65, %s67
    %p74 = scmp.eq.s32.totalorder %s15, 6
    %p75 = por %p73, %p74
    %p76 = scmp.ne.s32.totalorder %s67, %s68
    %p77 = scmp.eq.s32.totalorder %s15, 0
    %p78 = por %p76, %p77
    %p79 = scmp.ne.s32.totalorder %s67, %s68
    %p80 = scmp.eq.s32.totalorder %s16, 6
    %p81 = por %p79, %p80
    %p83 = scmp.ne.s32.totalorder %s68, %s82
    %p84 = scmp.eq.s32.totalorder %s16, 0
    %p85 = por %p83, %p84
    %s87 = sadd.s32 %s86, 1
    %p90 = scmp.eq.s32.totalorder %s10, 6
    %p91 = scmp.ne.s32.totalorder %s86, %s88
    %p92 = scmp.eq.s32.totalorder %s10, 0
    %p93 = por %p91, %p92
    %p94 = scmp.ne.s32.totalorder %s86, %s88
    %p95 = scmp.eq.s32.totalorder %s15, 6
    %p96 = por %p94, %p95
    %p97 = scmp.ne.s32.totalorder %s88, %s89
    %p98 = scmp.eq.s32.totalorder %s15, 0
    %p99 = por %p97, %p98
    %p100 = scmp.ne.s32.totalorder %s88, %s89
    %p101 = scmp.eq.s32.totalorder %s16, 6
    %p102 = por %p100, %p101
    %p104 = scmp.ne.s32.totalorder %s89, %s103
    %p105 = scmp.eq.s32.totalorder %s16, 0
    %p106 = por %p104, %p105
    %s107 = ssub.s32 %s10, %s17
    %p108 = scmp.eq.s32.totalorder %s107, 0
    %s110 = sadd.s32 %s109, 1
    %s111 = scalar_select %p108, %s109, %s110
    %p114 = pneg %p108
    %p115 = scmp.eq.s32.totalorder %s10, 6
    %p116 = por %p114, %p115
    %p117 = scmp.ne.s32.totalorder %s109, %s112
    %p118 = scmp.eq.s32.totalorder %s10, 0
    %p119 = por %p117, %p118
    %p120 = scmp.ne.s32.totalorder %s109, %s112
    %p121 = scmp.eq.s32.totalorder %s15, 6
    %p122 = por %p120, %p121
    %p123 = scmp.ne.s32.totalorder %s112, %s113
    %p124 = scmp.eq.s32.totalorder %s15, 0
    %p125 = por %p123, %p124
    %p126 = scmp.ne.s32.totalorder %s112, %s113
    %p127 = scmp.eq.s32.totalorder %s16, 6
    %p128 = por %p126, %p127
    %p130 = scmp.ne.s32.totalorder %s113, %s129
    %p131 = scmp.eq.s32.totalorder %s16, 0
    %p132 = por %p130, %p131
    %p133 = scmp.le.s32.totalorder 1, %s10
    %p134 = scmp.lt.s32.totalorder %s10, 8
    %p135 = pnand %p133, %p134
    %p136 = pneg %p135
    // Predicated region
    $region9: #{dqn_lstm_forward.5} parent=5 // pred_check
      _
    $region10: #{dqn_lstm_forward.5} parent=5 // pred_check_branch
      %138 = sbr.rel (%p135) target = $region12
    $region11: #{dqn_lstm_forward.5} parent=5 // pred_region
      %s139 = ssub.s32 %s10, 1
      // Predicated region
      $region13: #{dqn_lstm_forward.5} parent=11 // pred_check
        %p140 = pneg %p57
      $region14: #{dqn_lstm_forward.5} parent=11 // pred_check_branch
        %142 = sbr.rel (%p140) target = $region16
      $region15: #{dqn_lstm_forward.5} parent=11 // pred_region
        _
      $region16: #{dqn_lstm_forward.5} parent=11 // pred_fallthru
        _
      // Predicated region
      $region17: #{dqn_lstm_forward.5} parent=11 // pred_check
        %p143 = pneg %p78
      $region18: #{dqn_lstm_forward.5} parent=11 // pred_check_branch
        %145 = sbr.rel (%p143) target = $region20
      $region19: #{dqn_lstm_forward.5} parent=11 // pred_region
        _
      $region20: #{dqn_lstm_forward.5} parent=11 // pred_fallthru
        _
      // Predicated region
      $region21: #{dqn_lstm_forward.5} parent=11 // pred_check
        %p146 = pneg %p99
      $region22: #{dqn_lstm_forward.5} parent=11 // pred_check_branch
        %148 = sbr.rel (%p146) target = $region24
      $region23: #{dqn_lstm_forward.5} parent=11 // pred_region
        _
      $region24: #{dqn_lstm_forward.5} parent=11 // pred_fallthru
        _
    $region12: #{dqn_lstm_forward.5} parent=5 // pred_fallthru
      _
    %p149 = scmp.lt.s32.totalorder %s10, 7
    // Predicated region
    $region25: #{dqn_lstm_forward.5} parent=5 // pred_check
      %p150 = pneg %p149
    $region26: #{dqn_lstm_forward.5} parent=5 // pred_check_branch
      %152 = sbr.rel (%p150) target = $region28
    $region27: #{dqn_lstm_forward.5} parent=5 // pred_region
      // Predicated region
      $region29: #{dqn_lstm_forward.5} parent=27 // pred_check
        %p153 = pneg %p30
      $region30: #{dqn_lstm_forward.5} parent=27 // pred_check_branch
        %155 = sbr.rel (%p153) target = $region32
      $region31: #{dqn_lstm_forward.5} parent=27 // pred_region
        %s156 = smul.u32 58, %s10
        %p157 = scmp.lt.s32.totalorder %s156, 405
        %s158 = scalar_select %p157, %s156, 405
        %s159 = smul.addr %s158, 4
        %s160 = scalar_lea.vmem %s0, %s159
        %s161 = smul.u32 58, %s10
      $region32: #{dqn_lstm_forward.5} parent=27 // pred_fallthru
        _
    $region28: #{dqn_lstm_forward.5} parent=5 // pred_fallthru
      _
    %p162 = scmp.le.s32.totalorder 1, %s10
    %p163 = scmp.lt.s32.totalorder %s10, 8
    %p164 = pnand %p162, %p163
    %p165 = pneg %p164
    // Predicated region
    $region33: #{dqn_lstm_forward.5} parent=5 // pred_check
      _
    $region34: #{dqn_lstm_forward.5} parent=5 // pred_check_branch
      %167 = sbr.rel (%p164) target = $region36
    $region35: #{dqn_lstm_forward.5} parent=5 // pred_region
      %s168 = ssub.s32 %s10, 1
      %s169 = smul.u32 58, %s15
      %p170 = scmp.lt.s32.totalorder %s169, 405
      %s171 = scalar_select %p170, %s169, 405
      %s172 = smul.addr %s171, 4
      %s173 = scalar_lea.vmem %s0, %s172
      %p174 = pneg %p36
      %p175 = pneg %p33
      %p176 = pneg %p57
      %p177 = pneg %p54
      %p178 = pneg %p78
      %p179 = pneg %p75
      %p180 = pneg %p99
      %p181 = pneg %p96
      %p182 = pneg %p125
      %p183 = pneg %p122
      %s184 = smul.u32 58, %s15
      %p185 = scmp.lt.s32.totalorder %s184, 405
      %s186 = scalar_select %p185, %s184, 405
      %s187 = smul.addr %s186, 4
      %s188 = scalar_lea.vmem %s4, %s187
      %s189 = smul.u32 58, %s15
      %p190 = scmp.lt.s32.totalorder %s189, 405
      %s191 = scalar_select %p190, %s189, 405
      %s192 = smul.addr %s191, 4
      %s193 = scalar_lea.vmem %s0, %s192
      %s194 = smul.u32 58, %s15
      %s195 = smul.u32 58, %s15
      %p196 = scmp.lt.s32.totalorder %s195, 405
      %s197 = scalar_select %p196, %s195, 405
      %s198 = smul.addr %s197, 4
      %s199 = scalar_lea.vmem %s4, %s198
      %s200 = smul.u32 58, %s15
      %v202 = vld [vmem:[%s193] sm:$0xf]
      %v203 = vld [vmem:[%s193 + $0x4] sm:$0xf]
      %v204 = vld [vmem:[%s193 + $0x8] sm:$0xf]
      %v205 = vld [vmem:[%s193 + $0xc] sm:$0xf]
      %v206 = vld [vmem:[%s193 + $0x10] sm:$0xf]
      %v207 = vld [vmem:[%s193 + $0x14] sm:$0xf]
      %v208 = vld [vmem:[%s193 + $0x18] sm:$0xf]
      %v209 = vld [vmem:[%s193 + $0x1c] sm:$0xf]
      %v210 = vld [vmem:[%s193 + $0x20] sm:$0xf]
      %v211 = vld [vmem:[%s193 + $0x24] sm:$0xf]
      %v212 = vld [vmem:[%s193 + $0x28] sm:$0xf]
      %v213 = vld [vmem:[%s193 + $0x2c] sm:$0xf]
      %v214 = vld [vmem:[%s193 + $0x30] sm:$0xf]
      %v215 = vld [vmem:[%s193 + $0x34] sm:$0xf]
      %v216 = vld [vmem:[%s193 + $0x38] sm:$0xf]
      %v217 = vld [vmem:[%s193 + $0x3c] sm:$0xf]
      %v218 = vld [vmem:[%s193 + $0x40] sm:$0xf]
      %v219 = vld [vmem:[%s193 + $0x44] sm:$0xf]
      %v220 = vld [vmem:[%s193 + $0x48] sm:$0xf]
      %v221 = vld [vmem:[%s193 + $0x4c] sm:$0xf]
      %v222 = vld [vmem:[%s193 + $0x50] sm:$0xf]
      %v223 = vld [vmem:[%s193 + $0x54] sm:$0xf]
      %v224 = vld [vmem:[%s193 + $0x58] sm:$0xf]
      %v225 = vld [vmem:[%s193 + $0x5c] sm:$0xf]
      %v226 = vld [vmem:[%s193 + $0x60] sm:$0xf]
      %v227 = vld [vmem:[%s193 + $0x64] sm:$0xf]
      %v228 = vld [vmem:[%s193 + $0x68] sm:$0xf]
      %v229 = vld [vmem:[%s193 + $0x6c] sm:$0xf]
      %v230 = vld [vmem:[%s193 + $0x70] sm:$0xf]
      %v231 = vld [vmem:[%s193 + $0x74] sm:$0xf]
      %v232 = vld [vmem:[%s193 + $0x78] sm:$0xf]
      %v233 = vld [vmem:[%s193 + $0x7c] sm:$0xf]
      %v234 = vld [vmem:[%s193 + $0x80] sm:$0xf]
      %v235 = vld [vmem:[%s193 + $0x84] sm:$0xf]
      %v236 = vld [vmem:[%s193 + $0x88] sm:$0xf]
      %v237 = vld [vmem:[%s193 + $0x8c] sm:$0xf]
      %v238 = vld [vmem:[%s193 + $0x90] sm:$0xf]
      %v239 = vld [vmem:[%s193 + $0x94] sm:$0xf]
      %v240 = vld [vmem:[%s193 + $0x98] sm:$0xf]
      %v241 = vld [vmem:[%s193 + $0x9c] sm:$0xf]
      %v242 = vld [vmem:[%s193 + $0xa0] sm:$0xf]
      %v243 = vld [vmem:[%s193 + $0xa4] sm:$0xf]
      %v244 = vld [vmem:[%s193 + $0xa8] sm:$0xf]
      %v245 = vld [vmem:[%s193 + $0xac] sm:$0xf]
      %v246 = vld [vmem:[%s193 + $0xb0] sm:$0xf]
      %v247 = vld [vmem:[%s193 + $0xb4] sm:$0xf]
      %v248 = vld [vmem:[%s193 + $0xb8] sm:$0xf]
      %v249 = vld [vmem:[%s193 + $0xbc] sm:$0xf]
      %v250 = vld [vmem:[%s193 + $0xc0] sm:$0xf]
      %v251 = vld [vmem:[%s193 + $0xc4] sm:$0xf]
      %v252 = vld [vmem:[%s193 + $0xc8] sm:$0xf]
      %v253 = vld [vmem:[%s193 + $0xcc] sm:$0xf]
      %v254 = vld [vmem:[%s193 + $0xd0] sm:$0xf]
      %v255 = vld [vmem:[%s193 + $0xd4] sm:$0xf]
      %v256 = vld [vmem:[%s193 + $0xd8] sm:$0xf]
      %v257 = vld [vmem:[%s193 + $0xdc] sm:$0xf]
      %v258 = vld [vmem:[%s193 + $0xe0] sm:$0xf]
      %v259 = vld [vmem:[%s193 + $0xe4] sm:$0xf]
      %v260 = vld [vmem:[%s1] sm:$0xf]
      %v261 = vld [vmem:[%s1 + $0x4] sm:$0xf]
      %v262 = vld [vmem:[%s1 + $0x8] sm:$0xf]
      %v263 = vld [vmem:[%s1 + $0xc] sm:$0xf]
      %v264 = vld [vmem:[%s1 + $0x10] sm:$0xf]
      %v265 = vld [vmem:[%s1 + $0x14] sm:$0xf]
      %v266 = vld [vmem:[%s1 + $0x18] sm:$0xf]
      %v267 = vld [vmem:[%s1 + $0x1c] sm:$0xf]
      %v326 = vunpack.c.l.b16 %v202
      %v327 = vunpack.c.l.b16 %v203
      %v328 = vunpack.c.l.b16 %v204
      %v329 = vunpack.c.l.b16 %v205
      %v330 = vunpack.c.l.b16 %v206
      %v331 = vunpack.c.l.b16 %v207
      %v332 = vunpack.c.l.b16 %v208
      %v333 = vunpack.c.l.b16 %v209
      %v334 = vunpack.c.l.b16 %v210
      %v335 = vunpack.c.l.b16 %v211
      %v336 = vunpack.c.l.b16 %v212
      %v337 = vunpack.c.l.b16 %v213
      %v338 = vunpack.c.l.b16 %v214
      %v339 = vunpack.c.l.b16 %v215
      %v340 = vunpack.c.l.b16 %v216
      %v341 = vunpack.c.l.b16 %v217
      %v342 = vunpack.c.l.b16 %v218
      %v343 = vunpack.c.l.b16 %v219
      %v344 = vunpack.c.l.b16 %v220
      %v345 = vunpack.c.l.b16 %v221
      %v346 = vunpack.c.l.b16 %v222
      %v347 = vunpack.c.l.b16 %v223
      %v348 = vunpack.c.l.b16 %v224
      %v349 = vunpack.c.l.b16 %v225
      %v350 = vunpack.c.l.b16 %v226
      %v351 = vunpack.c.l.b16 %v227
      %v352 = vunpack.c.l.b16 %v228
      %v353 = vunpack.c.l.b16 %v229
      %v354 = vunpack.c.l.b16 %v230
      %v355 = vunpack.c.l.b16 %v231
      %v356 = vunpack.c.l.b16 %v232
      %v357 = vunpack.c.l.b16 %v233
      %v358 = vunpack.c.l.b16 %v234
      %v359 = vunpack.c.l.b16 %v235
      %v360 = vunpack.c.l.b16 %v236
      %v361 = vunpack.c.l.b16 %v237
      %v362 = vunpack.c.l.b16 %v238
      %v363 = vunpack.c.l.b16 %v239
      %v364 = vunpack.c.l.b16 %v240
      %v365 = vunpack.c.l.b16 %v241
      %v366 = vunpack.c.l.b16 %v242
      %v367 = vunpack.c.l.b16 %v243
      %v368 = vunpack.c.l.b16 %v244
      %v369 = vunpack.c.l.b16 %v245
      %v370 = vunpack.c.l.b16 %v246
      %v371 = vunpack.c.l.b16 %v247
      %v372 = vunpack.c.l.b16 %v248
      %v373 = vunpack.c.l.b16 %v249
      %v374 = vunpack.c.l.b16 %v250
      %v375 = vunpack.c.l.b16 %v251
      %v376 = vunpack.c.l.b16 %v252
      %v377 = vunpack.c.l.b16 %v253
      %v378 = vunpack.c.l.b16 %v254
      %v379 = vunpack.c.l.b16 %v255
      %v380 = vunpack.c.l.b16 %v256
      %v381 = vunpack.c.l.b16 %v257
      %v382 = vunpack.c.l.b16 %v258
      %v383 = vunpack.c.l.b16 %v259
      %v384 = vpack.c.b16 %v327, %v326
      %v385 = vpack.c.b16 %v329, %v328
      %v386 = vpack.c.b16 %v331, %v330
      %v387 = vpack.c.b16 %v333, %v332
      %v388 = vpack.c.b16 %v335, %v334
      %v389 = vpack.c.b16 %v337, %v336
      %v390 = vpack.c.b16 %v339, %v338
      %v391 = vpack.c.b16 %v341, %v340
      %v392 = vpack.c.b16 %v343, %v342
      %v393 = vpack.c.b16 %v345, %v344
      %v394 = vpack.c.b16 %v347, %v346
      %v395 = vpack.c.b16 %v349, %v348
      %v396 = vpack.c.b16 %v351, %v350
      %v397 = vpack.c.b16 %v353, %v352
      %v398 = vpack.c.b16 %v355, %v354
      %v399 = vpack.c.b16 %v357, %v356
      %v400 = vpack.c.b16 %v359, %v358
      %v401 = vpack.c.b16 %v361, %v360
      %v402 = vpack.c.b16 %v363, %v362
      %v403 = vpack.c.b16 %v365, %v364
      %v404 = vpack.c.b16 %v367, %v366
      %v405 = vpack.c.b16 %v369, %v368
      %v406 = vpack.c.b16 %v371, %v370
      %v407 = vpack.c.b16 %v373, %v372
      %v408 = vpack.c.b16 %v375, %v374
      %v409 = vpack.c.b16 %v377, %v376
      %v410 = vpack.c.b16 %v379, %v378
      %v411 = vpack.c.b16 %v381, %v380
      %v412 = vpack.c.b16 %v383, %v382
      %v421 = vunpack.c.l.b16 %v260
      %v422 = vunpack.c.l.b16 %v261
      %v423 = vunpack.c.l.b16 %v262
      %v424 = vunpack.c.l.b16 %v263
      %v425 = vunpack.c.l.b16 %v264
      %v426 = vunpack.c.l.b16 %v265
      %v427 = vunpack.c.l.b16 %v266
      %v428 = vunpack.c.l.b16 %v267
      %v429 = vpack.c.b16 %v422, %v421
      %v430 = vpack.c.b16 %v424, %v423
      %v431 = vpack.c.b16 %v426, %v425
      %v432 = vpack.c.b16 %v428, %v427
      %vm437 = vcmask 523264
      %v439 = vsel %vm437, %v384, 0
      %v442 = vsel %vm437, %v385, 0
      %v445 = vsel %vm437, %v386, 0
      %v448 = vsel %vm437, %v387, 0
      %v451 = vsel %vm437, %v388, 0
      %v454 = vsel %vm437, %v389, 0
      %v457 = vsel %vm437, %v390, 0
      %v460 = vsel %vm437, %v391, 0
      %v463 = vsel %vm437, %v392, 0
      %v466 = vsel %vm437, %v393, 0
      %v469 = vsel %vm437, %v394, 0
      %v472 = vsel %vm437, %v395, 0
      %v475 = vsel %vm437, %v396, 0
      %v478 = vsel %vm437, %v397, 0
      %v481 = vsel %vm437, %v398, 0
      %v484 = vsel %vm437, %v399, 0
      %v487 = vsel %vm437, %v400, 0
      %v490 = vsel %vm437, %v401, 0
      %v493 = vsel %vm437, %v402, 0
      %v496 = vsel %vm437, %v403, 0
      %v499 = vsel %vm437, %v404, 0
      %v502 = vsel %vm437, %v405, 0
      %v505 = vsel %vm437, %v406, 0
      %v508 = vsel %vm437, %v407, 0
      %v511 = vsel %vm437, %v408, 0
      %v514 = vsel %vm437, %v409, 0
      %v517 = vsel %vm437, %v410, 0
      %v520 = vsel %vm437, %v411, 0
      %v523 = vsel %vm437, %v412, 0
      %525 = vmatpush.bf16.msra.mxu0 0
      %526 = vmatpush.bf16.msra.mxu0 0
      %527 = vmatpush.bf16.msra.mxu0 0
      %528 = vmatpush.bf16.msra.mxu0 0
      %529 = vmatpush.bf16.msra.mxu0 %v432
      %530 = vmatpush.bf16.msra.mxu0 %v431
      %531 = vmatpush.bf16.msra.mxu0 %v430
      %532 = vmatpush.bf16.msra.mxu0 %v429
      %533 = vmatmul.bf16.gmra.mxu0 %v439
      %v534 = vpop.f32.mrf.mxu0
      %v535 = vadd.f32 0.0, %v534
      %v536 = vpop.f32.mrf.mxu0
      %v537 = vadd.f32 0.0, %v536
      %538 = vmatmul.bf16.gmra.mxu0 %v442
      %v539 = vpop.f32.mrf.mxu0
      %v540 = vadd.f32 0.0, %v539
      %v541 = vpop.f32.mrf.mxu0
      %v542 = vadd.f32 0.0, %v541
      %543 = vmatmul.bf16.gmra.mxu0 %v445
      %v544 = vpop.f32.mrf.mxu0
      %v545 = vadd.f32 0.0, %v544
      %v546 = vpop.f32.mrf.mxu0
      %v547 = vadd.f32 0.0, %v546
      %548 = vmatmul.bf16.gmra.mxu0 %v448
      %v549 = vpop.f32.mrf.mxu0
      %v550 = vadd.f32 0.0, %v549
      %v551 = vpop.f32.mrf.mxu0
      %v552 = vadd.f32 0.0, %v551
      %553 = vmatmul.bf16.gmra.mxu0 %v451
      %v554 = vpop.f32.mrf.mxu0
      %v555 = vadd.f32 0.0, %v554
      %v556 = vpop.f32.mrf.mxu0
      %v557 = vadd.f32 0.0, %v556
      %558 = vmatmul.bf16.gmra.mxu0 %v454
      %v559 = vpop.f32.mrf.mxu0
      %v560 = vadd.f32 0.0, %v559
      %v561 = vpop.f32.mrf.mxu0
      %v562 = vadd.f32 0.0, %v561
      %563 = vmatmul.bf16.gmra.mxu0 %v457
      %v564 = vpop.f32.mrf.mxu0
      %v565 = vadd.f32 0.0, %v564
      %v566 = vpop.f32.mrf.mxu0
      %v567 = vadd.f32 0.0, %v566
      %568 = vmatmul.bf16.gmra.mxu0 %v460
      %v569 = vpop.f32.mrf.mxu0
      %v570 = vadd.f32 0.0, %v569
      %v571 = vpop.f32.mrf.mxu0
      %v572 = vadd.f32 0.0, %v571
      %573 = vmatmul.bf16.gmra.mxu0 %v463
      %v574 = vpop.f32.mrf.mxu0
      %v575 = vadd.f32 0.0, %v574
      %v576 = vpop.f32.mrf.mxu0
      %v577 = vadd.f32 0.0, %v576
      %578 = vmatmul.bf16.gmra.mxu0 %v466
      %v579 = vpop.f32.mrf.mxu0
      %v580 = vadd.f32 0.0, %v579
      %v581 = vpop.f32.mrf.mxu0
      %v582 = vadd.f32 0.0, %v581
      %583 = vmatmul.bf16.gmra.mxu0 %v469
      %v584 = vpop.f32.mrf.mxu0
      %v585 = vadd.f32 0.0, %v584
      %v586 = vpop.f32.mrf.mxu0
      %v587 = vadd.f32 0.0, %v586
      %588 = vmatmul.bf16.gmra.mxu0 %v472
      %v589 = vpop.f32.mrf.mxu0
      %v590 = vadd.f32 0.0, %v589
      %v591 = vpop.f32.mrf.mxu0
      %v592 = vadd.f32 0.0, %v591
      %593 = vmatmul.bf16.gmra.mxu0 %v475
      %v594 = vpop.f32.mrf.mxu0
      %v595 = vadd.f32 0.0, %v594
      %v596 = vpop.f32.mrf.mxu0
      %v597 = vadd.f32 0.0, %v596
      %598 = vmatmul.bf16.gmra.mxu0 %v478
      %v599 = vpop.f32.mrf.mxu0
      %v600 = vadd.f32 0.0, %v599
      %v601 = vpop.f32.mrf.mxu0
      %v602 = vadd.f32 0.0, %v601
      %603 = vmatmul.bf16.gmra.mxu0 %v481
      %v604 = vpop.f32.mrf.mxu0
      %v605 = vadd.f32 0.0, %v604
      %v606 = vpop.f32.mrf.mxu0
      %v607 = vadd.f32 0.0, %v606
      %608 = vmatmul.bf16.gmra.mxu0 %v484
      %v609 = vpop.f32.mrf.mxu0
      %v610 = vadd.f32 0.0, %v609
      %v611 = vpop.f32.mrf.mxu0
      %v612 = vadd.f32 0.0, %v611
      %613 = vmatmul.bf16.gmra.mxu0 %v487
      %v614 = vpop.f32.mrf.mxu0
      %v615 = vadd.f32 0.0, %v614
      %v616 = vpop.f32.mrf.mxu0
      %v617 = vadd.f32 0.0, %v616
      %618 = vmatmul.bf16.gmra.mxu0 %v490
      %v619 = vpop.f32.mrf.mxu0
      %v620 = vadd.f32 0.0, %v619
      %v621 = vpop.f32.mrf.mxu0
      %v622 = vadd.f32 0.0, %v621
      %623 = vmatmul.bf16.gmra.mxu0 %v493
      %v624 = vpop.f32.mrf.mxu0
      %v625 = vadd.f32 0.0, %v624
      %v626 = vpop.f32.mrf.mxu0
      %v627 = vadd.f32 0.0, %v626
      %628 = vmatmul.bf16.gmra.mxu0 %v496
      %v629 = vpop.f32.mrf.mxu0
      %v630 = vadd.f32 0.0, %v629
      %v631 = vpop.f32.mrf.mxu0
      %v632 = vadd.f32 0.0, %v631
      %633 = vmatmul.bf16.gmra.mxu0 %v499
      %v634 = vpop.f32.mrf.mxu0
      %v635 = vadd.f32 0.0, %v634
      %v636 = vpop.f32.mrf.mxu0
      %v637 = vadd.f32 0.0, %v636
      %638 = vmatmul.bf16.gmra.mxu0 %v502
      %v639 = vpop.f32.mrf.mxu0
      %v640 = vadd.f32 0.0, %v639
      %v641 = vpop.f32.mrf.mxu0
      %v642 = vadd.f32 0.0, %v641
      %643 = vmatmul.bf16.gmra.mxu0 %v505
      %v644 = vpop.f32.mrf.mxu0
      %v645 = vadd.f32 0.0, %v644
      %v646 = vpop.f32.mrf.mxu0
      %v647 = vadd.f32 0.0, %v646
      %648 = vmatmul.bf16.gmra.mxu0 %v508
      %v649 = vpop.f32.mrf.mxu0
      %v650 = vadd.f32 0.0, %v649
      %v651 = vpop.f32.mrf.mxu0
      %v652 = vadd.f32 0.0, %v651
      %653 = vmatmul.bf16.gmra.mxu0 %v511
      %v654 = vpop.f32.mrf.mxu0
      %v655 = vadd.f32 0.0, %v654
      %v656 = vpop.f32.mrf.mxu0
      %v657 = vadd.f32 0.0, %v656
      %658 = vmatmul.bf16.gmra.mxu0 %v514
      %v659 = vpop.f32.mrf.mxu0
      %v660 = vadd.f32 0.0, %v659
      %v661 = vpop.f32.mrf.mxu0
      %v662 = vadd.f32 0.0, %v661
      %663 = vmatmul.bf16.gmra.mxu0 %v517
      %v664 = vpop.f32.mrf.mxu0
      %v665 = vadd.f32 0.0, %v664
      %v666 = vpop.f32.mrf.mxu0
      %v667 = vadd.f32 0.0, %v666
      %668 = vmatmul.bf16.gmra.mxu0 %v520
      %v669 = vpop.f32.mrf.mxu0
      %v670 = vadd.f32 0.0, %v669
      %v671 = vpop.f32.mrf.mxu0
      %v672 = vadd.f32 0.0, %v671
      %673 = vmatmul.bf16.gmra.mxu0 %v523
      %v674 = vpop.f32.mrf.mxu0
      %v675 = vadd.f32 0.0, %v674
      %v676 = vpop.f32.mrf.mxu0
      %v677 = vadd.f32 0.0, %v676
      %678 = vdwg.mxu0
      %v679 = vld [vmem:[%s2] sm:$0x1]
      %v681 = vperm.slane %v679, 0
      %v683 = vmul.f32 %v535, %v681
      %v684 = vmul.f32 %v537, %v681
      %v685 = vmul.f32 %v540, %v681
      %v686 = vmul.f32 %v542, %v681
      %v687 = vmul.f32 %v545, %v681
      %v688 = vmul.f32 %v547, %v681
      %v689 = vmul.f32 %v550, %v681
      %v690 = vmul.f32 %v552, %v681
      %v691 = vmul.f32 %v555, %v681
      %v692 = vmul.f32 %v557, %v681
      %v693 = vmul.f32 %v560, %v681
      %v694 = vmul.f32 %v562, %v681
      %v695 = vmul.f32 %v565, %v681
      %v696 = vmul.f32 %v567, %v681
      %v697 = vmul.f32 %v570, %v681
      %v698 = vmul.f32 %v572, %v681
      %v699 = vmul.f32 %v575, %v681
      %v700 = vmul.f32 %v577, %v681
      %v701 = vmul.f32 %v580, %v681
      %v702 = vmul.f32 %v582, %v681
      %v703 = vmul.f32 %v585, %v681
      %v704 = vmul.f32 %v587, %v681
      %v705 = vmul.f32 %v590, %v681
      %v706 = vmul.f32 %v592, %v681
      %v707 = vmul.f32 %v595, %v681
      %v708 = vmul.f32 %v597, %v681
      %v709 = vmul.f32 %v600, %v681
      %v710 = vmul.f32 %v602, %v681
      %v711 = vmul.f32 %v605, %v681
      %v712 = vmul.f32 %v607, %v681
      %v713 = vmul.f32 %v610, %v681
      %v714 = vmul.f32 %v612, %v681
      %v715 = vmul.f32 %v615, %v681
      %v716 = vmul.f32 %v617, %v681
      %v717 = vmul.f32 %v620, %v681
      %v718 = vmul.f32 %v622, %v681
      %v719 = vmul.f32 %v625, %v681
      %v720 = vmul.f32 %v627, %v681
      %v721 = vmul.f32 %v630, %v681
      %v722 = vmul.f32 %v632, %v681
      %v723 = vmul.f32 %v635, %v681
      %v724 = vmul.f32 %v637, %v681
      %v725 = vmul.f32 %v640, %v681
      %v726 = vmul.f32 %v642, %v681
      %v727 = vmul.f32 %v645, %v681
      %v728 = vmul.f32 %v647, %v681
      %v729 = vmul.f32 %v650, %v681
      %v730 = vmul.f32 %v652, %v681
      %v731 = vmul.f32 %v655, %v681
      %v732 = vmul.f32 %v657, %v681
      %v733 = vmul.f32 %v660, %v681
      %v734 = vmul.f32 %v662, %v681
      %v735 = vmul.f32 %v665, %v681
      %v736 = vmul.f32 %v667, %v681
      %v737 = vmul.f32 %v670, %v681
      %v738 = vmul.f32 %v672, %v681
      %v739 = vmul.f32 %v675, %v681
      %v740 = vmul.f32 %v677, %v681
      %v741 = vld [vmem:[%s3] sm:$0x1]
      %v743 = vperm.slane %v741, 0
      %v745 = vadd.f32 %v683, %v743
      %v746 = vadd.f32 %v684, %v743
      %v747 = vadd.f32 %v685, %v743
      %v748 = vadd.f32 %v686, %v743
      %v749 = vadd.f32 %v687, %v743
      %v750 = vadd.f32 %v688, %v743
      %v751 = vadd.f32 %v689, %v743
      %v752 = vadd.f32 %v690, %v743
      %v753 = vadd.f32 %v691, %v743
      %v754 = vadd.f32 %v692, %v743
      %v755 = vadd.f32 %v693, %v743
      %v756 = vadd.f32 %v694, %v743
      %v757 = vadd.f32 %v695, %v743
      %v758 = vadd.f32 %v696, %v743
      %v759 = vadd.f32 %v697, %v743
      %v760 = vadd.f32 %v698, %v743
      %v761 = vadd.f32 %v699, %v743
      %v762 = vadd.f32 %v700, %v743
      %v763 = vadd.f32 %v701, %v743
      %v764 = vadd.f32 %v702, %v743
      %v765 = vadd.f32 %v703, %v743
      %v766 = vadd.f32 %v704, %v743
      %v767 = vadd.f32 %v705, %v743
      %v768 = vadd.f32 %v706, %v743
      %v769 = vadd.f32 %v707, %v743
      %v770 = vadd.f32 %v708, %v743
      %v771 = vadd.f32 %v709, %v743
      %v772 = vadd.f32 %v710, %v743
      %v773 = vadd.f32 %v711, %v743
      %v774 = vadd.f32 %v712, %v743
      %v775 = vadd.f32 %v713, %v743
      %v776 = vadd.f32 %v714, %v743
      %v777 = vadd.f32 %v715, %v743
      %v778 = vadd.f32 %v716, %v743
      %v779 = vadd.f32 %v717, %v743
      %v780 = vadd.f32 %v718, %v743
      %v781 = vadd.f32 %v719, %v743
      %v782 = vadd.f32 %v720, %v743
      %v783 = vadd.f32 %v721, %v743
      %v784 = vadd.f32 %v722, %v743
      %v785 = vadd.f32 %v723, %v743
      %v786 = vadd.f32 %v724, %v743
      %v787 = vadd.f32 %v725, %v743
      %v788 = vadd.f32 %v726, %v743
      %v789 = vadd.f32 %v727, %v743
      %v790 = vadd.f32 %v728, %v743
      %v791 = vadd.f32 %v729, %v743
      %v792 = vadd.f32 %v730, %v743
      %v793 = vadd.f32 %v731, %v743
      %v794 = vadd.f32 %v732, %v743
      %v795 = vadd.f32 %v733, %v743
      %v796 = vadd.f32 %v734, %v743
      %v797 = vadd.f32 %v735, %v743
      %v798 = vadd.f32 %v736, %v743
      %v799 = vadd.f32 %v737, %v743
      %v800 = vadd.f32 %v738, %v743
      %v801 = vadd.f32 %v739, %v743
      %v802 = vadd.f32 %v740, %v743
      %v803 = vmax.f32 %v745, 0.0
      %v804 = vmax.f32 %v746, 0.0
      %v805 = vmax.f32 %v747, 0.0
      %v806 = vmax.f32 %v748, 0.0
      %v807 = vmax.f32 %v749, 0.0
      %v808 = vmax.f32 %v750, 0.0
      %v809 = vmax.f32 %v751, 0.0
      %v810 = vmax.f32 %v752, 0.0
      %v811 = vmax.f32 %v753, 0.0
      %v812 = vmax.f32 %v754, 0.0
      %v813 = vmax.f32 %v755, 0.0
      %v814 = vmax.f32 %v756, 0.0
      %v815 = vmax.f32 %v757, 0.0
      %v816 = vmax.f32 %v758, 0.0
      %v817 = vmax.f32 %v759, 0.0
      %v818 = vmax.f32 %v760, 0.0
      %v819 = vmax.f32 %v761, 0.0
      %v820 = vmax.f32 %v762, 0.0
      %v821 = vmax.f32 %v763, 0.0
      %v822 = vmax.f32 %v764, 0.0
      %v823 = vmax.f32 %v765, 0.0
      %v824 = vmax.f32 %v766, 0.0
      %v825 = vmax.f32 %v767, 0.0
      %v826 = vmax.f32 %v768, 0.0
      %v827 = vmax.f32 %v769, 0.0
      %v828 = vmax.f32 %v770, 0.0
      %v829 = vmax.f32 %v771, 0.0
      %v830 = vmax.f32 %v772, 0.0
      %v831 = vmax.f32 %v773, 0.0
      %v832 = vmax.f32 %v774, 0.0
      %v833 = vmax.f32 %v775, 0.0
      %v834 = vmax.f32 %v776, 0.0
      %v835 = vmax.f32 %v777, 0.0
      %v836 = vmax.f32 %v778, 0.0
      %v837 = vmax.f32 %v779, 0.0
      %v838 = vmax.f32 %v780, 0.0
      %v839 = vmax.f32 %v781, 0.0
      %v840 = vmax.f32 %v782, 0.0
      %v841 = vmax.f32 %v783, 0.0
      %v842 = vmax.f32 %v784, 0.0
      %v843 = vmax.f32 %v785, 0.0
      %v844 = vmax.f32 %v786, 0.0
      %v845 = vmax.f32 %v787, 0.0
      %v846 = vmax.f32 %v788, 0.0
      %v847 = vmax.f32 %v789, 0.0
      %v848 = vmax.f32 %v790, 0.0
      %v849 = vmax.f32 %v791, 0.0
      %v850 = vmax.f32 %v792, 0.0
      %v851 = vmax.f32 %v793, 0.0
      %v852 = vmax.f32 %v794, 0.0
      %v853 = vmax.f32 %v795, 0.0
      %v854 = vmax.f32 %v796, 0.0
      %v855 = vmax.f32 %v797, 0.0
      %v856 = vmax.f32 %v798, 0.0
      %v857 = vmax.f32 %v799, 0.0
      %v858 = vmax.f32 %v800, 0.0
      %v859 = vmax.f32 %v801, 0.0
      %v860 = vmax.f32 %v802, 0.0
      %v861 = vpack.c.bf16 %v803, %v803
      %v862 = vpack.c.bf16 %v804, %v804
      %v863 = vpack.c.bf16 %v805, %v805
      %v864 = vpack.c.bf16 %v806, %v806
      %v865 = vpack.c.bf16 %v807, %v807
      %v866 = vpack.c.bf16 %v808, %v808
      %v867 = vpack.c.bf16 %v809, %v809
      %v868 = vpack.c.bf16 %v810, %v810
      %v869 = vpack.c.bf16 %v811, %v811
      %v870 = vpack.c.bf16 %v812, %v812
      %v871 = vpack.c.bf16 %v813, %v813
      %v872 = vpack.c.bf16 %v814, %v814
      %v873 = vpack.c.bf16 %v815, %v815
      %v874 = vpack.c.bf16 %v816, %v816
      %v875 = vpack.c.bf16 %v817, %v817
      %v876 = vpack.c.bf16 %v818, %v818
      %v877 = vpack.c.bf16 %v819, %v819
      %v878 = vpack.c.bf16 %v820, %v820
      %v879 = vpack.c.bf16 %v821, %v821
      %v880 = vpack.c.bf16 %v822, %v822
      %v881 = vpack.c.bf16 %v823, %v823
      %v882 = vpack.c.bf16 %v824, %v824
      %v883 = vpack.c.bf16 %v825, %v825
      %v884 = vpack.c.bf16 %v826, %v826
      %v885 = vpack.c.bf16 %v827, %v827
      %v886 = vpack.c.bf16 %v828, %v828
      %v887 = vpack.c.bf16 %v829, %v829
      %v888 = vpack.c.bf16 %v830, %v830
      %v889 = vpack.c.bf16 %v831, %v831
      %v890 = vpack.c.bf16 %v832, %v832
      %v891 = vpack.c.bf16 %v833, %v833
      %v892 = vpack.c.bf16 %v834, %v834
      %v893 = vpack.c.bf16 %v835, %v835
      %v894 = vpack.c.bf16 %v836, %v836
      %v895 = vpack.c.bf16 %v837, %v837
      %v896 = vpack.c.bf16 %v838, %v838
      %v897 = vpack.c.bf16 %v839, %v839
      %v898 = vpack.c.bf16 %v840, %v840
      %v899 = vpack.c.bf16 %v841, %v841
      %v900 = vpack.c.bf16 %v842, %v842
      %v901 = vpack.c.bf16 %v843, %v843
      %v902 = vpack.c.bf16 %v844, %v844
      %v903 = vpack.c.bf16 %v845, %v845
      %v904 = vpack.c.bf16 %v846, %v846
      %v905 = vpack.c.bf16 %v847, %v847
      %v906 = vpack.c.bf16 %v848, %v848
      %v907 = vpack.c.bf16 %v849, %v849
      %v908 = vpack.c.bf16 %v850, %v850
      %v909 = vpack.c.bf16 %v851, %v851
      %v910 = vpack.c.bf16 %v852, %v852
      %v911 = vpack.c.bf16 %v853, %v853
      %v912 = vpack.c.bf16 %v854, %v854
      %v913 = vpack.c.bf16 %v855, %v855
      %v914 = vpack.c.bf16 %v856, %v856
      %v915 = vpack.c.bf16 %v857, %v857
      %v916 = vpack.c.bf16 %v858, %v858
      %v917 = vpack.c.bf16 %v859, %v859
      %v918 = vpack.c.bf16 %v860, %v860
      %vm919 = vcmask 257024
      %920 = vst.msk [vmem:[%s199] sm:$0xf] %vm919, %v861
      %921 = vst.msk [vmem:[%s199 + $0x4] sm:$0xf] %vm919, %v862
      %922 = vst.msk [vmem:[%s199 + $0x8] sm:$0xf] %vm919, %v863
      %923 = vst.msk [vmem:[%s199 + $0xc] sm:$0xf] %vm919, %v864
      %924 = vst.msk [vmem:[%s199 + $0x10] sm:$0xf] %vm919, %v865
      %925 = vst.msk [vmem:[%s199 + $0x14] sm:$0xf] %vm919, %v866
      %926 = vst.msk [vmem:[%s199 + $0x18] sm:$0xf] %vm919, %v867
      %927 = vst.msk [vmem:[%s199 + $0x1c] sm:$0xf] %vm919, %v868
      %928 = vst.msk [vmem:[%s199 + $0x20] sm:$0xf] %vm919, %v869
      %929 = vst.msk [vmem:[%s199 + $0x24] sm:$0xf] %vm919, %v870
      %930 = vst.msk [vmem:[%s199 + $0x28] sm:$0xf] %vm919, %v871
      %931 = vst.msk [vmem:[%s199 + $0x2c] sm:$0xf] %vm919, %v872
      %932 = vst.msk [vmem:[%s199 + $0x30] sm:$0xf] %vm919, %v873
      %933 = vst.msk [vmem:[%s199 + $0x34] sm:$0xf] %vm919, %v874
      %934 = vst.msk [vmem:[%s199 + $0x38] sm:$0xf] %vm919, %v875
      %935 = vst.msk [vmem:[%s199 + $0x3c] sm:$0xf] %vm919, %v876
      %936 = vst.msk [vmem:[%s199 + $0x40] sm:$0xf] %vm919, %v877
      %937 = vst.msk [vmem:[%s199 + $0x44] sm:$0xf] %vm919, %v878
      %938 = vst.msk [vmem:[%s199 + $0x48] sm:$0xf] %vm919, %v879
      %939 = vst.msk [vmem:[%s199 + $0x4c] sm:$0xf] %vm919, %v880
      %940 = vst.msk [vmem:[%s199 + $0x50] sm:$0xf] %vm919, %v881
      %941 = vst.msk [vmem:[%s199 + $0x54] sm:$0xf] %vm919, %v882
      %942 = vst.msk [vmem:[%s199 + $0x58] sm:$0xf] %vm919, %v883
      %943 = vst.msk [vmem:[%s199 + $0x5c] sm:$0xf] %vm919, %v884
      %944 = vst.msk [vmem:[%s199 + $0x60] sm:$0xf] %vm919, %v885
      %945 = vst.msk [vmem:[%s199 + $0x64] sm:$0xf] %vm919, %v886
      %946 = vst.msk [vmem:[%s199 + $0x68] sm:$0xf] %vm919, %v887
      %947 = vst.msk [vmem:[%s199 + $0x6c] sm:$0xf] %vm919, %v888
      %948 = vst.msk [vmem:[%s199 + $0x70] sm:$0xf] %vm919, %v889
      %949 = vst.msk [vmem:[%s199 + $0x74] sm:$0xf] %vm919, %v890
      %950 = vst.msk [vmem:[%s199 + $0x78] sm:$0xf] %vm919, %v891
      %951 = vst.msk [vmem:[%s199 + $0x7c] sm:$0xf] %vm919, %v892
      %952 = vst.msk [vmem:[%s199 + $0x80] sm:$0xf] %vm919, %v893
      %953 = vst.msk [vmem:[%s199 + $0x84] sm:$0xf] %vm919, %v894
      %954 = vst.msk [vmem:[%s199 + $0x88] sm:$0xf] %vm919, %v895
      %955 = vst.msk [vmem:[%s199 + $0x8c] sm:$0xf] %vm919, %v896
      %956 = vst.msk [vmem:[%s199 + $0x90] sm:$0xf] %vm919, %v897
      %957 = vst.msk [vmem:[%s199 + $0x94] sm:$0xf] %vm919, %v898
      %958 = vst.msk [vmem:[%s199 + $0x98] sm:$0xf] %vm919, %v899
      %959 = vst.msk [vmem:[%s199 + $0x9c] sm:$0xf] %vm919, %v900
      %960 = vst.msk [vmem:[%s199 + $0xa0] sm:$0xf] %vm919, %v901
      %961 = vst.msk [vmem:[%s199 + $0xa4] sm:$0xf] %vm919, %v902
      %962 = vst.msk [vmem:[%s199 + $0xa8] sm:$0xf] %vm919, %v903
      %963 = vst.msk [vmem:[%s199 + $0xac] sm:$0xf] %vm919, %v904
      %964 = vst.msk [vmem:[%s199 + $0xb0] sm:$0xf] %vm919, %v905
      %965 = vst.msk [vmem:[%s199 + $0xb4] sm:$0xf] %vm919, %v906
      %966 = vst.msk [vmem:[%s199 + $0xb8] sm:$0xf] %vm919, %v907
      %967 = vst.msk [vmem:[%s199 + $0xbc] sm:$0xf] %vm919, %v908
      %968 = vst.msk [vmem:[%s199 + $0xc0] sm:$0xf] %vm919, %v909
      %969 = vst.msk [vmem:[%s199 + $0xc4] sm:$0xf] %vm919, %v910
      %970 = vst.msk [vmem:[%s199 + $0xc8] sm:$0xf] %vm919, %v911
      %971 = vst.msk [vmem:[%s199 + $0xcc] sm:$0xf] %vm919, %v912
      %972 = vst.msk [vmem:[%s199 + $0xd0] sm:$0xf] %vm919, %v913
      %973 = vst.msk [vmem:[%s199 + $0xd4] sm:$0xf] %vm919, %v914
      %974 = vst.msk [vmem:[%s199 + $0xd8] sm:$0xf] %vm919, %v915
      %975 = vst.msk [vmem:[%s199 + $0xdc] sm:$0xf] %vm919, %v916
      %976 = vst.msk [vmem:[%s199 + $0xe0] sm:$0xf] %vm919, %v917
      %977 = vst.msk [vmem:[%s199 + $0xe4] sm:$0xf] %vm919, %v918
      %s978 = smul.u32 58, %s15
      %p979 = scmp.lt.s32.totalorder %s978, 405
      %s980 = scalar_select %p979, %s978, 405
      %s981 = smul.addr %s980, 4
      %s982 = scalar_lea.vmem %s4, %s981
      // Predicated region
      $region37: #{dqn_lstm_forward.5} parent=35 // pred_check
        %p983 = pneg %p122
      $region38: #{dqn_lstm_forward.5} parent=35 // pred_check_branch
        %985 = sbr.rel (%p983) target = $region40
      $region39: #{dqn_lstm_forward.5} parent=35 // pred_region
        %s986 = smul.u32 58, %s15
      $region40: #{dqn_lstm_forward.5} parent=35 // pred_fallthru
        _
    $region36: #{dqn_lstm_forward.5} parent=5 // pred_fallthru
      _
    %p987 = scmp.le.s32.totalorder 2, %s10
    // Predicated region
    $region41: #{dqn_lstm_forward.5} parent=5 // pred_check
      %p988 = pneg %p987
    $region42: #{dqn_lstm_forward.5} parent=5 // pred_check_branch
      %990 = sbr.rel (%p988) target = $region44
    $region43: #{dqn_lstm_forward.5} parent=5 // pred_region
      %s991 = ssub.s32 %s10, 2
      // Predicated region
      $region45: #{dqn_lstm_forward.5} parent=43 // pred_check
        %p992 = pneg %p128
      $region46: #{dqn_lstm_forward.5} parent=43 // pred_check_branch
        %994 = sbr.rel (%p992) target = $region48
      $region47: #{dqn_lstm_forward.5} parent=43 // pred_region
        %s995 = smul.u32 58, %s16
        %p996 = scmp.lt.s32.totalorder %s995, 405
        %s997 = scalar_select %p996, %s995, 405
        %s998 = smul.addr %s997, 4
        %s999 = scalar_lea.vmem %s4, %s998
      $region48: #{dqn_lstm_forward.5} parent=43 // pred_fallthru
        _
    $region44: #{dqn_lstm_forward.5} parent=5 // pred_fallthru
      _
  $region6: #{dqn_lstm_forward.5} parent=0 // loop_footer
    %s14 = sadd.s32 1, %s10
  $region7: #{dqn_lstm_forward.5} parent=0 // loop_footer_branch
    %9 = sbr.rel target = $region3
  $region8: #{dqn_lstm_forward.5} parent=0 // loop_exit
    _

// kernel: dqn_lstm_forward.6
$region0: #{dqn_lstm_forward.6}
  #allocation0 [shape = 'u32[]', space=smem, size = 0x4, offset = 0x4, fixed_abs, tag = 'smem constant byte address 0x4 - core index']
  #allocation1 [shape = 'u32[72,128]{1,0:T(1,128)}', space=vmem, size = 0x9000, scoped, tag = 'internal scratch']
  %s0 = inlined_call_operand.vmem [shape: bf16[656,512], index: 0, kind: input, shape index: {}]
  %s1 = inlined_call_operand.vmem [shape: bf16[512,64], index: 1, kind: input, shape index: {}]
  %s2 = inlined_call_operand.vmem [shape: f32[1,64], index: 2, kind: input, shape index: {}]
  %s3 = inlined_call_operand.vmem [shape: f32[1,64], index: 3, kind: input, shape index: {}]
  %s4 = inlined_call_operand.vmem [shape: bf16[656,64], index: 4, kind: output, shape index: {}]
  %s5 = sld [smem:[#allocation0]]
  $region49: #{dqn_lstm_forward.6} parent=0
    _
  %s7 = ssub.s32 1, %s5
  %s8 = scalar_select 0, %s7, %s5
  loop: start=0, step=1, limit=4
  $region2: #{dqn_lstm_forward.6} parent=0 // loop_pre_header
    _
  $region3: #{dqn_lstm_forward.6} parent=0 // loop_header
    %s10 = sphi 0, %s14
    %p11 = scmp.ge.s32.totalorder %s10, 4
    %s20 = sphi 0, %s22
    %s23 = sphi 0, %s20
    %s24 = sphi 0, %s23
    %s40 = sphi 0, %s24
    %s44 = sphi 0, %s44
    %s46 = sphi 0, %s44
    %s47 = sphi 0, %s46
    %s61 = sphi 0, %s47
    %s65 = sphi 0, %s65
    %s67 = sphi 0, %s65
    %s68 = sphi 0, %s67
    %s82 = sphi 0, %s68
    %s86 = sphi 0, %s86
    %s88 = sphi 0, %s86
    %s89 = sphi 0, %s88
    %s103 = sphi 0, %s89
    %s109 = sphi 0, %s111
    %s112 = sphi 0, %s109
    %s113 = sphi 0, %s112
    %s129 = sphi 0, %s113
  $region4: #{dqn_lstm_forward.6} parent=0 // loop_header_branch
    %13 = sbr.rel (%p11) target = $region8
  $region5: #{dqn_lstm_forward.6} parent=0 // loop_body
    %s15 = ssub.s32 %s10, 1
    %s16 = ssub.s32 %s10, 2
    %s17 = sadd.s32 %s10, 1
    %s18 = ssub.s32 %s10, %s17
    %p19 = scmp.eq.s32.totalorder %s18, 0
    %s21 = sadd.s32 %s20, 1
    %s22 = scalar_select %p19, %s20, %s21
    %p25 = pneg %p19
    %p26 = scmp.eq.s32.totalorder %s10, 1
    %p27 = por %p25, %p26
    %p28 = scmp.ne.s32.totalorder %s20, %s23
    %p29 = scmp.eq.s32.totalorder %s10, 0
    %p30 = por %p28, %p29
    %p31 = scmp.ne.s32.totalorder %s20, %s23
    %p32 = scmp.eq.s32.totalorder %s15, 1
    %p33 = por %p31, %p32
    %p34 = scmp.ne.s32.totalorder %s23, %s24
    %p35 = scmp.eq.s32.totalorder %s15, 0
    %p36 = por %p34, %p35
    %p37 = scmp.ne.s32.totalorder %s23, %s24
    %p38 = scmp.eq.s32.totalorder %s16, 1
    %p39 = por %p37, %p38
    %p41 = scmp.ne.s32.totalorder %s24, %s40
    %p42 = scmp.eq.s32.totalorder %s16, 0
    %p43 = por %p41, %p42
    %s45 = sadd.s32 %s44, 1
    %p48 = scmp.eq.s32.totalorder %s10, 1
    %p49 = scmp.ne.s32.totalorder %s44, %s46
    %p50 = scmp.eq.s32.totalorder %s10, 0
    %p51 = por %p49, %p50
    %p52 = scmp.ne.s32.totalorder %s44, %s46
    %p53 = scmp.eq.s32.totalorder %s15, 1
    %p54 = por %p52, %p53
    %p55 = scmp.ne.s32.totalorder %s46, %s47
    %p56 = scmp.eq.s32.totalorder %s15, 0
    %p57 = por %p55, %p56
    %p58 = scmp.ne.s32.totalorder %s46, %s47
    %p59 = scmp.eq.s32.totalorder %s16, 1
    %p60 = por %p58, %p59
    %p62 = scmp.ne.s32.totalorder %s47, %s61
    %p63 = scmp.eq.s32.totalorder %s16, 0
    %p64 = por %p62, %p63
    %s66 = sadd.s32 %s65, 1
    %p69 = scmp.eq.s32.totalorder %s10, 1
    %p70 = scmp.ne.s32.totalorder %s65, %s67
    %p71 = scmp.eq.s32.totalorder %s10, 0
    %p72 = por %p70, %p71
    %p73 = scmp.ne.s32.totalorder %s65, %s67
    %p74 = scmp.eq.s32.totalorder %s15, 1
    %p75 = por %p73, %p74
    %p76 = scmp.ne.s32.totalorder %s67, %s68
    %p77 = scmp.eq.s32.totalorder %s15, 0
    %p78 = por %p76, %p77
    %p79 = scmp.ne.s32.totalorder %s67, %s68
    %p80 = scmp.eq.s32.totalorder %s16, 1
    %p81 = por %p79, %p80
    %p83 = scmp.ne.s32.totalorder %s68, %s82
    %p84 = scmp.eq.s32.totalorder %s16, 0
    %p85 = por %p83, %p84
    %s87 = sadd.s32 %s86, 1
    %p90 = scmp.eq.s32.totalorder %s10, 1
    %p91 = scmp.ne.s32.totalorder %s86, %s88
    %p92 = scmp.eq.s32.totalorder %s10, 0
    %p93 = por %p91, %p92
    %p94 = scmp.ne.s32.totalorder %s86, %s88
    %p95 = scmp.eq.s32.totalorder %s15, 1
    %p96 = por %p94, %p95
    %p97 = scmp.ne.s32.totalorder %s88, %s89
    %p98 = scmp.eq.s32.totalorder %s15, 0
    %p99 = por %p97, %p98
    %p100 = scmp.ne.s32.totalorder %s88, %s89
    %p101 = scmp.eq.s32.totalorder %s16, 1
    %p102 = por %p100, %p101
    %p104 = scmp.ne.s32.totalorder %s89, %s103
    %p105 = scmp.eq.s32.totalorder %s16, 0
    %p106 = por %p104, %p105
    %s107 = ssub.s32 %s10, %s17
    %p108 = scmp.eq.s32.totalorder %s107, 0
    %s110 = sadd.s32 %s109, 1
    %s111 = scalar_select %p108, %s109, %s110
    %p114 = pneg %p108
    %p115 = scmp.eq.s32.totalorder %s10, 1
    %p116 = por %p114, %p115
    %p117 = scmp.ne.s32.totalorder %s109, %s112
    %p118 = scmp.eq.s32.totalorder %s10, 0
    %p119 = por %p117, %p118
    %p120 = scmp.ne.s32.totalorder %s109, %s112
    %p121 = scmp.eq.s32.totalorder %s15, 1
    %p122 = por %p120, %p121
    %p123 = scmp.ne.s32.totalorder %s112, %s113
    %p124 = scmp.eq.s32.totalorder %s15, 0
    %p125 = por %p123, %p124
    %p126 = scmp.ne.s32.totalorder %s112, %s113
    %p127 = scmp.eq.s32.totalorder %s16, 1
    %p128 = por %p126, %p127
    %p130 = scmp.ne.s32.totalorder %s113, %s129
    %p131 = scmp.eq.s32.totalorder %s16, 0
    %p132 = por %p130, %p131
    %p133 = scmp.le.s32.totalorder 1, %s10
    %p134 = scmp.lt.s32.totalorder %s10, 3
    %p135 = pnand %p133, %p134
    %p136 = pneg %p135
    // Predicated region
    $region9: #{dqn_lstm_forward.6} parent=5 // pred_check
      _
    $region10: #{dqn_lstm_forward.6} parent=5 // pred_check_branch
      %138 = sbr.rel (%p135) target = $region12
    $region11: #{dqn_lstm_forward.6} parent=5 // pred_region
      %s139 = ssub.s32 %s10, 1
      // Predicated region
      $region13: #{dqn_lstm_forward.6} parent=11 // pred_check
        %p140 = pneg %p57
      $region14: #{dqn_lstm_forward.6} parent=11 // pred_check_branch
        %142 = sbr.rel (%p140) target = $region16
      $region15: #{dqn_lstm_forward.6} parent=11 // pred_region
        _
      $region16: #{dqn_lstm_forward.6} parent=11 // pred_fallthru
        _
      // Predicated region
      $region17: #{dqn_lstm_forward.6} parent=11 // pred_check
        %p143 = pneg %p78
      $region18: #{dqn_lstm_forward.6} parent=11 // pred_check_branch
        %145 = sbr.rel (%p143) target = $region20
      $region19: #{dqn_lstm_forward.6} parent=11 // pred_region
        _
      $region20: #{dqn_lstm_forward.6} parent=11 // pred_fallthru
        _
      // Predicated region
      $region21: #{dqn_lstm_forward.6} parent=11 // pred_check
        %p146 = pneg %p99
      $region22: #{dqn_lstm_forward.6} parent=11 // pred_check_branch
        %148 = sbr.rel (%p146) target = $region24
      $region23: #{dqn_lstm_forward.6} parent=11 // pred_region
        _
      $region24: #{dqn_lstm_forward.6} parent=11 // pred_fallthru
        _
    $region12: #{dqn_lstm_forward.6} parent=5 // pred_fallthru
      _
    %p149 = scmp.lt.s32.totalorder %s10, 2
    // Predicated region
    $region25: #{dqn_lstm_forward.6} parent=5 // pred_check
      %p150 = pneg %p149
    $region26: #{dqn_lstm_forward.6} parent=5 // pred_check_branch
      %152 = sbr.rel (%p150) target = $region28
    $region27: #{dqn_lstm_forward.6} parent=5 // pred_region
      // Predicated region
      $region29: #{dqn_lstm_forward.6} parent=27 // pred_check
        %p153 = pneg %p30
      $region30: #{dqn_lstm_forward.6} parent=27 // pred_check_branch
        %155 = sbr.rel (%p153) target = $region32
      $region31: #{dqn_lstm_forward.6} parent=27 // pred_region
        %s156 = smul.u32 41, %s10
        %p157 = scmp.lt.s32.totalorder %s156, 81
        %s158 = scalar_select %p157, %s156, 81
        %s159 = smul.addr %s158, 4
        %s160 = smul.addr %s159, 4
        %s161 = scalar_lea.vmem %s0, %s160
        %s162 = smul.u32 41, %s10
      $region32: #{dqn_lstm_forward.6} parent=27 // pred_fallthru
        _
    $region28: #{dqn_lstm_forward.6} parent=5 // pred_fallthru
      _
    %p163 = scmp.le.s32.totalorder 1, %s10
    %p164 = scmp.lt.s32.totalorder %s10, 3
    %p165 = pnand %p163, %p164
    %p166 = pneg %p165
    // Predicated region
    $region33: #{dqn_lstm_forward.6} parent=5 // pred_check
      _
    $region34: #{dqn_lstm_forward.6} parent=5 // pred_check_branch
      %168 = sbr.rel (%p165) target = $region36
    $region35: #{dqn_lstm_forward.6} parent=5 // pred_region
      %s169 = ssub.s32 %s10, 1
      %s170 = smul.u32 41, %s15
      %p171 = scmp.lt.s32.totalorder %s170, 81
      %s172 = scalar_select %p171, %s170, 81
      %s173 = smul.addr %s172, 4
      %s174 = smul.addr %s173, 4
      %s175 = scalar_lea.vmem %s0, %s174
      %p176 = pneg %p36
      %p177 = pneg %p33
      %p178 = pneg %p57
      %p179 = pneg %p54
      %p180 = pneg %p78
      %p181 = pneg %p75
      %p182 = pneg %p99
      %p183 = pneg %p96
      %p184 = pneg %p125
      %p185 = pneg %p122
      %s186 = smul.u32 41, %s15
      %p187 = scmp.lt.s32.totalorder %s186, 81
      %s188 = scalar_select %p187, %s186, 81
      %s189 = smul.addr %s188, 4
      %s190 = scalar_lea.vmem %s4, %s189
      %s191 = smul.u32 41, %s15
      %p192 = scmp.lt.s32.totalorder %s191, 81
      %s193 = scalar_select %p192, %s191, 81
      %s194 = smul.addr %s193, 4
      %s195 = smul.addr %s194, 4
      %s196 = scalar_lea.vmem %s0, %s195
      %s197 = smul.u32 41, %s15
      %s198 = smul.u32 41, %s15
      %p199 = scmp.lt.s32.totalorder %s198, 81
      %s200 = scalar_select %p199, %s198, 81
      %s201 = smul.addr %s200, 4
      %s202 = scalar_lea.vmem %s4, %s201
      %s203 = smul.u32 41, %s15
      %v204 = vld [vmem:[%s196] sm:$0xff]
      %v205 = vld [vmem:[%s196 + $0x8] sm:$0xff]
      %v206 = vld [vmem:[%s196 + $0x10] sm:$0xff]
      %v207 = vld [vmem:[%s196 + $0x18] sm:$0xff]
      %v208 = vld [vmem:[%s196 + $0x20] sm:$0xff]
      %v209 = vld [vmem:[%s196 + $0x28] sm:$0xff]
      %v210 = vld [vmem:[%s196 + $0x30] sm:$0xff]
      %v211 = vld [vmem:[%s196 + $0x38] sm:$0xff]
      %v212 = vld [vmem:[%s196 + $0x40] sm:$0xff]
      %v213 = vld [vmem:[%s196 + $0x48] sm:$0xff]
      %v214 = vld [vmem:[%s196 + $0x50] sm:$0xff]
      %v215 = vld [vmem:[%s196 + $0x58] sm:$0xff]
      %v216 = vld [vmem:[%s196 + $0x60] sm:$0xff]
      %v217 = vld [vmem:[%s196 + $0x68] sm:$0xff]
      %v218 = vld [vmem:[%s196 + $0x70] sm:$0xff]
      %v219 = vld [vmem:[%s196 + $0x78] sm:$0xff]
      %v220 = vld [vmem:[%s196 + $0x80] sm:$0xff]
      %v221 = vld [vmem:[%s196 + $0x88] sm:$0xff]
      %v222 = vld [vmem:[%s196 + $0x90] sm:$0xff]
      %v223 = vld [vmem:[%s196 + $0x98] sm:$0xff]
      %v224 = vld [vmem:[%s196 + $0xa0] sm:$0xff]
      %v225 = vld [vmem:[%s196 + $0xa8] sm:$0xff]
      %v226 = vld [vmem:[%s196 + $0xb0] sm:$0xff]
      %v227 = vld [vmem:[%s196 + $0xb8] sm:$0xff]
      %v228 = vld [vmem:[%s196 + $0xc0] sm:$0xff]
      %v229 = vld [vmem:[%s196 + $0xc8] sm:$0xff]
      %v230 = vld [vmem:[%s196 + $0xd0] sm:$0xff]
      %v231 = vld [vmem:[%s196 + $0xd8] sm:$0xff]
      %v232 = vld [vmem:[%s196 + $0xe0] sm:$0xff]
      %v233 = vld [vmem:[%s196 + $0xe8] sm:$0xff]
      %v234 = vld [vmem:[%s196 + $0xf0] sm:$0xff]
      %v235 = vld [vmem:[%s196 + $0xf8] sm:$0xff]
      %v236 = vld [vmem:[%s196 + $0x100] sm:$0xff]
      %v237 = vld [vmem:[%s196 + $0x108] sm:$0xff]
      %v238 = vld [vmem:[%s196 + $0x110] sm:$0xff]
      %v239 = vld [vmem:[%s196 + $0x118] sm:$0xff]
      %v240 = vld [vmem:[%s196 + $0x120] sm:$0xff]
      %v241 = vld [vmem:[%s196 + $0x128] sm:$0xff]
      %v242 = vld [vmem:[%s196 + $0x130] sm:$0xff]
      %v243 = vld [vmem:[%s196 + $0x138] sm:$0xff]
      %v244 = vld [vmem:[%s196 + $0x140] sm:$0xff]
      %v245 = vld [vmem:[%s196 + $0x148] sm:$0xff]
      %v246 = vld [vmem:[%s196 + $0x150] sm:$0xff]
      %v247 = vld [vmem:[%s196 + $0x158] sm:$0xff]
      %v248 = vld [vmem:[%s196 + $0x160] sm:$0xff]
      %v249 = vld [vmem:[%s196 + $0x168] sm:$0xff]
      %v250 = vld [vmem:[%s196 + $0x170] sm:$0xff]
      %v251 = vld [vmem:[%s196 + $0x178] sm:$0xff]
      %v252 = vld [vmem:[%s196 + $0x180] sm:$0xff]
      %v253 = vld [vmem:[%s196 + $0x188] sm:$0xff]
      %v254 = vld [vmem:[%s196 + $0x190] sm:$0xff]
      %v255 = vld [vmem:[%s196 + $0x198] sm:$0xff]
      %v256 = vld [vmem:[%s196 + $0x1a0] sm:$0xff]
      %v257 = vld [vmem:[%s196 + $0x1a8] sm:$0xff]
      %v258 = vld [vmem:[%s196 + $0x1b0] sm:$0xff]
      %v259 = vld [vmem:[%s196 + $0x1b8] sm:$0xff]
      %v260 = vld [vmem:[%s196 + $0x1c0] sm:$0xff]
      %v261 = vld [vmem:[%s196 + $0x1c8] sm:$0xff]
      %v262 = vld [vmem:[%s196 + $0x1d0] sm:$0xff]
      %v263 = vld [vmem:[%s196 + $0x1d8] sm:$0xff]
      %v264 = vld [vmem:[%s196 + $0x1e0] sm:$0xff]
      %v265 = vld [vmem:[%s196 + $0x1e8] sm:$0xff]
      %v266 = vld [vmem:[%s196 + $0x1f0] sm:$0xff]
      %v267 = vld [vmem:[%s196 + $0x1f8] sm:$0xff]
      %v268 = vld [vmem:[%s196 + $0x200] sm:$0xff]
      %v269 = vld [vmem:[%s196 + $0x208] sm:$0xff]
      %v270 = vld [vmem:[%s196 + $0x210] sm:$0xff]
      %v271 = vld [vmem:[%s196 + $0x218] sm:$0xff]
      %v272 = vld [vmem:[%s196 + $0x220] sm:$0xff]
      %v273 = vld [vmem:[%s196 + $0x228] sm:$0xff]
      %v274 = vld [vmem:[%s196 + $0x230] sm:$0xff]
      %v275 = vld [vmem:[%s196 + $0x238] sm:$0xff]
      %v276 = vld [vmem:[%s196 + $0x240] sm:$0xff]
      %v277 = vld [vmem:[%s196 + $0x248] sm:$0xff]
      %v278 = vld [vmem:[%s196 + $0x250] sm:$0xff]
      %v279 = vld [vmem:[%s196 + $0x258] sm:$0xff]
      %v280 = vld [vmem:[%s196 + $0x260] sm:$0xff]
      %v281 = vld [vmem:[%s196 + $0x268] sm:$0xff]
      %v282 = vld [vmem:[%s196 + $0x270] sm:$0xff]
      %v283 = vld [vmem:[%s196 + $0x278] sm:$0xff]
      %v284 = vld [vmem:[%s196 + $0x280] sm:$0xff]
      %v285 = vld [vmem:[%s196 + $0x288] sm:$0xff]
      %v286 = vld [vmem:[%s1] sm:$0xf]
      %v287 = vld [vmem:[%s1 + $0x4] sm:$0xf]
      %v288 = vld [vmem:[%s1 + $0x8] sm:$0xf]
      %v289 = vld [vmem:[%s1 + $0xc] sm:$0xf]
      %v290 = vld [vmem:[%s1 + $0x10] sm:$0xf]
      %v291 = vld [vmem:[%s1 + $0x14] sm:$0xf]
      %v292 = vld [vmem:[%s1 + $0x18] sm:$0xf]
      %v293 = vld [vmem:[%s1 + $0x1c] sm:$0xf]
      %v294 = vld [vmem:[%s1 + $0x20] sm:$0xf]
      %v295 = vld [vmem:[%s1 + $0x24] sm:$0xf]
      %v296 = vld [vmem:[%s1 + $0x28] sm:$0xf]
      %v297 = vld [vmem:[%s1 + $0x2c] sm:$0xf]
      %v298 = vld [vmem:[%s1 + $0x30] sm:$0xf]
      %v299 = vld [vmem:[%s1 + $0x34] sm:$0xf]
      %v300 = vld [vmem:[%s1 + $0x38] sm:$0xf]
      %v301 = vld [vmem:[%s1 + $0x3c] sm:$0xf]
      %v302 = vld [vmem:[%s1 + $0x40] sm:$0xf]
      %v303 = vld [vmem:[%s1 + $0x44] sm:$0xf]
      %v304 = vld [vmem:[%s1 + $0x48] sm:$0xf]
      %v305 = vld [vmem:[%s1 + $0x4c] sm:$0xf]
      %v306 = vld [vmem:[%s1 + $0x50] sm:$0xf]
      %v307 = vld [vmem:[%s1 + $0x54] sm:$0xf]
      %v308 = vld [vmem:[%s1 + $0x58] sm:$0xf]
      %v309 = vld [vmem:[%s1 + $0x5c] sm:$0xf]
      %v310 = vld [vmem:[%s1 + $0x60] sm:$0xf]
      %v311 = vld [vmem:[%s1 + $0x64] sm:$0xf]
      %v312 = vld [vmem:[%s1 + $0x68] sm:$0xf]
      %v313 = vld [vmem:[%s1 + $0x6c] sm:$0xf]
      %v314 = vld [vmem:[%s1 + $0x70] sm:$0xf]
      %v315 = vld [vmem:[%s1 + $0x74] sm:$0xf]
      %v316 = vld [vmem:[%s1 + $0x78] sm:$0xf]
      %v317 = vld [vmem:[%s1 + $0x7c] sm:$0xf]
      %v318 = vld [vmem:[%s1 + $0x80] sm:$0xf]
      %v319 = vld [vmem:[%s1 + $0x84] sm:$0xf]
      %v320 = vld [vmem:[%s1 + $0x88] sm:$0xf]
      %v321 = vld [vmem:[%s1 + $0x8c] sm:$0xf]
      %v322 = vld [vmem:[%s1 + $0x90] sm:$0xf]
      %v323 = vld [vmem:[%s1 + $0x94] sm:$0xf]
      %v324 = vld [vmem:[%s1 + $0x98] sm:$0xf]
      %v325 = vld [vmem:[%s1 + $0x9c] sm:$0xf]
      %v326 = vld [vmem:[%s1 + $0xa0] sm:$0xf]
      %v327 = vld [vmem:[%s1 + $0xa4] sm:$0xf]
      %v328 = vld [vmem:[%s1 + $0xa8] sm:$0xf]
      %v329 = vld [vmem:[%s1 + $0xac] sm:$0xf]
      %v330 = vld [vmem:[%s1 + $0xb0] sm:$0xf]
      %v331 = vld [vmem:[%s1 + $0xb4] sm:$0xf]
      %v332 = vld [vmem:[%s1 + $0xb8] sm:$0xf]
      %v333 = vld [vmem:[%s1 + $0xbc] sm:$0xf]
      %v334 = vld [vmem:[%s1 + $0xc0] sm:$0xf]
      %v335 = vld [vmem:[%s1 + $0xc4] sm:$0xf]
      %v336 = vld [vmem:[%s1 + $0xc8] sm:$0xf]
      %v337 = vld [vmem:[%s1 + $0xcc] sm:$0xf]
      %v338 = vld [vmem:[%s1 + $0xd0] sm:$0xf]
      %v339 = vld [vmem:[%s1 + $0xd4] sm:$0xf]
      %v340 = vld [vmem:[%s1 + $0xd8] sm:$0xf]
      %v341 = vld [vmem:[%s1 + $0xdc] sm:$0xf]
      %v342 = vld [vmem:[%s1 + $0xe0] sm:$0xf]
      %v343 = vld [vmem:[%s1 + $0xe4] sm:$0xf]
      %v344 = vld [vmem:[%s1 + $0xe8] sm:$0xf]
      %v345 = vld [vmem:[%s1 + $0xec] sm:$0xf]
      %v346 = vld [vmem:[%s1 + $0xf0] sm:$0xf]
      %v347 = vld [vmem:[%s1 + $0xf4] sm:$0xf]
      %v348 = vld [vmem:[%s1 + $0xf8] sm:$0xf]
      %v349 = vld [vmem:[%s1 + $0xfc] sm:$0xf]
      %v432 = vunpack.c.l.b16 %v204
      %v433 = vunpack.c.h.b16 %v204
      %v434 = vunpack.c.l.b16 %v205
      %v435 = vunpack.c.h.b16 %v205
      %v436 = vunpack.c.l.b16 %v206
      %v437 = vunpack.c.h.b16 %v206
      %v438 = vunpack.c.l.b16 %v207
      %v439 = vunpack.c.h.b16 %v207
      %v440 = vunpack.c.l.b16 %v208
      %v441 = vunpack.c.h.b16 %v208
      %v442 = vunpack.c.l.b16 %v209
      %v443 = vunpack.c.h.b16 %v209
      %v444 = vunpack.c.l.b16 %v210
      %v445 = vunpack.c.h.b16 %v210
      %v446 = vunpack.c.l.b16 %v211
      %v447 = vunpack.c.h.b16 %v211
      %v448 = vunpack.c.l.b16 %v212
      %v449 = vunpack.c.h.b16 %v212
      %v450 = vunpack.c.l.b16 %v213
      %v451 = vunpack.c.h.b16 %v213
      %v452 = vunpack.c.l.b16 %v214
      %v453 = vunpack.c.h.b16 %v214
      %v454 = vunpack.c.l.b16 %v215
      %v455 = vunpack.c.h.b16 %v215
      %v456 = vunpack.c.l.b16 %v216
      %v457 = vunpack.c.h.b16 %v216
      %v458 = vunpack.c.l.b16 %v217
      %v459 = vunpack.c.h.b16 %v217
      %v460 = vunpack.c.l.b16 %v218
      %v461 = vunpack.c.h.b16 %v218
      %v462 = vunpack.c.l.b16 %v219
      %v463 = vunpack.c.h.b16 %v219
      %v464 = vunpack.c.l.b16 %v220
      %v465 = vunpack.c.h.b16 %v220
      %v466 = vunpack.c.l.b16 %v221
      %v467 = vunpack.c.h.b16 %v221
      %v468 = vunpack.c.l.b16 %v222
      %v469 = vunpack.c.h.b16 %v222
      %v470 = vunpack.c.l.b16 %v223
      %v471 = vunpack.c.h.b16 %v223
      %v472 = vunpack.c.l.b16 %v224
      %v473 = vunpack.c.h.b16 %v224
      %v474 = vunpack.c.l.b16 %v225
      %v475 = vunpack.c.h.b16 %v225
      %v476 = vunpack.c.l.b16 %v226
      %v477 = vunpack.c.h.b16 %v226
      %v478 = vunpack.c.l.b16 %v227
      %v479 = vunpack.c.h.b16 %v227
      %v480 = vunpack.c.l.b16 %v228
      %v481 = vunpack.c.h.b16 %v228
      %v482 = vunpack.c.l.b16 %v229
      %v483 = vunpack.c.h.b16 %v229
      %v484 = vunpack.c.l.b16 %v230
      %v485 = vunpack.c.h.b16 %v230
      %v486 = vunpack.c.l.b16 %v231
      %v487 = vunpack.c.h.b16 %v231
      %v488 = vunpack.c.l.b16 %v232
      %v489 = vunpack.c.h.b16 %v232
      %v490 = vunpack.c.l.b16 %v233
      %v491 = vunpack.c.h.b16 %v233
      %v492 = vunpack.c.l.b16 %v234
      %v493 = vunpack.c.h.b16 %v234
      %v494 = vunpack.c.l.b16 %v235
      %v495 = vunpack.c.h.b16 %v235
      %v496 = vunpack.c.l.b16 %v236
      %v497 = vunpack.c.h.b16 %v236
      %v498 = vunpack.c.l.b16 %v237
      %v499 = vunpack.c.h.b16 %v237
      %v500 = vunpack.c.l.b16 %v238
      %v501 = vunpack.c.h.b16 %v238
      %v502 = vunpack.c.l.b16 %v239
      %v503 = vunpack.c.h.b16 %v239
      %v504 = vunpack.c.l.b16 %v240
      %v505 = vunpack.c.h.b16 %v240
      %v506 = vunpack.c.l.b16 %v241
      %v507 = vunpack.c.h.b16 %v241
      %v508 = vunpack.c.l.b16 %v242
      %v509 = vunpack.c.h.b16 %v242
      %v510 = vunpack.c.l.b16 %v243
      %v511 = vunpack.c.h.b16 %v243
      %v512 = vunpack.c.l.b16 %v244
      %v513 = vunpack.c.h.b16 %v244
      %v514 = vunpack.c.l.b16 %v245
      %v515 = vunpack.c.h.b16 %v245
      %v516 = vunpack.c.l.b16 %v246
      %v517 = vunpack.c.h.b16 %v246
      %v518 = vunpack.c.l.b16 %v247
      %v519 = vunpack.c.h.b16 %v247
      %v520 = vunpack.c.l.b16 %v248
      %v521 = vunpack.c.h.b16 %v248
      %v522 = vunpack.c.l.b16 %v249
      %v523 = vunpack.c.h.b16 %v249
      %v524 = vunpack.c.l.b16 %v250
      %v525 = vunpack.c.h.b16 %v250
      %v526 = vunpack.c.l.b16 %v251
      %v527 = vunpack.c.h.b16 %v251
      %v528 = vunpack.c.l.b16 %v252
      %v529 = vunpack.c.h.b16 %v252
      %v530 = vunpack.c.l.b16 %v253
      %v531 = vunpack.c.h.b16 %v253
      %v532 = vunpack.c.l.b16 %v254
      %v533 = vunpack.c.h.b16 %v254
      %v534 = vunpack.c.l.b16 %v255
      %v535 = vunpack.c.h.b16 %v255
      %v536 = vunpack.c.l.b16 %v256
      %v537 = vunpack.c.h.b16 %v256
      %v538 = vunpack.c.l.b16 %v257
      %v539 = vunpack.c.h.b16 %v257
      %v540 = vunpack.c.l.b16 %v258
      %v541 = vunpack.c.h.b16 %v258
      %v542 = vunpack.c.l.b16 %v259
      %v543 = vunpack.c.h.b16 %v259
      %v544 = vunpack.c.l.b16 %v260
      %v545 = vunpack.c.h.b16 %v260
      %v546 = vunpack.c.l.b16 %v261
      %v547 = vunpack.c.h.b16 %v261
      %v548 = vunpack.c.l.b16 %v262
      %v549 = vunpack.c.h.b16 %v262
      %v550 = vunpack.c.l.b16 %v263
      %v551 = vunpack.c.h.b16 %v263
      %v552 = vunpack.c.l.b16 %v264
      %v553 = vunpack.c.h.b16 %v264
      %v554 = vunpack.c.l.b16 %v265
      %v555 = vunpack.c.h.b16 %v265
      %v556 = vunpack.c.l.b16 %v266
      %v557 = vunpack.c.h.b16 %v266
      %v558 = vunpack.c.l.b16 %v267
      %v559 = vunpack.c.h.b16 %v267
      %v560 = vunpack.c.l.b16 %v268
      %v561 = vunpack.c.h.b16 %v268
      %v562 = vunpack.c.l.b16 %v269
      %v563 = vunpack.c.h.b16 %v269
      %v564 = vunpack.c.l.b16 %v270
      %v565 = vunpack.c.h.b16 %v270
      %v566 = vunpack.c.l.b16 %v271
      %v567 = vunpack.c.h.b16 %v271
      %v568 = vunpack.c.l.b16 %v272
      %v569 = vunpack.c.h.b16 %v272
      %v570 = vunpack.c.l.b16 %v273
      %v571 = vunpack.c.h.b16 %v273
      %v572 = vunpack.c.l.b16 %v274
      %v573 = vunpack.c.h.b16 %v274
      %v574 = vunpack.c.l.b16 %v275
      %v575 = vunpack.c.h.b16 %v275
      %v576 = vunpack.c.l.b16 %v276
      %v577 = vunpack.c.h.b16 %v276
      %v578 = vunpack.c.l.b16 %v277
      %v579 = vunpack.c.h.b16 %v277
      %v580 = vunpack.c.l.b16 %v278
      %v581 = vunpack.c.h.b16 %v278
      %v582 = vunpack.c.l.b16 %v279
      %v583 = vunpack.c.h.b16 %v279
      %v584 = vunpack.c.l.b16 %v280
      %v585 = vunpack.c.h.b16 %v280
      %v586 = vunpack.c.l.b16 %v281
      %v587 = vunpack.c.h.b16 %v281
      %v588 = vunpack.c.l.b16 %v282
      %v589 = vunpack.c.h.b16 %v282
      %v590 = vunpack.c.l.b16 %v283
      %v591 = vunpack.c.h.b16 %v283
      %v592 = vunpack.c.l.b16 %v284
      %v593 = vunpack.c.h.b16 %v284
      %v594 = vunpack.c.l.b16 %v285
      %v595 = vunpack.c.h.b16 %v285
      %v596 = vpack.c.b16 %v436, %v432
      %v597 = vpack.c.b16 %v437, %v433
      %v598 = vpack.c.b16 %v438, %v434
      %v599 = vpack.c.b16 %v439, %v435
      %v600 = vpack.c.b16 %v444, %v440
      %v601 = vpack.c.b16 %v445, %v441
      %v602 = vpack.c.b16 %v446, %v442
      %v603 = vpack.c.b16 %v447, %v443
      %v604 = vpack.c.b16 %v452, %v448
      %v605 = vpack.c.b16 %v453, %v449
      %v606 = vpack.c.b16 %v454, %v450
      %v607 = vpack.c.b16 %v455, %v451
      %v608 = vpack.c.b16 %v460, %v456
      %v609 = vpack.c.b16 %v461, %v457
      %v610 = vpack.c.b16 %v462, %v458
      %v611 = vpack.c.b16 %v463, %v459
      %v612 = vpack.c.b16 %v468, %v464
      %v613 = vpack.c.b16 %v469, %v465
      %v614 = vpack.c.b16 %v470, %v466
      %v615 = vpack.c.b16 %v471, %v467
      %v616 = vpack.c.b16 %v476, %v472
      %v617 = vpack.c.b16 %v477, %v473
      %v618 = vpack.c.b16 %v478, %v474
      %v619 = vpack.c.b16 %v479, %v475
      %v620 = vpack.c.b16 %v484, %v480
      %v621 = vpack.c.b16 %v485, %v481
      %v622 = vpack.c.b16 %v486, %v482
      %v623 = vpack.c.b16 %v487, %v483
      %v624 = vpack.c.b16 %v492, %v488
      %v625 = vpack.c.b16 %v493, %v489
      %v626 = vpack.c.b16 %v494, %v490
      %v627 = vpack.c.b16 %v495, %v491
      %v628 = vpack.c.b16 %v500, %v496
      %v629 = vpack.c.b16 %v501, %v497
      %v630 = vpack.c.b16 %v502, %v498
      %v631 = vpack.c.b16 %v503, %v499
      %v632 = vpack.c.b16 %v508, %v504
      %v633 = vpack.c.b16 %v509, %v505
      %v634 = vpack.c.b16 %v510, %v506
      %v635 = vpack.c.b16 %v511, %v507
      %v636 = vpack.c.b16 %v516, %v512
      %v637 = vpack.c.b16 %v517, %v513
      %v638 = vpack.c.b16 %v518, %v514
      %v639 = vpack.c.b16 %v519, %v515
      %v640 = vpack.c.b16 %v524, %v520
      %v641 = vpack.c.b16 %v525, %v521
      %v642 = vpack.c.b16 %v526, %v522
      %v643 = vpack.c.b16 %v527, %v523
      %v644 = vpack.c.b16 %v532, %v528
      %v645 = vpack.c.b16 %v533, %v529
      %v646 = vpack.c.b16 %v534, %v530
      %v647 = vpack.c.b16 %v535, %v531
      %v648 = vpack.c.b16 %v540, %v536
      %v649 = vpack.c.b16 %v541, %v537
      %v650 = vpack.c.b16 %v542, %v538
      %v651 = vpack.c.b16 %v543, %v539
      %v652 = vpack.c.b16 %v548, %v544
      %v653 = vpack.c.b16 %v549, %v545
      %v654 = vpack.c.b16 %v550, %v546
      %v655 = vpack.c.b16 %v551, %v547
      %v656 = vpack.c.b16 %v556, %v552
      %v657 = vpack.c.b16 %v557, %v553
      %v658 = vpack.c.b16 %v558, %v554
      %v659 = vpack.c.b16 %v559, %v555
      %v660 = vpack.c.b16 %v564, %v560
      %v661 = vpack.c.b16 %v565, %v561
      %v662 = vpack.c.b16 %v566, %v562
      %v663 = vpack.c.b16 %v567, %v563
      %v664 = vpack.c.b16 %v572, %v568
      %v665 = vpack.c.b16 %v573, %v569
      %v666 = vpack.c.b16 %v574, %v570
      %v667 = vpack.c.b16 %v575, %v571
      %v668 = vpack.c.b16 %v580, %v576
      %v669 = vpack.c.b16 %v581, %v577
      %v670 = vpack.c.b16 %v582, %v578
      %v671 = vpack.c.b16 %v583, %v579
      %v672 = vpack.c.b16 %v588, %v584
      %v673 = vpack.c.b16 %v589, %v585
      %v674 = vpack.c.b16 %v590, %v586
      %v675 = vpack.c.b16 %v591, %v587
      %v676 = vpack.c.b16 %v592, %v592
      %v677 = vpack.c.b16 %v593, %v593
      %v678 = vpack.c.b16 %v594, %v594
      %v679 = vpack.c.b16 %v595, %v595
      %v828 = vunpack.c.l.b16 %v286
      %v829 = vunpack.c.l.b16 %v287
      %v830 = vunpack.c.l.b16 %v288
      %v831 = vunpack.c.l.b16 %v289
      %v832 = vunpack.c.l.b16 %v290
      %v833 = vunpack.c.l.b16 %v291
      %v834 = vunpack.c.l.b16 %v292
      %v835 = vunpack.c.l.b16 %v293
      %v836 = vunpack.c.l.b16 %v294
      %v837 = vunpack.c.l.b16 %v295
      %v838 = vunpack.c.l.b16 %v296
      %v839 = vunpack.c.l.b16 %v297
      %v840 = vunpack.c.l.b16 %v298
      %v841 = vunpack.c.l.b16 %v299
      %v842 = vunpack.c.l.b16 %v300
      %v843 = vunpack.c.l.b16 %v301
      %v844 = vunpack.c.l.b16 %v302
      %v845 = vunpack.c.l.b16 %v303
      %v846 = vunpack.c.l.b16 %v304
      %v847 = vunpack.c.l.b16 %v305
      %v848 = vunpack.c.l.b16 %v306
      %v849 = vunpack.c.l.b16 %v307
      %v850 = vunpack.c.l.b16 %v308
      %v851 = vunpack.c.l.b16 %v309
      %v852 = vunpack.c.l.b16 %v310
      %v853 = vunpack.c.l.b16 %v311
      %v854 = vunpack.c.l.b16 %v312
      %v855 = vunpack.c.l.b16 %v313
      %v856 = vunpack.c.l.b16 %v314
      %v857 = vunpack.c.l.b16 %v315
      %v858 = vunpack.c.l.b16 %v316
      %v859 = vunpack.c.l.b16 %v317
      %v860 = vunpack.c.l.b16 %v318
      %v861 = vunpack.c.l.b16 %v319
      %v862 = vunpack.c.l.b16 %v320
      %v863 = vunpack.c.l.b16 %v321
      %v864 = vunpack.c.l.b16 %v322
      %v865 = vunpack.c.l.b16 %v323
      %v866 = vunpack.c.l.b16 %v324
      %v867 = vunpack.c.l.b16 %v325
      %v868 = vunpack.c.l.b16 %v326
      %v869 = vunpack.c.l.b16 %v327
      %v870 = vunpack.c.l.b16 %v328
      %v871 = vunpack.c.l.b16 %v329
      %v872 = vunpack.c.l.b16 %v330
      %v873 = vunpack.c.l.b16 %v331
      %v874 = vunpack.c.l.b16 %v332
      %v875 = vunpack.c.l.b16 %v333
      %v876 = vunpack.c.l.b16 %v334
      %v877 = vunpack.c.l.b16 %v335
      %v878 = vunpack.c.l.b16 %v336
      %v879 = vunpack.c.l.b16 %v337
      %v880 = vunpack.c.l.b16 %v338
      %v881 = vunpack.c.l.b16 %v339
      %v882 = vunpack.c.l.b16 %v340
      %v883 = vunpack.c.l.b16 %v341
      %v884 = vunpack.c.l.b16 %v342
      %v885 = vunpack.c.l.b16 %v343
      %v886 = vunpack.c.l.b16 %v344
      %v887 = vunpack.c.l.b16 %v345
      %v888 = vunpack.c.l.b16 %v346
      %v889 = vunpack.c.l.b16 %v347
      %v890 = vunpack.c.l.b16 %v348
      %v891 = vunpack.c.l.b16 %v349
      %v892 = vpack.c.b16 %v829, %v828
      %v893 = vpack.c.b16 %v831, %v830
      %v894 = vpack.c.b16 %v833, %v832
      %v895 = vpack.c.b16 %v835, %v834
      %v896 = vpack.c.b16 %v837, %v836
      %v897 = vpack.c.b16 %v839, %v838
      %v898 = vpack.c.b16 %v841, %v840
      %v899 = vpack.c.b16 %v843, %v842
      %v900 = vpack.c.b16 %v845, %v844
      %v901 = vpack.c.b16 %v847, %v846
      %v902 = vpack.c.b16 %v849, %v848
      %v903 = vpack.c.b16 %v851, %v850
      %v904 = vpack.c.b16 %v853, %v852
      %v905 = vpack.c.b16 %v855, %v854
      %v906 = vpack.c.b16 %v857, %v856
      %v907 = vpack.c.b16 %v859, %v858
      %v908 = vpack.c.b16 %v861, %v860
      %v909 = vpack.c.b16 %v863, %v862
      %v910 = vpack.c.b16 %v865, %v864
      %v911 = vpack.c.b16 %v867, %v866
      %v912 = vpack.c.b16 %v869, %v868
      %v913 = vpack.c.b16 %v871, %v870
      %v914 = vpack.c.b16 %v873, %v872
      %v915 = vpack.c.b16 %v875, %v874
      %v916 = vpack.c.b16 %v877, %v876
      %v917 = vpack.c.b16 %v879, %v878
      %v918 = vpack.c.b16 %v881, %v880
      %v919 = vpack.c.b16 %v883, %v882
      %v920 = vpack.c.b16 %v885, %v884
      %v921 = vpack.c.b16 %v887, %v886
      %v922 = vpack.c.b16 %v889, %v888
      %v923 = vpack.c.b16 %v891, %v890
      %956 = vmatpush.bf16.msra.mxu0 %v899
      %957 = vmatpush.bf16.msra.mxu0 %v898
      %958 = vmatpush.bf16.msra.mxu0 %v897
      %959 = vmatpush.bf16.msra.mxu0 %v896
      %960 = vmatpush.bf16.msra.mxu0 %v895
      %961 = vmatpush.bf16.msra.mxu0 %v894
      %962 = vmatpush.bf16.msra.mxu0 %v893
      %963 = vmatpush.bf16.msra.mxu0 %v892
      %964 = vmatmul.bf16.gmra.mxu0 %v596
      %v965 = vpop.f32.mrf.mxu0
      %v966 = vadd.f32 0.0, %v965
      %v967 = vpop.f32.mrf.mxu0
      %v968 = vadd.f32 0.0, %v967
      %969 = vmatmul.bf16.gmra.mxu0 %v600
      %v970 = vpop.f32.mrf.mxu0
      %v971 = vadd.f32 0.0, %v970
      %v972 = vpop.f32.mrf.mxu0
      %v973 = vadd.f32 0.0, %v972
      %974 = vmatmul.bf16.gmra.mxu0 %v604
      %v975 = vpop.f32.mrf.mxu0
      %v976 = vadd.f32 0.0, %v975
      %v977 = vpop.f32.mrf.mxu0
      %v978 = vadd.f32 0.0, %v977
      %979 = vmatmul.bf16.gmra.mxu0 %v608
      %v980 = vpop.f32.mrf.mxu0
      %v981 = vadd.f32 0.0, %v980
      %v982 = vpop.f32.mrf.mxu0
      %v983 = vadd.f32 0.0, %v982
      %984 = vmatmul.bf16.gmra.mxu0 %v612
      %v985 = vpop.f32.mrf.mxu0
      %v986 = vadd.f32 0.0, %v985
      %v987 = vpop.f32.mrf.mxu0
      %v988 = vadd.f32 0.0, %v987
      %989 = vmatmul.bf16.gmra.mxu0 %v616
      %v990 = vpop.f32.mrf.mxu0
      %v991 = vadd.f32 0.0, %v990
      %v992 = vpop.f32.mrf.mxu0
      %v993 = vadd.f32 0.0, %v992
      %994 = vmatmul.bf16.gmra.mxu0 %v620
      %v995 = vpop.f32.mrf.mxu0
      %v996 = vadd.f32 0.0, %v995
      %v997 = vpop.f32.mrf.mxu0
      %v998 = vadd.f32 0.0, %v997
      %999 = vmatmul.bf16.gmra.mxu0 %v624
      %v1000 = vpop.f32.mrf.mxu0
      %v1001 = vadd.f32 0.0, %v1000
      %v1002 = vpop.f32.mrf.mxu0
      %v1003 = vadd.f32 0.0, %v1002
      %1004 = vmatmul.bf16.gmra.mxu0 %v628
      %v1005 = vpop.f32.mrf.mxu0
      %v1006 = vadd.f32 0.0, %v1005
      %v1007 = vpop.f32.mrf.mxu0
      %v1008 = vadd.f32 0.0, %v1007
      %1009 = vmatmul.bf16.gmra.mxu0 %v632
      %v1010 = vpop.f32.mrf.mxu0
      %v1011 = vadd.f32 0.0, %v1010
      %v1012 = vpop.f32.mrf.mxu0
      %v1013 = vadd.f32 0.0, %v1012
      %1014 = vmatmul.bf16.gmra.mxu0 %v636
      %v1015 = vpop.f32.mrf.mxu0
      %v1016 = vadd.f32 0.0, %v1015
      %v1017 = vpop.f32.mrf.mxu0
      %v1018 = vadd.f32 0.0, %v1017
      %1019 = vmatmul.bf16.gmra.mxu0 %v640
      %v1020 = vpop.f32.mrf.mxu0
      %v1021 = vadd.f32 0.0, %v1020
      %v1022 = vpop.f32.mrf.mxu0
      %v1023 = vadd.f32 0.0, %v1022
      %1024 = vmatmul.bf16.gmra.mxu0 %v644
      %v1025 = vpop.f32.mrf.mxu0
      %v1026 = vadd.f32 0.0, %v1025
      %v1027 = vpop.f32.mrf.mxu0
      %v1028 = vadd.f32 0.0, %v1027
      %1029 = vmatmul.bf16.gmra.mxu0 %v648
      %v1030 = vpop.f32.mrf.mxu0
      %v1031 = vadd.f32 0.0, %v1030
      %v1032 = vpop.f32.mrf.mxu0
      %v1033 = vadd.f32 0.0, %v1032
      %1034 = vmatmul.bf16.gmra.mxu0 %v652
      %v1035 = vpop.f32.mrf.mxu0
      %v1036 = vadd.f32 0.0, %v1035
      %v1037 = vpop.f32.mrf.mxu0
      %v1038 = vadd.f32 0.0, %v1037
      %1039 = vmatmul.bf16.gmra.mxu0 %v656
      %v1040 = vpop.f32.mrf.mxu0
      %v1041 = vadd.f32 0.0, %v1040
      %v1042 = vpop.f32.mrf.mxu0
      %v1043 = vadd.f32 0.0, %v1042
      %1044 = vmatmul.bf16.gmra.mxu0 %v660
      %v1045 = vpop.f32.mrf.mxu0
      %v1046 = vadd.f32 0.0, %v1045
      %v1047 = vpop.f32.mrf.mxu0
      %v1048 = vadd.f32 0.0, %v1047
      %1049 = vmatmul.bf16.gmra.mxu0 %v664
      %v1050 = vpop.f32.mrf.mxu0
      %v1051 = vadd.f32 0.0, %v1050
      %v1052 = vpop.f32.mrf.mxu0
      %v1053 = vadd.f32 0.0, %v1052
      %1054 = vmatmul.bf16.gmra.mxu0 %v668
      %v1055 = vpop.f32.mrf.mxu0
      %v1056 = vadd.f32 0.0, %v1055
      %v1057 = vpop.f32.mrf.mxu0
      %v1058 = vadd.f32 0.0, %v1057
      %1059 = vmatmul.bf16.gmra.mxu0 %v672
      %v1060 = vpop.f32.mrf.mxu0
      %v1061 = vadd.f32 0.0, %v1060
      %v1062 = vpop.f32.mrf.mxu0
      %v1063 = vadd.f32 0.0, %v1062
      %1064 = vmatmul.bf16.gmra.mxu0 %v676
      %v1065 = vpop.f32.mrf.mxu0
      %v1066 = vadd.f32 0.0, %v1065
      %v1067 = vpop.f32.mrf.mxu0
      %1068 = vdwg.mxu0
      %1069 = vmatpush.bf16.msra.mxu0 %v907
      %1070 = vmatpush.bf16.msra.mxu0 %v906
      %1071 = vmatpush.bf16.msra.mxu0 %v905
      %1072 = vmatpush.bf16.msra.mxu0 %v904
      %1073 = vmatpush.bf16.msra.mxu0 %v903
      %1074 = vmatpush.bf16.msra.mxu0 %v902
      %1075 = vmatpush.bf16.msra.mxu0 %v901
      %1076 = vmatpush.bf16.msra.mxu0 %v900
      %1077 = vmatmul.bf16.gmra.mxu0 %v597
      %v1078 = vpop.f32.mrf.mxu0
      %v1079 = vadd.f32 %v966, %v1078
      %v1080 = vpop.f32.mrf.mxu0
      %v1081 = vadd.f32 %v968, %v1080
      %1082 = vmatmul.bf16.gmra.mxu0 %v601
      %v1083 = vpop.f32.mrf.mxu0
      %v1084 = vadd.f32 %v971, %v1083
      %v1085 = vpop.f32.mrf.mxu0
      %v1086 = vadd.f32 %v973, %v1085
      %1087 = vmatmul.bf16.gmra.mxu0 %v605
      %v1088 = vpop.f32.mrf.mxu0
      %v1089 = vadd.f32 %v976, %v1088
      %v1090 = vpop.f32.mrf.mxu0
      %v1091 = vadd.f32 %v978, %v1090
      %1092 = vmatmul.bf16.gmra.mxu0 %v609
      %v1093 = vpop.f32.mrf.mxu0
      %v1094 = vadd.f32 %v981, %v1093
      %v1095 = vpop.f32.mrf.mxu0
      %v1096 = vadd.f32 %v983, %v1095
      %1097 = vmatmul.bf16.gmra.mxu0 %v613
      %v1098 = vpop.f32.mrf.mxu0
      %v1099 = vadd.f32 %v986, %v1098
      %v1100 = vpop.f32.mrf.mxu0
      %v1101 = vadd.f32 %v988, %v1100
      %1102 = vmatmul.bf16.gmra.mxu0 %v617
      %v1103 = vpop.f32.mrf.mxu0
      %v1104 = vadd.f32 %v991, %v1103
      %v1105 = vpop.f32.mrf.mxu0
      %v1106 = vadd.f32 %v993, %v1105
      %1107 = vmatmul.bf16.gmra.mxu0 %v621
      %v1108 = vpop.f32.mrf.mxu0
      %v1109 = vadd.f32 %v996, %v1108
      %v1110 = vpop.f32.mrf.mxu0
      %v1111 = vadd.f32 %v998, %v1110
      %1112 = vmatmul.bf16.gmra.mxu0 %v625
      %v1113 = vpop.f32.mrf.mxu0
      %v1114 = vadd.f32 %v1001, %v1113
      %v1115 = vpop.f32.mrf.mxu0
      %v1116 = vadd.f32 %v1003, %v1115
      %1117 = vmatmul.bf16.gmra.mxu0 %v629
      %v1118 = vpop.f32.mrf.mxu0
      %v1119 = vadd.f32 %v1006, %v1118
      %v1120 = vpop.f32.mrf.mxu0
      %v1121 = vadd.f32 %v1008, %v1120
      %1122 = vmatmul.bf16.gmra.mxu0 %v633
      %v1123 = vpop.f32.mrf.mxu0
      %v1124 = vadd.f32 %v1011, %v1123
      %v1125 = vpop.f32.mrf.mxu0
      %v1126 = vadd.f32 %v1013, %v1125
      %1127 = vmatmul.bf16.gmra.mxu0 %v637
      %v1128 = vpop.f32.mrf.mxu0
      %v1129 = vadd.f32 %v1016, %v1128
      %v1130 = vpop.f32.mrf.mxu0
      %v1131 = vadd.f32 %v1018, %v1130
      %1132 = vmatmul.bf16.gmra.mxu0 %v641
      %v1133 = vpop.f32.mrf.mxu0
      %v1134 = vadd.f32 %v1021, %v1133
      %v1135 = vpop.f32.mrf.mxu0
      %v1136 = vadd.f32 %v1023, %v1135
      %1137 = vmatmul.bf16.gmra.mxu0 %v645
      %v1138 = vpop.f32.mrf.mxu0
      %v1139 = vadd.f32 %v1026, %v1138
      %v1140 = vpop.f32.mrf.mxu0
      %v1141 = vadd.f32 %v1028, %v1140
      %1142 = vmatmul.bf16.gmra.mxu0 %v649
      %v1143 = vpop.f32.mrf.mxu0
      %v1144 = vadd.f32 %v1031, %v1143
      %v1145 = vpop.f32.mrf.mxu0
      %v1146 = vadd.f32 %v1033, %v1145
      %1147 = vmatmul.bf16.gmra.mxu0 %v653
      %v1148 = vpop.f32.mrf.mxu0
      %v1149 = vadd.f32 %v1036, %v1148
      %v1150 = vpop.f32.mrf.mxu0
      %v1151 = vadd.f32 %v1038, %v1150
      %1152 = vmatmul.bf16.gmra.mxu0 %v657
      %v1153 = vpop.f32.mrf.mxu0
      %v1154 = vadd.f32 %v1041, %v1153
      %v1155 = vpop.f32.mrf.mxu0
      %v1156 = vadd.f32 %v1043, %v1155
      %1157 = vmatmul.bf16.gmra.mxu0 %v661
      %v1158 = vpop.f32.mrf.mxu0
      %v1159 = vadd.f32 %v1046, %v1158
      %v1160 = vpop.f32.mrf.mxu0
      %v1161 = vadd.f32 %v1048, %v1160
      %1162 = vmatmul.bf16.gmra.mxu0 %v665
      %v1163 = vpop.f32.mrf.mxu0
      %v1164 = vadd.f32 %v1051, %v1163
      %v1165 = vpop.f32.mrf.mxu0
      %v1166 = vadd.f32 %v1053, %v1165
      %1167 = vmatmul.bf16.gmra.mxu0 %v669
      %v1168 = vpop.f32.mrf.mxu0
      %v1169 = vadd.f32 %v1056, %v1168
      %v1170 = vpop.f32.mrf.mxu0
      %v1171 = vadd.f32 %v1058, %v1170
      %1172 = vmatmul.bf16.gmra.mxu0 %v673
      %v1173 = vpop.f32.mrf.mxu0
      %v1174 = vadd.f32 %v1061, %v1173
      %v1175 = vpop.f32.mrf.mxu0
      %v1176 = vadd.f32 %v1063, %v1175
      %1177 = vmatmul.bf16.gmra.mxu0 %v677
      %v1178 = vpop.f32.mrf.mxu0
      %v1179 = vadd.f32 %v1066, %v1178
      %v1180 = vpop.f32.mrf.mxu0
      %1181 = vdwg.mxu0
      %1182 = vmatpush.bf16.msra.mxu0 %v915
      %1183 = vmatpush.bf16.msra.mxu0 %v914
      %1184 = vmatpush.bf16.msra.mxu0 %v913
      %1185 = vmatpush.bf16.msra.mxu0 %v912
      %1186 = vmatpush.bf16.msra.mxu0 %v911
      %1187 = vmatpush.bf16.msra.mxu0 %v910
      %1188 = vmatpush.bf16.msra.mxu0 %v909
      %1189 = vmatpush.bf16.msra.mxu0 %v908
      %1190 = vmatmul.bf16.gmra.mxu0 %v598
      %v1191 = vpop.f32.mrf.mxu0
      %v1192 = vadd.f32 %v1079, %v1191
      %v1193 = vpop.f32.mrf.mxu0
      %v1194 = vadd.f32 %v1081, %v1193
      %1195 = vmatmul.bf16.gmra.mxu0 %v602
      %v1196 = vpop.f32.mrf.mxu0
      %v1197 = vadd.f32 %v1084, %v1196
      %v1198 = vpop.f32.mrf.mxu0
      %v1199 = vadd.f32 %v1086, %v1198
      %1200 = vmatmul.bf16.gmra.mxu0 %v606
      %v1201 = vpop.f32.mrf.mxu0
      %v1202 = vadd.f32 %v1089, %v1201
      %v1203 = vpop.f32.mrf.mxu0
      %v1204 = vadd.f32 %v1091, %v1203
      %1205 = vmatmul.bf16.gmra.mxu0 %v610
      %v1206 = vpop.f32.mrf.mxu0
      %v1207 = vadd.f32 %v1094, %v1206
      %v1208 = vpop.f32.mrf.mxu0
      %v1209 = vadd.f32 %v1096, %v1208
      %1210 = vmatmul.bf16.gmra.mxu0 %v614
      %v1211 = vpop.f32.mrf.mxu0
      %v1212 = vadd.f32 %v1099, %v1211
      %v1213 = vpop.f32.mrf.mxu0
      %v1214 = vadd.f32 %v1101, %v1213
      %1215 = vmatmul.bf16.gmra.mxu0 %v618
      %v1216 = vpop.f32.mrf.mxu0
      %v1217 = vadd.f32 %v1104, %v1216
      %v1218 = vpop.f32.mrf.mxu0
      %v1219 = vadd.f32 %v1106, %v1218
      %1220 = vmatmul.bf16.gmra.mxu0 %v622
      %v1221 = vpop.f32.mrf.mxu0
      %v1222 = vadd.f32 %v1109, %v1221
      %v1223 = vpop.f32.mrf.mxu0
      %v1224 = vadd.f32 %v1111, %v1223
      %1225 = vmatmul.bf16.gmra.mxu0 %v626
      %v1226 = vpop.f32.mrf.mxu0
      %v1227 = vadd.f32 %v1114, %v1226
      %v1228 = vpop.f32.mrf.mxu0
      %v1229 = vadd.f32 %v1116, %v1228
      %1230 = vmatmul.bf16.gmra.mxu0 %v630
      %v1231 = vpop.f32.mrf.mxu0
      %v1232 = vadd.f32 %v1119, %v1231
      %v1233 = vpop.f32.mrf.mxu0
      %v1234 = vadd.f32 %v1121, %v1233
      %1235 = vmatmul.bf16.gmra.mxu0 %v634
      %v1236 = vpop.f32.mrf.mxu0
      %v1237 = vadd.f32 %v1124, %v1236
      %v1238 = vpop.f32.mrf.mxu0
      %v1239 = vadd.f32 %v1126, %v1238
      %1240 = vmatmul.bf16.gmra.mxu0 %v638
      %v1241 = vpop.f32.mrf.mxu0
      %v1242 = vadd.f32 %v1129, %v1241
      %v1243 = vpop.f32.mrf.mxu0
      %v1244 = vadd.f32 %v1131, %v1243
      %1245 = vmatmul.bf16.gmra.mxu0 %v642
      %v1246 = vpop.f32.mrf.mxu0
      %v1247 = vadd.f32 %v1134, %v1246
      %v1248 = vpop.f32.mrf.mxu0
      %v1249 = vadd.f32 %v1136, %v1248
      %1250 = vmatmul.bf16.gmra.mxu0 %v646
      %v1251 = vpop.f32.mrf.mxu0
      %v1252 = vadd.f32 %v1139, %v1251
      %v1253 = vpop.f32.mrf.mxu0
      %v1254 = vadd.f32 %v1141, %v1253
      %1255 = vmatmul.bf16.gmra.mxu0 %v650
      %v1256 = vpop.f32.mrf.mxu0
      %v1257 = vadd.f32 %v1144, %v1256
      %v1258 = vpop.f32.mrf.mxu0
      %v1259 = vadd.f32 %v1146, %v1258
      %1260 = vmatmul.bf16.gmra.mxu0 %v654
      %v1261 = vpop.f32.mrf.mxu0
      %v1262 = vadd.f32 %v1149, %v1261
      %v1263 = vpop.f32.mrf.mxu0
      %v1264 = vadd.f32 %v1151, %v1263
      %1265 = vmatmul.bf16.gmra.mxu0 %v658
      %v1266 = vpop.f32.mrf.mxu0
      %v1267 = vadd.f32 %v1154, %v1266
      %v1268 = vpop.f32.mrf.mxu0
      %v1269 = vadd.f32 %v1156, %v1268
      %1270 = vmatmul.bf16.gmra.mxu0 %v662
      %v1271 = vpop.f32.mrf.mxu0
      %v1272 = vadd.f32 %v1159, %v1271
      %v1273 = vpop.f32.mrf.mxu0
      %v1274 = vadd.f32 %v1161, %v1273
      %1275 = vmatmul.bf16.gmra.mxu0 %v666
      %v1276 = vpop.f32.mrf.mxu0
      %v1277 = vadd.f32 %v1164, %v1276
      %v1278 = vpop.f32.mrf.mxu0
      %v1279 = vadd.f32 %v1166, %v1278
      %1280 = vmatmul.bf16.gmra.mxu0 %v670
      %v1281 = vpop.f32.mrf.mxu0
      %v1282 = vadd.f32 %v1169, %v1281
      %v1283 = vpop.f32.mrf.mxu0
      %v1284 = vadd.f32 %v1171, %v1283
      %1285 = vmatmul.bf16.gmra.mxu0 %v674
      %v1286 = vpop.f32.mrf.mxu0
      %v1287 = vadd.f32 %v1174, %v1286
      %v1288 = vpop.f32.mrf.mxu0
      %v1289 = vadd.f32 %v1176, %v1288
      %1290 = vmatmul.bf16.gmra.mxu0 %v678
      %v1291 = vpop.f32.mrf.mxu0
      %v1292 = vadd.f32 %v1179, %v1291
      %v1293 = vpop.f32.mrf.mxu0
      %1294 = vdwg.mxu0
      %1295 = vmatpush.bf16.msra.mxu0 %v923
      %1296 = vmatpush.bf16.msra.mxu0 %v922
      %1297 = vmatpush.bf16.msra.mxu0 %v921
      %1298 = vmatpush.bf16.msra.mxu0 %v920
      %1299 = vmatpush.bf16.msra.mxu0 %v919
      %1300 = vmatpush.bf16.msra.mxu0 %v918
      %1301 = vmatpush.bf16.msra.mxu0 %v917
      %1302 = vmatpush.bf16.msra.mxu0 %v916
      %1303 = vmatmul.bf16.gmra.mxu0 %v599
      %v1304 = vpop.f32.mrf.mxu0
      %v1305 = vadd.f32 %v1192, %v1304
      %v1306 = vpop.f32.mrf.mxu0
      %v1307 = vadd.f32 %v1194, %v1306
      %1308 = vmatmul.bf16.gmra.mxu0 %v603
      %v1309 = vpop.f32.mrf.mxu0
      %v1310 = vadd.f32 %v1197, %v1309
      %v1311 = vpop.f32.mrf.mxu0
      %v1312 = vadd.f32 %v1199, %v1311
      %1313 = vmatmul.bf16.gmra.mxu0 %v607
      %v1314 = vpop.f32.mrf.mxu0
      %v1315 = vadd.f32 %v1202, %v1314
      %v1316 = vpop.f32.mrf.mxu0
      %v1317 = vadd.f32 %v1204, %v1316
      %1318 = vmatmul.bf16.gmra.mxu0 %v611
      %v1319 = vpop.f32.mrf.mxu0
      %v1320 = vadd.f32 %v1207, %v1319
      %v1321 = vpop.f32.mrf.mxu0
      %v1322 = vadd.f32 %v1209, %v1321
      %1323 = vmatmul.bf16.gmra.mxu0 %v615
      %v1324 = vpop.f32.mrf.mxu0
      %v1325 = vadd.f32 %v1212, %v1324
      %v1326 = vpop.f32.mrf.mxu0
      %v1327 = vadd.f32 %v1214, %v1326
      %1328 = vmatmul.bf16.gmra.mxu0 %v619
      %v1329 = vpop.f32.mrf.mxu0
      %v1330 = vadd.f32 %v1217, %v1329
      %v1331 = vpop.f32.mrf.mxu0
      %v1332 = vadd.f32 %v1219, %v1331
      %1333 = vmatmul.bf16.gmra.mxu0 %v623
      %v1334 = vpop.f32.mrf.mxu0
      %v1335 = vadd.f32 %v1222, %v1334
      %v1336 = vpop.f32.mrf.mxu0
      %v1337 = vadd.f32 %v1224, %v1336
      %1338 = vmatmul.bf16.gmra.mxu0 %v627
      %v1339 = vpop.f32.mrf.mxu0
      %v1340 = vadd.f32 %v1227, %v1339
      %v1341 = vpop.f32.mrf.mxu0
      %v1342 = vadd.f32 %v1229, %v1341
      %1343 = vmatmul.bf16.gmra.mxu0 %v631
      %v1344 = vpop.f32.mrf.mxu0
      %v1345 = vadd.f32 %v1232, %v1344
      %v1346 = vpop.f32.mrf.mxu0
      %v1347 = vadd.f32 %v1234, %v1346
      %1348 = vmatmul.bf16.gmra.mxu0 %v635
      %v1349 = vpop.f32.mrf.mxu0
      %v1350 = vadd.f32 %v1237, %v1349
      %v1351 = vpop.f32.mrf.mxu0
      %v1352 = vadd.f32 %v1239, %v1351
      %1353 = vmatmul.bf16.gmra.mxu0 %v639
      %v1354 = vpop.f32.mrf.mxu0
      %v1355 = vadd.f32 %v1242, %v1354
      %v1356 = vpop.f32.mrf.mxu0
      %v1357 = vadd.f32 %v1244, %v1356
      %1358 = vmatmul.bf16.gmra.mxu0 %v643
      %v1359 = vpop.f32.mrf.mxu0
      %v1360 = vadd.f32 %v1247, %v1359
      %v1361 = vpop.f32.mrf.mxu0
      %v1362 = vadd.f32 %v1249, %v1361
      %1363 = vmatmul.bf16.gmra.mxu0 %v647
      %v1364 = vpop.f32.mrf.mxu0
      %v1365 = vadd.f32 %v1252, %v1364
      %v1366 = vpop.f32.mrf.mxu0
      %v1367 = vadd.f32 %v1254, %v1366
      %1368 = vmatmul.bf16.gmra.mxu0 %v651
      %v1369 = vpop.f32.mrf.mxu0
      %v1370 = vadd.f32 %v1257, %v1369
      %v1371 = vpop.f32.mrf.mxu0
      %v1372 = vadd.f32 %v1259, %v1371
      %1373 = vmatmul.bf16.gmra.mxu0 %v655
      %v1374 = vpop.f32.mrf.mxu0
      %v1375 = vadd.f32 %v1262, %v1374
      %v1376 = vpop.f32.mrf.mxu0
      %v1377 = vadd.f32 %v1264, %v1376
      %1378 = vmatmul.bf16.gmra.mxu0 %v659
      %v1379 = vpop.f32.mrf.mxu0
      %v1380 = vadd.f32 %v1267, %v1379
      %v1381 = vpop.f32.mrf.mxu0
      %v1382 = vadd.f32 %v1269, %v1381
      %1383 = vmatmul.bf16.gmra.mxu0 %v663
      %v1384 = vpop.f32.mrf.mxu0
      %v1385 = vadd.f32 %v1272, %v1384
      %v1386 = vpop.f32.mrf.mxu0
      %v1387 = vadd.f32 %v1274, %v1386
      %1388 = vmatmul.bf16.gmra.mxu0 %v667
      %v1389 = vpop.f32.mrf.mxu0
      %v1390 = vadd.f32 %v1277, %v1389
      %v1391 = vpop.f32.mrf.mxu0
      %v1392 = vadd.f32 %v1279, %v1391
      %1393 = vmatmul.bf16.gmra.mxu0 %v671
      %v1394 = vpop.f32.mrf.mxu0
      %v1395 = vadd.f32 %v1282, %v1394
      %v1396 = vpop.f32.mrf.mxu0
      %v1397 = vadd.f32 %v1284, %v1396
      %1398 = vmatmul.bf16.gmra.mxu0 %v675
      %v1399 = vpop.f32.mrf.mxu0
      %v1400 = vadd.f32 %v1287, %v1399
      %v1401 = vpop.f32.mrf.mxu0
      %v1402 = vadd.f32 %v1289, %v1401
      %1403 = vmatmul.bf16.gmra.mxu0 %v679
      %v1404 = vpop.f32.mrf.mxu0
      %v1405 = vadd.f32 %v1292, %v1404
      %v1406 = vpop.f32.mrf.mxu0
      %1407 = vdwg.mxu0
      %v1408 = vld [vmem:[%s2] sm:$0x1]
      %v1410 = vperm.slane %v1408, 0
      %v1412 = vmul.f32 %v1305, %v1410
      %v1413 = vmul.f32 %v1307, %v1410
      %v1414 = vmul.f32 %v1310, %v1410
      %v1415 = vmul.f32 %v1312, %v1410
      %v1416 = vmul.f32 %v1315, %v1410
      %v1417 = vmul.f32 %v1317, %v1410
      %v1418 = vmul.f32 %v1320, %v1410
      %v1419 = vmul.f32 %v1322, %v1410
      %v1420 = vmul.f32 %v1325, %v1410
      %v1421 = vmul.f32 %v1327, %v1410
      %v1422 = vmul.f32 %v1330, %v1410
      %v1423 = vmul.f32 %v1332, %v1410
      %v1424 = vmul.f32 %v1335, %v1410
      %v1425 = vmul.f32 %v1337, %v1410
      %v1426 = vmul.f32 %v1340, %v1410
      %v1427 = vmul.f32 %v1342, %v1410
      %v1428 = vmul.f32 %v1345, %v1410
      %v1429 = vmul.f32 %v1347, %v1410
      %v1430 = vmul.f32 %v1350, %v1410
      %v1431 = vmul.f32 %v1352, %v1410
      %v1432 = vmul.f32 %v1355, %v1410
      %v1433 = vmul.f32 %v1357, %v1410
      %v1434 = vmul.f32 %v1360, %v1410
      %v1435 = vmul.f32 %v1362, %v1410
      %v1436 = vmul.f32 %v1365, %v1410
      %v1437 = vmul.f32 %v1367, %v1410
      %v1438 = vmul.f32 %v1370, %v1410
      %v1439 = vmul.f32 %v1372, %v1410
      %v1440 = vmul.f32 %v1375, %v1410
      %v1441 = vmul.f32 %v1377, %v1410
      %v1442 = vmul.f32 %v1380, %v1410
      %v1443 = vmul.f32 %v1382, %v1410
      %v1444 = vmul.f32 %v1385, %v1410
      %v1445 = vmul.f32 %v1387, %v1410
      %v1446 = vmul.f32 %v1390, %v1410
      %v1447 = vmul.f32 %v1392, %v1410
      %v1448 = vmul.f32 %v1395, %v1410
      %v1449 = vmul.f32 %v1397, %v1410
      %v1450 = vmul.f32 %v1400, %v1410
      %v1451 = vmul.f32 %v1402, %v1410
      %v1452 = vmul.f32 %v1405, %v1410
      %v1453 = vld [vmem:[%s3] sm:$0x1]
      %v1455 = vperm.slane %v1453, 0
      %v1457 = vadd.f32 %v1412, %v1455
      %v1458 = vadd.f32 %v1413, %v1455
      %v1459 = vadd.f32 %v1414, %v1455
      %v1460 = vadd.f32 %v1415, %v1455
      %v1461 = vadd.f32 %v1416, %v1455
      %v1462 = vadd.f32 %v1417, %v1455
      %v1463 = vadd.f32 %v1418, %v1455
      %v1464 = vadd.f32 %v1419, %v1455
      %v1465 = vadd.f32 %v1420, %v1455
      %v1466 = vadd.f32 %v1421, %v1455
      %v1467 = vadd.f32 %v1422, %v1455
      %v1468 = vadd.f32 %v1423, %v1455
      %v1469 = vadd.f32 %v1424, %v1455
      %v1470 = vadd.f32 %v1425, %v1455
      %v1471 = vadd.f32 %v1426, %v1455
      %v1472 = vadd.f32 %v1427, %v1455
      %v1473 = vadd.f32 %v1428, %v1455
      %v1474 = vadd.f32 %v1429, %v1455
      %v1475 = vadd.f32 %v1430, %v1455
      %v1476 = vadd.f32 %v1431, %v1455
      %v1477 = vadd.f32 %v1432, %v1455
      %v1478 = vadd.f32 %v1433, %v1455
      %v1479 = vadd.f32 %v1434, %v1455
      %v1480 = vadd.f32 %v1435, %v1455
      %v1481 = vadd.f32 %v1436, %v1455
      %v1482 = vadd.f32 %v1437, %v1455
      %v1483 = vadd.f32 %v1438, %v1455
      %v1484 = vadd.f32 %v1439, %v1455
      %v1485 = vadd.f32 %v1440, %v1455
      %v1486 = vadd.f32 %v1441, %v1455
      %v1487 = vadd.f32 %v1442, %v1455
      %v1488 = vadd.f32 %v1443, %v1455
      %v1489 = vadd.f32 %v1444, %v1455
      %v1490 = vadd.f32 %v1445, %v1455
      %v1491 = vadd.f32 %v1446, %v1455
      %v1492 = vadd.f32 %v1447, %v1455
      %v1493 = vadd.f32 %v1448, %v1455
      %v1494 = vadd.f32 %v1449, %v1455
      %v1495 = vadd.f32 %v1450, %v1455
      %v1496 = vadd.f32 %v1451, %v1455
      %v1497 = vadd.f32 %v1452, %v1455
      %v1498 = vmax.f32 %v1457, 0.0
      %v1499 = vmax.f32 %v1458, 0.0
      %v1500 = vmax.f32 %v1459, 0.0
      %v1501 = vmax.f32 %v1460, 0.0
      %v1502 = vmax.f32 %v1461, 0.0
      %v1503 = vmax.f32 %v1462, 0.0
      %v1504 = vmax.f32 %v1463, 0.0
      %v1505 = vmax.f32 %v1464, 0.0
      %v1506 = vmax.f32 %v1465, 0.0
      %v1507 = vmax.f32 %v1466, 0.0
      %v1508 = vmax.f32 %v1467, 0.0
      %v1509 = vmax.f32 %v1468, 0.0
      %v1510 = vmax.f32 %v1469, 0.0
      %v1511 = vmax.f32 %v1470, 0.0
      %v1512 = vmax.f32 %v1471, 0.0
      %v1513 = vmax.f32 %v1472, 0.0
      %v1514 = vmax.f32 %v1473, 0.0
      %v1515 = vmax.f32 %v1474, 0.0
      %v1516 = vmax.f32 %v1475, 0.0
      %v1517 = vmax.f32 %v1476, 0.0
      %v1518 = vmax.f32 %v1477, 0.0
      %v1519 = vmax.f32 %v1478, 0.0
      %v1520 = vmax.f32 %v1479, 0.0
      %v1521 = vmax.f32 %v1480, 0.0
      %v1522 = vmax.f32 %v1481, 0.0
      %v1523 = vmax.f32 %v1482, 0.0
      %v1524 = vmax.f32 %v1483, 0.0
      %v1525 = vmax.f32 %v1484, 0.0
      %v1526 = vmax.f32 %v1485, 0.0
      %v1527 = vmax.f32 %v1486, 0.0
      %v1528 = vmax.f32 %v1487, 0.0
      %v1529 = vmax.f32 %v1488, 0.0
      %v1530 = vmax.f32 %v1489, 0.0
      %v1531 = vmax.f32 %v1490, 0.0
      %v1532 = vmax.f32 %v1491, 0.0
      %v1533 = vmax.f32 %v1492, 0.0
      %v1534 = vmax.f32 %v1493, 0.0
      %v1535 = vmax.f32 %v1494, 0.0
      %v1536 = vmax.f32 %v1495, 0.0
      %v1537 = vmax.f32 %v1496, 0.0
      %v1538 = vmax.f32 %v1497, 0.0
      %v1539 = vpack.c.bf16 %v1498, %v1498
      %v1540 = vpack.c.bf16 %v1499, %v1499
      %v1541 = vpack.c.bf16 %v1500, %v1500
      %v1542 = vpack.c.bf16 %v1501, %v1501
      %v1543 = vpack.c.bf16 %v1502, %v1502
      %v1544 = vpack.c.bf16 %v1503, %v1503
      %v1545 = vpack.c.bf16 %v1504, %v1504
      %v1546 = vpack.c.bf16 %v1505, %v1505
      %v1547 = vpack.c.bf16 %v1506, %v1506
      %v1548 = vpack.c.bf16 %v1507, %v1507
      %v1549 = vpack.c.bf16 %v1508, %v1508
      %v1550 = vpack.c.bf16 %v1509, %v1509
      %v1551 = vpack.c.bf16 %v1510, %v1510
      %v1552 = vpack.c.bf16 %v1511, %v1511
      %v1553 = vpack.c.bf16 %v1512, %v1512
      %v1554 = vpack.c.bf16 %v1513, %v1513
      %v1555 = vpack.c.bf16 %v1514, %v1514
      %v1556 = vpack.c.bf16 %v1515, %v1515
      %v1557 = vpack.c.bf16 %v1516, %v1516
      %v1558 = vpack.c.bf16 %v1517, %v1517
      %v1559 = vpack.c.bf16 %v1518, %v1518
      %v1560 = vpack.c.bf16 %v1519, %v1519
      %v1561 = vpack.c.bf16 %v1520, %v1520
      %v1562 = vpack.c.bf16 %v1521, %v1521
      %v1563 = vpack.c.bf16 %v1522, %v1522
      %v1564 = vpack.c.bf16 %v1523, %v1523
      %v1565 = vpack.c.bf16 %v1524, %v1524
      %v1566 = vpack.c.bf16 %v1525, %v1525
      %v1567 = vpack.c.bf16 %v1526, %v1526
      %v1568 = vpack.c.bf16 %v1527, %v1527
      %v1569 = vpack.c.bf16 %v1528, %v1528
      %v1570 = vpack.c.bf16 %v1529, %v1529
      %v1571 = vpack.c.bf16 %v1530, %v1530
      %v1572 = vpack.c.bf16 %v1531, %v1531
      %v1573 = vpack.c.bf16 %v1532, %v1532
      %v1574 = vpack.c.bf16 %v1533, %v1533
      %v1575 = vpack.c.bf16 %v1534, %v1534
      %v1576 = vpack.c.bf16 %v1535, %v1535
      %v1577 = vpack.c.bf16 %v1536, %v1536
      %v1578 = vpack.c.bf16 %v1537, %v1537
      %v1579 = vpack.c.bf16 %v1538, %v1538
      %vm1580 = vcmask 519168
      %1581 = vst.msk [vmem:[%s202] sm:$0xf] %vm1580, %v1539
      %1582 = vst.msk [vmem:[%s202 + $0x4] sm:$0xf] %vm1580, %v1540
      %1583 = vst.msk [vmem:[%s202 + $0x8] sm:$0xf] %vm1580, %v1541
      %1584 = vst.msk [vmem:[%s202 + $0xc] sm:$0xf] %vm1580, %v1542
      %1585 = vst.msk [vmem:[%s202 + $0x10] sm:$0xf] %vm1580, %v1543
      %1586 = vst.msk [vmem:[%s202 + $0x14] sm:$0xf] %vm1580, %v1544
      %1587 = vst.msk [vmem:[%s202 + $0x18] sm:$0xf] %vm1580, %v1545
      %1588 = vst.msk [vmem:[%s202 + $0x1c] sm:$0xf] %vm1580, %v1546
      %1589 = vst.msk [vmem:[%s202 + $0x20] sm:$0xf] %vm1580, %v1547
      %1590 = vst.msk [vmem:[%s202 + $0x24] sm:$0xf] %vm1580, %v1548
      %1591 = vst.msk [vmem:[%s202 + $0x28] sm:$0xf] %vm1580, %v1549
      %1592 = vst.msk [vmem:[%s202 + $0x2c] sm:$0xf] %vm1580, %v1550
      %1593 = vst.msk [vmem:[%s202 + $0x30] sm:$0xf] %vm1580, %v1551
      %1594 = vst.msk [vmem:[%s202 + $0x34] sm:$0xf] %vm1580, %v1552
      %1595 = vst.msk [vmem:[%s202 + $0x38] sm:$0xf] %vm1580, %v1553
      %1596 = vst.msk [vmem:[%s202 + $0x3c] sm:$0xf] %vm1580, %v1554
      %1597 = vst.msk [vmem:[%s202 + $0x40] sm:$0xf] %vm1580, %v1555
      %1598 = vst.msk [vmem:[%s202 + $0x44] sm:$0xf] %vm1580, %v1556
      %1599 = vst.msk [vmem:[%s202 + $0x48] sm:$0xf] %vm1580, %v1557
      %1600 = vst.msk [vmem:[%s202 + $0x4c] sm:$0xf] %vm1580, %v1558
      %1601 = vst.msk [vmem:[%s202 + $0x50] sm:$0xf] %vm1580, %v1559
      %1602 = vst.msk [vmem:[%s202 + $0x54] sm:$0xf] %vm1580, %v1560
      %1603 = vst.msk [vmem:[%s202 + $0x58] sm:$0xf] %vm1580, %v1561
      %1604 = vst.msk [vmem:[%s202 + $0x5c] sm:$0xf] %vm1580, %v1562
      %1605 = vst.msk [vmem:[%s202 + $0x60] sm:$0xf] %vm1580, %v1563
      %1606 = vst.msk [vmem:[%s202 + $0x64] sm:$0xf] %vm1580, %v1564
      %1607 = vst.msk [vmem:[%s202 + $0x68] sm:$0xf] %vm1580, %v1565
      %1608 = vst.msk [vmem:[%s202 + $0x6c] sm:$0xf] %vm1580, %v1566
      %1609 = vst.msk [vmem:[%s202 + $0x70] sm:$0xf] %vm1580, %v1567
      %1610 = vst.msk [vmem:[%s202 + $0x74] sm:$0xf] %vm1580, %v1568
      %1611 = vst.msk [vmem:[%s202 + $0x78] sm:$0xf] %vm1580, %v1569
      %1612 = vst.msk [vmem:[%s202 + $0x7c] sm:$0xf] %vm1580, %v1570
      %1613 = vst.msk [vmem:[%s202 + $0x80] sm:$0xf] %vm1580, %v1571
      %1614 = vst.msk [vmem:[%s202 + $0x84] sm:$0xf] %vm1580, %v1572
      %1615 = vst.msk [vmem:[%s202 + $0x88] sm:$0xf] %vm1580, %v1573
      %1616 = vst.msk [vmem:[%s202 + $0x8c] sm:$0xf] %vm1580, %v1574
      %1617 = vst.msk [vmem:[%s202 + $0x90] sm:$0xf] %vm1580, %v1575
      %1618 = vst.msk [vmem:[%s202 + $0x94] sm:$0xf] %vm1580, %v1576
      %1619 = vst.msk [vmem:[%s202 + $0x98] sm:$0xf] %vm1580, %v1577
      %1620 = vst.msk [vmem:[%s202 + $0x9c] sm:$0xf] %vm1580, %v1578
      %1621 = vst.msk [vmem:[%s202 + $0xa0] sm:$0xf] %vm1580, %v1579
      %s1622 = smul.u32 41, %s15
      %p1623 = scmp.lt.s32.totalorder %s1622, 81
      %s1624 = scalar_select %p1623, %s1622, 81
      %s1625 = smul.addr %s1624, 4
      %s1626 = scalar_lea.vmem %s4, %s1625
      // Predicated region
      $region37: #{dqn_lstm_forward.6} parent=35 // pred_check
        %p1627 = pneg %p122
      $region38: #{dqn_lstm_forward.6} parent=35 // pred_check_branch
        %1629 = sbr.rel (%p1627) target = $region40
      $region39: #{dqn_lstm_forward.6} parent=35 // pred_region
        %s1630 = smul.u32 41, %s15
      $region40: #{dqn_lstm_forward.6} parent=35 // pred_fallthru
        _
    $region36: #{dqn_lstm_forward.6} parent=5 // pred_fallthru
      _
    %p1631 = scmp.le.s32.totalorder 2, %s10
    // Predicated region
    $region41: #{dqn_lstm_forward.6} parent=5 // pred_check
      %p1632 = pneg %p1631
    $region42: #{dqn_lstm_forward.6} parent=5 // pred_check_branch
      %1634 = sbr.rel (%p1632) target = $region44
    $region43: #{dqn_lstm_forward.6} parent=5 // pred_region
      %s1635 = ssub.s32 %s10, 2
      // Predicated region
      $region45: #{dqn_lstm_forward.6} parent=43 // pred_check
        %p1636 = pneg %p128
      $region46: #{dqn_lstm_forward.6} parent=43 // pred_check_branch
        %1638 = sbr.rel (%p1636) target = $region48
      $region47: #{dqn_lstm_forward.6} parent=43 // pred_region
        %s1639 = smul.u32 41, %s16
        %p1640 = scmp.lt.s32.totalorder %s1639, 81
        %s1641 = scalar_select %p1640, %s1639, 81
        %s1642 = smul.addr %s1641, 4
        %s1643 = scalar_lea.vmem %s4, %s1642
      $region48: #{dqn_lstm_forward.6} parent=43 // pred_fallthru
        _
    $region44: #{dqn_lstm_forward.6} parent=5 // pred_fallthru
      _
  $region6: #{dqn_lstm_forward.6} parent=0 // loop_footer
    %s14 = sadd.s32 1, %s10
  $region7: #{dqn_lstm_forward.6} parent=0 // loop_footer_branch
    %9 = sbr.rel target = $region3
  $region8: #{dqn_lstm_forward.6} parent=0 // loop_exit
    _

// kernel: dqn_lstm_forward.7
$region0: #{dqn_lstm_forward.7}
  #allocation0 [shape = 'u32[]', space=smem, size = 0x4, offset = 0x4, fixed_abs, tag = 'smem constant byte address 0x4 - core index']
  #allocation1 [shape = 'u32[72,128]{1,0:T(1,128)}', space=vmem, size = 0x9000, scoped, tag = 'internal scratch']
  %s0 = inlined_call_operand.vmem [shape: bf16[392,576], index: 0, kind: input, shape index: {}]
  %s1 = inlined_call_operand.vmem [shape: bf16[576,64], index: 1, kind: input, shape index: {}]
  %s2 = inlined_call_operand.vmem [shape: f32[1,64], index: 2, kind: input, shape index: {}]
  %s3 = inlined_call_operand.vmem [shape: f32[1,64], index: 3, kind: input, shape index: {}]
  %s4 = inlined_call_operand.vmem [shape: bf16[392,64], index: 4, kind: output, shape index: {}]
  %s5 = sld [smem:[#allocation0]]
  $region26: #{dqn_lstm_forward.7} parent=0
    _
  %s7 = ssub.s32 1, %s5
  %s8 = scalar_select 0, %s7, %s5
  // Predicated region
  $region2: #{dqn_lstm_forward.7} parent=0 // pred_check
    _
  $region3: #{dqn_lstm_forward.7} parent=0 // pred_check_branch
    %10 = sbr.rel (0) target = $region5
  $region4: #{dqn_lstm_forward.7} parent=0 // pred_region
    _
  $region5: #{dqn_lstm_forward.7} parent=0 // pred_fallthru
    _
  // Predicated region
  $region6: #{dqn_lstm_forward.7} parent=0 // pred_check
    _
  $region7: #{dqn_lstm_forward.7} parent=0 // pred_check_branch
    %12 = sbr.rel (0) target = $region9
  $region8: #{dqn_lstm_forward.7} parent=0 // pred_region
    _
  $region9: #{dqn_lstm_forward.7} parent=0 // pred_fallthru
    _
  // Predicated region
  $region10: #{dqn_lstm_forward.7} parent=0 // pred_check
    _
  $region11: #{dqn_lstm_forward.7} parent=0 // pred_check_branch
    %14 = sbr.rel (0) target = $region13
  $region12: #{dqn_lstm_forward.7} parent=0 // pred_region
    _
  $region13: #{dqn_lstm_forward.7} parent=0 // pred_fallthru
    _
  // Predicated region
  $region14: #{dqn_lstm_forward.7} parent=0 // pred_check
    _
  $region15: #{dqn_lstm_forward.7} parent=0 // pred_check_branch
    %16 = sbr.rel (0) target = $region17
  $region16: #{dqn_lstm_forward.7} parent=0 // pred_region
    _
  $region17: #{dqn_lstm_forward.7} parent=0 // pred_fallthru
    _
  %v18 = vld [vmem:[%s0] sm:$0xff]
  %v19 = vld [vmem:[%s0 + $0x8] sm:$0xff]
  %v20 = vld [vmem:[%s0 + $0x10] sm:$0xf]
  %v21 = vld [vmem:[%s0 + $0x14] sm:$0xff]
  %v22 = vld [vmem:[%s0 + $0x1c] sm:$0xff]
  %v23 = vld [vmem:[%s0 + $0x24] sm:$0xf]
  %v24 = vld [vmem:[%s0 + $0x28] sm:$0xff]
  %v25 = vld [vmem:[%s0 + $0x30] sm:$0xff]
  %v26 = vld [vmem:[%s0 + $0x38] sm:$0xf]
  %v27 = vld [vmem:[%s0 + $0x3c] sm:$0xff]
  %v28 = vld [vmem:[%s0 + $0x44] sm:$0xff]
  %v29 = vld [vmem:[%s0 + $0x4c] sm:$0xf]
  %v30 = vld [vmem:[%s0 + $0x50] sm:$0xff]
  %v31 = vld [vmem:[%s0 + $0x58] sm:$0xff]
  %v32 = vld [vmem:[%s0 + $0x60] sm:$0xf]
  %v33 = vld [vmem:[%s0 + $0x64] sm:$0xff]
  %v34 = vld [vmem:[%s0 + $0x6c] sm:$0xff]
  %v35 = vld [vmem:[%s0 + $0x74] sm:$0xf]
  %v36 = vld [vmem:[%s0 + $0x78] sm:$0xff]
  %v37 = vld [vmem:[%s0 + $0x80] sm:$0xff]
  %v38 = vld [vmem:[%s0 + $0x88] sm:$0xf]
  %v39 = vld [vmem:[%s0 + $0x8c] sm:$0xff]
  %v40 = vld [vmem:[%s0 + $0x94] sm:$0xff]
  %v41 = vld [vmem:[%s0 + $0x9c] sm:$0xf]
  %v42 = vld [vmem:[%s0 + $0xa0] sm:$0xff]
  %v43 = vld [vmem:[%s0 + $0xa8] sm:$0xff]
  %v44 = vld [vmem:[%s0 + $0xb0] sm:$0xf]
  %v45 = vld [vmem:[%s0 + $0xb4] sm:$0xff]
  %v46 = vld [vmem:[%s0 + $0xbc] sm:$0xff]
  %v47 = vld [vmem:[%s0 + $0xc4] sm:$0xf]
  %v48 = vld [vmem:[%s0 + $0xc8] sm:$0xff]
  %v49 = vld [vmem:[%s0 + $0xd0] sm:$0xff]
  %v50 = vld [vmem:[%s0 + $0xd8] sm:$0xf]
  %v51 = vld [vmem:[%s0 + $0xdc] sm:$0xff]
  %v52 = vld [vmem:[%s0 + $0xe4] sm:$0xff]
  %v53 = vld [vmem:[%s0 + $0xec] sm:$0xf]
  %v54 = vld [vmem:[%s0 + $0xf0] sm:$0xff]
  %v55 = vld [vmem:[%s0 + $0xf8] sm:$0xff]
  %v56 = vld [vmem:[%s0 + $0x100] sm:$0xf]
  %v57 = vld [vmem:[%s0 + $0x104] sm:$0xff]
  %v58 = vld [vmem:[%s0 + $0x10c] sm:$0xff]
  %v59 = vld [vmem:[%s0 + $0x114] sm:$0xf]
  %v60 = vld [vmem:[%s0 + $0x118] sm:$0xff]
  %v61 = vld [vmem:[%s0 + $0x120] sm:$0xff]
  %v62 = vld [vmem:[%s0 + $0x128] sm:$0xf]
  %v63 = vld [vmem:[%s0 + $0x12c] sm:$0xff]
  %v64 = vld [vmem:[%s0 + $0x134] sm:$0xff]
  %v65 = vld [vmem:[%s0 + $0x13c] sm:$0xf]
  %v66 = vld [vmem:[%s0 + $0x140] sm:$0xff]
  %v67 = vld [vmem:[%s0 + $0x148] sm:$0xff]
  %v68 = vld [vmem:[%s0 + $0x150] sm:$0xf]
  %v69 = vld [vmem:[%s0 + $0x154] sm:$0xff]
  %v70 = vld [vmem:[%s0 + $0x15c] sm:$0xff]
  %v71 = vld [vmem:[%s0 + $0x164] sm:$0xf]
  %v72 = vld [vmem:[%s0 + $0x168] sm:$0xff]
  %v73 = vld [vmem:[%s0 + $0x170] sm:$0xff]
  %v74 = vld [vmem:[%s0 + $0x178] sm:$0xf]
  %v75 = vld [vmem:[%s0 + $0x17c] sm:$0xff]
  %v76 = vld [vmem:[%s0 + $0x184] sm:$0xff]
  %v77 = vld [vmem:[%s0 + $0x18c] sm:$0xf]
  %v78 = vld [vmem:[%s0 + $0x190] sm:$0xff]
  %v79 = vld [vmem:[%s0 + $0x198] sm:$0xff]
  %v80 = vld [vmem:[%s0 + $0x1a0] sm:$0xf]
  %v81 = vld [vmem:[%s0 + $0x1a4] sm:$0xff]
  %v82 = vld [vmem:[%s0 + $0x1ac] sm:$0xff]
  %v83 = vld [vmem:[%s0 + $0x1b4] sm:$0xf]
  %v84 = vld [vmem:[%s0 + $0x1b8] sm:$0xff]
  %v85 = vld [vmem:[%s0 + $0x1c0] sm:$0xff]
  %v86 = vld [vmem:[%s0 + $0x1c8] sm:$0xf]
  %v87 = vld [vmem:[%s0 + $0x1cc] sm:$0xff]
  %v88 = vld [vmem:[%s0 + $0x1d4] sm:$0xff]
  %v89 = vld [vmem:[%s0 + $0x1dc] sm:$0xf]
  %v90 = vld [vmem:[%s0 + $0x1e0] sm:$0xff]
  %v91 = vld [vmem:[%s0 + $0x1e8] sm:$0xff]
  %v92 = vld [vmem:[%s0 + $0x1f0] sm:$0xf]
  %v93 = vld [vmem:[%s0 + $0x1f4] sm:$0xff]
  %v94 = vld [vmem:[%s0 + $0x1fc] sm:$0xff]
  %v95 = vld [vmem:[%s0 + $0x204] sm:$0xf]
  %v96 = vld [vmem:[%s0 + $0x208] sm:$0xff]
  %v97 = vld [vmem:[%s0 + $0x210] sm:$0xff]
  %v98 = vld [vmem:[%s0 + $0x218] sm:$0xf]
  %v99 = vld [vmem:[%s0 + $0x21c] sm:$0xff]
  %v100 = vld [vmem:[%s0 + $0x224] sm:$0xff]
  %v101 = vld [vmem:[%s0 + $0x22c] sm:$0xf]
  %v102 = vld [vmem:[%s0 + $0x230] sm:$0xff]
  %v103 = vld [vmem:[%s0 + $0x238] sm:$0xff]
  %v104 = vld [vmem:[%s0 + $0x240] sm:$0xf]
  %v105 = vld [vmem:[%s0 + $0x244] sm:$0xff]
  %v106 = vld [vmem:[%s0 + $0x24c] sm:$0xff]
  %v107 = vld [vmem:[%s0 + $0x254] sm:$0xf]
  %v108 = vld [vmem:[%s0 + $0x258] sm:$0xff]
  %v109 = vld [vmem:[%s0 + $0x260] sm:$0xff]
  %v110 = vld [vmem:[%s0 + $0x268] sm:$0xf]
  %v111 = vld [vmem:[%s0 + $0x26c] sm:$0xff]
  %v112 = vld [vmem:[%s0 + $0x274] sm:$0xff]
  %v113 = vld [vmem:[%s0 + $0x27c] sm:$0xf]
  %v114 = vld [vmem:[%s0 + $0x280] sm:$0xff]
  %v115 = vld [vmem:[%s0 + $0x288] sm:$0xff]
  %v116 = vld [vmem:[%s0 + $0x290] sm:$0xf]
  %v117 = vld [vmem:[%s0 + $0x294] sm:$0xff]
  %v118 = vld [vmem:[%s0 + $0x29c] sm:$0xff]
  %v119 = vld [vmem:[%s0 + $0x2a4] sm:$0xf]
  %v120 = vld [vmem:[%s0 + $0x2a8] sm:$0xff]
  %v121 = vld [vmem:[%s0 + $0x2b0] sm:$0xff]
  %v122 = vld [vmem:[%s0 + $0x2b8] sm:$0xf]
  %v123 = vld [vmem:[%s0 + $0x2bc] sm:$0xff]
  %v124 = vld [vmem:[%s0 + $0x2c4] sm:$0xff]
  %v125 = vld [vmem:[%s0 + $0x2cc] sm:$0xf]
  %v126 = vld [vmem:[%s0 + $0x2d0] sm:$0xff]
  %v127 = vld [vmem:[%s0 + $0x2d8] sm:$0xff]
  %v128 = vld [vmem:[%s0 + $0x2e0] sm:$0xf]
  %v129 = vld [vmem:[%s0 + $0x2e4] sm:$0xff]
  %v130 = vld [vmem:[%s0 + $0x2ec] sm:$0xff]
  %v131 = vld [vmem:[%s0 + $0x2f4] sm:$0xf]
  %v132 = vld [vmem:[%s0 + $0x2f8] sm:$0xff]
  %v133 = vld [vmem:[%s0 + $0x300] sm:$0xff]
  %v134 = vld [vmem:[%s0 + $0x308] sm:$0xf]
  %v135 = vld [vmem:[%s0 + $0x30c] sm:$0xff]
  %v136 = vld [vmem:[%s0 + $0x314] sm:$0xff]
  %v137 = vld [vmem:[%s0 + $0x31c] sm:$0xf]
  %v138 = vld [vmem:[%s0 + $0x320] sm:$0xff]
  %v139 = vld [vmem:[%s0 + $0x328] sm:$0xff]
  %v140 = vld [vmem:[%s0 + $0x330] sm:$0xf]
  %v141 = vld [vmem:[%s0 + $0x334] sm:$0xff]
  %v142 = vld [vmem:[%s0 + $0x33c] sm:$0xff]
  %v143 = vld [vmem:[%s0 + $0x344] sm:$0xf]
  %v144 = vld [vmem:[%s0 + $0x348] sm:$0xff]
  %v145 = vld [vmem:[%s0 + $0x350] sm:$0xff]
  %v146 = vld [vmem:[%s0 + $0x358] sm:$0xf]
  %v147 = vld [vmem:[%s0 + $0x35c] sm:$0xff]
  %v148 = vld [vmem:[%s0 + $0x364] sm:$0xff]
  %v149 = vld [vmem:[%s0 + $0x36c] sm:$0xf]
  %v150 = vld [vmem:[%s0 + $0x370] sm:$0xff]
  %v151 = vld [vmem:[%s0 + $0x378] sm:$0xff]
  %v152 = vld [vmem:[%s0 + $0x380] sm:$0xf]
  %v153 = vld [vmem:[%s0 + $0x384] sm:$0xff]
  %v154 = vld [vmem:[%s0 + $0x38c] sm:$0xff]
  %v155 = vld [vmem:[%s0 + $0x394] sm:$0xf]
  %v156 = vld [vmem:[%s0 + $0x398] sm:$0xff]
  %v157 = vld [vmem:[%s0 + $0x3a0] sm:$0xff]
  %v158 = vld [vmem:[%s0 + $0x3a8] sm:$0xf]
  %v159 = vld [vmem:[%s0 + $0x3ac] sm:$0xff]
  %v160 = vld [vmem:[%s0 + $0x3b4] sm:$0xff]
  %v161 = vld [vmem:[%s0 + $0x3bc] sm:$0xf]
  %v162 = vld [vmem:[%s0 + $0x3c0] sm:$0xff]
  %v163 = vld [vmem:[%s0 + $0x3c8] sm:$0xff]
  %v164 = vld [vmem:[%s0 + $0x3d0] sm:$0xf]
  %v165 = vld [vmem:[%s1] sm:$0xf]
  %v166 = vld [vmem:[%s1 + $0x4] sm:$0xf]
  %v167 = vld [vmem:[%s1 + $0x8] sm:$0xf]
  %v168 = vld [vmem:[%s1 + $0xc] sm:$0xf]
  %v169 = vld [vmem:[%s1 + $0x10] sm:$0xf]
  %v170 = vld [vmem:[%s1 + $0x14] sm:$0xf]
  %v171 = vld [vmem:[%s1 + $0x18] sm:$0xf]
  %v172 = vld [vmem:[%s1 + $0x1c] sm:$0xf]
  %v173 = vld [vmem:[%s1 + $0x20] sm:$0xf]
  %v174 = vld [vmem:[%s1 + $0x24] sm:$0xf]
  %v175 = vld [vmem:[%s1 + $0x28] sm:$0xf]
  %v176 = vld [vmem:[%s1 + $0x2c] sm:$0xf]
  %v177 = vld [vmem:[%s1 + $0x30] sm:$0xf]
  %v178 = vld [vmem:[%s1 + $0x34] sm:$0xf]
  %v179 = vld [vmem:[%s1 + $0x38] sm:$0xf]
  %v180 = vld [vmem:[%s1 + $0x3c] sm:$0xf]
  %v181 = vld [vmem:[%s1 + $0x40] sm:$0xf]
  %v182 = vld [vmem:[%s1 + $0x44] sm:$0xf]
  %v183 = vld [vmem:[%s1 + $0x48] sm:$0xf]
  %v184 = vld [vmem:[%s1 + $0x4c] sm:$0xf]
  %v185 = vld [vmem:[%s1 + $0x50] sm:$0xf]
  %v186 = vld [vmem:[%s1 + $0x54] sm:$0xf]
  %v187 = vld [vmem:[%s1 + $0x58] sm:$0xf]
  %v188 = vld [vmem:[%s1 + $0x5c] sm:$0xf]
  %v189 = vld [vmem:[%s1 + $0x60] sm:$0xf]
  %v190 = vld [vmem:[%s1 + $0x64] sm:$0xf]
  %v191 = vld [vmem:[%s1 + $0x68] sm:$0xf]
  %v192 = vld [vmem:[%s1 + $0x6c] sm:$0xf]
  %v193 = vld [vmem:[%s1 + $0x70] sm:$0xf]
  %v194 = vld [vmem:[%s1 + $0x74] sm:$0xf]
  %v195 = vld [vmem:[%s1 + $0x78] sm:$0xf]
  %v196 = vld [vmem:[%s1 + $0x7c] sm:$0xf]
  %v197 = vld [vmem:[%s1 + $0x80] sm:$0xf]
  %v198 = vld [vmem:[%s1 + $0x84] sm:$0xf]
  %v199 = vld [vmem:[%s1 + $0x88] sm:$0xf]
  %v200 = vld [vmem:[%s1 + $0x8c] sm:$0xf]
  %v201 = vld [vmem:[%s1 + $0x90] sm:$0xf]
  %v202 = vld [vmem:[%s1 + $0x94] sm:$0xf]
  %v203 = vld [vmem:[%s1 + $0x98] sm:$0xf]
  %v204 = vld [vmem:[%s1 + $0x9c] sm:$0xf]
  %v205 = vld [vmem:[%s1 + $0xa0] sm:$0xf]
  %v206 = vld [vmem:[%s1 + $0xa4] sm:$0xf]
  %v207 = vld [vmem:[%s1 + $0xa8] sm:$0xf]
  %v208 = vld [vmem:[%s1 + $0xac] sm:$0xf]
  %v209 = vld [vmem:[%s1 + $0xb0] sm:$0xf]
  %v210 = vld [vmem:[%s1 + $0xb4] sm:$0xf]
  %v211 = vld [vmem:[%s1 + $0xb8] sm:$0xf]
  %v212 = vld [vmem:[%s1 + $0xbc] sm:$0xf]
  %v213 = vld [vmem:[%s1 + $0xc0] sm:$0xf]
  %v214 = vld [vmem:[%s1 + $0xc4] sm:$0xf]
  %v215 = vld [vmem:[%s1 + $0xc8] sm:$0xf]
  %v216 = vld [vmem:[%s1 + $0xcc] sm:$0xf]
  %v217 = vld [vmem:[%s1 + $0xd0] sm:$0xf]
  %v218 = vld [vmem:[%s1 + $0xd4] sm:$0xf]
  %v219 = vld [vmem:[%s1 + $0xd8] sm:$0xf]
  %v220 = vld [vmem:[%s1 + $0xdc] sm:$0xf]
  %v221 = vld [vmem:[%s1 + $0xe0] sm:$0xf]
  %v222 = vld [vmem:[%s1 + $0xe4] sm:$0xf]
  %v223 = vld [vmem:[%s1 + $0xe8] sm:$0xf]
  %v224 = vld [vmem:[%s1 + $0xec] sm:$0xf]
  %v225 = vld [vmem:[%s1 + $0xf0] sm:$0xf]
  %v226 = vld [vmem:[%s1 + $0xf4] sm:$0xf]
  %v227 = vld [vmem:[%s1 + $0xf8] sm:$0xf]
  %v228 = vld [vmem:[%s1 + $0xfc] sm:$0xf]
  %v229 = vld [vmem:[%s1 + $0x100] sm:$0xf]
  %v230 = vld [vmem:[%s1 + $0x104] sm:$0xf]
  %v231 = vld [vmem:[%s1 + $0x108] sm:$0xf]
  %v232 = vld [vmem:[%s1 + $0x10c] sm:$0xf]
  %v233 = vld [vmem:[%s1 + $0x110] sm:$0xf]
  %v234 = vld [vmem:[%s1 + $0x114] sm:$0xf]
  %v235 = vld [vmem:[%s1 + $0x118] sm:$0xf]
  %v236 = vld [vmem:[%s1 + $0x11c] sm:$0xf]
  %v384 = vunpack.c.l.b16 %v18
  %v385 = vunpack.c.h.b16 %v18
  %v386 = vunpack.c.l.b16 %v19
  %v387 = vunpack.c.h.b16 %v19
  %v388 = vunpack.c.l.b16 %v20
  %v389 = vunpack.c.l.b16 %v21
  %v390 = vunpack.c.h.b16 %v21
  %v391 = vunpack.c.l.b16 %v22
  %v392 = vunpack.c.h.b16 %v22
  %v393 = vunpack.c.l.b16 %v23
  %v394 = vunpack.c.l.b16 %v24
  %v395 = vunpack.c.h.b16 %v24
  %v396 = vunpack.c.l.b16 %v25
  %v397 = vunpack.c.h.b16 %v25
  %v398 = vunpack.c.l.b16 %v26
  %v399 = vunpack.c.l.b16 %v27
  %v400 = vunpack.c.h.b16 %v27
  %v401 = vunpack.c.l.b16 %v28
  %v402 = vunpack.c.h.b16 %v28
  %v403 = vunpack.c.l.b16 %v29
  %v404 = vunpack.c.l.b16 %v30
  %v405 = vunpack.c.h.b16 %v30
  %v406 = vunpack.c.l.b16 %v31
  %v407 = vunpack.c.h.b16 %v31
  %v408 = vunpack.c.l.b16 %v32
  %v409 = vunpack.c.l.b16 %v33
  %v410 = vunpack.c.h.b16 %v33
  %v411 = vunpack.c.l.b16 %v34
  %v412 = vunpack.c.h.b16 %v34
  %v413 = vunpack.c.l.b16 %v35
  %v414 = vunpack.c.l.b16 %v36
  %v415 = vunpack.c.h.b16 %v36
  %v416 = vunpack.c.l.b16 %v37
  %v417 = vunpack.c.h.b16 %v37
  %v418 = vunpack.c.l.b16 %v38
  %v419 = vunpack.c.l.b16 %v39
  %v420 = vunpack.c.h.b16 %v39
  %v421 = vunpack.c.l.b16 %v40
  %v422 = vunpack.c.h.b16 %v40
  %v423 = vunpack.c.l.b16 %v41
  %v424 = vunpack.c.l.b16 %v42
  %v425 = vunpack.c.h.b16 %v42
  %v426 = vunpack.c.l.b16 %v43
  %v427 = vunpack.c.h.b16 %v43
  %v428 = vunpack.c.l.b16 %v44
  %v429 = vunpack.c.l.b16 %v45
  %v430 = vunpack.c.h.b16 %v45
  %v431 = vunpack.c.l.b16 %v46
  %v432 = vunpack.c.h.b16 %v46
  %v433 = vunpack.c.l.b16 %v47
  %v434 = vunpack.c.l.b16 %v48
  %v435 = vunpack.c.h.b16 %v48
  %v436 = vunpack.c.l.b16 %v49
  %v437 = vunpack.c.h.b16 %v49
  %v438 = vunpack.c.l.b16 %v50
  %v439 = vunpack.c.l.b16 %v51
  %v440 = vunpack.c.h.b16 %v51
  %v441 = vunpack.c.l.b16 %v52
  %v442 = vunpack.c.h.b16 %v52
  %v443 = vunpack.c.l.b16 %v53
  %v444 = vunpack.c.l.b16 %v54
  %v445 = vunpack.c.h.b16 %v54
  %v446 = vunpack.c.l.b16 %v55
  %v447 = vunpack.c.h.b16 %v55
  %v448 = vunpack.c.l.b16 %v56
  %v449 = vunpack.c.l.b16 %v57
  %v450 = vunpack.c.h.b16 %v57
  %v451 = vunpack.c.l.b16 %v58
  %v452 = vunpack.c.h.b16 %v58
  %v453 = vunpack.c.l.b16 %v59
  %v454 = vunpack.c.l.b16 %v60
  %v455 = vunpack.c.h.b16 %v60
  %v456 = vunpack.c.l.b16 %v61
  %v457 = vunpack.c.h.b16 %v61
  %v458 = vunpack.c.l.b16 %v62
  %v459 = vunpack.c.l.b16 %v63
  %v460 = vunpack.c.h.b16 %v63
  %v461 = vunpack.c.l.b16 %v64
  %v462 = vunpack.c.h.b16 %v64
  %v463 = vunpack.c.l.b16 %v65
  %v464 = vunpack.c.l.b16 %v66
  %v465 = vunpack.c.h.b16 %v66
  %v466 = vunpack.c.l.b16 %v67
  %v467 = vunpack.c.h.b16 %v67
  %v468 = vunpack.c.l.b16 %v68
  %v469 = vunpack.c.l.b16 %v69
  %v470 = vunpack.c.h.b16 %v69
  %v471 = vunpack.c.l.b16 %v70
  %v472 = vunpack.c.h.b16 %v70
  %v473 = vunpack.c.l.b16 %v71
  %v474 = vunpack.c.l.b16 %v72
  %v475 = vunpack.c.h.b16 %v72
  %v476 = vunpack.c.l.b16 %v73
  %v477 = vunpack.c.h.b16 %v73
  %v478 = vunpack.c.l.b16 %v74
  %v479 = vunpack.c.l.b16 %v75
  %v480 = vunpack.c.h.b16 %v75
  %v481 = vunpack.c.l.b16 %v76
  %v482 = vunpack.c.h.b16 %v76
  %v483 = vunpack.c.l.b16 %v77
  %v484 = vunpack.c.l.b16 %v78
  %v485 = vunpack.c.h.b16 %v78
  %v486 = vunpack.c.l.b16 %v79
  %v487 = vunpack.c.h.b16 %v79
  %v488 = vunpack.c.l.b16 %v80
  %v489 = vunpack.c.l.b16 %v81
  %v490 = vunpack.c.h.b16 %v81
  %v491 = vunpack.c.l.b16 %v82
  %v492 = vunpack.c.h.b16 %v82
  %v493 = vunpack.c.l.b16 %v83
  %v494 = vunpack.c.l.b16 %v84
  %v495 = vunpack.c.h.b16 %v84
  %v496 = vunpack.c.l.b16 %v85
  %v497 = vunpack.c.h.b16 %v85
  %v498 = vunpack.c.l.b16 %v86
  %v499 = vunpack.c.l.b16 %v87
  %v500 = vunpack.c.h.b16 %v87
  %v501 = vunpack.c.l.b16 %v88
  %v502 = vunpack.c.h.b16 %v88
  %v503 = vunpack.c.l.b16 %v89
  %v504 = vunpack.c.l.b16 %v90
  %v505 = vunpack.c.h.b16 %v90
  %v506 = vunpack.c.l.b16 %v91
  %v507 = vunpack.c.h.b16 %v91
  %v508 = vunpack.c.l.b16 %v92
  %v509 = vunpack.c.l.b16 %v93
  %v510 = vunpack.c.h.b16 %v93
  %v511 = vunpack.c.l.b16 %v94
  %v512 = vunpack.c.h.b16 %v94
  %v513 = vunpack.c.l.b16 %v95
  %v514 = vunpack.c.l.b16 %v96
  %v515 = vunpack.c.h.b16 %v96
  %v516 = vunpack.c.l.b16 %v97
  %v517 = vunpack.c.h.b16 %v97
  %v518 = vunpack.c.l.b16 %v98
  %v519 = vunpack.c.l.b16 %v99
  %v520 = vunpack.c.h.b16 %v99
  %v521 = vunpack.c.l.b16 %v100
  %v522 = vunpack.c.h.b16 %v100
  %v523 = vunpack.c.l.b16 %v101
  %v524 = vunpack.c.l.b16 %v102
  %v525 = vunpack.c.h.b16 %v102
  %v526 = vunpack.c.l.b16 %v103
  %v527 = vunpack.c.h.b16 %v103
  %v528 = vunpack.c.l.b16 %v104
  %v529 = vunpack.c.l.b16 %v105
  %v530 = vunpack.c.h.b16 %v105
  %v531 = vunpack.c.l.b16 %v106
  %v532 = vunpack.c.h.b16 %v106
  %v533 = vunpack.c.l.b16 %v107
  %v534 = vunpack.c.l.b16 %v108
  %v535 = vunpack.c.h.b16 %v108
  %v536 = vunpack.c.l.b16 %v109
  %v537 = vunpack.c.h.b16 %v109
  %v538 = vunpack.c.l.b16 %v110
  %v539 = vunpack.c.l.b16 %v111
  %v540 = vunpack.c.h.b16 %v111
  %v541 = vunpack.c.l.b16 %v112
  %v542 = vunpack.c.h.b16 %v112
  %v543 = vunpack.c.l.b16 %v113
  %v544 = vunpack.c.l.b16 %v114
  %v545 = vunpack.c.h.b16 %v114
  %v546 = vunpack.c.l.b16 %v115
  %v547 = vunpack.c.h.b16 %v115
  %v548 = vunpack.c.l.b16 %v116
  %v549 = vunpack.c.l.b16 %v117
  %v550 = vunpack.c.h.b16 %v117
  %v551 = vunpack.c.l.b16 %v118
  %v552 = vunpack.c.h.b16 %v118
  %v553 = vunpack.c.l.b16 %v119
  %v554 = vunpack.c.l.b16 %v120
  %v555 = vunpack.c.h.b16 %v120
  %v556 = vunpack.c.l.b16 %v121
  %v557 = vunpack.c.h.b16 %v121
  %v558 = vunpack.c.l.b16 %v122
  %v559 = vunpack.c.l.b16 %v123
  %v560 = vunpack.c.h.b16 %v123
  %v561 = vunpack.c.l.b16 %v124
  %v562 = vunpack.c.h.b16 %v124
  %v563 = vunpack.c.l.b16 %v125
  %v564 = vunpack.c.l.b16 %v126
  %v565 = vunpack.c.h.b16 %v126
  %v566 = vunpack.c.l.b16 %v127
  %v567 = vunpack.c.h.b16 %v127
  %v568 = vunpack.c.l.b16 %v128
  %v569 = vunpack.c.l.b16 %v129
  %v570 = vunpack.c.h.b16 %v129
  %v571 = vunpack.c.l.b16 %v130
  %v572 = vunpack.c.h.b16 %v130
  %v573 = vunpack.c.l.b16 %v131
  %v574 = vunpack.c.l.b16 %v132
  %v575 = vunpack.c.h.b16 %v132
  %v576 = vunpack.c.l.b16 %v133
  %v577 = vunpack.c.h.b16 %v133
  %v578 = vunpack.c.l.b16 %v134
  %v579 = vunpack.c.l.b16 %v135
  %v580 = vunpack.c.h.b16 %v135
  %v581 = vunpack.c.l.b16 %v136
  %v582 = vunpack.c.h.b16 %v136
  %v583 = vunpack.c.l.b16 %v137
  %v584 = vunpack.c.l.b16 %v138
  %v585 = vunpack.c.h.b16 %v138
  %v586 = vunpack.c.l.b16 %v139
  %v587 = vunpack.c.h.b16 %v139
  %v588 = vunpack.c.l.b16 %v140
  %v589 = vunpack.c.l.b16 %v141
  %v590 = vunpack.c.h.b16 %v141
  %v591 = vunpack.c.l.b16 %v142
  %v592 = vunpack.c.h.b16 %v142
  %v593 = vunpack.c.l.b16 %v143
  %v594 = vunpack.c.l.b16 %v144
  %v595 = vunpack.c.h.b16 %v144
  %v596 = vunpack.c.l.b16 %v145
  %v597 = vunpack.c.h.b16 %v145
  %v598 = vunpack.c.l.b16 %v146
  %v599 = vunpack.c.l.b16 %v147
  %v600 = vunpack.c.h.b16 %v147
  %v601 = vunpack.c.l.b16 %v148
  %v602 = vunpack.c.h.b16 %v148
  %v603 = vunpack.c.l.b16 %v149
  %v604 = vunpack.c.l.b16 %v150
  %v605 = vunpack.c.h.b16 %v150
  %v606 = vunpack.c.l.b16 %v151
  %v607 = vunpack.c.h.b16 %v151
  %v608 = vunpack.c.l.b16 %v152
  %v609 = vunpack.c.l.b16 %v153
  %v610 = vunpack.c.h.b16 %v153
  %v611 = vunpack.c.l.b16 %v154
  %v612 = vunpack.c.h.b16 %v154
  %v613 = vunpack.c.l.b16 %v155
  %v614 = vunpack.c.l.b16 %v156
  %v615 = vunpack.c.h.b16 %v156
  %v616 = vunpack.c.l.b16 %v157
  %v617 = vunpack.c.h.b16 %v157
  %v618 = vunpack.c.l.b16 %v158
  %v619 = vunpack.c.l.b16 %v159
  %v620 = vunpack.c.h.b16 %v159
  %v621 = vunpack.c.l.b16 %v160
  %v622 = vunpack.c.h.b16 %v160
  %v623 = vunpack.c.l.b16 %v161
  %v624 = vunpack.c.l.b16 %v162
  %v625 = vunpack.c.h.b16 %v162
  %v626 = vunpack.c.l.b16 %v163
  %v627 = vunpack.c.h.b16 %v163
  %v628 = vunpack.c.l.b16 %v164
  %v629 = vpack.c.b16 %v389, %v384
  %v630 = vpack.c.b16 %v390, %v385
  %v631 = vpack.c.b16 %v391, %v386
  %v632 = vpack.c.b16 %v392, %v387
  %v633 = vpack.c.b16 %v393, %v388
  %v634 = vpack.c.b16 %v399, %v394
  %v635 = vpack.c.b16 %v400, %v395
  %v636 = vpack.c.b16 %v401, %v396
  %v637 = vpack.c.b16 %v402, %v397
  %v638 = vpack.c.b16 %v403, %v398
  %v639 = vpack.c.b16 %v409, %v404
  %v640 = vpack.c.b16 %v410, %v405
  %v641 = vpack.c.b16 %v411, %v406
  %v642 = vpack.c.b16 %v412, %v407
  %v643 = vpack.c.b16 %v413, %v408
  %v644 = vpack.c.b16 %v419, %v414
  %v645 = vpack.c.b16 %v420, %v415
  %v646 = vpack.c.b16 %v421, %v416
  %v647 = vpack.c.b16 %v422, %v417
  %v648 = vpack.c.b16 %v423, %v418
  %v649 = vpack.c.b16 %v429, %v424
  %v650 = vpack.c.b16 %v430, %v425
  %v651 = vpack.c.b16 %v431, %v426
  %v652 = vpack.c.b16 %v432, %v427
  %v653 = vpack.c.b16 %v433, %v428
  %v654 = vpack.c.b16 %v439, %v434
  %v655 = vpack.c.b16 %v440, %v435
  %v656 = vpack.c.b16 %v441, %v436
  %v657 = vpack.c.b16 %v442, %v437
  %v658 = vpack.c.b16 %v443, %v438
  %v659 = vpack.c.b16 %v449, %v444
  %v660 = vpack.c.b16 %v450, %v445
  %v661 = vpack.c.b16 %v451, %v446
  %v662 = vpack.c.b16 %v452, %v447
  %v663 = vpack.c.b16 %v453, %v448
  %v664 = vpack.c.b16 %v459, %v454
  %v665 = vpack.c.b16 %v460, %v455
  %v666 = vpack.c.b16 %v461, %v456
  %v667 = vpack.c.b16 %v462, %v457
  %v668 = vpack.c.b16 %v463, %v458
  %v669 = vpack.c.b16 %v469, %v464
  %v670 = vpack.c.b16 %v470, %v465
  %v671 = vpack.c.b16 %v471, %v466
  %v672 = vpack.c.b16 %v472, %v467
  %v673 = vpack.c.b16 %v473, %v468
  %v674 = vpack.c.b16 %v479, %v474
  %v675 = vpack.c.b16 %v480, %v475
  %v676 = vpack.c.b16 %v481, %v476
  %v677 = vpack.c.b16 %v482, %v477
  %v678 = vpack.c.b16 %v483, %v478
  %v679 = vpack.c.b16 %v489, %v484
  %v680 = vpack.c.b16 %v490, %v485
  %v681 = vpack.c.b16 %v491, %v486
  %v682 = vpack.c.b16 %v492, %v487
  %v683 = vpack.c.b16 %v493, %v488
  %v684 = vpack.c.b16 %v499, %v494
  %v685 = vpack.c.b16 %v500, %v495
  %v686 = vpack.c.b16 %v501, %v496
  %v687 = vpack.c.b16 %v502, %v497
  %v688 = vpack.c.b16 %v503, %v498
  %v689 = vpack.c.b16 %v509, %v504
  %v690 = vpack.c.b16 %v510, %v505
  %v691 = vpack.c.b16 %v511, %v506
  %v692 = vpack.c.b16 %v512, %v507
  %v693 = vpack.c.b16 %v513, %v508
  %v694 = vpack.c.b16 %v519, %v514
  %v695 = vpack.c.b16 %v520, %v515
  %v696 = vpack.c.b16 %v521, %v516
  %v697 = vpack.c.b16 %v522, %v517
  %v698 = vpack.c.b16 %v523, %v518
  %v699 = vpack.c.b16 %v529, %v524
  %v700 = vpack.c.b16 %v530, %v525
  %v701 = vpack.c.b16 %v531, %v526
  %v702 = vpack.c.b16 %v532, %v527
  %v703 = vpack.c.b16 %v533, %v528
  %v704 = vpack.c.b16 %v539, %v534
  %v705 = vpack.c.b16 %v540, %v535
  %v706 = vpack.c.b16 %v541, %v536
  %v707 = vpack.c.b16 %v542, %v537
  %v708 = vpack.c.b16 %v543, %v538
  %v709 = vpack.c.b16 %v549, %v544
  %v710 = vpack.c.b16 %v550, %v545
  %v711 = vpack.c.b16 %v551, %v546
  %v712 = vpack.c.b16 %v552, %v547
  %v713 = vpack.c.b16 %v553, %v548
  %v714 = vpack.c.b16 %v559, %v554
  %v715 = vpack.c.b16 %v560, %v555
  %v716 = vpack.c.b16 %v561, %v556
  %v717 = vpack.c.b16 %v562, %v557
  %v718 = vpack.c.b16 %v563, %v558
  %v719 = vpack.c.b16 %v569, %v564
  %v720 = vpack.c.b16 %v570, %v565
  %v721 = vpack.c.b16 %v571, %v566
  %v722 = vpack.c.b16 %v572, %v567
  %v723 = vpack.c.b16 %v573, %v568
  %v724 = vpack.c.b16 %v579, %v574
  %v725 = vpack.c.b16 %v580, %v575
  %v726 = vpack.c.b16 %v581, %v576
  %v727 = vpack.c.b16 %v582, %v577
  %v728 = vpack.c.b16 %v583, %v578
  %v729 = vpack.c.b16 %v589, %v584
  %v730 = vpack.c.b16 %v590, %v585
  %v731 = vpack.c.b16 %v591, %v586
  %v732 = vpack.c.b16 %v592, %v587
  %v733 = vpack.c.b16 %v593, %v588
  %v734 = vpack.c.b16 %v599, %v594
  %v735 = vpack.c.b16 %v600, %v595
  %v736 = vpack.c.b16 %v601, %v596
  %v737 = vpack.c.b16 %v602, %v597
  %v738 = vpack.c.b16 %v603, %v598
  %v739 = vpack.c.b16 %v609, %v604
  %v740 = vpack.c.b16 %v610, %v605
  %v741 = vpack.c.b16 %v611, %v606
  %v742 = vpack.c.b16 %v612, %v607
  %v743 = vpack.c.b16 %v613, %v608
  %v744 = vpack.c.b16 %v619, %v614
  %v745 = vpack.c.b16 %v620, %v615
  %v746 = vpack.c.b16 %v621, %v616
  %v747 = vpack.c.b16 %v622, %v617
  %v748 = vpack.c.b16 %v623, %v618
  %v749 = vpack.c.b16 %v624, %v624
  %v750 = vpack.c.b16 %v625, %v625
  %v751 = vpack.c.b16 %v626, %v626
  %v752 = vpack.c.b16 %v627, %v627
  %v753 = vpack.c.b16 %v628, %v628
  %v926 = vunpack.c.l.b16 %v165
  %v927 = vunpack.c.l.b16 %v166
  %v928 = vunpack.c.l.b16 %v167
  %v929 = vunpack.c.l.b16 %v168
  %v930 = vunpack.c.l.b16 %v169
  %v931 = vunpack.c.l.b16 %v170
  %v932 = vunpack.c.l.b16 %v171
  %v933 = vunpack.c.l.b16 %v172
  %v934 = vunpack.c.l.b16 %v173
  %v935 = vunpack.c.l.b16 %v174
  %v936 = vunpack.c.l.b16 %v175
  %v937 = vunpack.c.l.b16 %v176
  %v938 = vunpack.c.l.b16 %v177
  %v939 = vunpack.c.l.b16 %v178
  %v940 = vunpack.c.l.b16 %v179
  %v941 = vunpack.c.l.b16 %v180
  %v942 = vunpack.c.l.b16 %v181
  %v943 = vunpack.c.l.b16 %v182
  %v944 = vunpack.c.l.b16 %v183
  %v945 = vunpack.c.l.b16 %v184
  %v946 = vunpack.c.l.b16 %v185
  %v947 = vunpack.c.l.b16 %v186
  %v948 = vunpack.c.l.b16 %v187
  %v949 = vunpack.c.l.b16 %v188
  %v950 = vunpack.c.l.b16 %v189
  %v951 = vunpack.c.l.b16 %v190
  %v952 = vunpack.c.l.b16 %v191
  %v953 = vunpack.c.l.b16 %v192
  %v954 = vunpack.c.l.b16 %v193
  %v955 = vunpack.c.l.b16 %v194
  %v956 = vunpack.c.l.b16 %v195
  %v957 = vunpack.c.l.b16 %v196
  %v958 = vunpack.c.l.b16 %v197
  %v959 = vunpack.c.l.b16 %v198
  %v960 = vunpack.c.l.b16 %v199
  %v961 = vunpack.c.l.b16 %v200
  %v962 = vunpack.c.l.b16 %v201
  %v963 = vunpack.c.l.b16 %v202
  %v964 = vunpack.c.l.b16 %v203
  %v965 = vunpack.c.l.b16 %v204
  %v966 = vunpack.c.l.b16 %v205
  %v967 = vunpack.c.l.b16 %v206
  %v968 = vunpack.c.l.b16 %v207
  %v969 = vunpack.c.l.b16 %v208
  %v970 = vunpack.c.l.b16 %v209
  %v971 = vunpack.c.l.b16 %v210
  %v972 = vunpack.c.l.b16 %v211
  %v973 = vunpack.c.l.b16 %v212
  %v974 = vunpack.c.l.b16 %v213
  %v975 = vunpack.c.l.b16 %v214
  %v976 = vunpack.c.l.b16 %v215
  %v977 = vunpack.c.l.b16 %v216
  %v978 = vunpack.c.l.b16 %v217
  %v979 = vunpack.c.l.b16 %v218
  %v980 = vunpack.c.l.b16 %v219
  %v981 = vunpack.c.l.b16 %v220
  %v982 = vunpack.c.l.b16 %v221
  %v983 = vunpack.c.l.b16 %v222
  %v984 = vunpack.c.l.b16 %v223
  %v985 = vunpack.c.l.b16 %v224
  %v986 = vunpack.c.l.b16 %v225
  %v987 = vunpack.c.l.b16 %v226
  %v988 = vunpack.c.l.b16 %v227
  %v989 = vunpack.c.l.b16 %v228
  %v990 = vunpack.c.l.b16 %v229
  %v991 = vunpack.c.l.b16 %v230
  %v992 = vunpack.c.l.b16 %v231
  %v993 = vunpack.c.l.b16 %v232
  %v994 = vunpack.c.l.b16 %v233
  %v995 = vunpack.c.l.b16 %v234
  %v996 = vunpack.c.l.b16 %v235
  %v997 = vunpack.c.l.b16 %v236
  %v998 = vpack.c.b16 %v927, %v926
  %v999 = vpack.c.b16 %v929, %v928
  %v1000 = vpack.c.b16 %v931, %v930
  %v1001 = vpack.c.b16 %v933, %v932
  %v1002 = vpack.c.b16 %v935, %v934
  %v1003 = vpack.c.b16 %v937, %v936
  %v1004 = vpack.c.b16 %v939, %v938
  %v1005 = vpack.c.b16 %v941, %v940
  %v1006 = vpack.c.b16 %v943, %v942
  %v1007 = vpack.c.b16 %v945, %v944
  %v1008 = vpack.c.b16 %v947, %v946
  %v1009 = vpack.c.b16 %v949, %v948
  %v1010 = vpack.c.b16 %v951, %v950
  %v1011 = vpack.c.b16 %v953, %v952
  %v1012 = vpack.c.b16 %v955, %v954
  %v1013 = vpack.c.b16 %v957, %v956
  %v1014 = vpack.c.b16 %v959, %v958
  %v1015 = vpack.c.b16 %v961, %v960
  %v1016 = vpack.c.b16 %v963, %v962
  %v1017 = vpack.c.b16 %v965, %v964
  %v1018 = vpack.c.b16 %v967, %v966
  %v1019 = vpack.c.b16 %v969, %v968
  %v1020 = vpack.c.b16 %v971, %v970
  %v1021 = vpack.c.b16 %v973, %v972
  %v1022 = vpack.c.b16 %v975, %v974
  %v1023 = vpack.c.b16 %v977, %v976
  %v1024 = vpack.c.b16 %v979, %v978
  %v1025 = vpack.c.b16 %v981, %v980
  %v1026 = vpack.c.b16 %v983, %v982
  %v1027 = vpack.c.b16 %v985, %v984
  %v1028 = vpack.c.b16 %v987, %v986
  %v1029 = vpack.c.b16 %v989, %v988
  %v1030 = vpack.c.b16 %v991, %v990
  %v1031 = vpack.c.b16 %v993, %v992
  %v1032 = vpack.c.b16 %v995, %v994
  %v1033 = vpack.c.b16 %v997, %v996
  %vm1070 = vcmask 523264
  %v1072 = vsel %vm1070, %v633, 0
  %v1075 = vsel %vm1070, %v638, 0
  %v1078 = vsel %vm1070, %v643, 0
  %v1081 = vsel %vm1070, %v648, 0
  %v1084 = vsel %vm1070, %v653, 0
  %v1087 = vsel %vm1070, %v658, 0
  %v1090 = vsel %vm1070, %v663, 0
  %v1093 = vsel %vm1070, %v668, 0
  %v1096 = vsel %vm1070, %v673, 0
  %v1099 = vsel %vm1070, %v678, 0
  %v1102 = vsel %vm1070, %v683, 0
  %v1105 = vsel %vm1070, %v688, 0
  %v1108 = vsel %vm1070, %v693, 0
  %v1111 = vsel %vm1070, %v698, 0
  %v1114 = vsel %vm1070, %v703, 0
  %v1117 = vsel %vm1070, %v708, 0
  %v1120 = vsel %vm1070, %v713, 0
  %v1123 = vsel %vm1070, %v718, 0
  %v1126 = vsel %vm1070, %v723, 0
  %v1129 = vsel %vm1070, %v728, 0
  %v1132 = vsel %vm1070, %v733, 0
  %v1135 = vsel %vm1070, %v738, 0
  %v1138 = vsel %vm1070, %v743, 0
  %v1141 = vsel %vm1070, %v748, 0
  %v1144 = vsel %vm1070, %v753, 0
  %1146 = vmatpush.bf16.msra.mxu0 %v1005
  %1147 = vmatpush.bf16.msra.mxu0 %v1004
  %1148 = vmatpush.bf16.msra.mxu0 %v1003
  %1149 = vmatpush.bf16.msra.mxu0 %v1002
  %1150 = vmatpush.bf16.msra.mxu0 %v1001
  %1151 = vmatpush.bf16.msra.mxu0 %v1000
  %1152 = vmatpush.bf16.msra.mxu0 %v999
  %1153 = vmatpush.bf16.msra.mxu0 %v998
  %1154 = vmatmul.bf16.gmra.mxu0 %v629
  %v1155 = vpop.f32.mrf.mxu0
  %v1156 = vadd.f32 0.0, %v1155
  %v1157 = vpop.f32.mrf.mxu0
  %v1158 = vadd.f32 0.0, %v1157
  %1159 = vmatmul.bf16.gmra.mxu0 %v634
  %v1160 = vpop.f32.mrf.mxu0
  %v1161 = vadd.f32 0.0, %v1160
  %v1162 = vpop.f32.mrf.mxu0
  %v1163 = vadd.f32 0.0, %v1162
  %1164 = vmatmul.bf16.gmra.mxu0 %v639
  %v1165 = vpop.f32.mrf.mxu0
  %v1166 = vadd.f32 0.0, %v1165
  %v1167 = vpop.f32.mrf.mxu0
  %v1168 = vadd.f32 0.0, %v1167
  %1169 = vmatmul.bf16.gmra.mxu0 %v644
  %v1170 = vpop.f32.mrf.mxu0
  %v1171 = vadd.f32 0.0, %v1170
  %v1172 = vpop.f32.mrf.mxu0
  %v1173 = vadd.f32 0.0, %v1172
  %1174 = vmatmul.bf16.gmra.mxu0 %v649
  %v1175 = vpop.f32.mrf.mxu0
  %v1176 = vadd.f32 0.0, %v1175
  %v1177 = vpop.f32.mrf.mxu0
  %v1178 = vadd.f32 0.0, %v1177
  %1179 = vmatmul.bf16.gmra.mxu0 %v654
  %v1180 = vpop.f32.mrf.mxu0
  %v1181 = vadd.f32 0.0, %v1180
  %v1182 = vpop.f32.mrf.mxu0
  %v1183 = vadd.f32 0.0, %v1182
  %1184 = vmatmul.bf16.gmra.mxu0 %v659
  %v1185 = vpop.f32.mrf.mxu0
  %v1186 = vadd.f32 0.0, %v1185
  %v1187 = vpop.f32.mrf.mxu0
  %v1188 = vadd.f32 0.0, %v1187
  %1189 = vmatmul.bf16.gmra.mxu0 %v664
  %v1190 = vpop.f32.mrf.mxu0
  %v1191 = vadd.f32 0.0, %v1190
  %v1192 = vpop.f32.mrf.mxu0
  %v1193 = vadd.f32 0.0, %v1192
  %1194 = vmatmul.bf16.gmra.mxu0 %v669
  %v1195 = vpop.f32.mrf.mxu0
  %v1196 = vadd.f32 0.0, %v1195
  %v1197 = vpop.f32.mrf.mxu0
  %v1198 = vadd.f32 0.0, %v1197
  %1199 = vmatmul.bf16.gmra.mxu0 %v674
  %v1200 = vpop.f32.mrf.mxu0
  %v1201 = vadd.f32 0.0, %v1200
  %v1202 = vpop.f32.mrf.mxu0
  %v1203 = vadd.f32 0.0, %v1202
  %1204 = vmatmul.bf16.gmra.mxu0 %v679
  %v1205 = vpop.f32.mrf.mxu0
  %v1206 = vadd.f32 0.0, %v1205
  %v1207 = vpop.f32.mrf.mxu0
  %v1208 = vadd.f32 0.0, %v1207
  %1209 = vmatmul.bf16.gmra.mxu0 %v684
  %v1210 = vpop.f32.mrf.mxu0
  %v1211 = vadd.f32 0.0, %v1210
  %v1212 = vpop.f32.mrf.mxu0
  %v1213 = vadd.f32 0.0, %v1212
  %1214 = vmatmul.bf16.gmra.mxu0 %v689
  %v1215 = vpop.f32.mrf.mxu0
  %v1216 = vadd.f32 0.0, %v1215
  %v1217 = vpop.f32.mrf.mxu0
  %v1218 = vadd.f32 0.0, %v1217
  %1219 = vmatmul.bf16.gmra.mxu0 %v694
  %v1220 = vpop.f32.mrf.mxu0
  %v1221 = vadd.f32 0.0, %v1220
  %v1222 = vpop.f32.mrf.mxu0
  %v1223 = vadd.f32 0.0, %v1222
  %1224 = vmatmul.bf16.gmra.mxu0 %v699
  %v1225 = vpop.f32.mrf.mxu0
  %v1226 = vadd.f32 0.0, %v1225
  %v1227 = vpop.f32.mrf.mxu0
  %v1228 = vadd.f32 0.0, %v1227
  %1229 = vmatmul.bf16.gmra.mxu0 %v704
  %v1230 = vpop.f32.mrf.mxu0
  %v1231 = vadd.f32 0.0, %v1230
  %v1232 = vpop.f32.mrf.mxu0
  %v1233 = vadd.f32 0.0, %v1232
  %1234 = vmatmul.bf16.gmra.mxu0 %v709
  %v1235 = vpop.f32.mrf.mxu0
  %v1236 = vadd.f32 0.0, %v1235
  %v1237 = vpop.f32.mrf.mxu0
  %v1238 = vadd.f32 0.0, %v1237
  %1239 = vmatmul.bf16.gmra.mxu0 %v714
  %v1240 = vpop.f32.mrf.mxu0
  %v1241 = vadd.f32 0.0, %v1240
  %v1242 = vpop.f32.mrf.mxu0
  %v1243 = vadd.f32 0.0, %v1242
  %1244 = vmatmul.bf16.gmra.mxu0 %v719
  %v1245 = vpop.f32.mrf.mxu0
  %v1246 = vadd.f32 0.0, %v1245
  %v1247 = vpop.f32.mrf.mxu0
  %v1248 = vadd.f32 0.0, %v1247
  %1249 = vmatmul.bf16.gmra.mxu0 %v724
  %v1250 = vpop.f32.mrf.mxu0
  %v1251 = vadd.f32 0.0, %v1250
  %v1252 = vpop.f32.mrf.mxu0
  %v1253 = vadd.f32 0.0, %v1252
  %1254 = vmatmul.bf16.gmra.mxu0 %v729
  %v1255 = vpop.f32.mrf.mxu0
  %v1256 = vadd.f32 0.0, %v1255
  %v1257 = vpop.f32.mrf.mxu0
  %v1258 = vadd.f32 0.0, %v1257
  %1259 = vmatmul.bf16.gmra.mxu0 %v734
  %v1260 = vpop.f32.mrf.mxu0
  %v1261 = vadd.f32 0.0, %v1260
  %v1262 = vpop.f32.mrf.mxu0
  %v1263 = vadd.f32 0.0, %v1262
  %1264 = vmatmul.bf16.gmra.mxu0 %v739
  %v1265 = vpop.f32.mrf.mxu0
  %v1266 = vadd.f32 0.0, %v1265
  %v1267 = vpop.f32.mrf.mxu0
  %v1268 = vadd.f32 0.0, %v1267
  %1269 = vmatmul.bf16.gmra.mxu0 %v744
  %v1270 = vpop.f32.mrf.mxu0
  %v1271 = vadd.f32 0.0, %v1270
  %v1272 = vpop.f32.mrf.mxu0
  %v1273 = vadd.f32 0.0, %v1272
  %1274 = vmatmul.bf16.gmra.mxu0 %v749
  %v1275 = vpop.f32.mrf.mxu0
  %v1276 = vadd.f32 0.0, %v1275
  %v1277 = vpop.f32.mrf.mxu0
  %1278 = vdwg.mxu0
  %1279 = vmatpush.bf16.msra.mxu0 %v1013
  %1280 = vmatpush.bf16.msra.mxu0 %v1012
  %1281 = vmatpush.bf16.msra.mxu0 %v1011
  %1282 = vmatpush.bf16.msra.mxu0 %v1010
  %1283 = vmatpush.bf16.msra.mxu0 %v1009
  %1284 = vmatpush.bf16.msra.mxu0 %v1008
  %1285 = vmatpush.bf16.msra.mxu0 %v1007
  %1286 = vmatpush.bf16.msra.mxu0 %v1006
  %1287 = vmatmul.bf16.gmra.mxu0 %v630
  %v1288 = vpop.f32.mrf.mxu0
  %v1289 = vadd.f32 %v1156, %v1288
  %v1290 = vpop.f32.mrf.mxu0
  %v1291 = vadd.f32 %v1158, %v1290
  %1292 = vmatmul.bf16.gmra.mxu0 %v635
  %v1293 = vpop.f32.mrf.mxu0
  %v1294 = vadd.f32 %v1161, %v1293
  %v1295 = vpop.f32.mrf.mxu0
  %v1296 = vadd.f32 %v1163, %v1295
  %1297 = vmatmul.bf16.gmra.mxu0 %v640
  %v1298 = vpop.f32.mrf.mxu0
  %v1299 = vadd.f32 %v1166, %v1298
  %v1300 = vpop.f32.mrf.mxu0
  %v1301 = vadd.f32 %v1168, %v1300
  %1302 = vmatmul.bf16.gmra.mxu0 %v645
  %v1303 = vpop.f32.mrf.mxu0
  %v1304 = vadd.f32 %v1171, %v1303
  %v1305 = vpop.f32.mrf.mxu0
  %v1306 = vadd.f32 %v1173, %v1305
  %1307 = vmatmul.bf16.gmra.mxu0 %v650
  %v1308 = vpop.f32.mrf.mxu0
  %v1309 = vadd.f32 %v1176, %v1308
  %v1310 = vpop.f32.mrf.mxu0
  %v1311 = vadd.f32 %v1178, %v1310
  %1312 = vmatmul.bf16.gmra.mxu0 %v655
  %v1313 = vpop.f32.mrf.mxu0
  %v1314 = vadd.f32 %v1181, %v1313
  %v1315 = vpop.f32.mrf.mxu0
  %v1316 = vadd.f32 %v1183, %v1315
  %1317 = vmatmul.bf16.gmra.mxu0 %v660
  %v1318 = vpop.f32.mrf.mxu0
  %v1319 = vadd.f32 %v1186, %v1318
  %v1320 = vpop.f32.mrf.mxu0
  %v1321 = vadd.f32 %v1188, %v1320
  %1322 = vmatmul.bf16.gmra.mxu0 %v665
  %v1323 = vpop.f32.mrf.mxu0
  %v1324 = vadd.f32 %v1191, %v1323
  %v1325 = vpop.f32.mrf.mxu0
  %v1326 = vadd.f32 %v1193, %v1325
  %1327 = vmatmul.bf16.gmra.mxu0 %v670
  %v1328 = vpop.f32.mrf.mxu0
  %v1329 = vadd.f32 %v1196, %v1328
  %v1330 = vpop.f32.mrf.mxu0
  %v1331 = vadd.f32 %v1198, %v1330
  %1332 = vmatmul.bf16.gmra.mxu0 %v675
  %v1333 = vpop.f32.mrf.mxu0
  %v1334 = vadd.f32 %v1201, %v1333
  %v1335 = vpop.f32.mrf.mxu0
  %v1336 = vadd.f32 %v1203, %v1335
  %1337 = vmatmul.bf16.gmra.mxu0 %v680
  %v1338 = vpop.f32.mrf.mxu0
  %v1339 = vadd.f32 %v1206, %v1338
  %v1340 = vpop.f32.mrf.mxu0
  %v1341 = vadd.f32 %v1208, %v1340
  %1342 = vmatmul.bf16.gmra.mxu0 %v685
  %v1343 = vpop.f32.mrf.mxu0
  %v1344 = vadd.f32 %v1211, %v1343
  %v1345 = vpop.f32.mrf.mxu0
  %v1346 = vadd.f32 %v1213, %v1345
  %1347 = vmatmul.bf16.gmra.mxu0 %v690
  %v1348 = vpop.f32.mrf.mxu0
  %v1349 = vadd.f32 %v1216, %v1348
  %v1350 = vpop.f32.mrf.mxu0
  %v1351 = vadd.f32 %v1218, %v1350
  %1352 = vmatmul.bf16.gmra.mxu0 %v695
  %v1353 = vpop.f32.mrf.mxu0
  %v1354 = vadd.f32 %v1221, %v1353
  %v1355 = vpop.f32.mrf.mxu0
  %v1356 = vadd.f32 %v1223, %v1355
  %1357 = vmatmul.bf16.gmra.mxu0 %v700
  %v1358 = vpop.f32.mrf.mxu0
  %v1359 = vadd.f32 %v1226, %v1358
  %v1360 = vpop.f32.mrf.mxu0
  %v1361 = vadd.f32 %v1228, %v1360
  %1362 = vmatmul.bf16.gmra.mxu0 %v705
  %v1363 = vpop.f32.mrf.mxu0
  %v1364 = vadd.f32 %v1231, %v1363
  %v1365 = vpop.f32.mrf.mxu0
  %v1366 = vadd.f32 %v1233, %v1365
  %1367 = vmatmul.bf16.gmra.mxu0 %v710
  %v1368 = vpop.f32.mrf.mxu0
  %v1369 = vadd.f32 %v1236, %v1368
  %v1370 = vpop.f32.mrf.mxu0
  %v1371 = vadd.f32 %v1238, %v1370
  %1372 = vmatmul.bf16.gmra.mxu0 %v715
  %v1373 = vpop.f32.mrf.mxu0
  %v1374 = vadd.f32 %v1241, %v1373
  %v1375 = vpop.f32.mrf.mxu0
  %v1376 = vadd.f32 %v1243, %v1375
  %1377 = vmatmul.bf16.gmra.mxu0 %v720
  %v1378 = vpop.f32.mrf.mxu0
  %v1379 = vadd.f32 %v1246, %v1378
  %v1380 = vpop.f32.mrf.mxu0
  %v1381 = vadd.f32 %v1248, %v1380
  %1382 = vmatmul.bf16.gmra.mxu0 %v725
  %v1383 = vpop.f32.mrf.mxu0
  %v1384 = vadd.f32 %v1251, %v1383
  %v1385 = vpop.f32.mrf.mxu0
  %v1386 = vadd.f32 %v1253, %v1385
  %1387 = vmatmul.bf16.gmra.mxu0 %v730
  %v1388 = vpop.f32.mrf.mxu0
  %v1389 = vadd.f32 %v1256, %v1388
  %v1390 = vpop.f32.mrf.mxu0
  %v1391 = vadd.f32 %v1258, %v1390
  %1392 = vmatmul.bf16.gmra.mxu0 %v735
  %v1393 = vpop.f32.mrf.mxu0
  %v1394 = vadd.f32 %v1261, %v1393
  %v1395 = vpop.f32.mrf.mxu0
  %v1396 = vadd.f32 %v1263, %v1395
  %1397 = vmatmul.bf16.gmra.mxu0 %v740
  %v1398 = vpop.f32.mrf.mxu0
  %v1399 = vadd.f32 %v1266, %v1398
  %v1400 = vpop.f32.mrf.mxu0
  %v1401 = vadd.f32 %v1268, %v1400
  %1402 = vmatmul.bf16.gmra.mxu0 %v745
  %v1403 = vpop.f32.mrf.mxu0
  %v1404 = vadd.f32 %v1271, %v1403
  %v1405 = vpop.f32.mrf.mxu0
  %v1406 = vadd.f32 %v1273, %v1405
  %1407 = vmatmul.bf16.gmra.mxu0 %v750
  %v1408 = vpop.f32.mrf.mxu0
  %v1409 = vadd.f32 %v1276, %v1408
  %v1410 = vpop.f32.mrf.mxu0
  %1411 = vdwg.mxu0
  %1412 = vmatpush.bf16.msra.mxu0 %v1021
  %1413 = vmatpush.bf16.msra.mxu0 %v1020
  %1414 = vmatpush.bf16.msra.mxu0 %v1019
  %1415 = vmatpush.bf16.msra.mxu0 %v1018
  %1416 = vmatpush.bf16.msra.mxu0 %v1017
  %1417 = vmatpush.bf16.msra.mxu0 %v1016
  %1418 = vmatpush.bf16.msra.mxu0 %v1015
  %1419 = vmatpush.bf16.msra.mxu0 %v1014
  %1420 = vmatmul.bf16.gmra.mxu0 %v631
  %v1421 = vpop.f32.mrf.mxu0
  %v1422 = vadd.f32 %v1289, %v1421
  %v1423 = vpop.f32.mrf.mxu0
  %v1424 = vadd.f32 %v1291, %v1423
  %1425 = vmatmul.bf16.gmra.mxu0 %v636
  %v1426 = vpop.f32.mrf.mxu0
  %v1427 = vadd.f32 %v1294, %v1426
  %v1428 = vpop.f32.mrf.mxu0
  %v1429 = vadd.f32 %v1296, %v1428
  %1430 = vmatmul.bf16.gmra.mxu0 %v641
  %v1431 = vpop.f32.mrf.mxu0
  %v1432 = vadd.f32 %v1299, %v1431
  %v1433 = vpop.f32.mrf.mxu0
  %v1434 = vadd.f32 %v1301, %v1433
  %1435 = vmatmul.bf16.gmra.mxu0 %v646
  %v1436 = vpop.f32.mrf.mxu0
  %v1437 = vadd.f32 %v1304, %v1436
  %v1438 = vpop.f32.mrf.mxu0
  %v1439 = vadd.f32 %v1306, %v1438
  %1440 = vmatmul.bf16.gmra.mxu0 %v651
  %v1441 = vpop.f32.mrf.mxu0
  %v1442 = vadd.f32 %v1309, %v1441
  %v1443 = vpop.f32.mrf.mxu0
  %v1444 = vadd.f32 %v1311, %v1443
  %1445 = vmatmul.bf16.gmra.mxu0 %v656
  %v1446 = vpop.f32.mrf.mxu0
  %v1447 = vadd.f32 %v1314, %v1446
  %v1448 = vpop.f32.mrf.mxu0
  %v1449 = vadd.f32 %v1316, %v1448
  %1450 = vmatmul.bf16.gmra.mxu0 %v661
  %v1451 = vpop.f32.mrf.mxu0
  %v1452 = vadd.f32 %v1319, %v1451
  %v1453 = vpop.f32.mrf.mxu0
  %v1454 = vadd.f32 %v1321, %v1453
  %1455 = vmatmul.bf16.gmra.mxu0 %v666
  %v1456 = vpop.f32.mrf.mxu0
  %v1457 = vadd.f32 %v1324, %v1456
  %v1458 = vpop.f32.mrf.mxu0
  %v1459 = vadd.f32 %v1326, %v1458
  %1460 = vmatmul.bf16.gmra.mxu0 %v671
  %v1461 = vpop.f32.mrf.mxu0
  %v1462 = vadd.f32 %v1329, %v1461
  %v1463 = vpop.f32.mrf.mxu0
  %v1464 = vadd.f32 %v1331, %v1463
  %1465 = vmatmul.bf16.gmra.mxu0 %v676
  %v1466 = vpop.f32.mrf.mxu0
  %v1467 = vadd.f32 %v1334, %v1466
  %v1468 = vpop.f32.mrf.mxu0
  %v1469 = vadd.f32 %v1336, %v1468
  %1470 = vmatmul.bf16.gmra.mxu0 %v681
  %v1471 = vpop.f32.mrf.mxu0
  %v1472 = vadd.f32 %v1339, %v1471
  %v1473 = vpop.f32.mrf.mxu0
  %v1474 = vadd.f32 %v1341, %v1473
  %1475 = vmatmul.bf16.gmra.mxu0 %v686
  %v1476 = vpop.f32.mrf.mxu0
  %v1477 = vadd.f32 %v1344, %v1476
  %v1478 = vpop.f32.mrf.mxu0
  %v1479 = vadd.f32 %v1346, %v1478
  %1480 = vmatmul.bf16.gmra.mxu0 %v691
  %v1481 = vpop.f32.mrf.mxu0
  %v1482 = vadd.f32 %v1349, %v1481
  %v1483 = vpop.f32.mrf.mxu0
  %v1484 = vadd.f32 %v1351, %v1483
  %1485 = vmatmul.bf16.gmra.mxu0 %v696
  %v1486 = vpop.f32.mrf.mxu0
  %v1487 = vadd.f32 %v1354, %v1486
  %v1488 = vpop.f32.mrf.mxu0
  %v1489 = vadd.f32 %v1356, %v1488
  %1490 = vmatmul.bf16.gmra.mxu0 %v701
  %v1491 = vpop.f32.mrf.mxu0
  %v1492 = vadd.f32 %v1359, %v1491
  %v1493 = vpop.f32.mrf.mxu0
  %v1494 = vadd.f32 %v1361, %v1493
  %1495 = vmatmul.bf16.gmra.mxu0 %v706
  %v1496 = vpop.f32.mrf.mxu0
  %v1497 = vadd.f32 %v1364, %v1496
  %v1498 = vpop.f32.mrf.mxu0
  %v1499 = vadd.f32 %v1366, %v1498
  %1500 = vmatmul.bf16.gmra.mxu0 %v711
  %v1501 = vpop.f32.mrf.mxu0
  %v1502 = vadd.f32 %v1369, %v1501
  %v1503 = vpop.f32.mrf.mxu0
  %v1504 = vadd.f32 %v1371, %v1503
  %1505 = vmatmul.bf16.gmra.mxu0 %v716
  %v1506 = vpop.f32.mrf.mxu0
  %v1507 = vadd.f32 %v1374, %v1506
  %v1508 = vpop.f32.mrf.mxu0
  %v1509 = vadd.f32 %v1376, %v1508
  %1510 = vmatmul.bf16.gmra.mxu0 %v721
  %v1511 = vpop.f32.mrf.mxu0
  %v1512 = vadd.f32 %v1379, %v1511
  %v1513 = vpop.f32.mrf.mxu0
  %v1514 = vadd.f32 %v1381, %v1513
  %1515 = vmatmul.bf16.gmra.mxu0 %v726
  %v1516 = vpop.f32.mrf.mxu0
  %v1517 = vadd.f32 %v1384, %v1516
  %v1518 = vpop.f32.mrf.mxu0
  %v1519 = vadd.f32 %v1386, %v1518
  %1520 = vmatmul.bf16.gmra.mxu0 %v731
  %v1521 = vpop.f32.mrf.mxu0
  %v1522 = vadd.f32 %v1389, %v1521
  %v1523 = vpop.f32.mrf.mxu0
  %v1524 = vadd.f32 %v1391, %v1523
  %1525 = vmatmul.bf16.gmra.mxu0 %v736
  %v1526 = vpop.f32.mrf.mxu0
  %v1527 = vadd.f32 %v1394, %v1526
  %v1528 = vpop.f32.mrf.mxu0
  %v1529 = vadd.f32 %v1396, %v1528
  %1530 = vmatmul.bf16.gmra.mxu0 %v741
  %v1531 = vpop.f32.mrf.mxu0
  %v1532 = vadd.f32 %v1399, %v1531
  %v1533 = vpop.f32.mrf.mxu0
  %v1534 = vadd.f32 %v1401, %v1533
  %1535 = vmatmul.bf16.gmra.mxu0 %v746
  %v1536 = vpop.f32.mrf.mxu0
  %v1537 = vadd.f32 %v1404, %v1536
  %v1538 = vpop.f32.mrf.mxu0
  %v1539 = vadd.f32 %v1406, %v1538
  %1540 = vmatmul.bf16.gmra.mxu0 %v751
  %v1541 = vpop.f32.mrf.mxu0
  %v1542 = vadd.f32 %v1409, %v1541
  %v1543 = vpop.f32.mrf.mxu0
  %1544 = vdwg.mxu0
  %1545 = vmatpush.bf16.msra.mxu0 %v1029
  %1546 = vmatpush.bf16.msra.mxu0 %v1028
  %1547 = vmatpush.bf16.msra.mxu0 %v1027
  %1548 = vmatpush.bf16.msra.mxu0 %v1026
  %1549 = vmatpush.bf16.msra.mxu0 %v1025
  %1550 = vmatpush.bf16.msra.mxu0 %v1024
  %1551 = vmatpush.bf16.msra.mxu0 %v1023
  %1552 = vmatpush.bf16.msra.mxu0 %v1022
  %1553 = vmatmul.bf16.gmra.mxu0 %v632
  %v1554 = vpop.f32.mrf.mxu0
  %v1555 = vadd.f32 %v1422, %v1554
  %v1556 = vpop.f32.mrf.mxu0
  %v1557 = vadd.f32 %v1424, %v1556
  %1558 = vmatmul.bf16.gmra.mxu0 %v637
  %v1559 = vpop.f32.mrf.mxu0
  %v1560 = vadd.f32 %v1427, %v1559
  %v1561 = vpop.f32.mrf.mxu0
  %v1562 = vadd.f32 %v1429, %v1561
  %1563 = vmatmul.bf16.gmra.mxu0 %v642
  %v1564 = vpop.f32.mrf.mxu0
  %v1565 = vadd.f32 %v1432, %v1564
  %v1566 = vpop.f32.mrf.mxu0
  %v1567 = vadd.f32 %v1434, %v1566
  %1568 = vmatmul.bf16.gmra.mxu0 %v647
  %v1569 = vpop.f32.mrf.mxu0
  %v1570 = vadd.f32 %v1437, %v1569
  %v1571 = vpop.f32.mrf.mxu0
  %v1572 = vadd.f32 %v1439, %v1571
  %1573 = vmatmul.bf16.gmra.mxu0 %v652
  %v1574 = vpop.f32.mrf.mxu0
  %v1575 = vadd.f32 %v1442, %v1574
  %v1576 = vpop.f32.mrf.mxu0
  %v1577 = vadd.f32 %v1444, %v1576
  %1578 = vmatmul.bf16.gmra.mxu0 %v657
  %v1579 = vpop.f32.mrf.mxu0
  %v1580 = vadd.f32 %v1447, %v1579
  %v1581 = vpop.f32.mrf.mxu0
  %v1582 = vadd.f32 %v1449, %v1581
  %1583 = vmatmul.bf16.gmra.mxu0 %v662
  %v1584 = vpop.f32.mrf.mxu0
  %v1585 = vadd.f32 %v1452, %v1584
  %v1586 = vpop.f32.mrf.mxu0
  %v1587 = vadd.f32 %v1454, %v1586
  %1588 = vmatmul.bf16.gmra.mxu0 %v667
  %v1589 = vpop.f32.mrf.mxu0
  %v1590 = vadd.f32 %v1457, %v1589
  %v1591 = vpop.f32.mrf.mxu0
  %v1592 = vadd.f32 %v1459, %v1591
  %1593 = vmatmul.bf16.gmra.mxu0 %v672
  %v1594 = vpop.f32.mrf.mxu0
  %v1595 = vadd.f32 %v1462, %v1594
  %v1596 = vpop.f32.mrf.mxu0
  %v1597 = vadd.f32 %v1464, %v1596
  %1598 = vmatmul.bf16.gmra.mxu0 %v677
  %v1599 = vpop.f32.mrf.mxu0
  %v1600 = vadd.f32 %v1467, %v1599
  %v1601 = vpop.f32.mrf.mxu0
  %v1602 = vadd.f32 %v1469, %v1601
  %1603 = vmatmul.bf16.gmra.mxu0 %v682
  %v1604 = vpop.f32.mrf.mxu0
  %v1605 = vadd.f32 %v1472, %v1604
  %v1606 = vpop.f32.mrf.mxu0
  %v1607 = vadd.f32 %v1474, %v1606
  %1608 = vmatmul.bf16.gmra.mxu0 %v687
  %v1609 = vpop.f32.mrf.mxu0
  %v1610 = vadd.f32 %v1477, %v1609
  %v1611 = vpop.f32.mrf.mxu0
  %v1612 = vadd.f32 %v1479, %v1611
  %1613 = vmatmul.bf16.gmra.mxu0 %v692
  %v1614 = vpop.f32.mrf.mxu0
  %v1615 = vadd.f32 %v1482, %v1614
  %v1616 = vpop.f32.mrf.mxu0
  %v1617 = vadd.f32 %v1484, %v1616
  %1618 = vmatmul.bf16.gmra.mxu0 %v697
  %v1619 = vpop.f32.mrf.mxu0
  %v1620 = vadd.f32 %v1487, %v1619
  %v1621 = vpop.f32.mrf.mxu0
  %v1622 = vadd.f32 %v1489, %v1621
  %1623 = vmatmul.bf16.gmra.mxu0 %v702
  %v1624 = vpop.f32.mrf.mxu0
  %v1625 = vadd.f32 %v1492, %v1624
  %v1626 = vpop.f32.mrf.mxu0
  %v1627 = vadd.f32 %v1494, %v1626
  %1628 = vmatmul.bf16.gmra.mxu0 %v707
  %v1629 = vpop.f32.mrf.mxu0
  %v1630 = vadd.f32 %v1497, %v1629
  %v1631 = vpop.f32.mrf.mxu0
  %v1632 = vadd.f32 %v1499, %v1631
  %1633 = vmatmul.bf16.gmra.mxu0 %v712
  %v1634 = vpop.f32.mrf.mxu0
  %v1635 = vadd.f32 %v1502, %v1634
  %v1636 = vpop.f32.mrf.mxu0
  %v1637 = vadd.f32 %v1504, %v1636
  %1638 = vmatmul.bf16.gmra.mxu0 %v717
  %v1639 = vpop.f32.mrf.mxu0
  %v1640 = vadd.f32 %v1507, %v1639
  %v1641 = vpop.f32.mrf.mxu0
  %v1642 = vadd.f32 %v1509, %v1641
  %1643 = vmatmul.bf16.gmra.mxu0 %v722
  %v1644 = vpop.f32.mrf.mxu0
  %v1645 = vadd.f32 %v1512, %v1644
  %v1646 = vpop.f32.mrf.mxu0
  %v1647 = vadd.f32 %v1514, %v1646
  %1648 = vmatmul.bf16.gmra.mxu0 %v727
  %v1649 = vpop.f32.mrf.mxu0
  %v1650 = vadd.f32 %v1517, %v1649
  %v1651 = vpop.f32.mrf.mxu0
  %v1652 = vadd.f32 %v1519, %v1651
  %1653 = vmatmul.bf16.gmra.mxu0 %v732
  %v1654 = vpop.f32.mrf.mxu0
  %v1655 = vadd.f32 %v1522, %v1654
  %v1656 = vpop.f32.mrf.mxu0
  %v1657 = vadd.f32 %v1524, %v1656
  %1658 = vmatmul.bf16.gmra.mxu0 %v737
  %v1659 = vpop.f32.mrf.mxu0
  %v1660 = vadd.f32 %v1527, %v1659
  %v1661 = vpop.f32.mrf.mxu0
  %v1662 = vadd.f32 %v1529, %v1661
  %1663 = vmatmul.bf16.gmra.mxu0 %v742
  %v1664 = vpop.f32.mrf.mxu0
  %v1665 = vadd.f32 %v1532, %v1664
  %v1666 = vpop.f32.mrf.mxu0
  %v1667 = vadd.f32 %v1534, %v1666
  %1668 = vmatmul.bf16.gmra.mxu0 %v747
  %v1669 = vpop.f32.mrf.mxu0
  %v1670 = vadd.f32 %v1537, %v1669
  %v1671 = vpop.f32.mrf.mxu0
  %v1672 = vadd.f32 %v1539, %v1671
  %1673 = vmatmul.bf16.gmra.mxu0 %v752
  %v1674 = vpop.f32.mrf.mxu0
  %v1675 = vadd.f32 %v1542, %v1674
  %v1676 = vpop.f32.mrf.mxu0
  %1677 = vdwg.mxu0
  %1678 = vmatpush.bf16.msra.mxu0 0
  %1679 = vmatpush.bf16.msra.mxu0 0
  %1680 = vmatpush.bf16.msra.mxu0 0
  %1681 = vmatpush.bf16.msra.mxu0 0
  %1682 = vmatpush.bf16.msra.mxu0 %v1033
  %1683 = vmatpush.bf16.msra.mxu0 %v1032
  %1684 = vmatpush.bf16.msra.mxu0 %v1031
  %1685 = vmatpush.bf16.msra.mxu0 %v1030
  %1686 = vmatmul.bf16.gmra.mxu0 %v1072
  %v1687 = vpop.f32.mrf.mxu0
  %v1688 = vadd.f32 %v1555, %v1687
  %v1689 = vpop.f32.mrf.mxu0
  %v1690 = vadd.f32 %v1557, %v1689
  %1691 = vmatmul.bf16.gmra.mxu0 %v1075
  %v1692 = vpop.f32.mrf.mxu0
  %v1693 = vadd.f32 %v1560, %v1692
  %v1694 = vpop.f32.mrf.mxu0
  %v1695 = vadd.f32 %v1562, %v1694
  %1696 = vmatmul.bf16.gmra.mxu0 %v1078
  %v1697 = vpop.f32.mrf.mxu0
  %v1698 = vadd.f32 %v1565, %v1697
  %v1699 = vpop.f32.mrf.mxu0
  %v1700 = vadd.f32 %v1567, %v1699
  %1701 = vmatmul.bf16.gmra.mxu0 %v1081
  %v1702 = vpop.f32.mrf.mxu0
  %v1703 = vadd.f32 %v1570, %v1702
  %v1704 = vpop.f32.mrf.mxu0
  %v1705 = vadd.f32 %v1572, %v1704
  %1706 = vmatmul.bf16.gmra.mxu0 %v1084
  %v1707 = vpop.f32.mrf.mxu0
  %v1708 = vadd.f32 %v1575, %v1707
  %v1709 = vpop.f32.mrf.mxu0
  %v1710 = vadd.f32 %v1577, %v1709
  %1711 = vmatmul.bf16.gmra.mxu0 %v1087
  %v1712 = vpop.f32.mrf.mxu0
  %v1713 = vadd.f32 %v1580, %v1712
  %v1714 = vpop.f32.mrf.mxu0
  %v1715 = vadd.f32 %v1582, %v1714
  %1716 = vmatmul.bf16.gmra.mxu0 %v1090
  %v1717 = vpop.f32.mrf.mxu0
  %v1718 = vadd.f32 %v1585, %v1717
  %v1719 = vpop.f32.mrf.mxu0
  %v1720 = vadd.f32 %v1587, %v1719
  %1721 = vmatmul.bf16.gmra.mxu0 %v1093
  %v1722 = vpop.f32.mrf.mxu0
  %v1723 = vadd.f32 %v1590, %v1722
  %v1724 = vpop.f32.mrf.mxu0
  %v1725 = vadd.f32 %v1592, %v1724
  %1726 = vmatmul.bf16.gmra.mxu0 %v1096
  %v1727 = vpop.f32.mrf.mxu0
  %v1728 = vadd.f32 %v1595, %v1727
  %v1729 = vpop.f32.mrf.mxu0
  %v1730 = vadd.f32 %v1597, %v1729
  %1731 = vmatmul.bf16.gmra.mxu0 %v1099
  %v1732 = vpop.f32.mrf.mxu0
  %v1733 = vadd.f32 %v1600, %v1732
  %v1734 = vpop.f32.mrf.mxu0
  %v1735 = vadd.f32 %v1602, %v1734
  %1736 = vmatmul.bf16.gmra.mxu0 %v1102
  %v1737 = vpop.f32.mrf.mxu0
  %v1738 = vadd.f32 %v1605, %v1737
  %v1739 = vpop.f32.mrf.mxu0
  %v1740 = vadd.f32 %v1607, %v1739
  %1741 = vmatmul.bf16.gmra.mxu0 %v1105
  %v1742 = vpop.f32.mrf.mxu0
  %v1743 = vadd.f32 %v1610, %v1742
  %v1744 = vpop.f32.mrf.mxu0
  %v1745 = vadd.f32 %v1612, %v1744
  %1746 = vmatmul.bf16.gmra.mxu0 %v1108
  %v1747 = vpop.f32.mrf.mxu0
  %v1748 = vadd.f32 %v1615, %v1747
  %v1749 = vpop.f32.mrf.mxu0
  %v1750 = vadd.f32 %v1617, %v1749
  %1751 = vmatmul.bf16.gmra.mxu0 %v1111
  %v1752 = vpop.f32.mrf.mxu0
  %v1753 = vadd.f32 %v1620, %v1752
  %v1754 = vpop.f32.mrf.mxu0
  %v1755 = vadd.f32 %v1622, %v1754
  %1756 = vmatmul.bf16.gmra.mxu0 %v1114
  %v1757 = vpop.f32.mrf.mxu0
  %v1758 = vadd.f32 %v1625, %v1757
  %v1759 = vpop.f32.mrf.mxu0
  %v1760 = vadd.f32 %v1627, %v1759
  %1761 = vmatmul.bf16.gmra.mxu0 %v1117
  %v1762 = vpop.f32.mrf.mxu0
  %v1763 = vadd.f32 %v1630, %v1762
  %v1764 = vpop.f32.mrf.mxu0
  %v1765 = vadd.f32 %v1632, %v1764
  %1766 = vmatmul.bf16.gmra.mxu0 %v1120
  %v1767 = vpop.f32.mrf.mxu0
  %v1768 = vadd.f32 %v1635, %v1767
  %v1769 = vpop.f32.mrf.mxu0
  %v1770 = vadd.f32 %v1637, %v1769
  %1771 = vmatmul.bf16.gmra.mxu0 %v1123
  %v1772 = vpop.f32.mrf.mxu0
  %v1773 = vadd.f32 %v1640, %v1772
  %v1774 = vpop.f32.mrf.mxu0
  %v1775 = vadd.f32 %v1642, %v1774
  %1776 = vmatmul.bf16.gmra.mxu0 %v1126
  %v1777 = vpop.f32.mrf.mxu0
  %v1778 = vadd.f32 %v1645, %v1777
  %v1779 = vpop.f32.mrf.mxu0
  %v1780 = vadd.f32 %v1647, %v1779
  %1781 = vmatmul.bf16.gmra.mxu0 %v1129
  %v1782 = vpop.f32.mrf.mxu0
  %v1783 = vadd.f32 %v1650, %v1782
  %v1784 = vpop.f32.mrf.mxu0
  %v1785 = vadd.f32 %v1652, %v1784
  %1786 = vmatmul.bf16.gmra.mxu0 %v1132
  %v1787 = vpop.f32.mrf.mxu0
  %v1788 = vadd.f32 %v1655, %v1787
  %v1789 = vpop.f32.mrf.mxu0
  %v1790 = vadd.f32 %v1657, %v1789
  %1791 = vmatmul.bf16.gmra.mxu0 %v1135
  %v1792 = vpop.f32.mrf.mxu0
  %v1793 = vadd.f32 %v1660, %v1792
  %v1794 = vpop.f32.mrf.mxu0
  %v1795 = vadd.f32 %v1662, %v1794
  %1796 = vmatmul.bf16.gmra.mxu0 %v1138
  %v1797 = vpop.f32.mrf.mxu0
  %v1798 = vadd.f32 %v1665, %v1797
  %v1799 = vpop.f32.mrf.mxu0
  %v1800 = vadd.f32 %v1667, %v1799
  %1801 = vmatmul.bf16.gmra.mxu0 %v1141
  %v1802 = vpop.f32.mrf.mxu0
  %v1803 = vadd.f32 %v1670, %v1802
  %v1804 = vpop.f32.mrf.mxu0
  %v1805 = vadd.f32 %v1672, %v1804
  %1806 = vmatmul.bf16.gmra.mxu0 %v1144
  %v1807 = vpop.f32.mrf.mxu0
  %v1808 = vadd.f32 %v1675, %v1807
  %v1809 = vpop.f32.mrf.mxu0
  %1810 = vdwg.mxu0
  %v1811 = vld [vmem:[%s2] sm:$0x1]
  %v1813 = vperm.slane %v1811, 0
  %v1815 = vmul.f32 %v1688, %v1813
  %v1816 = vmul.f32 %v1690, %v1813
  %v1817 = vmul.f32 %v1693, %v1813
  %v1818 = vmul.f32 %v1695, %v1813
  %v1819 = vmul.f32 %v1698, %v1813
  %v1820 = vmul.f32 %v1700, %v1813
  %v1821 = vmul.f32 %v1703, %v1813
  %v1822 = vmul.f32 %v1705, %v1813
  %v1823 = vmul.f32 %v1708, %v1813
  %v1824 = vmul.f32 %v1710, %v1813
  %v1825 = vmul.f32 %v1713, %v1813
  %v1826 = vmul.f32 %v1715, %v1813
  %v1827 = vmul.f32 %v1718, %v1813
  %v1828 = vmul.f32 %v1720, %v1813
  %v1829 = vmul.f32 %v1723, %v1813
  %v1830 = vmul.f32 %v1725, %v1813
  %v1831 = vmul.f32 %v1728, %v1813
  %v1832 = vmul.f32 %v1730, %v1813
  %v1833 = vmul.f32 %v1733, %v1813
  %v1834 = vmul.f32 %v1735, %v1813
  %v1835 = vmul.f32 %v1738, %v1813
  %v1836 = vmul.f32 %v1740, %v1813
  %v1837 = vmul.f32 %v1743, %v1813
  %v1838 = vmul.f32 %v1745, %v1813
  %v1839 = vmul.f32 %v1748, %v1813
  %v1840 = vmul.f32 %v1750, %v1813
  %v1841 = vmul.f32 %v1753, %v1813
  %v1842 = vmul.f32 %v1755, %v1813
  %v1843 = vmul.f32 %v1758, %v1813
  %v1844 = vmul.f32 %v1760, %v1813
  %v1845 = vmul.f32 %v1763, %v1813
  %v1846 = vmul.f32 %v1765, %v1813
  %v1847 = vmul.f32 %v1768, %v1813
  %v1848 = vmul.f32 %v1770, %v1813
  %v1849 = vmul.f32 %v1773, %v1813
  %v1850 = vmul.f32 %v1775, %v1813
  %v1851 = vmul.f32 %v1778, %v1813
  %v1852 = vmul.f32 %v1780, %v1813
  %v1853 = vmul.f32 %v1783, %v1813
  %v1854 = vmul.f32 %v1785, %v1813
  %v1855 = vmul.f32 %v1788, %v1813
  %v1856 = vmul.f32 %v1790, %v1813
  %v1857 = vmul.f32 %v1793, %v1813
  %v1858 = vmul.f32 %v1795, %v1813
  %v1859 = vmul.f32 %v1798, %v1813
  %v1860 = vmul.f32 %v1800, %v1813
  %v1861 = vmul.f32 %v1803, %v1813
  %v1862 = vmul.f32 %v1805, %v1813
  %v1863 = vmul.f32 %v1808, %v1813
  %v1864 = vld [vmem:[%s3] sm:$0x1]
  %v1866 = vperm.slane %v1864, 0
  %v1868 = vadd.f32 %v1815, %v1866
  %v1869 = vadd.f32 %v1816, %v1866
  %v1870 = vadd.f32 %v1817, %v1866
  %v1871 = vadd.f32 %v1818, %v1866
  %v1872 = vadd.f32 %v1819, %v1866
  %v1873 = vadd.f32 %v1820, %v1866
  %v1874 = vadd.f32 %v1821, %v1866
  %v1875 = vadd.f32 %v1822, %v1866
  %v1876 = vadd.f32 %v1823, %v1866
  %v1877 = vadd.f32 %v1824, %v1866
  %v1878 = vadd.f32 %v1825, %v1866
  %v1879 = vadd.f32 %v1826, %v1866
  %v1880 = vadd.f32 %v1827, %v1866
  %v1881 = vadd.f32 %v1828, %v1866
  %v1882 = vadd.f32 %v1829, %v1866
  %v1883 = vadd.f32 %v1830, %v1866
  %v1884 = vadd.f32 %v1831, %v1866
  %v1885 = vadd.f32 %v1832, %v1866
  %v1886 = vadd.f32 %v1833, %v1866
  %v1887 = vadd.f32 %v1834, %v1866
  %v1888 = vadd.f32 %v1835, %v1866
  %v1889 = vadd.f32 %v1836, %v1866
  %v1890 = vadd.f32 %v1837, %v1866
  %v1891 = vadd.f32 %v1838, %v1866
  %v1892 = vadd.f32 %v1839, %v1866
  %v1893 = vadd.f32 %v1840, %v1866
  %v1894 = vadd.f32 %v1841, %v1866
  %v1895 = vadd.f32 %v1842, %v1866
  %v1896 = vadd.f32 %v1843, %v1866
  %v1897 = vadd.f32 %v1844, %v1866
  %v1898 = vadd.f32 %v1845, %v1866
  %v1899 = vadd.f32 %v1846, %v1866
  %v1900 = vadd.f32 %v1847, %v1866
  %v1901 = vadd.f32 %v1848, %v1866
  %v1902 = vadd.f32 %v1849, %v1866
  %v1903 = vadd.f32 %v1850, %v1866
  %v1904 = vadd.f32 %v1851, %v1866
  %v1905 = vadd.f32 %v1852, %v1866
  %v1906 = vadd.f32 %v1853, %v1866
  %v1907 = vadd.f32 %v1854, %v1866
  %v1908 = vadd.f32 %v1855, %v1866
  %v1909 = vadd.f32 %v1856, %v1866
  %v1910 = vadd.f32 %v1857, %v1866
  %v1911 = vadd.f32 %v1858, %v1866
  %v1912 = vadd.f32 %v1859, %v1866
  %v1913 = vadd.f32 %v1860, %v1866
  %v1914 = vadd.f32 %v1861, %v1866
  %v1915 = vadd.f32 %v1862, %v1866
  %v1916 = vadd.f32 %v1863, %v1866
  %v1917 = vmax.f32 %v1868, 0.0
  %v1918 = vmax.f32 %v1869, 0.0
  %v1919 = vmax.f32 %v1870, 0.0
  %v1920 = vmax.f32 %v1871, 0.0
  %v1921 = vmax.f32 %v1872, 0.0
  %v1922 = vmax.f32 %v1873, 0.0
  %v1923 = vmax.f32 %v1874, 0.0
  %v1924 = vmax.f32 %v1875, 0.0
  %v1925 = vmax.f32 %v1876, 0.0
  %v1926 = vmax.f32 %v1877, 0.0
  %v1927 = vmax.f32 %v1878, 0.0
  %v1928 = vmax.f32 %v1879, 0.0
  %v1929 = vmax.f32 %v1880, 0.0
  %v1930 = vmax.f32 %v1881, 0.0
  %v1931 = vmax.f32 %v1882, 0.0
  %v1932 = vmax.f32 %v1883, 0.0
  %v1933 = vmax.f32 %v1884, 0.0
  %v1934 = vmax.f32 %v1885, 0.0
  %v1935 = vmax.f32 %v1886, 0.0
  %v1936 = vmax.f32 %v1887, 0.0
  %v1937 = vmax.f32 %v1888, 0.0
  %v1938 = vmax.f32 %v1889, 0.0
  %v1939 = vmax.f32 %v1890, 0.0
  %v1940 = vmax.f32 %v1891, 0.0
  %v1941 = vmax.f32 %v1892, 0.0
  %v1942 = vmax.f32 %v1893, 0.0
  %v1943 = vmax.f32 %v1894, 0.0
  %v1944 = vmax.f32 %v1895, 0.0
  %v1945 = vmax.f32 %v1896, 0.0
  %v1946 = vmax.f32 %v1897, 0.0
  %v1947 = vmax.f32 %v1898, 0.0
  %v1948 = vmax.f32 %v1899, 0.0
  %v1949 = vmax.f32 %v1900, 0.0
  %v1950 = vmax.f32 %v1901, 0.0
  %v1951 = vmax.f32 %v1902, 0.0
  %v1952 = vmax.f32 %v1903, 0.0
  %v1953 = vmax.f32 %v1904, 0.0
  %v1954 = vmax.f32 %v1905, 0.0
  %v1955 = vmax.f32 %v1906, 0.0
  %v1956 = vmax.f32 %v1907, 0.0
  %v1957 = vmax.f32 %v1908, 0.0
  %v1958 = vmax.f32 %v1909, 0.0
  %v1959 = vmax.f32 %v1910, 0.0
  %v1960 = vmax.f32 %v1911, 0.0
  %v1961 = vmax.f32 %v1912, 0.0
  %v1962 = vmax.f32 %v1913, 0.0
  %v1963 = vmax.f32 %v1914, 0.0
  %v1964 = vmax.f32 %v1915, 0.0
  %v1965 = vmax.f32 %v1916, 0.0
  %v1966 = vpack.c.bf16 %v1917, %v1917
  %v1967 = vpack.c.bf16 %v1918, %v1918
  %v1968 = vpack.c.bf16 %v1919, %v1919
  %v1969 = vpack.c.bf16 %v1920, %v1920
  %v1970 = vpack.c.bf16 %v1921, %v1921
  %v1971 = vpack.c.bf16 %v1922, %v1922
  %v1972 = vpack.c.bf16 %v1923, %v1923
  %v1973 = vpack.c.bf16 %v1924, %v1924
  %v1974 = vpack.c.bf16 %v1925, %v1925
  %v1975 = vpack.c.bf16 %v1926, %v1926
  %v1976 = vpack.c.bf16 %v1927, %v1927
  %v1977 = vpack.c.bf16 %v1928, %v1928
  %v1978 = vpack.c.bf16 %v1929, %v1929
  %v1979 = vpack.c.bf16 %v1930, %v1930
  %v1980 = vpack.c.bf16 %v1931, %v1931
  %v1981 = vpack.c.bf16 %v1932, %v1932
  %v1982 = vpack.c.bf16 %v1933, %v1933
  %v1983 = vpack.c.bf16 %v1934, %v1934
  %v1984 = vpack.c.bf16 %v1935, %v1935
  %v1985 = vpack.c.bf16 %v1936, %v1936
  %v1986 = vpack.c.bf16 %v1937, %v1937
  %v1987 = vpack.c.bf16 %v1938, %v1938
  %v1988 = vpack.c.bf16 %v1939, %v1939
  %v1989 = vpack.c.bf16 %v1940, %v1940
  %v1990 = vpack.c.bf16 %v1941, %v1941
  %v1991 = vpack.c.bf16 %v1942, %v1942
  %v1992 = vpack.c.bf16 %v1943, %v1943
  %v1993 = vpack.c.bf16 %v1944, %v1944
  %v1994 = vpack.c.bf16 %v1945, %v1945
  %v1995 = vpack.c.bf16 %v1946, %v1946
  %v1996 = vpack.c.bf16 %v1947, %v1947
  %v1997 = vpack.c.bf16 %v1948, %v1948
  %v1998 = vpack.c.bf16 %v1949, %v1949
  %v1999 = vpack.c.bf16 %v1950, %v1950
  %v2000 = vpack.c.bf16 %v1951, %v1951
  %v2001 = vpack.c.bf16 %v1952, %v1952
  %v2002 = vpack.c.bf16 %v1953, %v1953
  %v2003 = vpack.c.bf16 %v1954, %v1954
  %v2004 = vpack.c.bf16 %v1955, %v1955
  %v2005 = vpack.c.bf16 %v1956, %v1956
  %v2006 = vpack.c.bf16 %v1957, %v1957
  %v2007 = vpack.c.bf16 %v1958, %v1958
  %v2008 = vpack.c.bf16 %v1959, %v1959
  %v2009 = vpack.c.bf16 %v1960, %v1960
  %v2010 = vpack.c.bf16 %v1961, %v1961
  %v2011 = vpack.c.bf16 %v1962, %v1962
  %v2012 = vpack.c.bf16 %v1963, %v1963
  %v2013 = vpack.c.bf16 %v1964, %v1964
  %v2014 = vpack.c.bf16 %v1965, %v1965
  %vm2015 = vcmask 519168
  %2016 = vst.msk [vmem:[%s4] sm:$0xf] %vm2015, %v1966
  %2017 = vst.msk [vmem:[%s4 + $0x4] sm:$0xf] %vm2015, %v1967
  %2018 = vst.msk [vmem:[%s4 + $0x8] sm:$0xf] %vm2015, %v1968
  %2019 = vst.msk [vmem:[%s4 + $0xc] sm:$0xf] %vm2015, %v1969
  %2020 = vst.msk [vmem:[%s4 + $0x10] sm:$0xf] %vm2015, %v1970
  %2021 = vst.msk [vmem:[%s4 + $0x14] sm:$0xf] %vm2015, %v1971
  %2022 = vst.msk [vmem:[%s4 + $0x18] sm:$0xf] %vm2015, %v1972
  %2023 = vst.msk [vmem:[%s4 + $0x1c] sm:$0xf] %vm2015, %v1973
  %2024 = vst.msk [vmem:[%s4 + $0x20] sm:$0xf] %vm2015, %v1974
  %2025 = vst.msk [vmem:[%s4 + $0x24] sm:$0xf] %vm2015, %v1975
  %2026 = vst.msk [vmem:[%s4 + $0x28] sm:$0xf] %vm2015, %v1976
  %2027 = vst.msk [vmem:[%s4 + $0x2c] sm:$0xf] %vm2015, %v1977
  %2028 = vst.msk [vmem:[%s4 + $0x30] sm:$0xf] %vm2015, %v1978
  %2029 = vst.msk [vmem:[%s4 + $0x34] sm:$0xf] %vm2015, %v1979
  %2030 = vst.msk [vmem:[%s4 + $0x38] sm:$0xf] %vm2015, %v1980
  %2031 = vst.msk [vmem:[%s4 + $0x3c] sm:$0xf] %vm2015, %v1981
  %2032 = vst.msk [vmem:[%s4 + $0x40] sm:$0xf] %vm2015, %v1982
  %2033 = vst.msk [vmem:[%s4 + $0x44] sm:$0xf] %vm2015, %v1983
  %2034 = vst.msk [vmem:[%s4 + $0x48] sm:$0xf] %vm2015, %v1984
  %2035 = vst.msk [vmem:[%s4 + $0x4c] sm:$0xf] %vm2015, %v1985
  %2036 = vst.msk [vmem:[%s4 + $0x50] sm:$0xf] %vm2015, %v1986
  %2037 = vst.msk [vmem:[%s4 + $0x54] sm:$0xf] %vm2015, %v1987
  %2038 = vst.msk [vmem:[%s4 + $0x58] sm:$0xf] %vm2015, %v1988
  %2039 = vst.msk [vmem:[%s4 + $0x5c] sm:$0xf] %vm2015, %v1989
  %2040 = vst.msk [vmem:[%s4 + $0x60] sm:$0xf] %vm2015, %v1990
  %2041 = vst.msk [vmem:[%s4 + $0x64] sm:$0xf] %vm2015, %v1991
  %2042 = vst.msk [vmem:[%s4 + $0x68] sm:$0xf] %vm2015, %v1992
  %2043 = vst.msk [vmem:[%s4 + $0x6c] sm:$0xf] %vm2015, %v1993
  %2044 = vst.msk [vmem:[%s4 + $0x70] sm:$0xf] %vm2015, %v1994
  %2045 = vst.msk [vmem:[%s4 + $0x74] sm:$0xf] %vm2015, %v1995
  %2046 = vst.msk [vmem:[%s4 + $0x78] sm:$0xf] %vm2015, %v1996
  %2047 = vst.msk [vmem:[%s4 + $0x7c] sm:$0xf] %vm2015, %v1997
  %2048 = vst.msk [vmem:[%s4 + $0x80] sm:$0xf] %vm2015, %v1998
  %2049 = vst.msk [vmem:[%s4 + $0x84] sm:$0xf] %vm2015, %v1999
  %2050 = vst.msk [vmem:[%s4 + $0x88] sm:$0xf] %vm2015, %v2000
  %2051 = vst.msk [vmem:[%s4 + $0x8c] sm:$0xf] %vm2015, %v2001
  %2052 = vst.msk [vmem:[%s4 + $0x90] sm:$0xf] %vm2015, %v2002
  %2053 = vst.msk [vmem:[%s4 + $0x94] sm:$0xf] %vm2015, %v2003
  %2054 = vst.msk [vmem:[%s4 + $0x98] sm:$0xf] %vm2015, %v2004
  %2055 = vst.msk [vmem:[%s4 + $0x9c] sm:$0xf] %vm2015, %v2005
  %2056 = vst.msk [vmem:[%s4 + $0xa0] sm:$0xf] %vm2015, %v2006
  %2057 = vst.msk [vmem:[%s4 + $0xa4] sm:$0xf] %vm2015, %v2007
  %2058 = vst.msk [vmem:[%s4 + $0xa8] sm:$0xf] %vm2015, %v2008
  %2059 = vst.msk [vmem:[%s4 + $0xac] sm:$0xf] %vm2015, %v2009
  %2060 = vst.msk [vmem:[%s4 + $0xb0] sm:$0xf] %vm2015, %v2010
  %2061 = vst.msk [vmem:[%s4 + $0xb4] sm:$0xf] %vm2015, %v2011
  %2062 = vst.msk [vmem:[%s4 + $0xb8] sm:$0xf] %vm2015, %v2012
  %2063 = vst.msk [vmem:[%s4 + $0xbc] sm:$0xf] %vm2015, %v2013
  %2064 = vst.msk [vmem:[%s4 + $0xc0] sm:$0xf] %vm2015, %v2014
  // Predicated region
  $region18: #{dqn_lstm_forward.7} parent=0 // pred_check
    _
  $region19: #{dqn_lstm_forward.7} parent=0 // pred_check_branch
    %2066 = sbr.rel (0) target = $region21
  $region20: #{dqn_lstm_forward.7} parent=0 // pred_region
    _
  $region21: #{dqn_lstm_forward.7} parent=0 // pred_fallthru
    _
  // Predicated region
  $region22: #{dqn_lstm_forward.7} parent=0 // pred_check
    _
  $region23: #{dqn_lstm_forward.7} parent=0 // pred_check_branch
    %2068 = sbr.rel (0) target = $region25
  $region24: #{dqn_lstm_forward.7} parent=0 // pred_region
    _
  $region25: #{dqn_lstm_forward.7} parent=0 // pred_fallthru
    _

// kernel: dqn_lstm_forward.9
$region0: #{dqn_lstm_forward.9}
  #allocation0 [shape = 'u32[]', space=smem, size = 0x4, offset = 0x4, fixed_abs, tag = 'smem constant byte address 0x4 - core index']
  #allocation1 [shape = 'u32[72,128]{1,0:T(1,128)}', space=vmem, size = 0x9000, scoped, tag = 'internal scratch']
  %s0 = inlined_call_operand.vmem [shape: f32[4,2,1024], index: 0, kind: input, shape index: {}]
  %s1 = inlined_call_operand.vmem [shape: bf16[256,1024], index: 1, kind: input, shape index: {}]
  %s2 = inlined_call_operand.vmem [shape: bf16[256,128], index: 2, kind: input, shape index: {}]
  %s3 = inlined_call_operand.vmem [shape: f32[1,128], index: 3, kind: input, shape index: {}]
  %s4 = inlined_call_operand.hbm [shape: f32[2,128], index: 4, kind: output, shape index: {0}]
  %s5 = inlined_call_operand.hbm [shape: f32[2,256], index: 5, kind: output, shape index: {1}]
  %s6 = inlined_call_operand.hbm [shape: f32[2,256], index: 6, kind: output, shape index: {2}]
  %7 = xla_tuple %s4, %s5, %s6
  %s8 = sld [smem:[#allocation0]]
  $region73: #{dqn_lstm_forward.9} parent=0
    _
  %s10 = ssub.s32 1, %s8
  %s11 = scalar_select 0, %s10, %s8
  $region1: #{dqn_lstm_forward.9} parent=0
    #allocation2 [shape = 'u8[1024]{0}', space=vmem, size = 0x400, scoped, tag = 'output window, operand 0, single buffered']
    #allocation3 [shape = 's32[2]{0}', space=sflag, size = 0x8, scoped, tag = 'scoped memory for dqn_lstm_forward.9']
    #allocation4 [shape = 'u8[2048]{0}', space=vmem, size = 0x800, scoped, tag = 'output window, operand 1, single buffered']
    #allocation5 [shape = 's32[1]{0}', space=sflag, size = 0x4, scoped, tag = 'scoped memory for dqn_lstm_forward.9']
    #allocation6 [shape = 'u8[2048]{0}', space=vmem, size = 0x800, scoped, tag = 'output window, operand 2, single buffered']
    %12 = vsyncpa [#allocation3], 0
    %13 = vsyncpa [#allocation5], 0
    loop: start=0, step=1, limit=6
    $region2: #{dqn_lstm_forward.9} parent=1 // loop_pre_header
      _
    $region3: #{dqn_lstm_forward.9} parent=1 // loop_header
      %s15 = sphi 0, %s19
      %p16 = scmp.ge.s32.totalorder %s15, 6
      %s25 = sphi 0, %s27
      %s28 = sphi 0, %s25
      %s29 = sphi 0, %s28
      %s45 = sphi 0, %s29
      %s49 = sphi 0, %s49
      %s51 = sphi 0, %s49
      %s52 = sphi 0, %s51
      %s66 = sphi 0, %s52
      %s70 = sphi 0, %s70
      %s72 = sphi 0, %s70
      %s73 = sphi 0, %s72
      %s87 = sphi 0, %s73
      %s91 = sphi 0, %s91
      %s93 = sphi 0, %s91
      %s94 = sphi 0, %s93
      %s108 = sphi 0, %s94
      %s112 = sphi 0, %s112
      %s114 = sphi 0, %s112
      %s115 = sphi 0, %s114
      %s129 = sphi 0, %s115
      %s133 = sphi 0, %s133
      %s135 = sphi 0, %s133
      %s136 = sphi 0, %s135
      %s150 = sphi 0, %s136
      %s154 = sphi 0, %s154
      %s156 = sphi 0, %s154
      %s157 = sphi 0, %s156
      %s171 = sphi 0, %s157
    $region4: #{dqn_lstm_forward.9} parent=1 // loop_header_branch
      %18 = sbr.rel (%p16) target = $region8
    $region5: #{dqn_lstm_forward.9} parent=1 // loop_body
      %s20 = ssub.s32 %s15, 1
      %s21 = ssub.s32 %s15, 2
      %s22 = sadd.s32 %s15, 1
      %s23 = ssub.s32 %s15, %s22
      %p24 = scmp.eq.s32.totalorder %s23, 0
      %s26 = sadd.s32 %s25, 1
      %s27 = scalar_select %p24, %s25, %s26
      %p30 = pneg %p24
      %p31 = scmp.eq.s32.totalorder %s15, 3
      %p32 = por %p30, %p31
      %p33 = scmp.ne.s32.totalorder %s25, %s28
      %p34 = scmp.eq.s32.totalorder %s15, 0
      %p35 = por %p33, %p34
      %p36 = scmp.ne.s32.totalorder %s25, %s28
      %p37 = scmp.eq.s32.totalorder %s20, 3
      %p38 = por %p36, %p37
      %p39 = scmp.ne.s32.totalorder %s28, %s29
      %p40 = scmp.eq.s32.totalorder %s20, 0
      %p41 = por %p39, %p40
      %p42 = scmp.ne.s32.totalorder %s28, %s29
      %p43 = scmp.eq.s32.totalorder %s21, 3
      %p44 = por %p42, %p43
      %p46 = scmp.ne.s32.totalorder %s29, %s45
      %p47 = scmp.eq.s32.totalorder %s21, 0
      %p48 = por %p46, %p47
      %s50 = sadd.s32 %s49, 1
      %p53 = scmp.eq.s32.totalorder %s15, 3
      %p54 = scmp.ne.s32.totalorder %s49, %s51
      %p55 = scmp.eq.s32.totalorder %s15, 0
      %p56 = por %p54, %p55
      %p57 = scmp.ne.s32.totalorder %s49, %s51
      %p58 = scmp.eq.s32.totalorder %s20, 3
      %p59 = por %p57, %p58
      %p60 = scmp.ne.s32.totalorder %s51, %s52
      %p61 = scmp.eq.s32.totalorder %s20, 0
      %p62 = por %p60, %p61
      %p63 = scmp.ne.s32.totalorder %s51, %s52
      %p64 = scmp.eq.s32.totalorder %s21, 3
      %p65 = por %p63, %p64
      %p67 = scmp.ne.s32.totalorder %s52, %s66
      %p68 = scmp.eq.s32.totalorder %s21, 0
      %p69 = por %p67, %p68
      %s71 = sadd.s32 %s70, 1
      %p74 = scmp.eq.s32.totalorder %s15, 3
      %p75 = scmp.ne.s32.totalorder %s70, %s72
      %p76 = scmp.eq.s32.totalorder %s15, 0
      %p77 = por %p75, %p76
      %p78 = scmp.ne.s32.totalorder %s70, %s72
      %p79 = scmp.eq.s32.totalorder %s20, 3
      %p80 = por %p78, %p79
      %p81 = scmp.ne.s32.totalorder %s72, %s73
      %p82 = scmp.eq.s32.totalorder %s20, 0
      %p83 = por %p81, %p82
      %p84 = scmp.ne.s32.totalorder %s72, %s73
      %p85 = scmp.eq.s32.totalorder %s21, 3
      %p86 = por %p84, %p85
      %p88 = scmp.ne.s32.totalorder %s73, %s87
      %p89 = scmp.eq.s32.totalorder %s21, 0
      %p90 = por %p88, %p89
      %s92 = sadd.s32 %s91, 1
      %p95 = scmp.eq.s32.totalorder %s15, 3
      %p96 = scmp.ne.s32.totalorder %s91, %s93
      %p97 = scmp.eq.s32.totalorder %s15, 0
      %p98 = por %p96, %p97
      %p99 = scmp.ne.s32.totalorder %s91, %s93
      %p100 = scmp.eq.s32.totalorder %s20, 3
      %p101 = por %p99, %p100
      %p102 = scmp.ne.s32.totalorder %s93, %s94
      %p103 = scmp.eq.s32.totalorder %s20, 0
      %p104 = por %p102, %p103
      %p105 = scmp.ne.s32.totalorder %s93, %s94
      %p106 = scmp.eq.s32.totalorder %s21, 3
      %p107 = por %p105, %p106
      %p109 = scmp.ne.s32.totalorder %s94, %s108
      %p110 = scmp.eq.s32.totalorder %s21, 0
      %p111 = por %p109, %p110
      %s113 = sadd.s32 %s112, 1
      %p116 = scmp.eq.s32.totalorder %s15, 3
      %p117 = scmp.ne.s32.totalorder %s112, %s114
      %p118 = scmp.eq.s32.totalorder %s15, 0
      %p119 = por %p117, %p118
      %p120 = scmp.ne.s32.totalorder %s112, %s114
      %p121 = scmp.eq.s32.totalorder %s20, 3
      %p122 = por %p120, %p121
      %p123 = scmp.ne.s32.totalorder %s114, %s115
      %p124 = scmp.eq.s32.totalorder %s20, 0
      %p125 = por %p123, %p124
      %p126 = scmp.ne.s32.totalorder %s114, %s115
      %p127 = scmp.eq.s32.totalorder %s21, 3
      %p128 = por %p126, %p127
      %p130 = scmp.ne.s32.totalorder %s115, %s129
      %p131 = scmp.eq.s32.totalorder %s21, 0
      %p132 = por %p130, %p131
      %s134 = sadd.s32 %s133, 1
      %p137 = scmp.eq.s32.totalorder %s15, 3
      %p138 = scmp.ne.s32.totalorder %s133, %s135
      %p139 = scmp.eq.s32.totalorder %s15, 0
      %p140 = por %p138, %p139
      %p141 = scmp.ne.s32.totalorder %s133, %s135
      %p142 = scmp.eq.s32.totalorder %s20, 3
      %p143 = por %p141, %p142
      %p144 = scmp.ne.s32.totalorder %s135, %s136
      %p145 = scmp.eq.s32.totalorder %s20, 0
      %p146 = por %p144, %p145
      %p147 = scmp.ne.s32.totalorder %s135, %s136
      %p148 = scmp.eq.s32.totalorder %s21, 3
      %p149 = por %p147, %p148
      %p151 = scmp.ne.s32.totalorder %s136, %s150
      %p152 = scmp.eq.s32.totalorder %s21, 0
      %p153 = por %p151, %p152
      %s155 = sadd.s32 %s154, 1
      %p158 = scmp.eq.s32.totalorder %s15, 3
      %p159 = scmp.ne.s32.totalorder %s154, %s156
      %p160 = scmp.eq.s32.totalorder %s15, 0
      %p161 = por %p159, %p160
      %p162 = scmp.ne.s32.totalorder %s154, %s156
      %p163 = scmp.eq.s32.totalorder %s20, 3
      %p164 = por %p162, %p163
      %p165 = scmp.ne.s32.totalorder %s156, %s157
      %p166 = scmp.eq.s32.totalorder %s20, 0
      %p167 = por %p165, %p166
      %p168 = scmp.ne.s32.totalorder %s156, %s157
      %p169 = scmp.eq.s32.totalorder %s21, 3
      %p170 = por %p168, %p169
      %p172 = scmp.ne.s32.totalorder %s157, %s171
      %p173 = scmp.eq.s32.totalorder %s21, 0
      %p174 = por %p172, %p173
      %p175 = scmp.le.s32.totalorder 1, %s15
      %p176 = scmp.lt.s32.totalorder %s15, 5
      %p177 = pnand %p175, %p176
      %p178 = pneg %p177
      // Predicated region
      $region9: #{dqn_lstm_forward.9} parent=5 // pred_check
        _
      $region10: #{dqn_lstm_forward.9} parent=5 // pred_check_branch
        %180 = sbr.rel (%p177) target = $region12
      $region11: #{dqn_lstm_forward.9} parent=5 // pred_region
        %s181 = ssub.s32 %s15, 1
        // Predicated region
        $region13: #{dqn_lstm_forward.9} parent=11 // pred_check
          %p182 = pneg %p62
        $region14: #{dqn_lstm_forward.9} parent=11 // pred_check_branch
          %184 = sbr.rel (%p182) target = $region16
        $region15: #{dqn_lstm_forward.9} parent=11 // pred_region
          _
        $region16: #{dqn_lstm_forward.9} parent=11 // pred_fallthru
          _
        // Predicated region
        $region17: #{dqn_lstm_forward.9} parent=11 // pred_check
          %p185 = pneg %p83
        $region18: #{dqn_lstm_forward.9} parent=11 // pred_check_branch
          %187 = sbr.rel (%p185) target = $region20
        $region19: #{dqn_lstm_forward.9} parent=11 // pred_region
          _
        $region20: #{dqn_lstm_forward.9} parent=11 // pred_fallthru
          _
        // Predicated region
        $region21: #{dqn_lstm_forward.9} parent=11 // pred_check
          %p188 = pneg %p104
        $region22: #{dqn_lstm_forward.9} parent=11 // pred_check_branch
          %190 = sbr.rel (%p188) target = $region24
        $region23: #{dqn_lstm_forward.9} parent=11 // pred_region
          _
        $region24: #{dqn_lstm_forward.9} parent=11 // pred_fallthru
          _
      $region12: #{dqn_lstm_forward.9} parent=5 // pred_fallthru
        _
      %p191 = scmp.lt.s32.totalorder %s15, 4
      // Predicated region
      $region25: #{dqn_lstm_forward.9} parent=5 // pred_check
        %p192 = pneg %p191
      $region26: #{dqn_lstm_forward.9} parent=5 // pred_check_branch
        %194 = sbr.rel (%p192) target = $region28
      $region27: #{dqn_lstm_forward.9} parent=5 // pred_region
        // Predicated region
        $region29: #{dqn_lstm_forward.9} parent=27 // pred_check
          %p195 = pneg %p35
        $region30: #{dqn_lstm_forward.9} parent=27 // pred_check_branch
          %197 = sbr.rel (%p195) target = $region32
        $region31: #{dqn_lstm_forward.9} parent=27 // pred_region
          %p198 = scmp.lt.s32.totalorder %s15, 3
          %s199 = scalar_select %p198, %s15, 3
          %s200 = smul.addr %s199, 8
          %s201 = smul.addr %s200, 2
          %s202 = scalar_lea.vmem %s0, %s201
        $region32: #{dqn_lstm_forward.9} parent=27 // pred_fallthru
          _
      $region28: #{dqn_lstm_forward.9} parent=5 // pred_fallthru
        _
      %p203 = scmp.le.s32.totalorder 1, %s15
      %p204 = scmp.lt.s32.totalorder %s15, 5
      %p205 = pnand %p203, %p204
      %p206 = pneg %p205
      // Predicated region
      $region33: #{dqn_lstm_forward.9} parent=5 // pred_check
        _
      $region34: #{dqn_lstm_forward.9} parent=5 // pred_check_branch
        %208 = sbr.rel (%p205) target = $region36
      $region35: #{dqn_lstm_forward.9} parent=5 // pred_region
        %s209 = ssub.s32 %s15, 1
        %p210 = scmp.lt.s32.totalorder %s20, 3
        %s211 = scalar_select %p210, %s20, 3
        %s212 = smul.addr %s211, 8
        %s213 = smul.addr %s212, 2
        %s214 = scalar_lea.vmem %s0, %s213
        %p215 = pneg %p41
        %p216 = pneg %p38
        %p217 = pneg %p62
        %p218 = pneg %p59
        %p219 = pneg %p83
        %p220 = pneg %p80
        %p221 = pneg %p104
        %p222 = pneg %p101
        %p223 = pneg %p125
        %p224 = pneg %p122
        %p225 = pneg %p146
        %p226 = pneg %p143
        %p227 = pneg %p167
        %p228 = pneg %p164
        %p229 = scmp.lt.s32.totalorder %s20, 3
        %s230 = scalar_select %p229, %s20, 3
        %s231 = smul.addr %s230, 8
        %s232 = smul.addr %s231, 2
        %s233 = scalar_lea.vmem %s0, %s232
        %p234 = scmp.eq.s32.totalorder %s20, 0
        // Predicated region
        $region37: #{dqn_lstm_forward.9} parent=35 // pred_check
          %p235 = pneg %p234
        $region38: #{dqn_lstm_forward.9} parent=35 // pred_check_branch
          %237 = sbr.rel (%p235) target = $region40
        $region39: #{dqn_lstm_forward.9} parent=35 // pred_region
          %238 = vst [vmem:[#allocation4] sm:$0xf] 0.0
          %239 = vst [vmem:[#allocation6] sm:$0xf] 0.0
        $region40: #{dqn_lstm_forward.9} parent=35 // pred_fallthru
          _
        %v240 = vld [vmem:[%s233] sm:$0xff]
        %v241 = vld [vmem:[%s233 + $0x8] sm:$0xff]
        %v242 = vld [vmem:[#allocation4] sm:$0xf]
        %244 = vst [vmem:[#allocation1] ss:$4 sm:$0xff] %v242
        %v245 = vld.sshfl [vmem:[#allocation1] sm:$0xff pattern:$0x73625140]
        %v246 = vld.sshfl [vmem:[#allocation1 + $0x8] sm:$0xff pattern:$0x73625140]
        %v249 = vpack.c.bf16 %v245, %v245
        %v250 = vpack.c.bf16 %v246, %v246
        %v251 = vld [vmem:[%s1] sm:$0xff]
        %v252 = vld [vmem:[%s1 + $0x8] sm:$0xff]
        %v253 = vld [vmem:[%s1 + $0x10] sm:$0xff]
        %v254 = vld [vmem:[%s1 + $0x18] sm:$0xff]
        %v255 = vld [vmem:[%s1 + $0x20] sm:$0xff]
        %v256 = vld [vmem:[%s1 + $0x28] sm:$0xff]
        %v257 = vld [vmem:[%s1 + $0x30] sm:$0xff]
        %v258 = vld [vmem:[%s1 + $0x38] sm:$0xff]
        %v259 = vld [vmem:[%s1 + $0x40] sm:$0xff]
        %v260 = vld [vmem:[%s1 + $0x48] sm:$0xff]
        %v261 = vld [vmem:[%s1 + $0x50] sm:$0xff]
        %v262 = vld [vmem:[%s1 + $0x58] sm:$0xff]
        %v263 = vld [vmem:[%s1 + $0x60] sm:$0xff]
        %v264 = vld [vmem:[%s1 + $0x68] sm:$0xff]
        %v265 = vld [vmem:[%s1 + $0x70] sm:$0xff]
        %v266 = vld [vmem:[%s1 + $0x78] sm:$0xff]
        %v267 = vld [vmem:[%s1 + $0x80] sm:$0xff]
        %v268 = vld [vmem:[%s1 + $0x88] sm:$0xff]
        %v269 = vld [vmem:[%s1 + $0x90] sm:$0xff]
        %v270 = vld [vmem:[%s1 + $0x98] sm:$0xff]
        %v271 = vld [vmem:[%s1 + $0xa0] sm:$0xff]
        %v272 = vld [vmem:[%s1 + $0xa8] sm:$0xff]
        %v273 = vld [vmem:[%s1 + $0xb0] sm:$0xff]
        %v274 = vld [vmem:[%s1 + $0xb8] sm:$0xff]
        %v275 = vld [vmem:[%s1 + $0xc0] sm:$0xff]
        %v276 = vld [vmem:[%s1 + $0xc8] sm:$0xff]
        %v277 = vld [vmem:[%s1 + $0xd0] sm:$0xff]
        %v278 = vld [vmem:[%s1 + $0xd8] sm:$0xff]
        %v279 = vld [vmem:[%s1 + $0xe0] sm:$0xff]
        %v280 = vld [vmem:[%s1 + $0xe8] sm:$0xff]
        %v281 = vld [vmem:[%s1 + $0xf0] sm:$0xff]
        %v282 = vld [vmem:[%s1 + $0xf8] sm:$0xff]
        %v283 = vld [vmem:[%s1 + $0x100] sm:$0xff]
        %v284 = vld [vmem:[%s1 + $0x108] sm:$0xff]
        %v285 = vld [vmem:[%s1 + $0x110] sm:$0xff]
        %v286 = vld [vmem:[%s1 + $0x118] sm:$0xff]
        %v287 = vld [vmem:[%s1 + $0x120] sm:$0xff]
        %v288 = vld [vmem:[%s1 + $0x128] sm:$0xff]
        %v289 = vld [vmem:[%s1 + $0x130] sm:$0xff]
        %v290 = vld [vmem:[%s1 + $0x138] sm:$0xff]
        %v291 = vld [vmem:[%s1 + $0x140] sm:$0xff]
        %v292 = vld [vmem:[%s1 + $0x148] sm:$0xff]
        %v293 = vld [vmem:[%s1 + $0x150] sm:$0xff]
        %v294 = vld [vmem:[%s1 + $0x158] sm:$0xff]
        %v295 = vld [vmem:[%s1 + $0x160] sm:$0xff]
        %v296 = vld [vmem:[%s1 + $0x168] sm:$0xff]
        %v297 = vld [vmem:[%s1 + $0x170] sm:$0xff]
        %v298 = vld [vmem:[%s1 + $0x178] sm:$0xff]
        %v299 = vld [vmem:[%s1 + $0x180] sm:$0xff]
        %v300 = vld [vmem:[%s1 + $0x188] sm:$0xff]
        %v301 = vld [vmem:[%s1 + $0x190] sm:$0xff]
        %v302 = vld [vmem:[%s1 + $0x198] sm:$0xff]
        %v303 = vld [vmem:[%s1 + $0x1a0] sm:$0xff]
        %v304 = vld [vmem:[%s1 + $0x1a8] sm:$0xff]
        %v305 = vld [vmem:[%s1 + $0x1b0] sm:$0xff]
        %v306 = vld [vmem:[%s1 + $0x1b8] sm:$0xff]
        %v307 = vld [vmem:[%s1 + $0x1c0] sm:$0xff]
        %v308 = vld [vmem:[%s1 + $0x1c8] sm:$0xff]
        %v309 = vld [vmem:[%s1 + $0x1d0] sm:$0xff]
        %v310 = vld [vmem:[%s1 + $0x1d8] sm:$0xff]
        %v311 = vld [vmem:[%s1 + $0x1e0] sm:$0xff]
        %v312 = vld [vmem:[%s1 + $0x1e8] sm:$0xff]
        %v313 = vld [vmem:[%s1 + $0x1f0] sm:$0xff]
        %v314 = vld [vmem:[%s1 + $0x1f8] sm:$0xff]
        %v315 = vld [vmem:[%s1 + $0x200] sm:$0xff]
        %v316 = vld [vmem:[%s1 + $0x208] sm:$0xff]
        %v317 = vld [vmem:[%s1 + $0x210] sm:$0xff]
        %v318 = vld [vmem:[%s1 + $0x218] sm:$0xff]
        %v319 = vld [vmem:[%s1 + $0x220] sm:$0xff]
        %v320 = vld [vmem:[%s1 + $0x228] sm:$0xff]
        %v321 = vld [vmem:[%s1 + $0x230] sm:$0xff]
        %v322 = vld [vmem:[%s1 + $0x238] sm:$0xff]
        %v323 = vld [vmem:[%s1 + $0x240] sm:$0xff]
        %v324 = vld [vmem:[%s1 + $0x248] sm:$0xff]
        %v325 = vld [vmem:[%s1 + $0x250] sm:$0xff]
        %v326 = vld [vmem:[%s1 + $0x258] sm:$0xff]
        %v327 = vld [vmem:[%s1 + $0x260] sm:$0xff]
        %v328 = vld [vmem:[%s1 + $0x268] sm:$0xff]
        %v329 = vld [vmem:[%s1 + $0x270] sm:$0xff]
        %v330 = vld [vmem:[%s1 + $0x278] sm:$0xff]
        %v331 = vld [vmem:[%s1 + $0x280] sm:$0xff]
        %v332 = vld [vmem:[%s1 + $0x288] sm:$0xff]
        %v333 = vld [vmem:[%s1 + $0x290] sm:$0xff]
        %v334 = vld [vmem:[%s1 + $0x298] sm:$0xff]
        %v335 = vld [vmem:[%s1 + $0x2a0] sm:$0xff]
        %v336 = vld [vmem:[%s1 + $0x2a8] sm:$0xff]
        %v337 = vld [vmem:[%s1 + $0x2b0] sm:$0xff]
        %v338 = vld [vmem:[%s1 + $0x2b8] sm:$0xff]
        %v339 = vld [vmem:[%s1 + $0x2c0] sm:$0xff]
        %v340 = vld [vmem:[%s1 + $0x2c8] sm:$0xff]
        %v341 = vld [vmem:[%s1 + $0x2d0] sm:$0xff]
        %v342 = vld [vmem:[%s1 + $0x2d8] sm:$0xff]
        %v343 = vld [vmem:[%s1 + $0x2e0] sm:$0xff]
        %v344 = vld [vmem:[%s1 + $0x2e8] sm:$0xff]
        %v345 = vld [vmem:[%s1 + $0x2f0] sm:$0xff]
        %v346 = vld [vmem:[%s1 + $0x2f8] sm:$0xff]
        %v347 = vld [vmem:[%s1 + $0x300] sm:$0xff]
        %v348 = vld [vmem:[%s1 + $0x308] sm:$0xff]
        %v349 = vld [vmem:[%s1 + $0x310] sm:$0xff]
        %v350 = vld [vmem:[%s1 + $0x318] sm:$0xff]
        %v351 = vld [vmem:[%s1 + $0x320] sm:$0xff]
        %v352 = vld [vmem:[%s1 + $0x328] sm:$0xff]
        %v353 = vld [vmem:[%s1 + $0x330] sm:$0xff]
        %v354 = vld [vmem:[%s1 + $0x338] sm:$0xff]
        %v355 = vld [vmem:[%s1 + $0x340] sm:$0xff]
        %v356 = vld [vmem:[%s1 + $0x348] sm:$0xff]
        %v357 = vld [vmem:[%s1 + $0x350] sm:$0xff]
        %v358 = vld [vmem:[%s1 + $0x358] sm:$0xff]
        %v359 = vld [vmem:[%s1 + $0x360] sm:$0xff]
        %v360 = vld [vmem:[%s1 + $0x368] sm:$0xff]
        %v361 = vld [vmem:[%s1 + $0x370] sm:$0xff]
        %v362 = vld [vmem:[%s1 + $0x378] sm:$0xff]
        %v363 = vld [vmem:[%s1 + $0x380] sm:$0xff]
        %v364 = vld [vmem:[%s1 + $0x388] sm:$0xff]
        %v365 = vld [vmem:[%s1 + $0x390] sm:$0xff]
        %v366 = vld [vmem:[%s1 + $0x398] sm:$0xff]
        %v367 = vld [vmem:[%s1 + $0x3a0] sm:$0xff]
        %v368 = vld [vmem:[%s1 + $0x3a8] sm:$0xff]
        %v369 = vld [vmem:[%s1 + $0x3b0] sm:$0xff]
        %v370 = vld [vmem:[%s1 + $0x3b8] sm:$0xff]
        %v371 = vld [vmem:[%s1 + $0x3c0] sm:$0xff]
        %v372 = vld [vmem:[%s1 + $0x3c8] sm:$0xff]
        %v373 = vld [vmem:[%s1 + $0x3d0] sm:$0xff]
        %v374 = vld [vmem:[%s1 + $0x3d8] sm:$0xff]
        %v375 = vld [vmem:[%s1 + $0x3e0] sm:$0xff]
        %v376 = vld [vmem:[%s1 + $0x3e8] sm:$0xff]
        %v377 = vld [vmem:[%s1 + $0x3f0] sm:$0xff]
        %v378 = vld [vmem:[%s1 + $0x3f8] sm:$0xff]
        %v507 = vunpack.c.l.b16 %v251
        %v508 = vunpack.c.h.b16 %v251
        %v509 = vunpack.c.l.b16 %v252
        %v510 = vunpack.c.h.b16 %v252
        %v511 = vunpack.c.l.b16 %v253
        %v512 = vunpack.c.h.b16 %v253
        %v513 = vunpack.c.l.b16 %v254
        %v514 = vunpack.c.h.b16 %v254
        %v515 = vunpack.c.l.b16 %v255
        %v516 = vunpack.c.h.b16 %v255
        %v517 = vunpack.c.l.b16 %v256
        %v518 = vunpack.c.h.b16 %v256
        %v519 = vunpack.c.l.b16 %v257
        %v520 = vunpack.c.h.b16 %v257
        %v521 = vunpack.c.l.b16 %v258
        %v522 = vunpack.c.h.b16 %v258
        %v523 = vunpack.c.l.b16 %v259
        %v524 = vunpack.c.h.b16 %v259
        %v525 = vunpack.c.l.b16 %v260
        %v526 = vunpack.c.h.b16 %v260
        %v527 = vunpack.c.l.b16 %v261
        %v528 = vunpack.c.h.b16 %v261
        %v529 = vunpack.c.l.b16 %v262
        %v530 = vunpack.c.h.b16 %v262
        %v531 = vunpack.c.l.b16 %v263
        %v532 = vunpack.c.h.b16 %v263
        %v533 = vunpack.c.l.b16 %v264
        %v534 = vunpack.c.h.b16 %v264
        %v535 = vunpack.c.l.b16 %v265
        %v536 = vunpack.c.h.b16 %v265
        %v537 = vunpack.c.l.b16 %v266
        %v538 = vunpack.c.h.b16 %v266
        %v539 = vunpack.c.l.b16 %v267
        %v540 = vunpack.c.h.b16 %v267
        %v541 = vunpack.c.l.b16 %v268
        %v542 = vunpack.c.h.b16 %v268
        %v543 = vunpack.c.l.b16 %v269
        %v544 = vunpack.c.h.b16 %v269
        %v545 = vunpack.c.l.b16 %v270
        %v546 = vunpack.c.h.b16 %v270
        %v547 = vunpack.c.l.b16 %v271
        %v548 = vunpack.c.h.b16 %v271
        %v549 = vunpack.c.l.b16 %v272
        %v550 = vunpack.c.h.b16 %v272
        %v551 = vunpack.c.l.b16 %v273
        %v552 = vunpack.c.h.b16 %v273
        %v553 = vunpack.c.l.b16 %v274
        %v554 = vunpack.c.h.b16 %v274
        %v555 = vunpack.c.l.b16 %v275
        %v556 = vunpack.c.h.b16 %v275
        %v557 = vunpack.c.l.b16 %v276
        %v558 = vunpack.c.h.b16 %v276
        %v559 = vunpack.c.l.b16 %v277
        %v560 = vunpack.c.h.b16 %v277
        %v561 = vunpack.c.l.b16 %v278
        %v562 = vunpack.c.h.b16 %v278
        %v563 = vunpack.c.l.b16 %v279
        %v564 = vunpack.c.h.b16 %v279
        %v565 = vunpack.c.l.b16 %v280
        %v566 = vunpack.c.h.b16 %v280
        %v567 = vunpack.c.l.b16 %v281
        %v568 = vunpack.c.h.b16 %v281
        %v569 = vunpack.c.l.b16 %v282
        %v570 = vunpack.c.h.b16 %v282
        %v571 = vunpack.c.l.b16 %v283
        %v572 = vunpack.c.h.b16 %v283
        %v573 = vunpack.c.l.b16 %v284
        %v574 = vunpack.c.h.b16 %v284
        %v575 = vunpack.c.l.b16 %v285
        %v576 = vunpack.c.h.b16 %v285
        %v577 = vunpack.c.l.b16 %v286
        %v578 = vunpack.c.h.b16 %v286
        %v579 = vunpack.c.l.b16 %v287
        %v580 = vunpack.c.h.b16 %v287
        %v581 = vunpack.c.l.b16 %v288
        %v582 = vunpack.c.h.b16 %v288
        %v583 = vunpack.c.l.b16 %v289
        %v584 = vunpack.c.h.b16 %v289
        %v585 = vunpack.c.l.b16 %v290
        %v586 = vunpack.c.h.b16 %v290
        %v587 = vunpack.c.l.b16 %v291
        %v588 = vunpack.c.h.b16 %v291
        %v589 = vunpack.c.l.b16 %v292
        %v590 = vunpack.c.h.b16 %v292
        %v591 = vunpack.c.l.b16 %v293
        %v592 = vunpack.c.h.b16 %v293
        %v593 = vunpack.c.l.b16 %v294
        %v594 = vunpack.c.h.b16 %v294
        %v595 = vunpack.c.l.b16 %v295
        %v596 = vunpack.c.h.b16 %v295
        %v597 = vunpack.c.l.b16 %v296
        %v598 = vunpack.c.h.b16 %v296
        %v599 = vunpack.c.l.b16 %v297
        %v600 = vunpack.c.h.b16 %v297
        %v601 = vunpack.c.l.b16 %v298
        %v602 = vunpack.c.h.b16 %v298
        %v603 = vunpack.c.l.b16 %v299
        %v604 = vunpack.c.h.b16 %v299
        %v605 = vunpack.c.l.b16 %v300
        %v606 = vunpack.c.h.b16 %v300
        %v607 = vunpack.c.l.b16 %v301
        %v608 = vunpack.c.h.b16 %v301
        %v609 = vunpack.c.l.b16 %v302
        %v610 = vunpack.c.h.b16 %v302
        %v611 = vunpack.c.l.b16 %v303
        %v612 = vunpack.c.h.b16 %v303
        %v613 = vunpack.c.l.b16 %v304
        %v614 = vunpack.c.h.b16 %v304
        %v615 = vunpack.c.l.b16 %v305
        %v616 = vunpack.c.h.b16 %v305
        %v617 = vunpack.c.l.b16 %v306
        %v618 = vunpack.c.h.b16 %v306
        %v619 = vunpack.c.l.b16 %v307
        %v620 = vunpack.c.h.b16 %v307
        %v621 = vunpack.c.l.b16 %v308
        %v622 = vunpack.c.h.b16 %v308
        %v623 = vunpack.c.l.b16 %v309
        %v624 = vunpack.c.h.b16 %v309
        %v625 = vunpack.c.l.b16 %v310
        %v626 = vunpack.c.h.b16 %v310
        %v627 = vunpack.c.l.b16 %v311
        %v628 = vunpack.c.h.b16 %v311
        %v629 = vunpack.c.l.b16 %v312
        %v630 = vunpack.c.h.b16 %v312
        %v631 = vunpack.c.l.b16 %v313
        %v632 = vunpack.c.h.b16 %v313
        %v633 = vunpack.c.l.b16 %v314
        %v634 = vunpack.c.h.b16 %v314
        %v635 = vunpack.c.l.b16 %v315
        %v636 = vunpack.c.h.b16 %v315
        %v637 = vunpack.c.l.b16 %v316
        %v638 = vunpack.c.h.b16 %v316
        %v639 = vunpack.c.l.b16 %v317
        %v640 = vunpack.c.h.b16 %v317
        %v641 = vunpack.c.l.b16 %v318
        %v642 = vunpack.c.h.b16 %v318
        %v643 = vunpack.c.l.b16 %v319
        %v644 = vunpack.c.h.b16 %v319
        %v645 = vunpack.c.l.b16 %v320
        %v646 = vunpack.c.h.b16 %v320
        %v647 = vunpack.c.l.b16 %v321
        %v648 = vunpack.c.h.b16 %v321
        %v649 = vunpack.c.l.b16 %v322
        %v650 = vunpack.c.h.b16 %v322
        %v651 = vunpack.c.l.b16 %v323
        %v652 = vunpack.c.h.b16 %v323
        %v653 = vunpack.c.l.b16 %v324
        %v654 = vunpack.c.h.b16 %v324
        %v655 = vunpack.c.l.b16 %v325
        %v656 = vunpack.c.h.b16 %v325
        %v657 = vunpack.c.l.b16 %v326
        %v658 = vunpack.c.h.b16 %v326
        %v659 = vunpack.c.l.b16 %v327
        %v660 = vunpack.c.h.b16 %v327
        %v661 = vunpack.c.l.b16 %v328
        %v662 = vunpack.c.h.b16 %v328
        %v663 = vunpack.c.l.b16 %v329
        %v664 = vunpack.c.h.b16 %v329
        %v665 = vunpack.c.l.b16 %v330
        %v666 = vunpack.c.h.b16 %v330
        %v667 = vunpack.c.l.b16 %v331
        %v668 = vunpack.c.h.b16 %v331
        %v669 = vunpack.c.l.b16 %v332
        %v670 = vunpack.c.h.b16 %v332
        %v671 = vunpack.c.l.b16 %v333
        %v672 = vunpack.c.h.b16 %v333
        %v673 = vunpack.c.l.b16 %v334
        %v674 = vunpack.c.h.b16 %v334
        %v675 = vunpack.c.l.b16 %v335
        %v676 = vunpack.c.h.b16 %v335
        %v677 = vunpack.c.l.b16 %v336
        %v678 = vunpack.c.h.b16 %v336
        %v679 = vunpack.c.l.b16 %v337
        %v680 = vunpack.c.h.b16 %v337
        %v681 = vunpack.c.l.b16 %v338
        %v682 = vunpack.c.h.b16 %v338
        %v683 = vunpack.c.l.b16 %v339
        %v684 = vunpack.c.h.b16 %v339
        %v685 = vunpack.c.l.b16 %v340
        %v686 = vunpack.c.h.b16 %v340
        %v687 = vunpack.c.l.b16 %v341
        %v688 = vunpack.c.h.b16 %v341
        %v689 = vunpack.c.l.b16 %v342
        %v690 = vunpack.c.h.b16 %v342
        %v691 = vunpack.c.l.b16 %v343
        %v692 = vunpack.c.h.b16 %v343
        %v693 = vunpack.c.l.b16 %v344
        %v694 = vunpack.c.h.b16 %v344
        %v695 = vunpack.c.l.b16 %v345
        %v696 = vunpack.c.h.b16 %v345
        %v697 = vunpack.c.l.b16 %v346
        %v698 = vunpack.c.h.b16 %v346
        %v699 = vunpack.c.l.b16 %v347
        %v700 = vunpack.c.h.b16 %v347
        %v701 = vunpack.c.l.b16 %v348
        %v702 = vunpack.c.h.b16 %v348
        %v703 = vunpack.c.l.b16 %v349
        %v704 = vunpack.c.h.b16 %v349
        %v705 = vunpack.c.l.b16 %v350
        %v706 = vunpack.c.h.b16 %v350
        %v707 = vunpack.c.l.b16 %v351
        %v708 = vunpack.c.h.b16 %v351
        %v709 = vunpack.c.l.b16 %v352
        %v710 = vunpack.c.h.b16 %v352
        %v711 = vunpack.c.l.b16 %v353
        %v712 = vunpack.c.h.b16 %v353
        %v713 = vunpack.c.l.b16 %v354
        %v714 = vunpack.c.h.b16 %v354
        %v715 = vunpack.c.l.b16 %v355
        %v716 = vunpack.c.h.b16 %v355
        %v717 = vunpack.c.l.b16 %v356
        %v718 = vunpack.c.h.b16 %v356
        %v719 = vunpack.c.l.b16 %v357
        %v720 = vunpack.c.h.b16 %v357
        %v721 = vunpack.c.l.b16 %v358
        %v722 = vunpack.c.h.b16 %v358
        %v723 = vunpack.c.l.b16 %v359
        %v724 = vunpack.c.h.b16 %v359
        %v725 = vunpack.c.l.b16 %v360
        %v726 = vunpack.c.h.b16 %v360
        %v727 = vunpack.c.l.b16 %v361
        %v728 = vunpack.c.h.b16 %v361
        %v729 = vunpack.c.l.b16 %v362
        %v730 = vunpack.c.h.b16 %v362
        %v731 = vunpack.c.l.b16 %v363
        %v732 = vunpack.c.h.b16 %v363
        %v733 = vunpack.c.l.b16 %v364
        %v734 = vunpack.c.h.b16 %v364
        %v735 = vunpack.c.l.b16 %v365
        %v736 = vunpack.c.h.b16 %v365
        %v737 = vunpack.c.l.b16 %v366
        %v738 = vunpack.c.h.b16 %v366
        %v739 = vunpack.c.l.b16 %v367
        %v740 = vunpack.c.h.b16 %v367
        %v741 = vunpack.c.l.b16 %v368
        %v742 = vunpack.c.h.b16 %v368
        %v743 = vunpack.c.l.b16 %v369
        %v744 = vunpack.c.h.b16 %v369
        %v745 = vunpack.c.l.b16 %v370
        %v746 = vunpack.c.h.b16 %v370
        %v747 = vunpack.c.l.b16 %v371
        %v748 = vunpack.c.h.b16 %v371
        %v749 = vunpack.c.l.b16 %v372
        %v750 = vunpack.c.h.b16 %v372
        %v751 = vunpack.c.l.b16 %v373
        %v752 = vunpack.c.h.b16 %v373
        %v753 = vunpack.c.l.b16 %v374
        %v754 = vunpack.c.h.b16 %v374
        %v755 = vunpack.c.l.b16 %v375
        %v756 = vunpack.c.h.b16 %v375
        %v757 = vunpack.c.l.b16 %v376
        %v758 = vunpack.c.h.b16 %v376
        %v759 = vunpack.c.l.b16 %v377
        %v760 = vunpack.c.h.b16 %v377
        %v761 = vunpack.c.l.b16 %v378
        %v762 = vunpack.c.h.b16 %v378
        %v763 = vpack.c.b16 %v515, %v507
        %v764 = vpack.c.b16 %v516, %v508
        %v765 = vpack.c.b16 %v517, %v509
        %v766 = vpack.c.b16 %v518, %v510
        %v767 = vpack.c.b16 %v519, %v511
        %v768 = vpack.c.b16 %v520, %v512
        %v769 = vpack.c.b16 %v521, %v513
        %v770 = vpack.c.b16 %v522, %v514
        %v771 = vpack.c.b16 %v531, %v523
        %v772 = vpack.c.b16 %v532, %v524
        %v773 = vpack.c.b16 %v533, %v525
        %v774 = vpack.c.b16 %v534, %v526
        %v775 = vpack.c.b16 %v535, %v527
        %v776 = vpack.c.b16 %v536, %v528
        %v777 = vpack.c.b16 %v537, %v529
        %v778 = vpack.c.b16 %v538, %v530
        %v779 = vpack.c.b16 %v547, %v539
        %v780 = vpack.c.b16 %v548, %v540
        %v781 = vpack.c.b16 %v549, %v541
        %v782 = vpack.c.b16 %v550, %v542
        %v783 = vpack.c.b16 %v551, %v543
        %v784 = vpack.c.b16 %v552, %v544
        %v785 = vpack.c.b16 %v553, %v545
        %v786 = vpack.c.b16 %v554, %v546
        %v787 = vpack.c.b16 %v563, %v555
        %v788 = vpack.c.b16 %v564, %v556
        %v789 = vpack.c.b16 %v565, %v557
        %v790 = vpack.c.b16 %v566, %v558
        %v791 = vpack.c.b16 %v567, %v559
        %v792 = vpack.c.b16 %v568, %v560
        %v793 = vpack.c.b16 %v569, %v561
        %v794 = vpack.c.b16 %v570, %v562
        %v795 = vpack.c.b16 %v579, %v571
        %v796 = vpack.c.b16 %v580, %v572
        %v797 = vpack.c.b16 %v581, %v573
        %v798 = vpack.c.b16 %v582, %v574
        %v799 = vpack.c.b16 %v583, %v575
        %v800 = vpack.c.b16 %v584, %v576
        %v801 = vpack.c.b16 %v585, %v577
        %v802 = vpack.c.b16 %v586, %v578
        %v803 = vpack.c.b16 %v595, %v587
        %v804 = vpack.c.b16 %v596, %v588
        %v805 = vpack.c.b16 %v597, %v589
        %v806 = vpack.c.b16 %v598, %v590
        %v807 = vpack.c.b16 %v599, %v591
        %v808 = vpack.c.b16 %v600, %v592
        %v809 = vpack.c.b16 %v601, %v593
        %v810 = vpack.c.b16 %v602, %v594
        %v811 = vpack.c.b16 %v611, %v603
        %v812 = vpack.c.b16 %v612, %v604
        %v813 = vpack.c.b16 %v613, %v605
        %v814 = vpack.c.b16 %v614, %v606
        %v815 = vpack.c.b16 %v615, %v607
        %v816 = vpack.c.b16 %v616, %v608
        %v817 = vpack.c.b16 %v617, %v609
        %v818 = vpack.c.b16 %v618, %v610
        %v819 = vpack.c.b16 %v627, %v619
        %v820 = vpack.c.b16 %v628, %v620
        %v821 = vpack.c.b16 %v629, %v621
        %v822 = vpack.c.b16 %v630, %v622
        %v823 = vpack.c.b16 %v631, %v623
        %v824 = vpack.c.b16 %v632, %v624
        %v825 = vpack.c.b16 %v633, %v625
        %v826 = vpack.c.b16 %v634, %v626
        %v827 = vpack.c.b16 %v643, %v635
        %v828 = vpack.c.b16 %v644, %v636
        %v829 = vpack.c.b16 %v645, %v637
        %v830 = vpack.c.b16 %v646, %v638
        %v831 = vpack.c.b16 %v647, %v639
        %v832 = vpack.c.b16 %v648, %v640
        %v833 = vpack.c.b16 %v649, %v641
        %v834 = vpack.c.b16 %v650, %v642
        %v835 = vpack.c.b16 %v659, %v651
        %v836 = vpack.c.b16 %v660, %v652
        %v837 = vpack.c.b16 %v661, %v653
        %v838 = vpack.c.b16 %v662, %v654
        %v839 = vpack.c.b16 %v663, %v655
        %v840 = vpack.c.b16 %v664, %v656
        %v841 = vpack.c.b16 %v665, %v657
        %v842 = vpack.c.b16 %v666, %v658
        %v843 = vpack.c.b16 %v675, %v667
        %v844 = vpack.c.b16 %v676, %v668
        %v845 = vpack.c.b16 %v677, %v669
        %v846 = vpack.c.b16 %v678, %v670
        %v847 = vpack.c.b16 %v679, %v671
        %v848 = vpack.c.b16 %v680, %v672
        %v849 = vpack.c.b16 %v681, %v673
        %v850 = vpack.c.b16 %v682, %v674
        %v851 = vpack.c.b16 %v691, %v683
        %v852 = vpack.c.b16 %v692, %v684
        %v853 = vpack.c.b16 %v693, %v685
        %v854 = vpack.c.b16 %v694, %v686
        %v855 = vpack.c.b16 %v695, %v687
        %v856 = vpack.c.b16 %v696, %v688
        %v857 = vpack.c.b16 %v697, %v689
        %v858 = vpack.c.b16 %v698, %v690
        %v859 = vpack.c.b16 %v707, %v699
        %v860 = vpack.c.b16 %v708, %v700
        %v861 = vpack.c.b16 %v709, %v701
        %v862 = vpack.c.b16 %v710, %v702
        %v863 = vpack.c.b16 %v711, %v703
        %v864 = vpack.c.b16 %v712, %v704
        %v865 = vpack.c.b16 %v713, %v705
        %v866 = vpack.c.b16 %v714, %v706
        %v867 = vpack.c.b16 %v723, %v715
        %v868 = vpack.c.b16 %v724, %v716
        %v869 = vpack.c.b16 %v725, %v717
        %v870 = vpack.c.b16 %v726, %v718
        %v871 = vpack.c.b16 %v727, %v719
        %v872 = vpack.c.b16 %v728, %v720
        %v873 = vpack.c.b16 %v729, %v721
        %v874 = vpack.c.b16 %v730, %v722
        %v875 = vpack.c.b16 %v739, %v731
        %v876 = vpack.c.b16 %v740, %v732
        %v877 = vpack.c.b16 %v741, %v733
        %v878 = vpack.c.b16 %v742, %v734
        %v879 = vpack.c.b16 %v743, %v735
        %v880 = vpack.c.b16 %v744, %v736
        %v881 = vpack.c.b16 %v745, %v737
        %v882 = vpack.c.b16 %v746, %v738
        %v883 = vpack.c.b16 %v755, %v747
        %v884 = vpack.c.b16 %v756, %v748
        %v885 = vpack.c.b16 %v757, %v749
        %v886 = vpack.c.b16 %v758, %v750
        %v887 = vpack.c.b16 %v759, %v751
        %v888 = vpack.c.b16 %v760, %v752
        %v889 = vpack.c.b16 %v761, %v753
        %v890 = vpack.c.b16 %v762, %v754
        %1019 = vmatpush.bf16.msra.mxu0 %v819
        %1020 = vmatpush.bf16.msra.mxu0 %v811
        %1021 = vmatpush.bf16.msra.mxu0 %v803
        %1022 = vmatpush.bf16.msra.mxu0 %v795
        %1023 = vmatpush.bf16.msra.mxu0 %v787
        %1024 = vmatpush.bf16.msra.mxu0 %v779
        %1025 = vmatpush.bf16.msra.mxu0 %v771
        %1026 = vmatpush.bf16.msra.mxu0 %v763
        %1027 = vmatmul.bf16.gmra.mxu0 %v249
        %v1028 = vpop.f32.mrf.mxu0
        %v1029 = vadd.f32 0.0, %v1028
        %v1030 = vpop.f32.mrf.mxu0
        %1031 = vdwg.mxu0
        %1032 = vmatpush.bf16.msra.mxu0 %v883
        %1033 = vmatpush.bf16.msra.mxu0 %v875
        %1034 = vmatpush.bf16.msra.mxu0 %v867
        %1035 = vmatpush.bf16.msra.mxu0 %v859
        %1036 = vmatpush.bf16.msra.mxu0 %v851
        %1037 = vmatpush.bf16.msra.mxu0 %v843
        %1038 = vmatpush.bf16.msra.mxu0 %v835
        %1039 = vmatpush.bf16.msra.mxu0 %v827
        %1040 = vmatmul.bf16.gmra.mxu0 %v250
        %v1041 = vpop.f32.mrf.mxu0
        %v1042 = vadd.f32 %v1029, %v1041
        %v1043 = vpop.f32.mrf.mxu0
        %1044 = vdwg.mxu0
        %1045 = vmatpush.bf16.msra.mxu0 %v820
        %1046 = vmatpush.bf16.msra.mxu0 %v812
        %1047 = vmatpush.bf16.msra.mxu0 %v804
        %1048 = vmatpush.bf16.msra.mxu0 %v796
        %1049 = vmatpush.bf16.msra.mxu0 %v788
        %1050 = vmatpush.bf16.msra.mxu0 %v780
        %1051 = vmatpush.bf16.msra.mxu0 %v772
        %1052 = vmatpush.bf16.msra.mxu0 %v764
        %1053 = vmatmul.bf16.gmra.mxu0 %v249
        %v1054 = vpop.f32.mrf.mxu0
        %v1055 = vadd.f32 0.0, %v1054
        %v1056 = vpop.f32.mrf.mxu0
        %1057 = vdwg.mxu0
        %1058 = vmatpush.bf16.msra.mxu0 %v884
        %1059 = vmatpush.bf16.msra.mxu0 %v876
        %1060 = vmatpush.bf16.msra.mxu0 %v868
        %1061 = vmatpush.bf16.msra.mxu0 %v860
        %1062 = vmatpush.bf16.msra.mxu0 %v852
        %1063 = vmatpush.bf16.msra.mxu0 %v844
        %1064 = vmatpush.bf16.msra.mxu0 %v836
        %1065 = vmatpush.bf16.msra.mxu0 %v828
        %1066 = vmatmul.bf16.gmra.mxu0 %v250
        %v1067 = vpop.f32.mrf.mxu0
        %v1068 = vadd.f32 %v1055, %v1067
        %v1069 = vpop.f32.mrf.mxu0
        %1070 = vdwg.mxu0
        %1071 = vmatpush.bf16.msra.mxu0 %v821
        %1072 = vmatpush.bf16.msra.mxu0 %v813
        %1073 = vmatpush.bf16.msra.mxu0 %v805
        %1074 = vmatpush.bf16.msra.mxu0 %v797
        %1075 = vmatpush.bf16.msra.mxu0 %v789
        %1076 = vmatpush.bf16.msra.mxu0 %v781
        %1077 = vmatpush.bf16.msra.mxu0 %v773
        %1078 = vmatpush.bf16.msra.mxu0 %v765
        %1079 = vmatmul.bf16.gmra.mxu0 %v249
        %v1080 = vpop.f32.mrf.mxu0
        %v1081 = vadd.f32 0.0, %v1080
        %v1082 = vpop.f32.mrf.mxu0
        %1083 = vdwg.mxu0
        %1084 = vmatpush.bf16.msra.mxu0 %v885
        %1085 = vmatpush.bf16.msra.mxu0 %v877
        %1086 = vmatpush.bf16.msra.mxu0 %v869
        %1087 = vmatpush.bf16.msra.mxu0 %v861
        %1088 = vmatpush.bf16.msra.mxu0 %v853
        %1089 = vmatpush.bf16.msra.mxu0 %v845
        %1090 = vmatpush.bf16.msra.mxu0 %v837
        %1091 = vmatpush.bf16.msra.mxu0 %v829
        %1092 = vmatmul.bf16.gmra.mxu0 %v250
        %v1093 = vpop.f32.mrf.mxu0
        %v1094 = vadd.f32 %v1081, %v1093
        %v1095 = vpop.f32.mrf.mxu0
        %1096 = vdwg.mxu0
        %1097 = vmatpush.bf16.msra.mxu0 %v822
        %1098 = vmatpush.bf16.msra.mxu0 %v814
        %1099 = vmatpush.bf16.msra.mxu0 %v806
        %1100 = vmatpush.bf16.msra.mxu0 %v798
        %1101 = vmatpush.bf16.msra.mxu0 %v790
        %1102 = vmatpush.bf16.msra.mxu0 %v782
        %1103 = vmatpush.bf16.msra.mxu0 %v774
        %1104 = vmatpush.bf16.msra.mxu0 %v766
        %1105 = vmatmul.bf16.gmra.mxu0 %v249
        %v1106 = vpop.f32.mrf.mxu0
        %v1107 = vadd.f32 0.0, %v1106
        %v1108 = vpop.f32.mrf.mxu0
        %1109 = vdwg.mxu0
        %1110 = vmatpush.bf16.msra.mxu0 %v886
        %1111 = vmatpush.bf16.msra.mxu0 %v878
        %1112 = vmatpush.bf16.msra.mxu0 %v870
        %1113 = vmatpush.bf16.msra.mxu0 %v862
        %1114 = vmatpush.bf16.msra.mxu0 %v854
        %1115 = vmatpush.bf16.msra.mxu0 %v846
        %1116 = vmatpush.bf16.msra.mxu0 %v838
        %1117 = vmatpush.bf16.msra.mxu0 %v830
        %1118 = vmatmul.bf16.gmra.mxu0 %v250
        %v1119 = vpop.f32.mrf.mxu0
        %v1120 = vadd.f32 %v1107, %v1119
        %v1121 = vpop.f32.mrf.mxu0
        %1122 = vdwg.mxu0
        %1123 = vmatpush.bf16.msra.mxu0 %v823
        %1124 = vmatpush.bf16.msra.mxu0 %v815
        %1125 = vmatpush.bf16.msra.mxu0 %v807
        %1126 = vmatpush.bf16.msra.mxu0 %v799
        %1127 = vmatpush.bf16.msra.mxu0 %v791
        %1128 = vmatpush.bf16.msra.mxu0 %v783
        %1129 = vmatpush.bf16.msra.mxu0 %v775
        %1130 = vmatpush.bf16.msra.mxu0 %v767
        %1131 = vmatmul.bf16.gmra.mxu0 %v249
        %v1132 = vpop.f32.mrf.mxu0
        %v1133 = vadd.f32 0.0, %v1132
        %v1134 = vpop.f32.mrf.mxu0
        %1135 = vdwg.mxu0
        %1136 = vmatpush.bf16.msra.mxu0 %v887
        %1137 = vmatpush.bf16.msra.mxu0 %v879
        %1138 = vmatpush.bf16.msra.mxu0 %v871
        %1139 = vmatpush.bf16.msra.mxu0 %v863
        %1140 = vmatpush.bf16.msra.mxu0 %v855
        %1141 = vmatpush.bf16.msra.mxu0 %v847
        %1142 = vmatpush.bf16.msra.mxu0 %v839
        %1143 = vmatpush.bf16.msra.mxu0 %v831
        %1144 = vmatmul.bf16.gmra.mxu0 %v250
        %v1145 = vpop.f32.mrf.mxu0
        %v1146 = vadd.f32 %v1133, %v1145
        %v1147 = vpop.f32.mrf.mxu0
        %1148 = vdwg.mxu0
        %1149 = vmatpush.bf16.msra.mxu0 %v824
        %1150 = vmatpush.bf16.msra.mxu0 %v816
        %1151 = vmatpush.bf16.msra.mxu0 %v808
        %1152 = vmatpush.bf16.msra.mxu0 %v800
        %1153 = vmatpush.bf16.msra.mxu0 %v792
        %1154 = vmatpush.bf16.msra.mxu0 %v784
        %1155 = vmatpush.bf16.msra.mxu0 %v776
        %1156 = vmatpush.bf16.msra.mxu0 %v768
        %1157 = vmatmul.bf16.gmra.mxu0 %v249
        %v1158 = vpop.f32.mrf.mxu0
        %v1159 = vadd.f32 0.0, %v1158
        %v1160 = vpop.f32.mrf.mxu0
        %1161 = vdwg.mxu0
        %1162 = vmatpush.bf16.msra.mxu0 %v888
        %1163 = vmatpush.bf16.msra.mxu0 %v880
        %1164 = vmatpush.bf16.msra.mxu0 %v872
        %1165 = vmatpush.bf16.msra.mxu0 %v864
        %1166 = vmatpush.bf16.msra.mxu0 %v856
        %1167 = vmatpush.bf16.msra.mxu0 %v848
        %1168 = vmatpush.bf16.msra.mxu0 %v840
        %1169 = vmatpush.bf16.msra.mxu0 %v832
        %1170 = vmatmul.bf16.gmra.mxu0 %v250
        %v1171 = vpop.f32.mrf.mxu0
        %v1172 = vadd.f32 %v1159, %v1171
        %v1173 = vpop.f32.mrf.mxu0
        %1174 = vdwg.mxu0
        %1175 = vmatpush.bf16.msra.mxu0 %v825
        %1176 = vmatpush.bf16.msra.mxu0 %v817
        %1177 = vmatpush.bf16.msra.mxu0 %v809
        %1178 = vmatpush.bf16.msra.mxu0 %v801
        %1179 = vmatpush.bf16.msra.mxu0 %v793
        %1180 = vmatpush.bf16.msra.mxu0 %v785
        %1181 = vmatpush.bf16.msra.mxu0 %v777
        %1182 = vmatpush.bf16.msra.mxu0 %v769
        %1183 = vmatmul.bf16.gmra.mxu0 %v249
        %v1184 = vpop.f32.mrf.mxu0
        %v1185 = vadd.f32 0.0, %v1184
        %v1186 = vpop.f32.mrf.mxu0
        %1187 = vdwg.mxu0
        %1188 = vmatpush.bf16.msra.mxu0 %v889
        %1189 = vmatpush.bf16.msra.mxu0 %v881
        %1190 = vmatpush.bf16.msra.mxu0 %v873
        %1191 = vmatpush.bf16.msra.mxu0 %v865
        %1192 = vmatpush.bf16.msra.mxu0 %v857
        %1193 = vmatpush.bf16.msra.mxu0 %v849
        %1194 = vmatpush.bf16.msra.mxu0 %v841
        %1195 = vmatpush.bf16.msra.mxu0 %v833
        %1196 = vmatmul.bf16.gmra.mxu0 %v250
        %v1197 = vpop.f32.mrf.mxu0
        %v1198 = vadd.f32 %v1185, %v1197
        %v1199 = vpop.f32.mrf.mxu0
        %1200 = vdwg.mxu0
        %1201 = vmatpush.bf16.msra.mxu0 %v826
        %1202 = vmatpush.bf16.msra.mxu0 %v818
        %1203 = vmatpush.bf16.msra.mxu0 %v810
        %1204 = vmatpush.bf16.msra.mxu0 %v802
        %1205 = vmatpush.bf16.msra.mxu0 %v794
        %1206 = vmatpush.bf16.msra.mxu0 %v786
        %1207 = vmatpush.bf16.msra.mxu0 %v778
        %1208 = vmatpush.bf16.msra.mxu0 %v770
        %1209 = vmatmul.bf16.gmra.mxu0 %v249
        %v1210 = vpop.f32.mrf.mxu0
        %v1211 = vadd.f32 0.0, %v1210
        %v1212 = vpop.f32.mrf.mxu0
        %1213 = vdwg.mxu0
        %1214 = vmatpush.bf16.msra.mxu0 %v890
        %1215 = vmatpush.bf16.msra.mxu0 %v882
        %1216 = vmatpush.bf16.msra.mxu0 %v874
        %1217 = vmatpush.bf16.msra.mxu0 %v866
        %1218 = vmatpush.bf16.msra.mxu0 %v858
        %1219 = vmatpush.bf16.msra.mxu0 %v850
        %1220 = vmatpush.bf16.msra.mxu0 %v842
        %1221 = vmatpush.bf16.msra.mxu0 %v834
        %1222 = vmatmul.bf16.gmra.mxu0 %v250
        %v1223 = vpop.f32.mrf.mxu0
        %v1224 = vadd.f32 %v1211, %v1223
        %v1225 = vpop.f32.mrf.mxu0
        %1226 = vdwg.mxu0
        %v1235 = vrot.slane %v1068, 6
        %v1236 = vrot.slane %v1094, 4
        %v1237 = vrot.slane %v1120, 2
        %v1238 = vrot.slane %v1172, 6
        %v1239 = vrot.slane %v1198, 4
        %v1240 = vrot.slane %v1224, 2
        %vm1241 = vcmask 1041408
        %v1242 = vsel %vm1241, %v1042, %v1235
        %vm1243 = vcmask 1045508
        %v1244 = vsel %vm1243, %v1236, %v1237
        %vm1245 = vcmask 1043456
        %v1246 = vsel %vm1245, %v1242, %v1244
        %v1247 = vsel %vm1241, %v1146, %v1238
        %v1248 = vsel %vm1243, %v1239, %v1240
        %v1249 = vsel %vm1245, %v1247, %v1248
        %v1252 = vadd.f32 %v240, %v1246
        %v1253 = vadd.f32 %v241, %v1249
        %v1254 = vxor.u32 %v1252, 2147483648
        %v1255 = vmul.f32 %v1254, 1.442695
        %v1256 = vpow.pop %v1255
        %v1257 = vadd.f32 %v1256, 1.0
        %v1258 = vrcp.pop %v1257
        %v1259 = vmul.f32 %v1257, %v1258
        %v1260 = vsub.f32 1.0, %v1259
        %v1261 = vmul.f32 %v1258, %v1260
        %v1262 = vadd.f32 %v1258, %v1261
        %vm1263 = vweird.f32 %v1257
        %vm1264 = vweird.f32 %v1258
        %vm1265 = vmor %vm1263, %vm1264
        %v1266 = vsel %vm1265, %v1258, %v1262
        %v1267 = vand.u32 2147483647, %v1257
        %vm1268 = vcmp.eq.f32.partialorder %v1267, 8.507059e+37
        %v1269 = vand.u32 %v1257, 2147483648
        %v1270 = vor.u32 1.1754944e-38, %v1269
        %v1271 = vsel %vm1268, %v1270, %v1266
        %v1272 = vmul.f32 1.0, %v1271
        %v1274 = vrot.slane %v1252, 4
        %v1276 = vxor.u32 %v1274, 2147483648
        %v1277 = vmul.f32 %v1276, 1.442695
        %v1278 = vpow.pop %v1277
        %v1279 = vadd.f32 %v1278, 1.0
        %v1280 = vrcp.pop %v1279
        %v1281 = vmul.f32 %v1279, %v1280
        %v1282 = vsub.f32 1.0, %v1281
        %v1283 = vmul.f32 %v1280, %v1282
        %v1284 = vadd.f32 %v1280, %v1283
        %vm1285 = vweird.f32 %v1279
        %vm1286 = vweird.f32 %v1280
        %vm1287 = vmor %vm1285, %vm1286
        %v1288 = vsel %vm1287, %v1280, %v1284
        %v1289 = vand.u32 2147483647, %v1279
        %vm1290 = vcmp.eq.f32.partialorder %v1289, 8.507059e+37
        %v1291 = vand.u32 %v1279, 2147483648
        %v1292 = vor.u32 1.1754944e-38, %v1291
        %v1293 = vsel %vm1290, %v1292, %v1288
        %v1294 = vmul.f32 1.0, %v1293
        %v1295 = vtanh.pop %v1253
        %v1297 = vrot.slane %v1253, 4
        %v1299 = vxor.u32 %v1297, 2147483648
        %v1300 = vmul.f32 %v1299, 1.442695
        %v1301 = vpow.pop %v1300
        %v1302 = vadd.f32 %v1301, 1.0
        %v1303 = vrcp.pop %v1302
        %v1304 = vmul.f32 %v1302, %v1303
        %v1305 = vsub.f32 1.0, %v1304
        %v1306 = vmul.f32 %v1303, %v1305
        %v1307 = vadd.f32 %v1303, %v1306
        %vm1308 = vweird.f32 %v1302
        %vm1309 = vweird.f32 %v1303
        %vm1310 = vmor %vm1308, %vm1309
        %v1311 = vsel %vm1310, %v1303, %v1307
        %v1312 = vand.u32 2147483647, %v1302
        %vm1313 = vcmp.eq.f32.partialorder %v1312, 8.507059e+37
        %v1314 = vand.u32 %v1302, 2147483648
        %v1315 = vor.u32 1.1754944e-38, %v1314
        %v1316 = vsel %vm1313, %v1315, %v1311
        %v1317 = vmul.f32 1.0, %v1316
        %v1318 = vld [vmem:[#allocation6] sm:$0xf]
        %v1319 = vmul.f32 %v1294, %v1318
        %v1320 = vmul.f32 %v1272, %v1295
        %v1321 = vadd.f32 %v1319, %v1320
        %v1322 = vtanh.pop %v1321
        %v1323 = vmul.f32 %v1317, %v1322
        %1324 = vst [vmem:[#allocation4] sm:$0xf] %v1323
        %1325 = vst [vmem:[#allocation6] sm:$0xf] %v1321
        %p1326 = scmp.eq.s32.totalorder %s20, 3
        // Predicated region
        $region41: #{dqn_lstm_forward.9} parent=35 // pred_check
          %p1327 = pneg %p1326
        $region42: #{dqn_lstm_forward.9} parent=35 // pred_check_branch
          %1329 = sbr.rel (%p1327) target = $region44
        $region43: #{dqn_lstm_forward.9} parent=35 // pred_region
          %1331 = vst [vmem:[#allocation1] ss:$4 sm:$0xff] %v1323
          %v1332 = vld.sshfl [vmem:[#allocation1] sm:$0xff pattern:$0x73625140]
          %v1333 = vld.sshfl [vmem:[#allocation1 + $0x8] sm:$0xff pattern:$0x73625140]
          %v1336 = vpack.c.bf16 %v1332, %v1332
          %v1337 = vpack.c.bf16 %v1333, %v1333
          %v1338 = vld [vmem:[%s2] sm:$0xf]
          %v1339 = vld [vmem:[%s2 + $0x4] sm:$0xf]
          %v1340 = vld [vmem:[%s2 + $0x8] sm:$0xf]
          %v1341 = vld [vmem:[%s2 + $0xc] sm:$0xf]
          %v1342 = vld [vmem:[%s2 + $0x10] sm:$0xf]
          %v1343 = vld [vmem:[%s2 + $0x14] sm:$0xf]
          %v1344 = vld [vmem:[%s2 + $0x18] sm:$0xf]
          %v1345 = vld [vmem:[%s2 + $0x1c] sm:$0xf]
          %v1346 = vld [vmem:[%s2 + $0x20] sm:$0xf]
          %v1347 = vld [vmem:[%s2 + $0x24] sm:$0xf]
          %v1348 = vld [vmem:[%s2 + $0x28] sm:$0xf]
          %v1349 = vld [vmem:[%s2 + $0x2c] sm:$0xf]
          %v1350 = vld [vmem:[%s2 + $0x30] sm:$0xf]
          %v1351 = vld [vmem:[%s2 + $0x34] sm:$0xf]
          %v1352 = vld [vmem:[%s2 + $0x38] sm:$0xf]
          %v1353 = vld [vmem:[%s2 + $0x3c] sm:$0xf]
          %v1354 = vld [vmem:[%s2 + $0x40] sm:$0xf]
          %v1355 = vld [vmem:[%s2 + $0x44] sm:$0xf]
          %v1356 = vld [vmem:[%s2 + $0x48] sm:$0xf]
          %v1357 = vld [vmem:[%s2 + $0x4c] sm:$0xf]
          %v1358 = vld [vmem:[%s2 + $0x50] sm:$0xf]
          %v1359 = vld [vmem:[%s2 + $0x54] sm:$0xf]
          %v1360 = vld [vmem:[%s2 + $0x58] sm:$0xf]
          %v1361 = vld [vmem:[%s2 + $0x5c] sm:$0xf]
          %v1362 = vld [vmem:[%s2 + $0x60] sm:$0xf]
          %v1363 = vld [vmem:[%s2 + $0x64] sm:$0xf]
          %v1364 = vld [vmem:[%s2 + $0x68] sm:$0xf]
          %v1365 = vld [vmem:[%s2 + $0x6c] sm:$0xf]
          %v1366 = vld [vmem:[%s2 + $0x70] sm:$0xf]
          %v1367 = vld [vmem:[%s2 + $0x74] sm:$0xf]
          %v1368 = vld [vmem:[%s2 + $0x78] sm:$0xf]
          %v1369 = vld [vmem:[%s2 + $0x7c] sm:$0xf]
          %v1370 = vld [vmem:[%s3] sm:$0x1]
          %v1372 = vperm.slane %v1370, 0
          %v1406 = vunpack.c.l.b16 %v1338
          %v1407 = vunpack.c.l.b16 %v1339
          %v1408 = vunpack.c.l.b16 %v1340
          %v1409 = vunpack.c.l.b16 %v1341
          %v1410 = vunpack.c.l.b16 %v1342
          %v1411 = vunpack.c.l.b16 %v1343
          %v1412 = vunpack.c.l.b16 %v1344
          %v1413 = vunpack.c.l.b16 %v1345
          %v1414 = vunpack.c.l.b16 %v1346
          %v1415 = vunpack.c.l.b16 %v1347
          %v1416 = vunpack.c.l.b16 %v1348
          %v1417 = vunpack.c.l.b16 %v1349
          %v1418 = vunpack.c.l.b16 %v1350
          %v1419 = vunpack.c.l.b16 %v1351
          %v1420 = vunpack.c.l.b16 %v1352
          %v1421 = vunpack.c.l.b16 %v1353
          %v1422 = vunpack.c.l.b16 %v1354
          %v1423 = vunpack.c.l.b16 %v1355
          %v1424 = vunpack.c.l.b16 %v1356
          %v1425 = vunpack.c.l.b16 %v1357
          %v1426 = vunpack.c.l.b16 %v1358
          %v1427 = vunpack.c.l.b16 %v1359
          %v1428 = vunpack.c.l.b16 %v1360
          %v1429 = vunpack.c.l.b16 %v1361
          %v1430 = vunpack.c.l.b16 %v1362
          %v1431 = vunpack.c.l.b16 %v1363
          %v1432 = vunpack.c.l.b16 %v1364
          %v1433 = vunpack.c.l.b16 %v1365
          %v1434 = vunpack.c.l.b16 %v1366
          %v1435 = vunpack.c.l.b16 %v1367
          %v1436 = vunpack.c.l.b16 %v1368
          %v1437 = vunpack.c.l.b16 %v1369
          %v1438 = vpack.c.b16 %v1407, %v1406
          %v1439 = vpack.c.b16 %v1409, %v1408
          %v1440 = vpack.c.b16 %v1411, %v1410
          %v1441 = vpack.c.b16 %v1413, %v1412
          %v1442 = vpack.c.b16 %v1415, %v1414
          %v1443 = vpack.c.b16 %v1417, %v1416
          %v1444 = vpack.c.b16 %v1419, %v1418
          %v1445 = vpack.c.b16 %v1421, %v1420
          %v1446 = vpack.c.b16 %v1423, %v1422
          %v1447 = vpack.c.b16 %v1425, %v1424
          %v1448 = vpack.c.b16 %v1427, %v1426
          %v1449 = vpack.c.b16 %v1429, %v1428
          %v1450 = vpack.c.b16 %v1431, %v1430
          %v1451 = vpack.c.b16 %v1433, %v1432
          %v1452 = vpack.c.b16 %v1435, %v1434
          %v1453 = vpack.c.b16 %v1437, %v1436
          %1470 = vmatpush.bf16.msra.mxu0 %v1445
          %1471 = vmatpush.bf16.msra.mxu0 %v1444
          %1472 = vmatpush.bf16.msra.mxu0 %v1443
          %1473 = vmatpush.bf16.msra.mxu0 %v1442
          %1474 = vmatpush.bf16.msra.mxu0 %v1441
          %1475 = vmatpush.bf16.msra.mxu0 %v1440
          %1476 = vmatpush.bf16.msra.mxu0 %v1439
          %1477 = vmatpush.bf16.msra.mxu0 %v1438
          %1478 = vmatmul.bf16.gmra.mxu0 %v1336
          %v1479 = vpop.f32.mrf.mxu0
          %v1480 = vadd.f32 %v1372, %v1479
          %v1481 = vpop.f32.mrf.mxu0
          %1482 = vdwg.mxu0
          %1483 = vmatpush.bf16.msra.mxu0 %v1453
          %1484 = vmatpush.bf16.msra.mxu0 %v1452
          %1485 = vmatpush.bf16.msra.mxu0 %v1451
          %1486 = vmatpush.bf16.msra.mxu0 %v1450
          %1487 = vmatpush.bf16.msra.mxu0 %v1449
          %1488 = vmatpush.bf16.msra.mxu0 %v1448
          %1489 = vmatpush.bf16.msra.mxu0 %v1447
          %1490 = vmatpush.bf16.msra.mxu0 %v1446
          %1491 = vmatmul.bf16.gmra.mxu0 %v1337
          %v1492 = vpop.f32.mrf.mxu0
          %v1493 = vadd.f32 %v1480, %v1492
          %v1494 = vpop.f32.mrf.mxu0
          %1495 = vdwg.mxu0
          %1496 = vst [vmem:[#allocation2] sm:$0x3] %v1493
        $region44: #{dqn_lstm_forward.9} parent=35 // pred_fallthru
          _
        // Predicated region
        $region45: #{dqn_lstm_forward.9} parent=35 // pred_check
          %p1497 = pneg %p122
        $region46: #{dqn_lstm_forward.9} parent=35 // pred_check_branch
          %1499 = sbr.rel (%p1497) target = $region48
        $region47: #{dqn_lstm_forward.9} parent=35 // pred_region
          %1501 = vsyncadd [#allocation3], 0
          %s1503 = sshll.u32 [#allocation2], 4
          %s1504 = int_to_ptr.vmem [resolvable:$true] %s1503
          %s1505 = sshll.u32 %s4, 4
          %s1506 = int_to_ptr.hbm [resolvable:$true] %s1505
          %1508 = dma.vmem_to_hbm [thread:$0]  %s1504, 32, %s1506, [#allocation3]
        $region48: #{dqn_lstm_forward.9} parent=35 // pred_fallthru
          _
        // Predicated region
        $region49: #{dqn_lstm_forward.9} parent=35 // pred_check
          %p1509 = pneg %p143
        $region50: #{dqn_lstm_forward.9} parent=35 // pred_check_branch
          %1511 = sbr.rel (%p1509) target = $region52
        $region51: #{dqn_lstm_forward.9} parent=35 // pred_region
          %1513 = vsyncadd [#allocation5], 0
          %s1515 = sshll.u32 [#allocation4], 4
          %s1516 = int_to_ptr.vmem [resolvable:$true] %s1515
          %s1517 = sshll.u32 %s5, 4
          %s1518 = int_to_ptr.hbm [resolvable:$true] %s1517
          %1520 = dma.vmem_to_hbm [thread:$0]  %s1516, 64, %s1518, [#allocation5]
        $region52: #{dqn_lstm_forward.9} parent=35 // pred_fallthru
          _
        // Predicated region
        $region53: #{dqn_lstm_forward.9} parent=35 // pred_check
          %p1521 = pneg %p164
        $region54: #{dqn_lstm_forward.9} parent=35 // pred_check_branch
          %1523 = sbr.rel (%p1521) target = $region56
        $region55: #{dqn_lstm_forward.9} parent=35 // pred_region
          %1525 = vsyncadd [#allocation5], 0
          %s1527 = sshll.u32 [#allocation6], 4
          %s1528 = int_to_ptr.vmem [resolvable:$true] %s1527
          %s1529 = sshll.u32 %s6, 4
          %s1530 = int_to_ptr.hbm [resolvable:$true] %s1529
          %1532 = dma.vmem_to_hbm [thread:$0]  %s1528, 64, %s1530, [#allocation5]
        $region56: #{dqn_lstm_forward.9} parent=35 // pred_fallthru
          _
        // Predicated region
        $region57: #{dqn_lstm_forward.9} parent=35 // pred_check
          %p1533 = pneg %p122
        $region58: #{dqn_lstm_forward.9} parent=35 // pred_check_branch
          %1535 = sbr.rel (%p1533) target = $region60
        $region59: #{dqn_lstm_forward.9} parent=35 // pred_region
          %1537 = dma.done [#allocation3], 32
        $region60: #{dqn_lstm_forward.9} parent=35 // pred_fallthru
          _
        // Predicated region
        $region61: #{dqn_lstm_forward.9} parent=35 // pred_check
          %p1538 = pneg %p143
        $region62: #{dqn_lstm_forward.9} parent=35 // pred_check_branch
          %1540 = sbr.rel (%p1538) target = $region64
        $region63: #{dqn_lstm_forward.9} parent=35 // pred_region
          %1542 = dma.done [#allocation5], 64
        $region64: #{dqn_lstm_forward.9} parent=35 // pred_fallthru
          _
        // Predicated region
        $region65: #{dqn_lstm_forward.9} parent=35 // pred_check
          %p1543 = pneg %p164
        $region66: #{dqn_lstm_forward.9} parent=35 // pred_check_branch
          %1545 = sbr.rel (%p1543) target = $region68
        $region67: #{dqn_lstm_forward.9} parent=35 // pred_region
          %1547 = dma.done [#allocation5], 64
        $region68: #{dqn_lstm_forward.9} parent=35 // pred_fallthru
          _
      $region36: #{dqn_lstm_forward.9} parent=5 // pred_fallthru
        _
      %p1548 = scmp.le.s32.totalorder 2, %s15
      // Predicated region
      $region69: #{dqn_lstm_forward.9} parent=5 // pred_check
        %p1549 = pneg %p1548
      $region70: #{dqn_lstm_forward.9} parent=5 // pred_check_branch
        %1551 = sbr.rel (%p1549) target = $region72
      $region71: #{dqn_lstm_forward.9} parent=5 // pred_region
        %s1552 = ssub.s32 %s15, 2
      $region72: #{dqn_lstm_forward.9} parent=5 // pred_fallthru
        _
    $region6: #{dqn_lstm_forward.9} parent=1 // loop_footer
      %s19 = sadd.s32 1, %s15
    $region7: #{dqn_lstm_forward.9} parent=1 // loop_footer_branch
      %14 = sbr.rel target = $region3
    $region8: #{dqn_lstm_forward.9} parent=1 // loop_exit
      _
    %1553 = vsyncpa [#allocation3], 1
    %s1554 = scalar_lea.sflag [#allocation3], 1
    %1555 = vsyncpa %s1554, 1
    %1556 = vsyncpa [#allocation5], 1

// kernel: dqn_lstm_forward.8
$region0: #{dqn_lstm_forward.8}
  #allocation0 [shape = 'u32[]', space=smem, size = 0x4, offset = 0x4, fixed_abs, tag = 'smem constant byte address 0x4 - core index']
  #allocation1 [shape = 'u32[72,128]{1,0:T(1,128)}', space=vmem, size = 0x9000, scoped, tag = 'internal scratch']
  %s0 = inlined_call_operand.vmem [shape: bf16[8,3136], index: 0, kind: input, shape index: {}]
  %s1 = inlined_call_operand.vmem [shape: bf16[3136,512], index: 1, kind: input, shape index: {}]
  %s2 = inlined_call_operand.vmem [shape: f32[1,512], index: 2, kind: input, shape index: {}]
  %s3 = inlined_call_operand.vmem [shape: bf16[512,1024], index: 3, kind: input, shape index: {}]
  %s4 = inlined_call_operand.vmem [shape: f32[1,1024], index: 4, kind: input, shape index: {}]
  %s5 = inlined_call_operand.vmem [shape: f32[8,1024], index: 5, kind: output, shape index: {}]
  %s6 = sld [smem:[#allocation0]]
  $region30: #{dqn_lstm_forward.8} parent=0
    _
  %s8 = ssub.s32 1, %s6
  %s9 = scalar_select 0, %s8, %s6
  // Predicated region
  $region2: #{dqn_lstm_forward.8} parent=0 // pred_check
    _
  $region3: #{dqn_lstm_forward.8} parent=0 // pred_check_branch
    %11 = sbr.rel (0) target = $region5
  $region4: #{dqn_lstm_forward.8} parent=0 // pred_region
    _
  $region5: #{dqn_lstm_forward.8} parent=0 // pred_fallthru
    _
  // Predicated region
  $region6: #{dqn_lstm_forward.8} parent=0 // pred_check
    _
  $region7: #{dqn_lstm_forward.8} parent=0 // pred_check_branch
    %13 = sbr.rel (0) target = $region9
  $region8: #{dqn_lstm_forward.8} parent=0 // pred_region
    _
  $region9: #{dqn_lstm_forward.8} parent=0 // pred_fallthru
    _
  // Predicated region
  $region10: #{dqn_lstm_forward.8} parent=0 // pred_check
    _
  $region11: #{dqn_lstm_forward.8} parent=0 // pred_check_branch
    %15 = sbr.rel (0) target = $region13
  $region12: #{dqn_lstm_forward.8} parent=0 // pred_region
    _
  $region13: #{dqn_lstm_forward.8} parent=0 // pred_fallthru
    _
  // Predicated region
  $region14: #{dqn_lstm_forward.8} parent=0 // pred_check
    _
  $region15: #{dqn_lstm_forward.8} parent=0 // pred_check_branch
    %17 = sbr.rel (0) target = $region17
  $region16: #{dqn_lstm_forward.8} parent=0 // pred_region
    _
  $region17: #{dqn_lstm_forward.8} parent=0 // pred_fallthru
    _
  // Predicated region
  $region18: #{dqn_lstm_forward.8} parent=0 // pred_check
    _
  $region19: #{dqn_lstm_forward.8} parent=0 // pred_check_branch
    %19 = sbr.rel (0) target = $region21
  $region20: #{dqn_lstm_forward.8} parent=0 // pred_region
    _
  $region21: #{dqn_lstm_forward.8} parent=0 // pred_fallthru
    _
  %v21 = vld [vmem:[%s0] sm:$0xff]
  %v22 = vld [vmem:[%s0 + $0x8] sm:$0xff]
  %v23 = vld [vmem:[%s0 + $0x10] sm:$0xff]
  %v24 = vld [vmem:[%s0 + $0x18] sm:$0xff]
  %v25 = vld [vmem:[%s0 + $0x20] sm:$0xff]
  %v26 = vld [vmem:[%s0 + $0x28] sm:$0xff]
  %v27 = vld [vmem:[%s0 + $0x30] sm:$0xff]
  %v28 = vld [vmem:[%s0 + $0x38] sm:$0xff]
  %v29 = vld [vmem:[%s0 + $0x40] sm:$0xff]
  %v30 = vld [vmem:[%s0 + $0x48] sm:$0xff]
  %v31 = vld [vmem:[%s0 + $0x50] sm:$0xff]
  %v32 = vld [vmem:[%s0 + $0x58] sm:$0xff]
  %v33 = vld [vmem:[%s0 + $0x60] sm:$0xf]
  %v34 = vld [vmem:[%s1] sm:$0xff]
  %v35 = vld [vmem:[%s1 + $0x8] sm:$0xff]
  %v36 = vld [vmem:[%s1 + $0x10] sm:$0xff]
  %v37 = vld [vmem:[%s1 + $0x18] sm:$0xff]
  %v38 = vld [vmem:[%s1 + $0x20] sm:$0xff]
  %v39 = vld [vmem:[%s1 + $0x28] sm:$0xff]
  %v40 = vld [vmem:[%s1 + $0x30] sm:$0xff]
  %v41 = vld [vmem:[%s1 + $0x38] sm:$0xff]
  %v42 = vld [vmem:[%s1 + $0x40] sm:$0xff]
  %v43 = vld [vmem:[%s1 + $0x48] sm:$0xff]
  %v44 = vld [vmem:[%s1 + $0x50] sm:$0xff]
  %v45 = vld [vmem:[%s1 + $0x58] sm:$0xff]
  %v46 = vld [vmem:[%s1 + $0x60] sm:$0xff]
  %v47 = vld [vmem:[%s1 + $0x68] sm:$0xff]
  %v48 = vld [vmem:[%s1 + $0x70] sm:$0xff]
  %v49 = vld [vmem:[%s1 + $0x78] sm:$0xff]
  %v50 = vld [vmem:[%s1 + $0x80] sm:$0xff]
  %v51 = vld [vmem:[%s1 + $0x88] sm:$0xff]
  %v52 = vld [vmem:[%s1 + $0x90] sm:$0xff]
  %v53 = vld [vmem:[%s1 + $0x98] sm:$0xff]
  %v54 = vld [vmem:[%s1 + $0xa0] sm:$0xff]
  %v55 = vld [vmem:[%s1 + $0xa8] sm:$0xff]
  %v56 = vld [vmem:[%s1 + $0xb0] sm:$0xff]
  %v57 = vld [vmem:[%s1 + $0xb8] sm:$0xff]
  %v58 = vld [vmem:[%s1 + $0xc0] sm:$0xff]
  %v59 = vld [vmem:[%s1 + $0xc8] sm:$0xff]
  %v60 = vld [vmem:[%s1 + $0xd0] sm:$0xff]
  %v61 = vld [vmem:[%s1 + $0xd8] sm:$0xff]
  %v62 = vld [vmem:[%s1 + $0xe0] sm:$0xff]
  %v63 = vld [vmem:[%s1 + $0xe8] sm:$0xff]
  %v64 = vld [vmem:[%s1 + $0xf0] sm:$0xff]
  %v65 = vld [vmem:[%s1 + $0xf8] sm:$0xff]
  %v66 = vld [vmem:[%s1 + $0x100] sm:$0xff]
  %v67 = vld [vmem:[%s1 + $0x108] sm:$0xff]
  %v68 = vld [vmem:[%s1 + $0x110] sm:$0xff]
  %v69 = vld [vmem:[%s1 + $0x118] sm:$0xff]
  %v70 = vld [vmem:[%s1 + $0x120] sm:$0xff]
  %v71 = vld [vmem:[%s1 + $0x128] sm:$0xff]
  %v72 = vld [vmem:[%s1 + $0x130] sm:$0xff]
  %v73 = vld [vmem:[%s1 + $0x138] sm:$0xff]
  %v74 = vld [vmem:[%s1 + $0x140] sm:$0xff]
  %v75 = vld [vmem:[%s1 + $0x148] sm:$0xff]
  %v76 = vld [vmem:[%s1 + $0x150] sm:$0xff]
  %v77 = vld [vmem:[%s1 + $0x158] sm:$0xff]
  %v78 = vld [vmem:[%s1 + $0x160] sm:$0xff]
  %v79 = vld [vmem:[%s1 + $0x168] sm:$0xff]
  %v80 = vld [vmem:[%s1 + $0x170] sm:$0xff]
  %v81 = vld [vmem:[%s1 + $0x178] sm:$0xff]
  %v82 = vld [vmem:[%s1 + $0x180] sm:$0xff]
  %v83 = vld [vmem:[%s1 + $0x188] sm:$0xff]
  %v84 = vld [vmem:[%s1 + $0x190] sm:$0xff]
  %v85 = vld [vmem:[%s1 + $0x198] sm:$0xff]
  %v86 = vld [vmem:[%s1 + $0x1a0] sm:$0xff]
  %v87 = vld [vmem:[%s1 + $0x1a8] sm:$0xff]
  %v88 = vld [vmem:[%s1 + $0x1b0] sm:$0xff]
  %v89 = vld [vmem:[%s1 + $0x1b8] sm:$0xff]
  %v90 = vld [vmem:[%s1 + $0x1c0] sm:$0xff]
  %v91 = vld [vmem:[%s1 + $0x1c8] sm:$0xff]
  %v92 = vld [vmem:[%s1 + $0x1d0] sm:$0xff]
  %v93 = vld [vmem:[%s1 + $0x1d8] sm:$0xff]
  %v94 = vld [vmem:[%s1 + $0x1e0] sm:$0xff]
  %v95 = vld [vmem:[%s1 + $0x1e8] sm:$0xff]
  %v96 = vld [vmem:[%s1 + $0x1f0] sm:$0xff]
  %v97 = vld [vmem:[%s1 + $0x1f8] sm:$0xff]
  %v98 = vld [vmem:[%s1 + $0x200] sm:$0xff]
  %v99 = vld [vmem:[%s1 + $0x208] sm:$0xff]
  %v100 = vld [vmem:[%s1 + $0x210] sm:$0xff]
  %v101 = vld [vmem:[%s1 + $0x218] sm:$0xff]
  %v102 = vld [vmem:[%s1 + $0x220] sm:$0xff]
  %v103 = vld [vmem:[%s1 + $0x228] sm:$0xff]
  %v104 = vld [vmem:[%s1 + $0x230] sm:$0xff]
  %v105 = vld [vmem:[%s1 + $0x238] sm:$0xff]
  %v106 = vld [vmem:[%s1 + $0x240] sm:$0xff]
  %v107 = vld [vmem:[%s1 + $0x248] sm:$0xff]
  %v108 = vld [vmem:[%s1 + $0x250] sm:$0xff]
  %v109 = vld [vmem:[%s1 + $0x258] sm:$0xff]
  %v110 = vld [vmem:[%s1 + $0x260] sm:$0xff]
  %v111 = vld [vmem:[%s1 + $0x268] sm:$0xff]
  %v112 = vld [vmem:[%s1 + $0x270] sm:$0xff]
  %v113 = vld [vmem:[%s1 + $0x278] sm:$0xff]
  %v114 = vld [vmem:[%s1 + $0x280] sm:$0xff]
  %v115 = vld [vmem:[%s1 + $0x288] sm:$0xff]
  %v116 = vld [vmem:[%s1 + $0x290] sm:$0xff]
  %v117 = vld [vmem:[%s1 + $0x298] sm:$0xff]
  %v118 = vld [vmem:[%s1 + $0x2a0] sm:$0xff]
  %v119 = vld [vmem:[%s1 + $0x2a8] sm:$0xff]
  %v120 = vld [vmem:[%s1 + $0x2b0] sm:$0xff]
  %v121 = vld [vmem:[%s1 + $0x2b8] sm:$0xff]
  %v122 = vld [vmem:[%s1 + $0x2c0] sm:$0xff]
  %v123 = vld [vmem:[%s1 + $0x2c8] sm:$0xff]
  %v124 = vld [vmem:[%s1 + $0x2d0] sm:$0xff]
  %v125 = vld [vmem:[%s1 + $0x2d8] sm:$0xff]
  %v126 = vld [vmem:[%s1 + $0x2e0] sm:$0xff]
  %v127 = vld [vmem:[%s1 + $0x2e8] sm:$0xff]
  %v128 = vld [vmem:[%s1 + $0x2f0] sm:$0xff]
  %v129 = vld [vmem:[%s1 + $0x2f8] sm:$0xff]
  %v130 = vld [vmem:[%s1 + $0x300] sm:$0xff]
  %v131 = vld [vmem:[%s1 + $0x308] sm:$0xff]
  %v132 = vld [vmem:[%s1 + $0x310] sm:$0xff]
  %v133 = vld [vmem:[%s1 + $0x318] sm:$0xff]
  %v134 = vld [vmem:[%s1 + $0x320] sm:$0xff]
  %v135 = vld [vmem:[%s1 + $0x328] sm:$0xff]
  %v136 = vld [vmem:[%s1 + $0x330] sm:$0xff]
  %v137 = vld [vmem:[%s1 + $0x338] sm:$0xff]
  %v138 = vld [vmem:[%s1 + $0x340] sm:$0xff]
  %v139 = vld [vmem:[%s1 + $0x348] sm:$0xff]
  %v140 = vld [vmem:[%s1 + $0x350] sm:$0xff]
  %v141 = vld [vmem:[%s1 + $0x358] sm:$0xff]
  %v142 = vld [vmem:[%s1 + $0x360] sm:$0xff]
  %v143 = vld [vmem:[%s1 + $0x368] sm:$0xff]
  %v144 = vld [vmem:[%s1 + $0x370] sm:$0xff]
  %v145 = vld [vmem:[%s1 + $0x378] sm:$0xff]
  %v146 = vld [vmem:[%s1 + $0x380] sm:$0xff]
  %v147 = vld [vmem:[%s1 + $0x388] sm:$0xff]
  %v148 = vld [vmem:[%s1 + $0x390] sm:$0xff]
  %v149 = vld [vmem:[%s1 + $0x398] sm:$0xff]
  %v150 = vld [vmem:[%s1 + $0x3a0] sm:$0xff]
  %v151 = vld [vmem:[%s1 + $0x3a8] sm:$0xff]
  %v152 = vld [vmem:[%s1 + $0x3b0] sm:$0xff]
  %v153 = vld [vmem:[%s1 + $0x3b8] sm:$0xff]
  %v154 = vld [vmem:[%s1 + $0x3c0] sm:$0xff]
  %v155 = vld [vmem:[%s1 + $0x3c8] sm:$0xff]
  %v156 = vld [vmem:[%s1 + $0x3d0] sm:$0xff]
  %v157 = vld [vmem:[%s1 + $0x3d8] sm:$0xff]
  %v158 = vld [vmem:[%s1 + $0x3e0] sm:$0xff]
  %v159 = vld [vmem:[%s1 + $0x3e8] sm:$0xff]
  %v160 = vld [vmem:[%s1 + $0x3f0] sm:$0xff]
  %v161 = vld [vmem:[%s1 + $0x3f8] sm:$0xff]
  %v162 = vld [vmem:[%s1 + $0x400] sm:$0xff]
  %v163 = vld [vmem:[%s1 + $0x408] sm:$0xff]
  %v164 = vld [vmem:[%s1 + $0x410] sm:$0xff]
  %v165 = vld [vmem:[%s1 + $0x418] sm:$0xff]
  %v166 = vld [vmem:[%s1 + $0x420] sm:$0xff]
  %v167 = vld [vmem:[%s1 + $0x428] sm:$0xff]
  %v168 = vld [vmem:[%s1 + $0x430] sm:$0xff]
  %v169 = vld [vmem:[%s1 + $0x438] sm:$0xff]
  %v170 = vld [vmem:[%s1 + $0x440] sm:$0xff]
  %v171 = vld [vmem:[%s1 + $0x448] sm:$0xff]
  %v172 = vld [vmem:[%s1 + $0x450] sm:$0xff]
  %v173 = vld [vmem:[%s1 + $0x458] sm:$0xff]
  %v174 = vld [vmem:[%s1 + $0x460] sm:$0xff]
  %v175 = vld [vmem:[%s1 + $0x468] sm:$0xff]
  %v176 = vld [vmem:[%s1 + $0x470] sm:$0xff]
  %v177 = vld [vmem:[%s1 + $0x478] sm:$0xff]
  %v178 = vld [vmem:[%s1 + $0x480] sm:$0xff]
  %v179 = vld [vmem:[%s1 + $0x488] sm:$0xff]
  %v180 = vld [vmem:[%s1 + $0x490] sm:$0xff]
  %v181 = vld [vmem:[%s1 + $0x498] sm:$0xff]
  %v182 = vld [vmem:[%s1 + $0x4a0] sm:$0xff]
  %v183 = vld [vmem:[%s1 + $0x4a8] sm:$0xff]
  %v184 = vld [vmem:[%s1 + $0x4b0] sm:$0xff]
  %v185 = vld [vmem:[%s1 + $0x4b8] sm:$0xff]
  %v186 = vld [vmem:[%s1 + $0x4c0] sm:$0xff]
  %v187 = vld [vmem:[%s1 + $0x4c8] sm:$0xff]
  %v188 = vld [vmem:[%s1 + $0x4d0] sm:$0xff]
  %v189 = vld [vmem:[%s1 + $0x4d8] sm:$0xff]
  %v190 = vld [vmem:[%s1 + $0x4e0] sm:$0xff]
  %v191 = vld [vmem:[%s1 + $0x4e8] sm:$0xff]
  %v192 = vld [vmem:[%s1 + $0x4f0] sm:$0xff]
  %v193 = vld [vmem:[%s1 + $0x4f8] sm:$0xff]
  %v194 = vld [vmem:[%s1 + $0x500] sm:$0xff]
  %v195 = vld [vmem:[%s1 + $0x508] sm:$0xff]
  %v196 = vld [vmem:[%s1 + $0x510] sm:$0xff]
  %v197 = vld [vmem:[%s1 + $0x518] sm:$0xff]
  %v198 = vld [vmem:[%s1 + $0x520] sm:$0xff]
  %v199 = vld [vmem:[%s1 + $0x528] sm:$0xff]
  %v200 = vld [vmem:[%s1 + $0x530] sm:$0xff]
  %v201 = vld [vmem:[%s1 + $0x538] sm:$0xff]
  %v202 = vld [vmem:[%s1 + $0x540] sm:$0xff]
  %v203 = vld [vmem:[%s1 + $0x548] sm:$0xff]
  %v204 = vld [vmem:[%s1 + $0x550] sm:$0xff]
  %v205 = vld [vmem:[%s1 + $0x558] sm:$0xff]
  %v206 = vld [vmem:[%s1 + $0x560] sm:$0xff]
  %v207 = vld [vmem:[%s1 + $0x568] sm:$0xff]
  %v208 = vld [vmem:[%s1 + $0x570] sm:$0xff]
  %v209 = vld [vmem:[%s1 + $0x578] sm:$0xff]
  %v210 = vld [vmem:[%s1 + $0x580] sm:$0xff]
  %v211 = vld [vmem:[%s1 + $0x588] sm:$0xff]
  %v212 = vld [vmem:[%s1 + $0x590] sm:$0xff]
  %v213 = vld [vmem:[%s1 + $0x598] sm:$0xff]
  %v214 = vld [vmem:[%s1 + $0x5a0] sm:$0xff]
  %v215 = vld [vmem:[%s1 + $0x5a8] sm:$0xff]
  %v216 = vld [vmem:[%s1 + $0x5b0] sm:$0xff]
  %v217 = vld [vmem:[%s1 + $0x5b8] sm:$0xff]
  %v218 = vld [vmem:[%s1 + $0x5c0] sm:$0xff]
  %v219 = vld [vmem:[%s1 + $0x5c8] sm:$0xff]
  %v220 = vld [vmem:[%s1 + $0x5d0] sm:$0xff]
  %v221 = vld [vmem:[%s1 + $0x5d8] sm:$0xff]
  %v222 = vld [vmem:[%s1 + $0x5e0] sm:$0xff]
  %v223 = vld [vmem:[%s1 + $0x5e8] sm:$0xff]
  %v224 = vld [vmem:[%s1 + $0x5f0] sm:$0xff]
  %v225 = vld [vmem:[%s1 + $0x5f8] sm:$0xff]
  %v226 = vld [vmem:[%s1 + $0x600] sm:$0xff]
  %v227 = vld [vmem:[%s1 + $0x608] sm:$0xff]
  %v228 = vld [vmem:[%s1 + $0x610] sm:$0xff]
  %v229 = vld [vmem:[%s1 + $0x618] sm:$0xff]
  %v230 = vld [vmem:[%s1 + $0x620] sm:$0xff]
  %v231 = vld [vmem:[%s1 + $0x628] sm:$0xff]
  %v232 = vld [vmem:[%s1 + $0x630] sm:$0xff]
  %v233 = vld [vmem:[%s1 + $0x638] sm:$0xff]
  %v234 = vld [vmem:[%s1 + $0x640] sm:$0xff]
  %v235 = vld [vmem:[%s1 + $0x648] sm:$0xff]
  %v236 = vld [vmem:[%s1 + $0x650] sm:$0xff]
  %v237 = vld [vmem:[%s1 + $0x658] sm:$0xff]
  %v238 = vld [vmem:[%s1 + $0x660] sm:$0xff]
  %v239 = vld [vmem:[%s1 + $0x668] sm:$0xff]
  %v240 = vld [vmem:[%s1 + $0x670] sm:$0xff]
  %v241 = vld [vmem:[%s1 + $0x678] sm:$0xff]
  %v242 = vld [vmem:[%s1 + $0x680] sm:$0xff]
  %v243 = vld [vmem:[%s1 + $0x688] sm:$0xff]
  %v244 = vld [vmem:[%s1 + $0x690] sm:$0xff]
  %v245 = vld [vmem:[%s1 + $0x698] sm:$0xff]
  %v246 = vld [vmem:[%s1 + $0x6a0] sm:$0xff]
  %v247 = vld [vmem:[%s1 + $0x6a8] sm:$0xff]
  %v248 = vld [vmem:[%s1 + $0x6b0] sm:$0xff]
  %v249 = vld [vmem:[%s1 + $0x6b8] sm:$0xff]
  %v250 = vld [vmem:[%s1 + $0x6c0] sm:$0xff]
  %v251 = vld [vmem:[%s1 + $0x6c8] sm:$0xff]
  %v252 = vld [vmem:[%s1 + $0x6d0] sm:$0xff]
  %v253 = vld [vmem:[%s1 + $0x6d8] sm:$0xff]
  %v254 = vld [vmem:[%s1 + $0x6e0] sm:$0xff]
  %v255 = vld [vmem:[%s1 + $0x6e8] sm:$0xff]
  %v256 = vld [vmem:[%s1 + $0x6f0] sm:$0xff]
  %v257 = vld [vmem:[%s1 + $0x6f8] sm:$0xff]
  %v258 = vld [vmem:[%s1 + $0x700] sm:$0xff]
  %v259 = vld [vmem:[%s1 + $0x708] sm:$0xff]
  %v260 = vld [vmem:[%s1 + $0x710] sm:$0xff]
  %v261 = vld [vmem:[%s1 + $0x718] sm:$0xff]
  %v262 = vld [vmem:[%s1 + $0x720] sm:$0xff]
  %v263 = vld [vmem:[%s1 + $0x728] sm:$0xff]
  %v264 = vld [vmem:[%s1 + $0x730] sm:$0xff]
  %v265 = vld [vmem:[%s1 + $0x738] sm:$0xff]
  %v266 = vld [vmem:[%s1 + $0x740] sm:$0xff]
  %v267 = vld [vmem:[%s1 + $0x748] sm:$0xff]
  %v268 = vld [vmem:[%s1 + $0x750] sm:$0xff]
  %v269 = vld [vmem:[%s1 + $0x758] sm:$0xff]
  %v270 = vld [vmem:[%s1 + $0x760] sm:$0xff]
  %v271 = vld [vmem:[%s1 + $0x768] sm:$0xff]
  %v272 = vld [vmem:[%s1 + $0x770] sm:$0xff]
  %v273 = vld [vmem:[%s1 + $0x778] sm:$0xff]
  %v274 = vld [vmem:[%s1 + $0x780] sm:$0xff]
  %v275 = vld [vmem:[%s1 + $0x788] sm:$0xff]
  %v276 = vld [vmem:[%s1 + $0x790] sm:$0xff]
  %v277 = vld [vmem:[%s1 + $0x798] sm:$0xff]
  %v278 = vld [vmem:[%s1 + $0x7a0] sm:$0xff]
  %v279 = vld [vmem:[%s1 + $0x7a8] sm:$0xff]
  %v280 = vld [vmem:[%s1 + $0x7b0] sm:$0xff]
  %v281 = vld [vmem:[%s1 + $0x7b8] sm:$0xff]
  %v282 = vld [vmem:[%s1 + $0x7c0] sm:$0xff]
  %v283 = vld [vmem:[%s1 + $0x7c8] sm:$0xff]
  %v284 = vld [vmem:[%s1 + $0x7d0] sm:$0xff]
  %v285 = vld [vmem:[%s1 + $0x7d8] sm:$0xff]
  %v286 = vld [vmem:[%s1 + $0x7e0] sm:$0xff]
  %v287 = vld [vmem:[%s1 + $0x7e8] sm:$0xff]
  %v288 = vld [vmem:[%s1 + $0x7f0] sm:$0xff]
  %v289 = vld [vmem:[%s1 + $0x7f8] sm:$0xff]
  %v290 = vld [vmem:[%s1 + $0x800] sm:$0xff]
  %v291 = vld [vmem:[%s1 + $0x808] sm:$0xff]
  %v292 = vld [vmem:[%s1 + $0x810] sm:$0xff]
  %v293 = vld [vmem:[%s1 + $0x818] sm:$0xff]
  %v294 = vld [vmem:[%s1 + $0x820] sm:$0xff]
  %v295 = vld [vmem:[%s1 + $0x828] sm:$0xff]
  %v296 = vld [vmem:[%s1 + $0x830] sm:$0xff]
  %v297 = vld [vmem:[%s1 + $0x838] sm:$0xff]
  %v298 = vld [vmem:[%s1 + $0x840] sm:$0xff]
  %v299 = vld [vmem:[%s1 + $0x848] sm:$0xff]
  %v300 = vld [vmem:[%s1 + $0x850] sm:$0xff]
  %v301 = vld [vmem:[%s1 + $0x858] sm:$0xff]
  %v302 = vld [vmem:[%s1 + $0x860] sm:$0xff]
  %v303 = vld [vmem:[%s1 + $0x868] sm:$0xff]
  %v304 = vld [vmem:[%s1 + $0x870] sm:$0xff]
  %v305 = vld [vmem:[%s1 + $0x878] sm:$0xff]
  %v306 = vld [vmem:[%s1 + $0x880] sm:$0xff]
  %v307 = vld [vmem:[%s1 + $0x888] sm:$0xff]
  %v308 = vld [vmem:[%s1 + $0x890] sm:$0xff]
  %v309 = vld [vmem:[%s1 + $0x898] sm:$0xff]
  %v310 = vld [vmem:[%s1 + $0x8a0] sm:$0xff]
  %v311 = vld [vmem:[%s1 + $0x8a8] sm:$0xff]
  %v312 = vld [vmem:[%s1 + $0x8b0] sm:$0xff]
  %v313 = vld [vmem:[%s1 + $0x8b8] sm:$0xff]
  %v314 = vld [vmem:[%s1 + $0x8c0] sm:$0xff]
  %v315 = vld [vmem:[%s1 + $0x8c8] sm:$0xff]
  %v316 = vld [vmem:[%s1 + $0x8d0] sm:$0xff]
  %v317 = vld [vmem:[%s1 + $0x8d8] sm:$0xff]
  %v318 = vld [vmem:[%s1 + $0x8e0] sm:$0xff]
  %v319 = vld [vmem:[%s1 + $0x8e8] sm:$0xff]
  %v320 = vld [vmem:[%s1 + $0x8f0] sm:$0xff]
  %v321 = vld [vmem:[%s1 + $0x8f8] sm:$0xff]
  %v322 = vld [vmem:[%s1 + $0x900] sm:$0xff]
  %v323 = vld [vmem:[%s1 + $0x908] sm:$0xff]
  %v324 = vld [vmem:[%s1 + $0x910] sm:$0xff]
  %v325 = vld [vmem:[%s1 + $0x918] sm:$0xff]
  %v326 = vld [vmem:[%s1 + $0x920] sm:$0xff]
  %v327 = vld [vmem:[%s1 + $0x928] sm:$0xff]
  %v328 = vld [vmem:[%s1 + $0x930] sm:$0xff]
  %v329 = vld [vmem:[%s1 + $0x938] sm:$0xff]
  %v330 = vld [vmem:[%s1 + $0x940] sm:$0xff]
  %v331 = vld [vmem:[%s1 + $0x948] sm:$0xff]
  %v332 = vld [vmem:[%s1 + $0x950] sm:$0xff]
  %v333 = vld [vmem:[%s1 + $0x958] sm:$0xff]
  %v334 = vld [vmem:[%s1 + $0x960] sm:$0xff]
  %v335 = vld [vmem:[%s1 + $0x968] sm:$0xff]
  %v336 = vld [vmem:[%s1 + $0x970] sm:$0xff]
  %v337 = vld [vmem:[%s1 + $0x978] sm:$0xff]
  %v338 = vld [vmem:[%s1 + $0x980] sm:$0xff]
  %v339 = vld [vmem:[%s1 + $0x988] sm:$0xff]
  %v340 = vld [vmem:[%s1 + $0x990] sm:$0xff]
  %v341 = vld [vmem:[%s1 + $0x998] sm:$0xff]
  %v342 = vld [vmem:[%s1 + $0x9a0] sm:$0xff]
  %v343 = vld [vmem:[%s1 + $0x9a8] sm:$0xff]
  %v344 = vld [vmem:[%s1 + $0x9b0] sm:$0xff]
  %v345 = vld [vmem:[%s1 + $0x9b8] sm:$0xff]
  %v346 = vld [vmem:[%s1 + $0x9c0] sm:$0xff]
  %v347 = vld [vmem:[%s1 + $0x9c8] sm:$0xff]
  %v348 = vld [vmem:[%s1 + $0x9d0] sm:$0xff]
  %v349 = vld [vmem:[%s1 + $0x9d8] sm:$0xff]
  %v350 = vld [vmem:[%s1 + $0x9e0] sm:$0xff]
  %v351 = vld [vmem:[%s1 + $0x9e8] sm:$0xff]
  %v352 = vld [vmem:[%s1 + $0x9f0] sm:$0xff]
  %v353 = vld [vmem:[%s1 + $0x9f8] sm:$0xff]
  %v354 = vld [vmem:[%s1 + $0xa00] sm:$0xff]
  %v355 = vld [vmem:[%s1 + $0xa08] sm:$0xff]
  %v356 = vld [vmem:[%s1 + $0xa10] sm:$0xff]
  %v357 = vld [vmem:[%s1 + $0xa18] sm:$0xff]
  %v358 = vld [vmem:[%s1 + $0xa20] sm:$0xff]
  %v359 = vld [vmem:[%s1 + $0xa28] sm:$0xff]
  %v360 = vld [vmem:[%s1 + $0xa30] sm:$0xff]
  %v361 = vld [vmem:[%s1 + $0xa38] sm:$0xff]
  %v362 = vld [vmem:[%s1 + $0xa40] sm:$0xff]
  %v363 = vld [vmem:[%s1 + $0xa48] sm:$0xff]
  %v364 = vld [vmem:[%s1 + $0xa50] sm:$0xff]
  %v365 = vld [vmem:[%s1 + $0xa58] sm:$0xff]
  %v366 = vld [vmem:[%s1 + $0xa60] sm:$0xff]
  %v367 = vld [vmem:[%s1 + $0xa68] sm:$0xff]
  %v368 = vld [vmem:[%s1 + $0xa70] sm:$0xff]
  %v369 = vld [vmem:[%s1 + $0xa78] sm:$0xff]
  %v370 = vld [vmem:[%s1 + $0xa80] sm:$0xff]
  %v371 = vld [vmem:[%s1 + $0xa88] sm:$0xff]
  %v372 = vld [vmem:[%s1 + $0xa90] sm:$0xff]
  %v373 = vld [vmem:[%s1 + $0xa98] sm:$0xff]
  %v374 = vld [vmem:[%s1 + $0xaa0] sm:$0xff]
  %v375 = vld [vmem:[%s1 + $0xaa8] sm:$0xff]
  %v376 = vld [vmem:[%s1 + $0xab0] sm:$0xff]
  %v377 = vld [vmem:[%s1 + $0xab8] sm:$0xff]
  %v378 = vld [vmem:[%s1 + $0xac0] sm:$0xff]
  %v379 = vld [vmem:[%s1 + $0xac8] sm:$0xff]
  %v380 = vld [vmem:[%s1 + $0xad0] sm:$0xff]
  %v381 = vld [vmem:[%s1 + $0xad8] sm:$0xff]
  %v382 = vld [vmem:[%s1 + $0xae0] sm:$0xff]
  %v383 = vld [vmem:[%s1 + $0xae8] sm:$0xff]
  %v384 = vld [vmem:[%s1 + $0xaf0] sm:$0xff]
  %v385 = vld [vmem:[%s1 + $0xaf8] sm:$0xff]
  %v386 = vld [vmem:[%s1 + $0xb00] sm:$0xff]
  %v387 = vld [vmem:[%s1 + $0xb08] sm:$0xff]
  %v388 = vld [vmem:[%s1 + $0xb10] sm:$0xff]
  %v389 = vld [vmem:[%s1 + $0xb18] sm:$0xff]
  %v390 = vld [vmem:[%s1 + $0xb20] sm:$0xff]
  %v391 = vld [vmem:[%s1 + $0xb28] sm:$0xff]
  %v392 = vld [vmem:[%s1 + $0xb30] sm:$0xff]
  %v393 = vld [vmem:[%s1 + $0xb38] sm:$0xff]
  %v394 = vld [vmem:[%s1 + $0xb40] sm:$0xff]
  %v395 = vld [vmem:[%s1 + $0xb48] sm:$0xff]
  %v396 = vld [vmem:[%s1 + $0xb50] sm:$0xff]
  %v397 = vld [vmem:[%s1 + $0xb58] sm:$0xff]
  %v398 = vld [vmem:[%s1 + $0xb60] sm:$0xff]
  %v399 = vld [vmem:[%s1 + $0xb68] sm:$0xff]
  %v400 = vld [vmem:[%s1 + $0xb70] sm:$0xff]
  %v401 = vld [vmem:[%s1 + $0xb78] sm:$0xff]
  %v402 = vld [vmem:[%s1 + $0xb80] sm:$0xff]
  %v403 = vld [vmem:[%s1 + $0xb88] sm:$0xff]
  %v404 = vld [vmem:[%s1 + $0xb90] sm:$0xff]
  %v405 = vld [vmem:[%s1 + $0xb98] sm:$0xff]
  %v406 = vld [vmem:[%s1 + $0xba0] sm:$0xff]
  %v407 = vld [vmem:[%s1 + $0xba8] sm:$0xff]
  %v408 = vld [vmem:[%s1 + $0xbb0] sm:$0xff]
  %v409 = vld [vmem:[%s1 + $0xbb8] sm:$0xff]
  %v410 = vld [vmem:[%s1 + $0xbc0] sm:$0xff]
  %v411 = vld [vmem:[%s1 + $0xbc8] sm:$0xff]
  %v412 = vld [vmem:[%s1 + $0xbd0] sm:$0xff]
  %v413 = vld [vmem:[%s1 + $0xbd8] sm:$0xff]
  %v414 = vld [vmem:[%s1 + $0xbe0] sm:$0xff]
  %v415 = vld [vmem:[%s1 + $0xbe8] sm:$0xff]
  %v416 = vld [vmem:[%s1 + $0xbf0] sm:$0xff]
  %v417 = vld [vmem:[%s1 + $0xbf8] sm:$0xff]
  %v418 = vld [vmem:[%s1 + $0xc00] sm:$0xff]
  %v419 = vld [vmem:[%s1 + $0xc08] sm:$0xff]
  %v420 = vld [vmem:[%s1 + $0xc10] sm:$0xff]
  %v421 = vld [vmem:[%s1 + $0xc18] sm:$0xff]
  %v422 = vld [vmem:[%s1 + $0xc20] sm:$0xff]
  %v423 = vld [vmem:[%s1 + $0xc28] sm:$0xff]
  %v424 = vld [vmem:[%s1 + $0xc30] sm:$0xff]
  %v425 = vld [vmem:[%s1 + $0xc38] sm:$0xff]
  %v426 = vld [vmem:[%s1 + $0xc40] sm:$0xff]
  %v427 = vld [vmem:[%s1 + $0xc48] sm:$0xff]
  %v428 = vld [vmem:[%s1 + $0xc50] sm:$0xff]
  %v429 = vld [vmem:[%s1 + $0xc58] sm:$0xff]
  %v430 = vld [vmem:[%s1 + $0xc60] sm:$0xff]
  %v431 = vld [vmem:[%s1 + $0xc68] sm:$0xff]
  %v432 = vld [vmem:[%s1 + $0xc70] sm:$0xff]
  %v433 = vld [vmem:[%s1 + $0xc78] sm:$0xff]
  %v434 = vld [vmem:[%s1 + $0xc80] sm:$0xff]
  %v435 = vld [vmem:[%s1 + $0xc88] sm:$0xff]
  %v436 = vld [vmem:[%s1 + $0xc90] sm:$0xff]
  %v437 = vld [vmem:[%s1 + $0xc98] sm:$0xff]
  %v438 = vld [vmem:[%s1 + $0xca0] sm:$0xff]
  %v439 = vld [vmem:[%s1 + $0xca8] sm:$0xff]
  %v440 = vld [vmem:[%s1 + $0xcb0] sm:$0xff]
  %v441 = vld [vmem:[%s1 + $0xcb8] sm:$0xff]
  %v442 = vld [vmem:[%s1 + $0xcc0] sm:$0xff]
  %v443 = vld [vmem:[%s1 + $0xcc8] sm:$0xff]
  %v444 = vld [vmem:[%s1 + $0xcd0] sm:$0xff]
  %v445 = vld [vmem:[%s1 + $0xcd8] sm:$0xff]
  %v446 = vld [vmem:[%s1 + $0xce0] sm:$0xff]
  %v447 = vld [vmem:[%s1 + $0xce8] sm:$0xff]
  %v448 = vld [vmem:[%s1 + $0xcf0] sm:$0xff]
  %v449 = vld [vmem:[%s1 + $0xcf8] sm:$0xff]
  %v450 = vld [vmem:[%s1 + $0xd00] sm:$0xff]
  %v451 = vld [vmem:[%s1 + $0xd08] sm:$0xff]
  %v452 = vld [vmem:[%s1 + $0xd10] sm:$0xff]
  %v453 = vld [vmem:[%s1 + $0xd18] sm:$0xff]
  %v454 = vld [vmem:[%s1 + $0xd20] sm:$0xff]
  %v455 = vld [vmem:[%s1 + $0xd28] sm:$0xff]
  %v456 = vld [vmem:[%s1 + $0xd30] sm:$0xff]
  %v457 = vld [vmem:[%s1 + $0xd38] sm:$0xff]
  %v458 = vld [vmem:[%s1 + $0xd40] sm:$0xff]
  %v459 = vld [vmem:[%s1 + $0xd48] sm:$0xff]
  %v460 = vld [vmem:[%s1 + $0xd50] sm:$0xff]
  %v461 = vld [vmem:[%s1 + $0xd58] sm:$0xff]
  %v462 = vld [vmem:[%s1 + $0xd60] sm:$0xff]
  %v463 = vld [vmem:[%s1 + $0xd68] sm:$0xff]
  %v464 = vld [vmem:[%s1 + $0xd70] sm:$0xff]
  %v465 = vld [vmem:[%s1 + $0xd78] sm:$0xff]
  %v466 = vld [vmem:[%s1 + $0xd80] sm:$0xff]
  %v467 = vld [vmem:[%s1 + $0xd88] sm:$0xff]
  %v468 = vld [vmem:[%s1 + $0xd90] sm:$0xff]
  %v469 = vld [vmem:[%s1 + $0xd98] sm:$0xff]
  %v470 = vld [vmem:[%s1 + $0xda0] sm:$0xff]
  %v471 = vld [vmem:[%s1 + $0xda8] sm:$0xff]
  %v472 = vld [vmem:[%s1 + $0xdb0] sm:$0xff]
  %v473 = vld [vmem:[%s1 + $0xdb8] sm:$0xff]
  %v474 = vld [vmem:[%s1 + $0xdc0] sm:$0xff]
  %v475 = vld [vmem:[%s1 + $0xdc8] sm:$0xff]
  %v476 = vld [vmem:[%s1 + $0xdd0] sm:$0xff]
  %v477 = vld [vmem:[%s1 + $0xdd8] sm:$0xff]
  %v478 = vld [vmem:[%s1 + $0xde0] sm:$0xff]
  %v479 = vld [vmem:[%s1 + $0xde8] sm:$0xff]
  %v480 = vld [vmem:[%s1 + $0xdf0] sm:$0xff]
  %v481 = vld [vmem:[%s1 + $0xdf8] sm:$0xff]
  %v482 = vld [vmem:[%s1 + $0xe00] sm:$0xff]
  %v483 = vld [vmem:[%s1 + $0xe08] sm:$0xff]
  %v484 = vld [vmem:[%s1 + $0xe10] sm:$0xff]
  %v485 = vld [vmem:[%s1 + $0xe18] sm:$0xff]
  %v486 = vld [vmem:[%s1 + $0xe20] sm:$0xff]
  %v487 = vld [vmem:[%s1 + $0xe28] sm:$0xff]
  %v488 = vld [vmem:[%s1 + $0xe30] sm:$0xff]
  %v489 = vld [vmem:[%s1 + $0xe38] sm:$0xff]
  %v490 = vld [vmem:[%s1 + $0xe40] sm:$0xff]
  %v491 = vld [vmem:[%s1 + $0xe48] sm:$0xff]
  %v492 = vld [vmem:[%s1 + $0xe50] sm:$0xff]
  %v493 = vld [vmem:[%s1 + $0xe58] sm:$0xff]
  %v494 = vld [vmem:[%s1 + $0xe60] sm:$0xff]
  %v495 = vld [vmem:[%s1 + $0xe68] sm:$0xff]
  %v496 = vld [vmem:[%s1 + $0xe70] sm:$0xff]
  %v497 = vld [vmem:[%s1 + $0xe78] sm:$0xff]
  %v498 = vld [vmem:[%s1 + $0xe80] sm:$0xff]
  %v499 = vld [vmem:[%s1 + $0xe88] sm:$0xff]
  %v500 = vld [vmem:[%s1 + $0xe90] sm:$0xff]
  %v501 = vld [vmem:[%s1 + $0xe98] sm:$0xff]
  %v502 = vld [vmem:[%s1 + $0xea0] sm:$0xff]
  %v503 = vld [vmem:[%s1 + $0xea8] sm:$0xff]
  %v504 = vld [vmem:[%s1 + $0xeb0] sm:$0xff]
  %v505 = vld [vmem:[%s1 + $0xeb8] sm:$0xff]
  %v506 = vld [vmem:[%s1 + $0xec0] sm:$0xff]
  %v507 = vld [vmem:[%s1 + $0xec8] sm:$0xff]
  %v508 = vld [vmem:[%s1 + $0xed0] sm:$0xff]
  %v509 = vld [vmem:[%s1 + $0xed8] sm:$0xff]
  %v510 = vld [vmem:[%s1 + $0xee0] sm:$0xff]
  %v511 = vld [vmem:[%s1 + $0xee8] sm:$0xff]
  %v512 = vld [vmem:[%s1 + $0xef0] sm:$0xff]
  %v513 = vld [vmem:[%s1 + $0xef8] sm:$0xff]
  %v514 = vld [vmem:[%s1 + $0xf00] sm:$0xff]
  %v515 = vld [vmem:[%s1 + $0xf08] sm:$0xff]
  %v516 = vld [vmem:[%s1 + $0xf10] sm:$0xff]
  %v517 = vld [vmem:[%s1 + $0xf18] sm:$0xff]
  %v518 = vld [vmem:[%s1 + $0xf20] sm:$0xff]
  %v519 = vld [vmem:[%s1 + $0xf28] sm:$0xff]
  %v520 = vld [vmem:[%s1 + $0xf30] sm:$0xff]
  %v521 = vld [vmem:[%s1 + $0xf38] sm:$0xff]
  %v522 = vld [vmem:[%s1 + $0xf40] sm:$0xff]
  %v523 = vld [vmem:[%s1 + $0xf48] sm:$0xff]
  %v524 = vld [vmem:[%s1 + $0xf50] sm:$0xff]
  %v525 = vld [vmem:[%s1 + $0xf58] sm:$0xff]
  %v526 = vld [vmem:[%s1 + $0xf60] sm:$0xff]
  %v527 = vld [vmem:[%s1 + $0xf68] sm:$0xff]
  %v528 = vld [vmem:[%s1 + $0xf70] sm:$0xff]
  %v529 = vld [vmem:[%s1 + $0xf78] sm:$0xff]
  %v530 = vld [vmem:[%s1 + $0xf80] sm:$0xff]
  %v531 = vld [vmem:[%s1 + $0xf88] sm:$0xff]
  %v532 = vld [vmem:[%s1 + $0xf90] sm:$0xff]
  %v533 = vld [vmem:[%s1 + $0xf98] sm:$0xff]
  %v534 = vld [vmem:[%s1 + $0xfa0] sm:$0xff]
  %v535 = vld [vmem:[%s1 + $0xfa8] sm:$0xff]
  %v536 = vld [vmem:[%s1 + $0xfb0] sm:$0xff]
  %v537 = vld [vmem:[%s1 + $0xfb8] sm:$0xff]
  %v538 = vld [vmem:[%s1 + $0xfc0] sm:$0xff]
  %v539 = vld [vmem:[%s1 + $0xfc8] sm:$0xff]
  %v540 = vld [vmem:[%s1 + $0xfd0] sm:$0xff]
  %v541 = vld [vmem:[%s1 + $0xfd8] sm:$0xff]
  %v542 = vld [vmem:[%s1 + $0xfe0] sm:$0xff]
  %v543 = vld [vmem:[%s1 + $0xfe8] sm:$0xff]
  %v544 = vld [vmem:[%s1 + $0xff0] sm:$0xff]
  %v545 = vld [vmem:[%s1 + $0xff8] sm:$0xff]
  %v546 = vld [vmem:[%s1 + $0x1000] sm:$0xff]
  %v547 = vld [vmem:[%s1 + $0x1008] sm:$0xff]
  %v548 = vld [vmem:[%s1 + $0x1010] sm:$0xff]
  %v549 = vld [vmem:[%s1 + $0x1018] sm:$0xff]
  %v550 = vld [vmem:[%s1 + $0x1020] sm:$0xff]
  %v551 = vld [vmem:[%s1 + $0x1028] sm:$0xff]
  %v552 = vld [vmem:[%s1 + $0x1030] sm:$0xff]
  %v553 = vld [vmem:[%s1 + $0x1038] sm:$0xff]
  %v554 = vld [vmem:[%s1 + $0x1040] sm:$0xff]
  %v555 = vld [vmem:[%s1 + $0x1048] sm:$0xff]
  %v556 = vld [vmem:[%s1 + $0x1050] sm:$0xff]
  %v557 = vld [vmem:[%s1 + $0x1058] sm:$0xff]
  %v558 = vld [vmem:[%s1 + $0x1060] sm:$0xff]
  %v559 = vld [vmem:[%s1 + $0x1068] sm:$0xff]
  %v560 = vld [vmem:[%s1 + $0x1070] sm:$0xff]
  %v561 = vld [vmem:[%s1 + $0x1078] sm:$0xff]
  %v562 = vld [vmem:[%s1 + $0x1080] sm:$0xff]
  %v563 = vld [vmem:[%s1 + $0x1088] sm:$0xff]
  %v564 = vld [vmem:[%s1 + $0x1090] sm:$0xff]
  %v565 = vld [vmem:[%s1 + $0x1098] sm:$0xff]
  %v566 = vld [vmem:[%s1 + $0x10a0] sm:$0xff]
  %v567 = vld [vmem:[%s1 + $0x10a8] sm:$0xff]
  %v568 = vld [vmem:[%s1 + $0x10b0] sm:$0xff]
  %v569 = vld [vmem:[%s1 + $0x10b8] sm:$0xff]
  %v570 = vld [vmem:[%s1 + $0x10c0] sm:$0xff]
  %v571 = vld [vmem:[%s1 + $0x10c8] sm:$0xff]
  %v572 = vld [vmem:[%s1 + $0x10d0] sm:$0xff]
  %v573 = vld [vmem:[%s1 + $0x10d8] sm:$0xff]
  %v574 = vld [vmem:[%s1 + $0x10e0] sm:$0xff]
  %v575 = vld [vmem:[%s1 + $0x10e8] sm:$0xff]
  %v576 = vld [vmem:[%s1 + $0x10f0] sm:$0xff]
  %v577 = vld [vmem:[%s1 + $0x10f8] sm:$0xff]
  %v578 = vld [vmem:[%s1 + $0x1100] sm:$0xff]
  %v579 = vld [vmem:[%s1 + $0x1108] sm:$0xff]
  %v580 = vld [vmem:[%s1 + $0x1110] sm:$0xff]
  %v581 = vld [vmem:[%s1 + $0x1118] sm:$0xff]
  %v582 = vld [vmem:[%s1 + $0x1120] sm:$0xff]
  %v583 = vld [vmem:[%s1 + $0x1128] sm:$0xff]
  %v584 = vld [vmem:[%s1 + $0x1130] sm:$0xff]
  %v585 = vld [vmem:[%s1 + $0x1138] sm:$0xff]
  %v586 = vld [vmem:[%s1 + $0x1140] sm:$0xff]
  %v587 = vld [vmem:[%s1 + $0x1148] sm:$0xff]
  %v588 = vld [vmem:[%s1 + $0x1150] sm:$0xff]
  %v589 = vld [vmem:[%s1 + $0x1158] sm:$0xff]
  %v590 = vld [vmem:[%s1 + $0x1160] sm:$0xff]
  %v591 = vld [vmem:[%s1 + $0x1168] sm:$0xff]
  %v592 = vld [vmem:[%s1 + $0x1170] sm:$0xff]
  %v593 = vld [vmem:[%s1 + $0x1178] sm:$0xff]
  %v594 = vld [vmem:[%s1 + $0x1180] sm:$0xff]
  %v595 = vld [vmem:[%s1 + $0x1188] sm:$0xff]
  %v596 = vld [vmem:[%s1 + $0x1190] sm:$0xff]
  %v597 = vld [vmem:[%s1 + $0x1198] sm:$0xff]
  %v598 = vld [vmem:[%s1 + $0x11a0] sm:$0xff]
  %v599 = vld [vmem:[%s1 + $0x11a8] sm:$0xff]
  %v600 = vld [vmem:[%s1 + $0x11b0] sm:$0xff]
  %v601 = vld [vmem:[%s1 + $0x11b8] sm:$0xff]
  %v602 = vld [vmem:[%s1 + $0x11c0] sm:$0xff]
  %v603 = vld [vmem:[%s1 + $0x11c8] sm:$0xff]
  %v604 = vld [vmem:[%s1 + $0x11d0] sm:$0xff]
  %v605 = vld [vmem:[%s1 + $0x11d8] sm:$0xff]
  %v606 = vld [vmem:[%s1 + $0x11e0] sm:$0xff]
  %v607 = vld [vmem:[%s1 + $0x11e8] sm:$0xff]
  %v608 = vld [vmem:[%s1 + $0x11f0] sm:$0xff]
  %v609 = vld [vmem:[%s1 + $0x11f8] sm:$0xff]
  %v610 = vld [vmem:[%s1 + $0x1200] sm:$0xff]
  %v611 = vld [vmem:[%s1 + $0x1208] sm:$0xff]
  %v612 = vld [vmem:[%s1 + $0x1210] sm:$0xff]
  %v613 = vld [vmem:[%s1 + $0x1218] sm:$0xff]
  %v614 = vld [vmem:[%s1 + $0x1220] sm:$0xff]
  %v615 = vld [vmem:[%s1 + $0x1228] sm:$0xff]
  %v616 = vld [vmem:[%s1 + $0x1230] sm:$0xff]
  %v617 = vld [vmem:[%s1 + $0x1238] sm:$0xff]
  %v618 = vld [vmem:[%s1 + $0x1240] sm:$0xff]
  %v619 = vld [vmem:[%s1 + $0x1248] sm:$0xff]
  %v620 = vld [vmem:[%s1 + $0x1250] sm:$0xff]
  %v621 = vld [vmem:[%s1 + $0x1258] sm:$0xff]
  %v622 = vld [vmem:[%s1 + $0x1260] sm:$0xff]
  %v623 = vld [vmem:[%s1 + $0x1268] sm:$0xff]
  %v624 = vld [vmem:[%s1 + $0x1270] sm:$0xff]
  %v625 = vld [vmem:[%s1 + $0x1278] sm:$0xff]
  %v626 = vld [vmem:[%s1 + $0x1280] sm:$0xff]
  %v627 = vld [vmem:[%s1 + $0x1288] sm:$0xff]
  %v628 = vld [vmem:[%s1 + $0x1290] sm:$0xff]
  %v629 = vld [vmem:[%s1 + $0x1298] sm:$0xff]
  %v630 = vld [vmem:[%s1 + $0x12a0] sm:$0xff]
  %v631 = vld [vmem:[%s1 + $0x12a8] sm:$0xff]
  %v632 = vld [vmem:[%s1 + $0x12b0] sm:$0xff]
  %v633 = vld [vmem:[%s1 + $0x12b8] sm:$0xff]
  %v634 = vld [vmem:[%s1 + $0x12c0] sm:$0xff]
  %v635 = vld [vmem:[%s1 + $0x12c8] sm:$0xff]
  %v636 = vld [vmem:[%s1 + $0x12d0] sm:$0xff]
  %v637 = vld [vmem:[%s1 + $0x12d8] sm:$0xff]
  %v638 = vld [vmem:[%s1 + $0x12e0] sm:$0xff]
  %v639 = vld [vmem:[%s1 + $0x12e8] sm:$0xff]
  %v640 = vld [vmem:[%s1 + $0x12f0] sm:$0xff]
  %v641 = vld [vmem:[%s1 + $0x12f8] sm:$0xff]
  %v642 = vld [vmem:[%s1 + $0x1300] sm:$0xff]
  %v643 = vld [vmem:[%s1 + $0x1308] sm:$0xff]
  %v644 = vld [vmem:[%s1 + $0x1310] sm:$0xff]
  %v645 = vld [vmem:[%s1 + $0x1318] sm:$0xff]
  %v646 = vld [vmem:[%s1 + $0x1320] sm:$0xff]
  %v647 = vld [vmem:[%s1 + $0x1328] sm:$0xff]
  %v648 = vld [vmem:[%s1 + $0x1330] sm:$0xff]
  %v649 = vld [vmem:[%s1 + $0x1338] sm:$0xff]
  %v650 = vld [vmem:[%s1 + $0x1340] sm:$0xff]
  %v651 = vld [vmem:[%s1 + $0x1348] sm:$0xff]
  %v652 = vld [vmem:[%s1 + $0x1350] sm:$0xff]
  %v653 = vld [vmem:[%s1 + $0x1358] sm:$0xff]
  %v654 = vld [vmem:[%s1 + $0x1360] sm:$0xff]
  %v655 = vld [vmem:[%s1 + $0x1368] sm:$0xff]
  %v656 = vld [vmem:[%s1 + $0x1370] sm:$0xff]
  %v657 = vld [vmem:[%s1 + $0x1378] sm:$0xff]
  %v658 = vld [vmem:[%s1 + $0x1380] sm:$0xff]
  %v659 = vld [vmem:[%s1 + $0x1388] sm:$0xff]
  %v660 = vld [vmem:[%s1 + $0x1390] sm:$0xff]
  %v661 = vld [vmem:[%s1 + $0x1398] sm:$0xff]
  %v662 = vld [vmem:[%s1 + $0x13a0] sm:$0xff]
  %v663 = vld [vmem:[%s1 + $0x13a8] sm:$0xff]
  %v664 = vld [vmem:[%s1 + $0x13b0] sm:$0xff]
  %v665 = vld [vmem:[%s1 + $0x13b8] sm:$0xff]
  %v666 = vld [vmem:[%s1 + $0x13c0] sm:$0xff]
  %v667 = vld [vmem:[%s1 + $0x13c8] sm:$0xff]
  %v668 = vld [vmem:[%s1 + $0x13d0] sm:$0xff]
  %v669 = vld [vmem:[%s1 + $0x13d8] sm:$0xff]
  %v670 = vld [vmem:[%s1 + $0x13e0] sm:$0xff]
  %v671 = vld [vmem:[%s1 + $0x13e8] sm:$0xff]
  %v672 = vld [vmem:[%s1 + $0x13f0] sm:$0xff]
  %v673 = vld [vmem:[%s1 + $0x13f8] sm:$0xff]
  %v674 = vld [vmem:[%s1 + $0x1400] sm:$0xff]
  %v675 = vld [vmem:[%s1 + $0x1408] sm:$0xff]
  %v676 = vld [vmem:[%s1 + $0x1410] sm:$0xff]
  %v677 = vld [vmem:[%s1 + $0x1418] sm:$0xff]
  %v678 = vld [vmem:[%s1 + $0x1420] sm:$0xff]
  %v679 = vld [vmem:[%s1 + $0x1428] sm:$0xff]
  %v680 = vld [vmem:[%s1 + $0x1430] sm:$0xff]
  %v681 = vld [vmem:[%s1 + $0x1438] sm:$0xff]
  %v682 = vld [vmem:[%s1 + $0x1440] sm:$0xff]
  %v683 = vld [vmem:[%s1 + $0x1448] sm:$0xff]
  %v684 = vld [vmem:[%s1 + $0x1450] sm:$0xff]
  %v685 = vld [vmem:[%s1 + $0x1458] sm:$0xff]
  %v686 = vld [vmem:[%s1 + $0x1460] sm:$0xff]
  %v687 = vld [vmem:[%s1 + $0x1468] sm:$0xff]
  %v688 = vld [vmem:[%s1 + $0x1470] sm:$0xff]
  %v689 = vld [vmem:[%s1 + $0x1478] sm:$0xff]
  %v690 = vld [vmem:[%s1 + $0x1480] sm:$0xff]
  %v691 = vld [vmem:[%s1 + $0x1488] sm:$0xff]
  %v692 = vld [vmem:[%s1 + $0x1490] sm:$0xff]
  %v693 = vld [vmem:[%s1 + $0x1498] sm:$0xff]
  %v694 = vld [vmem:[%s1 + $0x14a0] sm:$0xff]
  %v695 = vld [vmem:[%s1 + $0x14a8] sm:$0xff]
  %v696 = vld [vmem:[%s1 + $0x14b0] sm:$0xff]
  %v697 = vld [vmem:[%s1 + $0x14b8] sm:$0xff]
  %v698 = vld [vmem:[%s1 + $0x14c0] sm:$0xff]
  %v699 = vld [vmem:[%s1 + $0x14c8] sm:$0xff]
  %v700 = vld [vmem:[%s1 + $0x14d0] sm:$0xff]
  %v701 = vld [vmem:[%s1 + $0x14d8] sm:$0xff]
  %v702 = vld [vmem:[%s1 + $0x14e0] sm:$0xff]
  %v703 = vld [vmem:[%s1 + $0x14e8] sm:$0xff]
  %v704 = vld [vmem:[%s1 + $0x14f0] sm:$0xff]
  %v705 = vld [vmem:[%s1 + $0x14f8] sm:$0xff]
  %v706 = vld [vmem:[%s1 + $0x1500] sm:$0xff]
  %v707 = vld [vmem:[%s1 + $0x1508] sm:$0xff]
  %v708 = vld [vmem:[%s1 + $0x1510] sm:$0xff]
  %v709 = vld [vmem:[%s1 + $0x1518] sm:$0xff]
  %v710 = vld [vmem:[%s1 + $0x1520] sm:$0xff]
  %v711 = vld [vmem:[%s1 + $0x1528] sm:$0xff]
  %v712 = vld [vmem:[%s1 + $0x1530] sm:$0xff]
  %v713 = vld [vmem:[%s1 + $0x1538] sm:$0xff]
  %v714 = vld [vmem:[%s1 + $0x1540] sm:$0xff]
  %v715 = vld [vmem:[%s1 + $0x1548] sm:$0xff]
  %v716 = vld [vmem:[%s1 + $0x1550] sm:$0xff]
  %v717 = vld [vmem:[%s1 + $0x1558] sm:$0xff]
  %v718 = vld [vmem:[%s1 + $0x1560] sm:$0xff]
  %v719 = vld [vmem:[%s1 + $0x1568] sm:$0xff]
  %v720 = vld [vmem:[%s1 + $0x1570] sm:$0xff]
  %v721 = vld [vmem:[%s1 + $0x1578] sm:$0xff]
  %v722 = vld [vmem:[%s1 + $0x1580] sm:$0xff]
  %v723 = vld [vmem:[%s1 + $0x1588] sm:$0xff]
  %v724 = vld [vmem:[%s1 + $0x1590] sm:$0xff]
  %v725 = vld [vmem:[%s1 + $0x1598] sm:$0xff]
  %v726 = vld [vmem:[%s1 + $0x15a0] sm:$0xff]
  %v727 = vld [vmem:[%s1 + $0x15a8] sm:$0xff]
  %v728 = vld [vmem:[%s1 + $0x15b0] sm:$0xff]
  %v729 = vld [vmem:[%s1 + $0x15b8] sm:$0xff]
  %v730 = vld [vmem:[%s1 + $0x15c0] sm:$0xff]
  %v731 = vld [vmem:[%s1 + $0x15c8] sm:$0xff]
  %v732 = vld [vmem:[%s1 + $0x15d0] sm:$0xff]
  %v733 = vld [vmem:[%s1 + $0x15d8] sm:$0xff]
  %v734 = vld [vmem:[%s1 + $0x15e0] sm:$0xff]
  %v735 = vld [vmem:[%s1 + $0x15e8] sm:$0xff]
  %v736 = vld [vmem:[%s1 + $0x15f0] sm:$0xff]
  %v737 = vld [vmem:[%s1 + $0x15f8] sm:$0xff]
  %v738 = vld [vmem:[%s1 + $0x1600] sm:$0xff]
  %v739 = vld [vmem:[%s1 + $0x1608] sm:$0xff]
  %v740 = vld [vmem:[%s1 + $0x1610] sm:$0xff]
  %v741 = vld [vmem:[%s1 + $0x1618] sm:$0xff]
  %v742 = vld [vmem:[%s1 + $0x1620] sm:$0xff]
  %v743 = vld [vmem:[%s1 + $0x1628] sm:$0xff]
  %v744 = vld [vmem:[%s1 + $0x1630] sm:$0xff]
  %v745 = vld [vmem:[%s1 + $0x1638] sm:$0xff]
  %v746 = vld [vmem:[%s1 + $0x1640] sm:$0xff]
  %v747 = vld [vmem:[%s1 + $0x1648] sm:$0xff]
  %v748 = vld [vmem:[%s1 + $0x1650] sm:$0xff]
  %v749 = vld [vmem:[%s1 + $0x1658] sm:$0xff]
  %v750 = vld [vmem:[%s1 + $0x1660] sm:$0xff]
  %v751 = vld [vmem:[%s1 + $0x1668] sm:$0xff]
  %v752 = vld [vmem:[%s1 + $0x1670] sm:$0xff]
  %v753 = vld [vmem:[%s1 + $0x1678] sm:$0xff]
  %v754 = vld [vmem:[%s1 + $0x1680] sm:$0xff]
  %v755 = vld [vmem:[%s1 + $0x1688] sm:$0xff]
  %v756 = vld [vmem:[%s1 + $0x1690] sm:$0xff]
  %v757 = vld [vmem:[%s1 + $0x1698] sm:$0xff]
  %v758 = vld [vmem:[%s1 + $0x16a0] sm:$0xff]
  %v759 = vld [vmem:[%s1 + $0x16a8] sm:$0xff]
  %v760 = vld [vmem:[%s1 + $0x16b0] sm:$0xff]
  %v761 = vld [vmem:[%s1 + $0x16b8] sm:$0xff]
  %v762 = vld [vmem:[%s1 + $0x16c0] sm:$0xff]
  %v763 = vld [vmem:[%s1 + $0x16c8] sm:$0xff]
  %v764 = vld [vmem:[%s1 + $0x16d0] sm:$0xff]
  %v765 = vld [vmem:[%s1 + $0x16d8] sm:$0xff]
  %v766 = vld [vmem:[%s1 + $0x16e0] sm:$0xff]
  %v767 = vld [vmem:[%s1 + $0x16e8] sm:$0xff]
  %v768 = vld [vmem:[%s1 + $0x16f0] sm:$0xff]
  %v769 = vld [vmem:[%s1 + $0x16f8] sm:$0xff]
  %v770 = vld [vmem:[%s1 + $0x1700] sm:$0xff]
  %v771 = vld [vmem:[%s1 + $0x1708] sm:$0xff]
  %v772 = vld [vmem:[%s1 + $0x1710] sm:$0xff]
  %v773 = vld [vmem:[%s1 + $0x1718] sm:$0xff]
  %v774 = vld [vmem:[%s1 + $0x1720] sm:$0xff]
  %v775 = vld [vmem:[%s1 + $0x1728] sm:$0xff]
  %v776 = vld [vmem:[%s1 + $0x1730] sm:$0xff]
  %v777 = vld [vmem:[%s1 + $0x1738] sm:$0xff]
  %v778 = vld [vmem:[%s1 + $0x1740] sm:$0xff]
  %v779 = vld [vmem:[%s1 + $0x1748] sm:$0xff]
  %v780 = vld [vmem:[%s1 + $0x1750] sm:$0xff]
  %v781 = vld [vmem:[%s1 + $0x1758] sm:$0xff]
  %v782 = vld [vmem:[%s1 + $0x1760] sm:$0xff]
  %v783 = vld [vmem:[%s1 + $0x1768] sm:$0xff]
  %v784 = vld [vmem:[%s1 + $0x1770] sm:$0xff]
  %v785 = vld [vmem:[%s1 + $0x1778] sm:$0xff]
  %v786 = vld [vmem:[%s1 + $0x1780] sm:$0xff]
  %v787 = vld [vmem:[%s1 + $0x1788] sm:$0xff]
  %v788 = vld [vmem:[%s1 + $0x1790] sm:$0xff]
  %v789 = vld [vmem:[%s1 + $0x1798] sm:$0xff]
  %v790 = vld [vmem:[%s1 + $0x17a0] sm:$0xff]
  %v791 = vld [vmem:[%s1 + $0x17a8] sm:$0xff]
  %v792 = vld [vmem:[%s1 + $0x17b0] sm:$0xff]
  %v793 = vld [vmem:[%s1 + $0x17b8] sm:$0xff]
  %v794 = vld [vmem:[%s1 + $0x17c0] sm:$0xff]
  %v795 = vld [vmem:[%s1 + $0x17c8] sm:$0xff]
  %v796 = vld [vmem:[%s1 + $0x17d0] sm:$0xff]
  %v797 = vld [vmem:[%s1 + $0x17d8] sm:$0xff]
  %v798 = vld [vmem:[%s1 + $0x17e0] sm:$0xff]
  %v799 = vld [vmem:[%s1 + $0x17e8] sm:$0xff]
  %v800 = vld [vmem:[%s1 + $0x17f0] sm:$0xff]
  %v801 = vld [vmem:[%s1 + $0x17f8] sm:$0xff]
  %v802 = vld [vmem:[%s1 + $0x1800] sm:$0xff]
  %v803 = vld [vmem:[%s1 + $0x1808] sm:$0xff]
  %v804 = vld [vmem:[%s1 + $0x1810] sm:$0xff]
  %v805 = vld [vmem:[%s1 + $0x1818] sm:$0xff]
  %v806 = vld [vmem:[%s1 + $0x1820] sm:$0xff]
  %v807 = vld [vmem:[%s1 + $0x1828] sm:$0xff]
  %v808 = vld [vmem:[%s1 + $0x1830] sm:$0xff]
  %v809 = vld [vmem:[%s1 + $0x1838] sm:$0xff]
  %v810 = vld [vmem:[%s1 + $0x1840] sm:$0xff]
  %v811 = vld [vmem:[%s1 + $0x1848] sm:$0xff]
  %v812 = vld [vmem:[%s1 + $0x1850] sm:$0xff]
  %v813 = vld [vmem:[%s1 + $0x1858] sm:$0xff]
  %v814 = vld [vmem:[%s1 + $0x1860] sm:$0xff]
  %v815 = vld [vmem:[%s1 + $0x1868] sm:$0xff]
  %v816 = vld [vmem:[%s1 + $0x1870] sm:$0xff]
  %v817 = vld [vmem:[%s1 + $0x1878] sm:$0xff]
  %v818 = vld [vmem:[%s2] sm:$0xf]
  %v820 = vperm.slane %v818, 0
  %v821 = vperm.slane %v818, 1
  %v822 = vperm.slane %v818, 2
  %v823 = vperm.slane %v818, 3
  %v841 = vunpack.c.l.b16 %v21
  %v842 = vunpack.c.h.b16 %v21
  %v843 = vunpack.c.l.b16 %v22
  %v844 = vunpack.c.h.b16 %v22
  %v845 = vunpack.c.l.b16 %v23
  %v846 = vunpack.c.h.b16 %v23
  %v847 = vunpack.c.l.b16 %v24
  %v848 = vunpack.c.h.b16 %v24
  %v849 = vunpack.c.l.b16 %v25
  %v850 = vunpack.c.h.b16 %v25
  %v851 = vunpack.c.l.b16 %v26
  %v852 = vunpack.c.h.b16 %v26
  %v853 = vunpack.c.l.b16 %v27
  %v854 = vunpack.c.h.b16 %v27
  %v855 = vunpack.c.l.b16 %v28
  %v856 = vunpack.c.h.b16 %v28
  %v857 = vunpack.c.l.b16 %v29
  %v858 = vunpack.c.h.b16 %v29
  %v859 = vunpack.c.l.b16 %v30
  %v860 = vunpack.c.h.b16 %v30
  %v861 = vunpack.c.l.b16 %v31
  %v862 = vunpack.c.h.b16 %v31
  %v863 = vunpack.c.l.b16 %v32
  %v864 = vunpack.c.h.b16 %v32
  %v865 = vunpack.c.l.b16 %v33
  %v866 = vpack.c.b16 %v841, %v841
  %v867 = vpack.c.b16 %v842, %v842
  %v868 = vpack.c.b16 %v843, %v843
  %v869 = vpack.c.b16 %v844, %v844
  %v870 = vpack.c.b16 %v845, %v845
  %v871 = vpack.c.b16 %v846, %v846
  %v872 = vpack.c.b16 %v847, %v847
  %v873 = vpack.c.b16 %v848, %v848
  %v874 = vpack.c.b16 %v849, %v849
  %v875 = vpack.c.b16 %v850, %v850
  %v876 = vpack.c.b16 %v851, %v851
  %v877 = vpack.c.b16 %v852, %v852
  %v878 = vpack.c.b16 %v853, %v853
  %v879 = vpack.c.b16 %v854, %v854
  %v880 = vpack.c.b16 %v855, %v855
  %v881 = vpack.c.b16 %v856, %v856
  %v882 = vpack.c.b16 %v857, %v857
  %v883 = vpack.c.b16 %v858, %v858
  %v884 = vpack.c.b16 %v859, %v859
  %v885 = vpack.c.b16 %v860, %v860
  %v886 = vpack.c.b16 %v861, %v861
  %v887 = vpack.c.b16 %v862, %v862
  %v888 = vpack.c.b16 %v863, %v863
  %v889 = vpack.c.b16 %v864, %v864
  %v890 = vpack.c.b16 %v865, %v865
  %v1699 = vunpack.c.l.b16 %v34
  %v1700 = vunpack.c.h.b16 %v34
  %v1701 = vunpack.c.l.b16 %v35
  %v1702 = vunpack.c.h.b16 %v35
  %v1703 = vunpack.c.l.b16 %v36
  %v1704 = vunpack.c.h.b16 %v36
  %v1705 = vunpack.c.l.b16 %v37
  %v1706 = vunpack.c.h.b16 %v37
  %v1707 = vunpack.c.l.b16 %v38
  %v1708 = vunpack.c.h.b16 %v38
  %v1709 = vunpack.c.l.b16 %v39
  %v1710 = vunpack.c.h.b16 %v39
  %v1711 = vunpack.c.l.b16 %v40
  %v1712 = vunpack.c.h.b16 %v40
  %v1713 = vunpack.c.l.b16 %v41
  %v1714 = vunpack.c.h.b16 %v41
  %v1715 = vunpack.c.l.b16 %v42
  %v1716 = vunpack.c.h.b16 %v42
  %v1717 = vunpack.c.l.b16 %v43
  %v1718 = vunpack.c.h.b16 %v43
  %v1719 = vunpack.c.l.b16 %v44
  %v1720 = vunpack.c.h.b16 %v44
  %v1721 = vunpack.c.l.b16 %v45
  %v1722 = vunpack.c.h.b16 %v45
  %v1723 = vunpack.c.l.b16 %v46
  %v1724 = vunpack.c.h.b16 %v46
  %v1725 = vunpack.c.l.b16 %v47
  %v1726 = vunpack.c.h.b16 %v47
  %v1727 = vunpack.c.l.b16 %v48
  %v1728 = vunpack.c.h.b16 %v48
  %v1729 = vunpack.c.l.b16 %v49
  %v1730 = vunpack.c.h.b16 %v49
  %v1731 = vunpack.c.l.b16 %v50
  %v1732 = vunpack.c.h.b16 %v50
  %v1733 = vunpack.c.l.b16 %v51
  %v1734 = vunpack.c.h.b16 %v51
  %v1735 = vunpack.c.l.b16 %v52
  %v1736 = vunpack.c.h.b16 %v52
  %v1737 = vunpack.c.l.b16 %v53
  %v1738 = vunpack.c.h.b16 %v53
  %v1739 = vunpack.c.l.b16 %v54
  %v1740 = vunpack.c.h.b16 %v54
  %v1741 = vunpack.c.l.b16 %v55
  %v1742 = vunpack.c.h.b16 %v55
  %v1743 = vunpack.c.l.b16 %v56
  %v1744 = vunpack.c.h.b16 %v56
  %v1745 = vunpack.c.l.b16 %v57
  %v1746 = vunpack.c.h.b16 %v57
  %v1747 = vunpack.c.l.b16 %v58
  %v1748 = vunpack.c.h.b16 %v58
  %v1749 = vunpack.c.l.b16 %v59
  %v1750 = vunpack.c.h.b16 %v59
  %v1751 = vunpack.c.l.b16 %v60
  %v1752 = vunpack.c.h.b16 %v60
  %v1753 = vunpack.c.l.b16 %v61
  %v1754 = vunpack.c.h.b16 %v61
  %v1755 = vunpack.c.l.b16 %v62
  %v1756 = vunpack.c.h.b16 %v62
  %v1757 = vunpack.c.l.b16 %v63
  %v1758 = vunpack.c.h.b16 %v63
  %v1759 = vunpack.c.l.b16 %v64
  %v1760 = vunpack.c.h.b16 %v64
  %v1761 = vunpack.c.l.b16 %v65
  %v1762 = vunpack.c.h.b16 %v65
  %v1763 = vunpack.c.l.b16 %v66
  %v1764 = vunpack.c.h.b16 %v66
  %v1765 = vunpack.c.l.b16 %v67
  %v1766 = vunpack.c.h.b16 %v67
  %v1767 = vunpack.c.l.b16 %v68
  %v1768 = vunpack.c.h.b16 %v68
  %v1769 = vunpack.c.l.b16 %v69
  %v1770 = vunpack.c.h.b16 %v69
  %v1771 = vunpack.c.l.b16 %v70
  %v1772 = vunpack.c.h.b16 %v70
  %v1773 = vunpack.c.l.b16 %v71
  %v1774 = vunpack.c.h.b16 %v71
  %v1775 = vunpack.c.l.b16 %v72
  %v1776 = vunpack.c.h.b16 %v72
  %v1777 = vunpack.c.l.b16 %v73
  %v1778 = vunpack.c.h.b16 %v73
  %v1779 = vunpack.c.l.b16 %v74
  %v1780 = vunpack.c.h.b16 %v74
  %v1781 = vunpack.c.l.b16 %v75
  %v1782 = vunpack.c.h.b16 %v75
  %v1783 = vunpack.c.l.b16 %v76
  %v1784 = vunpack.c.h.b16 %v76
  %v1785 = vunpack.c.l.b16 %v77
  %v1786 = vunpack.c.h.b16 %v77
  %v1787 = vunpack.c.l.b16 %v78
  %v1788 = vunpack.c.h.b16 %v78
  %v1789 = vunpack.c.l.b16 %v79
  %v1790 = vunpack.c.h.b16 %v79
  %v1791 = vunpack.c.l.b16 %v80
  %v1792 = vunpack.c.h.b16 %v80
  %v1793 = vunpack.c.l.b16 %v81
  %v1794 = vunpack.c.h.b16 %v81
  %v1795 = vunpack.c.l.b16 %v82
  %v1796 = vunpack.c.h.b16 %v82
  %v1797 = vunpack.c.l.b16 %v83
  %v1798 = vunpack.c.h.b16 %v83
  %v1799 = vunpack.c.l.b16 %v84
  %v1800 = vunpack.c.h.b16 %v84
  %v1801 = vunpack.c.l.b16 %v85
  %v1802 = vunpack.c.h.b16 %v85
  %v1803 = vunpack.c.l.b16 %v86
  %v1804 = vunpack.c.h.b16 %v86
  %v1805 = vunpack.c.l.b16 %v87
  %v1806 = vunpack.c.h.b16 %v87
  %v1807 = vunpack.c.l.b16 %v88
  %v1808 = vunpack.c.h.b16 %v88
  %v1809 = vunpack.c.l.b16 %v89
  %v1810 = vunpack.c.h.b16 %v89
  %v1811 = vunpack.c.l.b16 %v90
  %v1812 = vunpack.c.h.b16 %v90
  %v1813 = vunpack.c.l.b16 %v91
  %v1814 = vunpack.c.h.b16 %v91
  %v1815 = vunpack.c.l.b16 %v92
  %v1816 = vunpack.c.h.b16 %v92
  %v1817 = vunpack.c.l.b16 %v93
  %v1818 = vunpack.c.h.b16 %v93
  %v1819 = vunpack.c.l.b16 %v94
  %v1820 = vunpack.c.h.b16 %v94
  %v1821 = vunpack.c.l.b16 %v95
  %v1822 = vunpack.c.h.b16 %v95
  %v1823 = vunpack.c.l.b16 %v96
  %v1824 = vunpack.c.h.b16 %v96
  %v1825 = vunpack.c.l.b16 %v97
  %v1826 = vunpack.c.h.b16 %v97
  %v1827 = vunpack.c.l.b16 %v98
  %v1828 = vunpack.c.h.b16 %v98
  %v1829 = vunpack.c.l.b16 %v99
  %v1830 = vunpack.c.h.b16 %v99
  %v1831 = vunpack.c.l.b16 %v100
  %v1832 = vunpack.c.h.b16 %v100
  %v1833 = vunpack.c.l.b16 %v101
  %v1834 = vunpack.c.h.b16 %v101
  %v1835 = vunpack.c.l.b16 %v102
  %v1836 = vunpack.c.h.b16 %v102
  %v1837 = vunpack.c.l.b16 %v103
  %v1838 = vunpack.c.h.b16 %v103
  %v1839 = vunpack.c.l.b16 %v104
  %v1840 = vunpack.c.h.b16 %v104
  %v1841 = vunpack.c.l.b16 %v105
  %v1842 = vunpack.c.h.b16 %v105
  %v1843 = vunpack.c.l.b16 %v106
  %v1844 = vunpack.c.h.b16 %v106
  %v1845 = vunpack.c.l.b16 %v107
  %v1846 = vunpack.c.h.b16 %v107
  %v1847 = vunpack.c.l.b16 %v108
  %v1848 = vunpack.c.h.b16 %v108
  %v1849 = vunpack.c.l.b16 %v109
  %v1850 = vunpack.c.h.b16 %v109
  %v1851 = vunpack.c.l.b16 %v110
  %v1852 = vunpack.c.h.b16 %v110
  %v1853 = vunpack.c.l.b16 %v111
  %v1854 = vunpack.c.h.b16 %v111
  %v1855 = vunpack.c.l.b16 %v112
  %v1856 = vunpack.c.h.b16 %v112
  %v1857 = vunpack.c.l.b16 %v113
  %v1858 = vunpack.c.h.b16 %v113
  %v1859 = vunpack.c.l.b16 %v114
  %v1860 = vunpack.c.h.b16 %v114
  %v1861 = vunpack.c.l.b16 %v115
  %v1862 = vunpack.c.h.b16 %v115
  %v1863 = vunpack.c.l.b16 %v116
  %v1864 = vunpack.c.h.b16 %v116
  %v1865 = vunpack.c.l.b16 %v117
  %v1866 = vunpack.c.h.b16 %v117
  %v1867 = vunpack.c.l.b16 %v118
  %v1868 = vunpack.c.h.b16 %v118
  %v1869 = vunpack.c.l.b16 %v119
  %v1870 = vunpack.c.h.b16 %v119
  %v1871 = vunpack.c.l.b16 %v120
  %v1872 = vunpack.c.h.b16 %v120
  %v1873 = vunpack.c.l.b16 %v121
  %v1874 = vunpack.c.h.b16 %v121
  %v1875 = vunpack.c.l.b16 %v122
  %v1876 = vunpack.c.h.b16 %v122
  %v1877 = vunpack.c.l.b16 %v123
  %v1878 = vunpack.c.h.b16 %v123
  %v1879 = vunpack.c.l.b16 %v124
  %v1880 = vunpack.c.h.b16 %v124
  %v1881 = vunpack.c.l.b16 %v125
  %v1882 = vunpack.c.h.b16 %v125
  %v1883 = vunpack.c.l.b16 %v126
  %v1884 = vunpack.c.h.b16 %v126
  %v1885 = vunpack.c.l.b16 %v127
  %v1886 = vunpack.c.h.b16 %v127
  %v1887 = vunpack.c.l.b16 %v128
  %v1888 = vunpack.c.h.b16 %v128
  %v1889 = vunpack.c.l.b16 %v129
  %v1890 = vunpack.c.h.b16 %v129
  %v1891 = vunpack.c.l.b16 %v130
  %v1892 = vunpack.c.h.b16 %v130
  %v1893 = vunpack.c.l.b16 %v131
  %v1894 = vunpack.c.h.b16 %v131
  %v1895 = vunpack.c.l.b16 %v132
  %v1896 = vunpack.c.h.b16 %v132
  %v1897 = vunpack.c.l.b16 %v133
  %v1898 = vunpack.c.h.b16 %v133
  %v1899 = vunpack.c.l.b16 %v134
  %v1900 = vunpack.c.h.b16 %v134
  %v1901 = vunpack.c.l.b16 %v135
  %v1902 = vunpack.c.h.b16 %v135
  %v1903 = vunpack.c.l.b16 %v136
  %v1904 = vunpack.c.h.b16 %v136
  %v1905 = vunpack.c.l.b16 %v137
  %v1906 = vunpack.c.h.b16 %v137
  %v1907 = vunpack.c.l.b16 %v138
  %v1908 = vunpack.c.h.b16 %v138
  %v1909 = vunpack.c.l.b16 %v139
  %v1910 = vunpack.c.h.b16 %v139
  %v1911 = vunpack.c.l.b16 %v140
  %v1912 = vunpack.c.h.b16 %v140
  %v1913 = vunpack.c.l.b16 %v141
  %v1914 = vunpack.c.h.b16 %v141
  %v1915 = vunpack.c.l.b16 %v142
  %v1916 = vunpack.c.h.b16 %v142
  %v1917 = vunpack.c.l.b16 %v143
  %v1918 = vunpack.c.h.b16 %v143
  %v1919 = vunpack.c.l.b16 %v144
  %v1920 = vunpack.c.h.b16 %v144
  %v1921 = vunpack.c.l.b16 %v145
  %v1922 = vunpack.c.h.b16 %v145
  %v1923 = vunpack.c.l.b16 %v146
  %v1924 = vunpack.c.h.b16 %v146
  %v1925 = vunpack.c.l.b16 %v147
  %v1926 = vunpack.c.h.b16 %v147
  %v1927 = vunpack.c.l.b16 %v148
  %v1928 = vunpack.c.h.b16 %v148
  %v1929 = vunpack.c.l.b16 %v149
  %v1930 = vunpack.c.h.b16 %v149
  %v1931 = vunpack.c.l.b16 %v150
  %v1932 = vunpack.c.h.b16 %v150
  %v1933 = vunpack.c.l.b16 %v151
  %v1934 = vunpack.c.h.b16 %v151
  %v1935 = vunpack.c.l.b16 %v152
  %v1936 = vunpack.c.h.b16 %v152
  %v1937 = vunpack.c.l.b16 %v153
  %v1938 = vunpack.c.h.b16 %v153
  %v1939 = vunpack.c.l.b16 %v154
  %v1940 = vunpack.c.h.b16 %v154
  %v1941 = vunpack.c.l.b16 %v155
  %v1942 = vunpack.c.h.b16 %v155
  %v1943 = vunpack.c.l.b16 %v156
  %v1944 = vunpack.c.h.b16 %v156
  %v1945 = vunpack.c.l.b16 %v157
  %v1946 = vunpack.c.h.b16 %v157
  %v1947 = vunpack.c.l.b16 %v158
  %v1948 = vunpack.c.h.b16 %v158
  %v1949 = vunpack.c.l.b16 %v159
  %v1950 = vunpack.c.h.b16 %v159
  %v1951 = vunpack.c.l.b16 %v160
  %v1952 = vunpack.c.h.b16 %v160
  %v1953 = vunpack.c.l.b16 %v161
  %v1954 = vunpack.c.h.b16 %v161
  %v1955 = vunpack.c.l.b16 %v162
  %v1956 = vunpack.c.h.b16 %v162
  %v1957 = vunpack.c.l.b16 %v163
  %v1958 = vunpack.c.h.b16 %v163
  %v1959 = vunpack.c.l.b16 %v164
  %v1960 = vunpack.c.h.b16 %v164
  %v1961 = vunpack.c.l.b16 %v165
  %v1962 = vunpack.c.h.b16 %v165
  %v1963 = vunpack.c.l.b16 %v166
  %v1964 = vunpack.c.h.b16 %v166
  %v1965 = vunpack.c.l.b16 %v167
  %v1966 = vunpack.c.h.b16 %v167
  %v1967 = vunpack.c.l.b16 %v168
  %v1968 = vunpack.c.h.b16 %v168
  %v1969 = vunpack.c.l.b16 %v169
  %v1970 = vunpack.c.h.b16 %v169
  %v1971 = vunpack.c.l.b16 %v170
  %v1972 = vunpack.c.h.b16 %v170
  %v1973 = vunpack.c.l.b16 %v171
  %v1974 = vunpack.c.h.b16 %v171
  %v1975 = vunpack.c.l.b16 %v172
  %v1976 = vunpack.c.h.b16 %v172
  %v1977 = vunpack.c.l.b16 %v173
  %v1978 = vunpack.c.h.b16 %v173
  %v1979 = vunpack.c.l.b16 %v174
  %v1980 = vunpack.c.h.b16 %v174
  %v1981 = vunpack.c.l.b16 %v175
  %v1982 = vunpack.c.h.b16 %v175
  %v1983 = vunpack.c.l.b16 %v176
  %v1984 = vunpack.c.h.b16 %v176
  %v1985 = vunpack.c.l.b16 %v177
  %v1986 = vunpack.c.h.b16 %v177
  %v1987 = vunpack.c.l.b16 %v178
  %v1988 = vunpack.c.h.b16 %v178
  %v1989 = vunpack.c.l.b16 %v179
  %v1990 = vunpack.c.h.b16 %v179
  %v1991 = vunpack.c.l.b16 %v180
  %v1992 = vunpack.c.h.b16 %v180
  %v1993 = vunpack.c.l.b16 %v181
  %v1994 = vunpack.c.h.b16 %v181
  %v1995 = vunpack.c.l.b16 %v182
  %v1996 = vunpack.c.h.b16 %v182
  %v1997 = vunpack.c.l.b16 %v183
  %v1998 = vunpack.c.h.b16 %v183
  %v1999 = vunpack.c.l.b16 %v184
  %v2000 = vunpack.c.h.b16 %v184
  %v2001 = vunpack.c.l.b16 %v185
  %v2002 = vunpack.c.h.b16 %v185
  %v2003 = vunpack.c.l.b16 %v186
  %v2004 = vunpack.c.h.b16 %v186
  %v2005 = vunpack.c.l.b16 %v187
  %v2006 = vunpack.c.h.b16 %v187
  %v2007 = vunpack.c.l.b16 %v188
  %v2008 = vunpack.c.h.b16 %v188
  %v2009 = vunpack.c.l.b16 %v189
  %v2010 = vunpack.c.h.b16 %v189
  %v2011 = vunpack.c.l.b16 %v190
  %v2012 = vunpack.c.h.b16 %v190
  %v2013 = vunpack.c.l.b16 %v191
  %v2014 = vunpack.c.h.b16 %v191
  %v2015 = vunpack.c.l.b16 %v192
  %v2016 = vunpack.c.h.b16 %v192
  %v2017 = vunpack.c.l.b16 %v193
  %v2018 = vunpack.c.h.b16 %v193
  %v2019 = vunpack.c.l.b16 %v194
  %v2020 = vunpack.c.h.b16 %v194
  %v2021 = vunpack.c.l.b16 %v195
  %v2022 = vunpack.c.h.b16 %v195
  %v2023 = vunpack.c.l.b16 %v196
  %v2024 = vunpack.c.h.b16 %v196
  %v2025 = vunpack.c.l.b16 %v197
  %v2026 = vunpack.c.h.b16 %v197
  %v2027 = vunpack.c.l.b16 %v198
  %v2028 = vunpack.c.h.b16 %v198
  %v2029 = vunpack.c.l.b16 %v199
  %v2030 = vunpack.c.h.b16 %v199
  %v2031 = vunpack.c.l.b16 %v200
  %v2032 = vunpack.c.h.b16 %v200
  %v2033 = vunpack.c.l.b16 %v201
  %v2034 = vunpack.c.h.b16 %v201
  %v2035 = vunpack.c.l.b16 %v202
  %v2036 = vunpack.c.h.b16 %v202
  %v2037 = vunpack.c.l.b16 %v203
  %v2038 = vunpack.c.h.b16 %v203
  %v2039 = vunpack.c.l.b16 %v204
  %v2040 = vunpack.c.h.b16 %v204
  %v2041 = vunpack.c.l.b16 %v205
  %v2042 = vunpack.c.h.b16 %v205
  %v2043 = vunpack.c.l.b16 %v206
  %v2044 = vunpack.c.h.b16 %v206
  %v2045 = vunpack.c.l.b16 %v207
  %v2046 = vunpack.c.h.b16 %v207
  %v2047 = vunpack.c.l.b16 %v208
  %v2048 = vunpack.c.h.b16 %v208
  %v2049 = vunpack.c.l.b16 %v209
  %v2050 = vunpack.c.h.b16 %v209
  %v2051 = vunpack.c.l.b16 %v210
  %v2052 = vunpack.c.h.b16 %v210
  %v2053 = vunpack.c.l.b16 %v211
  %v2054 = vunpack.c.h.b16 %v211
  %v2055 = vunpack.c.l.b16 %v212
  %v2056 = vunpack.c.h.b16 %v212
  %v2057 = vunpack.c.l.b16 %v213
  %v2058 = vunpack.c.h.b16 %v213
  %v2059 = vunpack.c.l.b16 %v214
  %v2060 = vunpack.c.h.b16 %v214
  %v2061 = vunpack.c.l.b16 %v215
  %v2062 = vunpack.c.h.b16 %v215
  %v2063 = vunpack.c.l.b16 %v216
  %v2064 = vunpack.c.h.b16 %v216
  %v2065 = vunpack.c.l.b16 %v217
  %v2066 = vunpack.c.h.b16 %v217
  %v2067 = vunpack.c.l.b16 %v218
  %v2068 = vunpack.c.h.b16 %v218
  %v2069 = vunpack.c.l.b16 %v219
  %v2070 = vunpack.c.h.b16 %v219
  %v2071 = vunpack.c.l.b16 %v220
  %v2072 = vunpack.c.h.b16 %v220
  %v2073 = vunpack.c.l.b16 %v221
  %v2074 = vunpack.c.h.b16 %v221
  %v2075 = vunpack.c.l.b16 %v222
  %v2076 = vunpack.c.h.b16 %v222
  %v2077 = vunpack.c.l.b16 %v223
  %v2078 = vunpack.c.h.b16 %v223
  %v2079 = vunpack.c.l.b16 %v224
  %v2080 = vunpack.c.h.b16 %v224
  %v2081 = vunpack.c.l.b16 %v225
  %v2082 = vunpack.c.h.b16 %v225
  %v2083 = vunpack.c.l.b16 %v226
  %v2084 = vunpack.c.h.b16 %v226
  %v2085 = vunpack.c.l.b16 %v227
  %v2086 = vunpack.c.h.b16 %v227
  %v2087 = vunpack.c.l.b16 %v228
  %v2088 = vunpack.c.h.b16 %v228
  %v2089 = vunpack.c.l.b16 %v229
  %v2090 = vunpack.c.h.b16 %v229
  %v2091 = vunpack.c.l.b16 %v230
  %v2092 = vunpack.c.h.b16 %v230
  %v2093 = vunpack.c.l.b16 %v231
  %v2094 = vunpack.c.h.b16 %v231
  %v2095 = vunpack.c.l.b16 %v232
  %v2096 = vunpack.c.h.b16 %v232
  %v2097 = vunpack.c.l.b16 %v233
  %v2098 = vunpack.c.h.b16 %v233
  %v2099 = vunpack.c.l.b16 %v234
  %v2100 = vunpack.c.h.b16 %v234
  %v2101 = vunpack.c.l.b16 %v235
  %v2102 = vunpack.c.h.b16 %v235
  %v2103 = vunpack.c.l.b16 %v236
  %v2104 = vunpack.c.h.b16 %v236
  %v2105 = vunpack.c.l.b16 %v237
  %v2106 = vunpack.c.h.b16 %v237
  %v2107 = vunpack.c.l.b16 %v238
  %v2108 = vunpack.c.h.b16 %v238
  %v2109 = vunpack.c.l.b16 %v239
  %v2110 = vunpack.c.h.b16 %v239
  %v2111 = vunpack.c.l.b16 %v240
  %v2112 = vunpack.c.h.b16 %v240
  %v2113 = vunpack.c.l.b16 %v241
  %v2114 = vunpack.c.h.b16 %v241
  %v2115 = vunpack.c.l.b16 %v242
  %v2116 = vunpack.c.h.b16 %v242
  %v2117 = vunpack.c.l.b16 %v243
  %v2118 = vunpack.c.h.b16 %v243
  %v2119 = vunpack.c.l.b16 %v244
  %v2120 = vunpack.c.h.b16 %v244
  %v2121 = vunpack.c.l.b16 %v245
  %v2122 = vunpack.c.h.b16 %v245
  %v2123 = vunpack.c.l.b16 %v246
  %v2124 = vunpack.c.h.b16 %v246
  %v2125 = vunpack.c.l.b16 %v247
  %v2126 = vunpack.c.h.b16 %v247
  %v2127 = vunpack.c.l.b16 %v248
  %v2128 = vunpack.c.h.b16 %v248
  %v2129 = vunpack.c.l.b16 %v249
  %v2130 = vunpack.c.h.b16 %v249
  %v2131 = vunpack.c.l.b16 %v250
  %v2132 = vunpack.c.h.b16 %v250
  %v2133 = vunpack.c.l.b16 %v251
  %v2134 = vunpack.c.h.b16 %v251
  %v2135 = vunpack.c.l.b16 %v252
  %v2136 = vunpack.c.h.b16 %v252
  %v2137 = vunpack.c.l.b16 %v253
  %v2138 = vunpack.c.h.b16 %v253
  %v2139 = vunpack.c.l.b16 %v254
  %v2140 = vunpack.c.h.b16 %v254
  %v2141 = vunpack.c.l.b16 %v255
  %v2142 = vunpack.c.h.b16 %v255
  %v2143 = vunpack.c.l.b16 %v256
  %v2144 = vunpack.c.h.b16 %v256
  %v2145 = vunpack.c.l.b16 %v257
  %v2146 = vunpack.c.h.b16 %v257
  %v2147 = vunpack.c.l.b16 %v258
  %v2148 = vunpack.c.h.b16 %v258
  %v2149 = vunpack.c.l.b16 %v259
  %v2150 = vunpack.c.h.b16 %v259
  %v2151 = vunpack.c.l.b16 %v260
  %v2152 = vunpack.c.h.b16 %v260
  %v2153 = vunpack.c.l.b16 %v261
  %v2154 = vunpack.c.h.b16 %v261
  %v2155 = vunpack.c.l.b16 %v262
  %v2156 = vunpack.c.h.b16 %v262
  %v2157 = vunpack.c.l.b16 %v263
  %v2158 = vunpack.c.h.b16 %v263
  %v2159 = vunpack.c.l.b16 %v264
  %v2160 = vunpack.c.h.b16 %v264
  %v2161 = vunpack.c.l.b16 %v265
  %v2162 = vunpack.c.h.b16 %v265
  %v2163 = vunpack.c.l.b16 %v266
  %v2164 = vunpack.c.h.b16 %v266
  %v2165 = vunpack.c.l.b16 %v267
  %v2166 = vunpack.c.h.b16 %v267
  %v2167 = vunpack.c.l.b16 %v268
  %v2168 = vunpack.c.h.b16 %v268
  %v2169 = vunpack.c.l.b16 %v269
  %v2170 = vunpack.c.h.b16 %v269
  %v2171 = vunpack.c.l.b16 %v270
  %v2172 = vunpack.c.h.b16 %v270
  %v2173 = vunpack.c.l.b16 %v271
  %v2174 = vunpack.c.h.b16 %v271
  %v2175 = vunpack.c.l.b16 %v272
  %v2176 = vunpack.c.h.b16 %v272
  %v2177 = vunpack.c.l.b16 %v273
  %v2178 = vunpack.c.h.b16 %v273
  %v2179 = vunpack.c.l.b16 %v274
  %v2180 = vunpack.c.h.b16 %v274
  %v2181 = vunpack.c.l.b16 %v275
  %v2182 = vunpack.c.h.b16 %v275
  %v2183 = vunpack.c.l.b16 %v276
  %v2184 = vunpack.c.h.b16 %v276
  %v2185 = vunpack.c.l.b16 %v277
  %v2186 = vunpack.c.h.b16 %v277
  %v2187 = vunpack.c.l.b16 %v278
  %v2188 = vunpack.c.h.b16 %v278
  %v2189 = vunpack.c.l.b16 %v279
  %v2190 = vunpack.c.h.b16 %v279
  %v2191 = vunpack.c.l.b16 %v280
  %v2192 = vunpack.c.h.b16 %v280
  %v2193 = vunpack.c.l.b16 %v281
  %v2194 = vunpack.c.h.b16 %v281
  %v2195 = vunpack.c.l.b16 %v282
  %v2196 = vunpack.c.h.b16 %v282
  %v2197 = vunpack.c.l.b16 %v283
  %v2198 = vunpack.c.h.b16 %v283
  %v2199 = vunpack.c.l.b16 %v284
  %v2200 = vunpack.c.h.b16 %v284
  %v2201 = vunpack.c.l.b16 %v285
  %v2202 = vunpack.c.h.b16 %v285
  %v2203 = vunpack.c.l.b16 %v286
  %v2204 = vunpack.c.h.b16 %v286
  %v2205 = vunpack.c.l.b16 %v287
  %v2206 = vunpack.c.h.b16 %v287
  %v2207 = vunpack.c.l.b16 %v288
  %v2208 = vunpack.c.h.b16 %v288
  %v2209 = vunpack.c.l.b16 %v289
  %v2210 = vunpack.c.h.b16 %v289
  %v2211 = vunpack.c.l.b16 %v290
  %v2212 = vunpack.c.h.b16 %v290
  %v2213 = vunpack.c.l.b16 %v291
  %v2214 = vunpack.c.h.b16 %v291
  %v2215 = vunpack.c.l.b16 %v292
  %v2216 = vunpack.c.h.b16 %v292
  %v2217 = vunpack.c.l.b16 %v293
  %v2218 = vunpack.c.h.b16 %v293
  %v2219 = vunpack.c.l.b16 %v294
  %v2220 = vunpack.c.h.b16 %v294
  %v2221 = vunpack.c.l.b16 %v295
  %v2222 = vunpack.c.h.b16 %v295
  %v2223 = vunpack.c.l.b16 %v296
  %v2224 = vunpack.c.h.b16 %v296
  %v2225 = vunpack.c.l.b16 %v297
  %v2226 = vunpack.c.h.b16 %v297
  %v2227 = vunpack.c.l.b16 %v298
  %v2228 = vunpack.c.h.b16 %v298
  %v2229 = vunpack.c.l.b16 %v299
  %v2230 = vunpack.c.h.b16 %v299
  %v2231 = vunpack.c.l.b16 %v300
  %v2232 = vunpack.c.h.b16 %v300
  %v2233 = vunpack.c.l.b16 %v301
  %v2234 = vunpack.c.h.b16 %v301
  %v2235 = vunpack.c.l.b16 %v302
  %v2236 = vunpack.c.h.b16 %v302
  %v2237 = vunpack.c.l.b16 %v303
  %v2238 = vunpack.c.h.b16 %v303
  %v2239 = vunpack.c.l.b16 %v304
  %v2240 = vunpack.c.h.b16 %v304
  %v2241 = vunpack.c.l.b16 %v305
  %v2242 = vunpack.c.h.b16 %v305
  %v2243 = vunpack.c.l.b16 %v306
  %v2244 = vunpack.c.h.b16 %v306
  %v2245 = vunpack.c.l.b16 %v307
  %v2246 = vunpack.c.h.b16 %v307
  %v2247 = vunpack.c.l.b16 %v308
  %v2248 = vunpack.c.h.b16 %v308
  %v2249 = vunpack.c.l.b16 %v309
  %v2250 = vunpack.c.h.b16 %v309
  %v2251 = vunpack.c.l.b16 %v310
  %v2252 = vunpack.c.h.b16 %v310
  %v2253 = vunpack.c.l.b16 %v311
  %v2254 = vunpack.c.h.b16 %v311
  %v2255 = vunpack.c.l.b16 %v312
  %v2256 = vunpack.c.h.b16 %v312
  %v2257 = vunpack.c.l.b16 %v313
  %v2258 = vunpack.c.h.b16 %v313
  %v2259 = vunpack.c.l.b16 %v314
  %v2260 = vunpack.c.h.b16 %v314
  %v2261 = vunpack.c.l.b16 %v315
  %v2262 = vunpack.c.h.b16 %v315
  %v2263 = vunpack.c.l.b16 %v316
  %v2264 = vunpack.c.h.b16 %v316
  %v2265 = vunpack.c.l.b16 %v317
  %v2266 = vunpack.c.h.b16 %v317
  %v2267 = vunpack.c.l.b16 %v318
  %v2268 = vunpack.c.h.b16 %v318
  %v2269 = vunpack.c.l.b16 %v319
  %v2270 = vunpack.c.h.b16 %v319
  %v2271 = vunpack.c.l.b16 %v320
  %v2272 = vunpack.c.h.b16 %v320
  %v2273 = vunpack.c.l.b16 %v321
  %v2274 = vunpack.c.h.b16 %v321
  %v2275 = vunpack.c.l.b16 %v322
  %v2276 = vunpack.c.h.b16 %v322
  %v2277 = vunpack.c.l.b16 %v323
  %v2278 = vunpack.c.h.b16 %v323
  %v2279 = vunpack.c.l.b16 %v324
  %v2280 = vunpack.c.h.b16 %v324
  %v2281 = vunpack.c.l.b16 %v325
  %v2282 = vunpack.c.h.b16 %v325
  %v2283 = vunpack.c.l.b16 %v326
  %v2284 = vunpack.c.h.b16 %v326
  %v2285 = vunpack.c.l.b16 %v327
  %v2286 = vunpack.c.h.b16 %v327
  %v2287 = vunpack.c.l.b16 %v328
  %v2288 = vunpack.c.h.b16 %v328
  %v2289 = vunpack.c.l.b16 %v329
  %v2290 = vunpack.c.h.b16 %v329
  %v2291 = vunpack.c.l.b16 %v330
  %v2292 = vunpack.c.h.b16 %v330
  %v2293 = vunpack.c.l.b16 %v331
  %v2294 = vunpack.c.h.b16 %v331
  %v2295 = vunpack.c.l.b16 %v332
  %v2296 = vunpack.c.h.b16 %v332
  %v2297 = vunpack.c.l.b16 %v333
  %v2298 = vunpack.c.h.b16 %v333
  %v2299 = vunpack.c.l.b16 %v334
  %v2300 = vunpack.c.h.b16 %v334
  %v2301 = vunpack.c.l.b16 %v335
  %v2302 = vunpack.c.h.b16 %v335
  %v2303 = vunpack.c.l.b16 %v336
  %v2304 = vunpack.c.h.b16 %v336
  %v2305 = vunpack.c.l.b16 %v337
  %v2306 = vunpack.c.h.b16 %v337
  %v2307 = vunpack.c.l.b16 %v338
  %v2308 = vunpack.c.h.b16 %v338
  %v2309 = vunpack.c.l.b16 %v339
  %v2310 = vunpack.c.h.b16 %v339
  %v2311 = vunpack.c.l.b16 %v340
  %v2312 = vunpack.c.h.b16 %v340
  %v2313 = vunpack.c.l.b16 %v341
  %v2314 = vunpack.c.h.b16 %v341
  %v2315 = vunpack.c.l.b16 %v342
  %v2316 = vunpack.c.h.b16 %v342
  %v2317 = vunpack.c.l.b16 %v343
  %v2318 = vunpack.c.h.b16 %v343
  %v2319 = vunpack.c.l.b16 %v344
  %v2320 = vunpack.c.h.b16 %v344
  %v2321 = vunpack.c.l.b16 %v345
  %v2322 = vunpack.c.h.b16 %v345
  %v2323 = vunpack.c.l.b16 %v346
  %v2324 = vunpack.c.h.b16 %v346
  %v2325 = vunpack.c.l.b16 %v347
  %v2326 = vunpack.c.h.b16 %v347
  %v2327 = vunpack.c.l.b16 %v348
  %v2328 = vunpack.c.h.b16 %v348
  %v2329 = vunpack.c.l.b16 %v349
  %v2330 = vunpack.c.h.b16 %v349
  %v2331 = vunpack.c.l.b16 %v350
  %v2332 = vunpack.c.h.b16 %v350
  %v2333 = vunpack.c.l.b16 %v351
  %v2334 = vunpack.c.h.b16 %v351
  %v2335 = vunpack.c.l.b16 %v352
  %v2336 = vunpack.c.h.b16 %v352
  %v2337 = vunpack.c.l.b16 %v353
  %v2338 = vunpack.c.h.b16 %v353
  %v2339 = vunpack.c.l.b16 %v354
  %v2340 = vunpack.c.h.b16 %v354
  %v2341 = vunpack.c.l.b16 %v355
  %v2342 = vunpack.c.h.b16 %v355
  %v2343 = vunpack.c.l.b16 %v356
  %v2344 = vunpack.c.h.b16 %v356
  %v2345 = vunpack.c.l.b16 %v357
  %v2346 = vunpack.c.h.b16 %v357
  %v2347 = vunpack.c.l.b16 %v358
  %v2348 = vunpack.c.h.b16 %v358
  %v2349 = vunpack.c.l.b16 %v359
  %v2350 = vunpack.c.h.b16 %v359
  %v2351 = vunpack.c.l.b16 %v360
  %v2352 = vunpack.c.h.b16 %v360
  %v2353 = vunpack.c.l.b16 %v361
  %v2354 = vunpack.c.h.b16 %v361
  %v2355 = vunpack.c.l.b16 %v362
  %v2356 = vunpack.c.h.b16 %v362
  %v2357 = vunpack.c.l.b16 %v363
  %v2358 = vunpack.c.h.b16 %v363
  %v2359 = vunpack.c.l.b16 %v364
  %v2360 = vunpack.c.h.b16 %v364
  %v2361 = vunpack.c.l.b16 %v365
  %v2362 = vunpack.c.h.b16 %v365
  %v2363 = vunpack.c.l.b16 %v366
  %v2364 = vunpack.c.h.b16 %v366
  %v2365 = vunpack.c.l.b16 %v367
  %v2366 = vunpack.c.h.b16 %v367
  %v2367 = vunpack.c.l.b16 %v368
  %v2368 = vunpack.c.h.b16 %v368
  %v2369 = vunpack.c.l.b16 %v369
  %v2370 = vunpack.c.h.b16 %v369
  %v2371 = vunpack.c.l.b16 %v370
  %v2372 = vunpack.c.h.b16 %v370
  %v2373 = vunpack.c.l.b16 %v371
  %v2374 = vunpack.c.h.b16 %v371
  %v2375 = vunpack.c.l.b16 %v372
  %v2376 = vunpack.c.h.b16 %v372
  %v2377 = vunpack.c.l.b16 %v373
  %v2378 = vunpack.c.h.b16 %v373
  %v2379 = vunpack.c.l.b16 %v374
  %v2380 = vunpack.c.h.b16 %v374
  %v2381 = vunpack.c.l.b16 %v375
  %v2382 = vunpack.c.h.b16 %v375
  %v2383 = vunpack.c.l.b16 %v376
  %v2384 = vunpack.c.h.b16 %v376
  %v2385 = vunpack.c.l.b16 %v377
  %v2386 = vunpack.c.h.b16 %v377
  %v2387 = vunpack.c.l.b16 %v378
  %v2388 = vunpack.c.h.b16 %v378
  %v2389 = vunpack.c.l.b16 %v379
  %v2390 = vunpack.c.h.b16 %v379
  %v2391 = vunpack.c.l.b16 %v380
  %v2392 = vunpack.c.h.b16 %v380
  %v2393 = vunpack.c.l.b16 %v381
  %v2394 = vunpack.c.h.b16 %v381
  %v2395 = vunpack.c.l.b16 %v382
  %v2396 = vunpack.c.h.b16 %v382
  %v2397 = vunpack.c.l.b16 %v383
  %v2398 = vunpack.c.h.b16 %v383
  %v2399 = vunpack.c.l.b16 %v384
  %v2400 = vunpack.c.h.b16 %v384
  %v2401 = vunpack.c.l.b16 %v385
  %v2402 = vunpack.c.h.b16 %v385
  %v2403 = vunpack.c.l.b16 %v386
  %v2404 = vunpack.c.h.b16 %v386
  %v2405 = vunpack.c.l.b16 %v387
  %v2406 = vunpack.c.h.b16 %v387
  %v2407 = vunpack.c.l.b16 %v388
  %v2408 = vunpack.c.h.b16 %v388
  %v2409 = vunpack.c.l.b16 %v389
  %v2410 = vunpack.c.h.b16 %v389
  %v2411 = vunpack.c.l.b16 %v390
  %v2412 = vunpack.c.h.b16 %v390
  %v2413 = vunpack.c.l.b16 %v391
  %v2414 = vunpack.c.h.b16 %v391
  %v2415 = vunpack.c.l.b16 %v392
  %v2416 = vunpack.c.h.b16 %v392
  %v2417 = vunpack.c.l.b16 %v393
  %v2418 = vunpack.c.h.b16 %v393
  %v2419 = vunpack.c.l.b16 %v394
  %v2420 = vunpack.c.h.b16 %v394
  %v2421 = vunpack.c.l.b16 %v395
  %v2422 = vunpack.c.h.b16 %v395
  %v2423 = vunpack.c.l.b16 %v396
  %v2424 = vunpack.c.h.b16 %v396
  %v2425 = vunpack.c.l.b16 %v397
  %v2426 = vunpack.c.h.b16 %v397
  %v2427 = vunpack.c.l.b16 %v398
  %v2428 = vunpack.c.h.b16 %v398
  %v2429 = vunpack.c.l.b16 %v399
  %v2430 = vunpack.c.h.b16 %v399
  %v2431 = vunpack.c.l.b16 %v400
  %v2432 = vunpack.c.h.b16 %v400
  %v2433 = vunpack.c.l.b16 %v401
  %v2434 = vunpack.c.h.b16 %v401
  %v2435 = vunpack.c.l.b16 %v402
  %v2436 = vunpack.c.h.b16 %v402
  %v2437 = vunpack.c.l.b16 %v403
  %v2438 = vunpack.c.h.b16 %v403
  %v2439 = vunpack.c.l.b16 %v404
  %v2440 = vunpack.c.h.b16 %v404
  %v2441 = vunpack.c.l.b16 %v405
  %v2442 = vunpack.c.h.b16 %v405
  %v2443 = vunpack.c.l.b16 %v406
  %v2444 = vunpack.c.h.b16 %v406
  %v2445 = vunpack.c.l.b16 %v407
  %v2446 = vunpack.c.h.b16 %v407
  %v2447 = vunpack.c.l.b16 %v408
  %v2448 = vunpack.c.h.b16 %v408
  %v2449 = vunpack.c.l.b16 %v409
  %v2450 = vunpack.c.h.b16 %v409
  %v2451 = vunpack.c.l.b16 %v410
  %v2452 = vunpack.c.h.b16 %v410
  %v2453 = vunpack.c.l.b16 %v411
  %v2454 = vunpack.c.h.b16 %v411
  %v2455 = vunpack.c.l.b16 %v412
  %v2456 = vunpack.c.h.b16 %v412
  %v2457 = vunpack.c.l.b16 %v413
  %v2458 = vunpack.c.h.b16 %v413
  %v2459 = vunpack.c.l.b16 %v414
  %v2460 = vunpack.c.h.b16 %v414
  %v2461 = vunpack.c.l.b16 %v415
  %v2462 = vunpack.c.h.b16 %v415
  %v2463 = vunpack.c.l.b16 %v416
  %v2464 = vunpack.c.h.b16 %v416
  %v2465 = vunpack.c.l.b16 %v417
  %v2466 = vunpack.c.h.b16 %v417
  %v2467 = vunpack.c.l.b16 %v418
  %v2468 = vunpack.c.h.b16 %v418
  %v2469 = vunpack.c.l.b16 %v419
  %v2470 = vunpack.c.h.b16 %v419
  %v2471 = vunpack.c.l.b16 %v420
  %v2472 = vunpack.c.h.b16 %v420
  %v2473 = vunpack.c.l.b16 %v421
  %v2474 = vunpack.c.h.b16 %v421
  %v2475 = vunpack.c.l.b16 %v422
  %v2476 = vunpack.c.h.b16 %v422
  %v2477 = vunpack.c.l.b16 %v423
  %v2478 = vunpack.c.h.b16 %v423
  %v2479 = vunpack.c.l.b16 %v424
  %v2480 = vunpack.c.h.b16 %v424
  %v2481 = vunpack.c.l.b16 %v425
  %v2482 = vunpack.c.h.b16 %v425
  %v2483 = vunpack.c.l.b16 %v426
  %v2484 = vunpack.c.h.b16 %v426
  %v2485 = vunpack.c.l.b16 %v427
  %v2486 = vunpack.c.h.b16 %v427
  %v2487 = vunpack.c.l.b16 %v428
  %v2488 = vunpack.c.h.b16 %v428
  %v2489 = vunpack.c.l.b16 %v429
  %v2490 = vunpack.c.h.b16 %v429
  %v2491 = vunpack.c.l.b16 %v430
  %v2492 = vunpack.c.h.b16 %v430
  %v2493 = vunpack.c.l.b16 %v431
  %v2494 = vunpack.c.h.b16 %v431
  %v2495 = vunpack.c.l.b16 %v432
  %v2496 = vunpack.c.h.b16 %v432
  %v2497 = vunpack.c.l.b16 %v433
  %v2498 = vunpack.c.h.b16 %v433
  %v2499 = vunpack.c.l.b16 %v434
  %v2500 = vunpack.c.h.b16 %v434
  %v2501 = vunpack.c.l.b16 %v435
  %v2502 = vunpack.c.h.b16 %v435
  %v2503 = vunpack.c.l.b16 %v436
  %v2504 = vunpack.c.h.b16 %v436
  %v2505 = vunpack.c.l.b16 %v437
  %v2506 = vunpack.c.h.b16 %v437
  %v2507 = vunpack.c.l.b16 %v438
  %v2508 = vunpack.c.h.b16 %v438
  %v2509 = vunpack.c.l.b16 %v439
  %v2510 = vunpack.c.h.b16 %v439
  %v2511 = vunpack.c.l.b16 %v440
  %v2512 = vunpack.c.h.b16 %v440
  %v2513 = vunpack.c.l.b16 %v441
  %v2514 = vunpack.c.h.b16 %v441
  %v2515 = vunpack.c.l.b16 %v442
  %v2516 = vunpack.c.h.b16 %v442
  %v2517 = vunpack.c.l.b16 %v443
  %v2518 = vunpack.c.h.b16 %v443
  %v2519 = vunpack.c.l.b16 %v444
  %v2520 = vunpack.c.h.b16 %v444
  %v2521 = vunpack.c.l.b16 %v445
  %v2522 = vunpack.c.h.b16 %v445
  %v2523 = vunpack.c.l.b16 %v446
  %v2524 = vunpack.c.h.b16 %v446
  %v2525 = vunpack.c.l.b16 %v447
  %v2526 = vunpack.c.h.b16 %v447
  %v2527 = vunpack.c.l.b16 %v448
  %v2528 = vunpack.c.h.b16 %v448
  %v2529 = vunpack.c.l.b16 %v449
  %v2530 = vunpack.c.h.b16 %v449
  %v2531 = vunpack.c.l.b16 %v450
  %v2532 = vunpack.c.h.b16 %v450
  %v2533 = vunpack.c.l.b16 %v451
  %v2534 = vunpack.c.h.b16 %v451
  %v2535 = vunpack.c.l.b16 %v452
  %v2536 = vunpack.c.h.b16 %v452
  %v2537 = vunpack.c.l.b16 %v453
  %v2538 = vunpack.c.h.b16 %v453
  %v2539 = vunpack.c.l.b16 %v454
  %v2540 = vunpack.c.h.b16 %v454
  %v2541 = vunpack.c.l.b16 %v455
  %v2542 = vunpack.c.h.b16 %v455
  %v2543 = vunpack.c.l.b16 %v456
  %v2544 = vunpack.c.h.b16 %v456
  %v2545 = vunpack.c.l.b16 %v457
  %v2546 = vunpack.c.h.b16 %v457
  %v2547 = vunpack.c.l.b16 %v458
  %v2548 = vunpack.c.h.b16 %v458
  %v2549 = vunpack.c.l.b16 %v459
  %v2550 = vunpack.c.h.b16 %v459
  %v2551 = vunpack.c.l.b16 %v460
  %v2552 = vunpack.c.h.b16 %v460
  %v2553 = vunpack.c.l.b16 %v461
  %v2554 = vunpack.c.h.b16 %v461
  %v2555 = vunpack.c.l.b16 %v462
  %v2556 = vunpack.c.h.b16 %v462
  %v2557 = vunpack.c.l.b16 %v463
  %v2558 = vunpack.c.h.b16 %v463
  %v2559 = vunpack.c.l.b16 %v464
  %v2560 = vunpack.c.h.b16 %v464
  %v2561 = vunpack.c.l.b16 %v465
  %v2562 = vunpack.c.h.b16 %v465
  %v2563 = vunpack.c.l.b16 %v466
  %v2564 = vunpack.c.h.b16 %v466
  %v2565 = vunpack.c.l.b16 %v467
  %v2566 = vunpack.c.h.b16 %v467
  %v2567 = vunpack.c.l.b16 %v468
  %v2568 = vunpack.c.h.b16 %v468
  %v2569 = vunpack.c.l.b16 %v469
  %v2570 = vunpack.c.h.b16 %v469
  %v2571 = vunpack.c.l.b16 %v470
  %v2572 = vunpack.c.h.b16 %v470
  %v2573 = vunpack.c.l.b16 %v471
  %v2574 = vunpack.c.h.b16 %v471
  %v2575 = vunpack.c.l.b16 %v472
  %v2576 = vunpack.c.h.b16 %v472
  %v2577 = vunpack.c.l.b16 %v473
  %v2578 = vunpack.c.h.b16 %v473
  %v2579 = vunpack.c.l.b16 %v474
  %v2580 = vunpack.c.h.b16 %v474
  %v2581 = vunpack.c.l.b16 %v475
  %v2582 = vunpack.c.h.b16 %v475
  %v2583 = vunpack.c.l.b16 %v476
  %v2584 = vunpack.c.h.b16 %v476
  %v2585 = vunpack.c.l.b16 %v477
  %v2586 = vunpack.c.h.b16 %v477
  %v2587 = vunpack.c.l.b16 %v478
  %v2588 = vunpack.c.h.b16 %v478
  %v2589 = vunpack.c.l.b16 %v479
  %v2590 = vunpack.c.h.b16 %v479
  %v2591 = vunpack.c.l.b16 %v480
  %v2592 = vunpack.c.h.b16 %v480
  %v2593 = vunpack.c.l.b16 %v481
  %v2594 = vunpack.c.h.b16 %v481
  %v2595 = vunpack.c.l.b16 %v482
  %v2596 = vunpack.c.h.b16 %v482
  %v2597 = vunpack.c.l.b16 %v483
  %v2598 = vunpack.c.h.b16 %v483
  %v2599 = vunpack.c.l.b16 %v484
  %v2600 = vunpack.c.h.b16 %v484
  %v2601 = vunpack.c.l.b16 %v485
  %v2602 = vunpack.c.h.b16 %v485
  %v2603 = vunpack.c.l.b16 %v486
  %v2604 = vunpack.c.h.b16 %v486
  %v2605 = vunpack.c.l.b16 %v487
  %v2606 = vunpack.c.h.b16 %v487
  %v2607 = vunpack.c.l.b16 %v488
  %v2608 = vunpack.c.h.b16 %v488
  %v2609 = vunpack.c.l.b16 %v489
  %v2610 = vunpack.c.h.b16 %v489
  %v2611 = vunpack.c.l.b16 %v490
  %v2612 = vunpack.c.h.b16 %v490
  %v2613 = vunpack.c.l.b16 %v491
  %v2614 = vunpack.c.h.b16 %v491
  %v2615 = vunpack.c.l.b16 %v492
  %v2616 = vunpack.c.h.b16 %v492
  %v2617 = vunpack.c.l.b16 %v493
  %v2618 = vunpack.c.h.b16 %v493
  %v2619 = vunpack.c.l.b16 %v494
  %v2620 = vunpack.c.h.b16 %v494
  %v2621 = vunpack.c.l.b16 %v495
  %v2622 = vunpack.c.h.b16 %v495
  %v2623 = vunpack.c.l.b16 %v496
  %v2624 = vunpack.c.h.b16 %v496
  %v2625 = vunpack.c.l.b16 %v497
  %v2626 = vunpack.c.h.b16 %v497
  %v2627 = vunpack.c.l.b16 %v498
  %v2628 = vunpack.c.h.b16 %v498
  %v2629 = vunpack.c.l.b16 %v499
  %v2630 = vunpack.c.h.b16 %v499
  %v2631 = vunpack.c.l.b16 %v500
  %v2632 = vunpack.c.h.b16 %v500
  %v2633 = vunpack.c.l.b16 %v501
  %v2634 = vunpack.c.h.b16 %v501
  %v2635 = vunpack.c.l.b16 %v502
  %v2636 = vunpack.c.h.b16 %v502
  %v2637 = vunpack.c.l.b16 %v503
  %v2638 = vunpack.c.h.b16 %v503
  %v2639 = vunpack.c.l.b16 %v504
  %v2640 = vunpack.c.h.b16 %v504
  %v2641 = vunpack.c.l.b16 %v505
  %v2642 = vunpack.c.h.b16 %v505
  %v2643 = vunpack.c.l.b16 %v506
  %v2644 = vunpack.c.h.b16 %v506
  %v2645 = vunpack.c.l.b16 %v507
  %v2646 = vunpack.c.h.b16 %v507
  %v2647 = vunpack.c.l.b16 %v508
  %v2648 = vunpack.c.h.b16 %v508
  %v2649 = vunpack.c.l.b16 %v509
  %v2650 = vunpack.c.h.b16 %v509
  %v2651 = vunpack.c.l.b16 %v510
  %v2652 = vunpack.c.h.b16 %v510
  %v2653 = vunpack.c.l.b16 %v511
  %v2654 = vunpack.c.h.b16 %v511
  %v2655 = vunpack.c.l.b16 %v512
  %v2656 = vunpack.c.h.b16 %v512
  %v2657 = vunpack.c.l.b16 %v513
  %v2658 = vunpack.c.h.b16 %v513
  %v2659 = vunpack.c.l.b16 %v514
  %v2660 = vunpack.c.h.b16 %v514
  %v2661 = vunpack.c.l.b16 %v515
  %v2662 = vunpack.c.h.b16 %v515
  %v2663 = vunpack.c.l.b16 %v516
  %v2664 = vunpack.c.h.b16 %v516
  %v2665 = vunpack.c.l.b16 %v517
  %v2666 = vunpack.c.h.b16 %v517
  %v2667 = vunpack.c.l.b16 %v518
  %v2668 = vunpack.c.h.b16 %v518
  %v2669 = vunpack.c.l.b16 %v519
  %v2670 = vunpack.c.h.b16 %v519
  %v2671 = vunpack.c.l.b16 %v520
  %v2672 = vunpack.c.h.b16 %v520
  %v2673 = vunpack.c.l.b16 %v521
  %v2674 = vunpack.c.h.b16 %v521
  %v2675 = vunpack.c.l.b16 %v522
  %v2676 = vunpack.c.h.b16 %v522
  %v2677 = vunpack.c.l.b16 %v523
  %v2678 = vunpack.c.h.b16 %v523
  %v2679 = vunpack.c.l.b16 %v524
  %v2680 = vunpack.c.h.b16 %v524
  %v2681 = vunpack.c.l.b16 %v525
  %v2682 = vunpack.c.h.b16 %v525
  %v2683 = vunpack.c.l.b16 %v526
  %v2684 = vunpack.c.h.b16 %v526
  %v2685 = vunpack.c.l.b16 %v527
  %v2686 = vunpack.c.h.b16 %v527
  %v2687 = vunpack.c.l.b16 %v528
  %v2688 = vunpack.c.h.b16 %v528
  %v2689 = vunpack.c.l.b16 %v529
  %v2690 = vunpack.c.h.b16 %v529
  %v2691 = vunpack.c.l.b16 %v530
  %v2692 = vunpack.c.h.b16 %v530
  %v2693 = vunpack.c.l.b16 %v531
  %v2694 = vunpack.c.h.b16 %v531
  %v2695 = vunpack.c.l.b16 %v532
  %v2696 = vunpack.c.h.b16 %v532
  %v2697 = vunpack.c.l.b16 %v533
  %v2698 = vunpack.c.h.b16 %v533
  %v2699 = vunpack.c.l.b16 %v534
  %v2700 = vunpack.c.h.b16 %v534
  %v2701 = vunpack.c.l.b16 %v535
  %v2702 = vunpack.c.h.b16 %v535
  %v2703 = vunpack.c.l.b16 %v536
  %v2704 = vunpack.c.h.b16 %v536
  %v2705 = vunpack.c.l.b16 %v537
  %v2706 = vunpack.c.h.b16 %v537
  %v2707 = vunpack.c.l.b16 %v538
  %v2708 = vunpack.c.h.b16 %v538
  %v2709 = vunpack.c.l.b16 %v539
  %v2710 = vunpack.c.h.b16 %v539
  %v2711 = vunpack.c.l.b16 %v540
  %v2712 = vunpack.c.h.b16 %v540
  %v2713 = vunpack.c.l.b16 %v541
  %v2714 = vunpack.c.h.b16 %v541
  %v2715 = vunpack.c.l.b16 %v542
  %v2716 = vunpack.c.h.b16 %v542
  %v2717 = vunpack.c.l.b16 %v543
  %v2718 = vunpack.c.h.b16 %v543
  %v2719 = vunpack.c.l.b16 %v544
  %v2720 = vunpack.c.h.b16 %v544
  %v2721 = vunpack.c.l.b16 %v545
  %v2722 = vunpack.c.h.b16 %v545
  %v2723 = vunpack.c.l.b16 %v546
  %v2724 = vunpack.c.h.b16 %v546
  %v2725 = vunpack.c.l.b16 %v547
  %v2726 = vunpack.c.h.b16 %v547
  %v2727 = vunpack.c.l.b16 %v548
  %v2728 = vunpack.c.h.b16 %v548
  %v2729 = vunpack.c.l.b16 %v549
  %v2730 = vunpack.c.h.b16 %v549
  %v2731 = vunpack.c.l.b16 %v550
  %v2732 = vunpack.c.h.b16 %v550
  %v2733 = vunpack.c.l.b16 %v551
  %v2734 = vunpack.c.h.b16 %v551
  %v2735 = vunpack.c.l.b16 %v552
  %v2736 = vunpack.c.h.b16 %v552
  %v2737 = vunpack.c.l.b16 %v553
  %v2738 = vunpack.c.h.b16 %v553
  %v2739 = vunpack.c.l.b16 %v554
  %v2740 = vunpack.c.h.b16 %v554
  %v2741 = vunpack.c.l.b16 %v555
  %v2742 = vunpack.c.h.b16 %v555
  %v2743 = vunpack.c.l.b16 %v556
  %v2744 = vunpack.c.h.b16 %v556
  %v2745 = vunpack.c.l.b16 %v557
  %v2746 = vunpack.c.h.b16 %v557
  %v2747 = vunpack.c.l.b16 %v558
  %v2748 = vunpack.c.h.b16 %v558
  %v2749 = vunpack.c.l.b16 %v559
  %v2750 = vunpack.c.h.b16 %v559
  %v2751 = vunpack.c.l.b16 %v560
  %v2752 = vunpack.c.h.b16 %v560
  %v2753 = vunpack.c.l.b16 %v561
  %v2754 = vunpack.c.h.b16 %v561
  %v2755 = vunpack.c.l.b16 %v562
  %v2756 = vunpack.c.h.b16 %v562
  %v2757 = vunpack.c.l.b16 %v563
  %v2758 = vunpack.c.h.b16 %v563
  %v2759 = vunpack.c.l.b16 %v564
  %v2760 = vunpack.c.h.b16 %v564
  %v2761 = vunpack.c.l.b16 %v565
  %v2762 = vunpack.c.h.b16 %v565
  %v2763 = vunpack.c.l.b16 %v566
  %v2764 = vunpack.c.h.b16 %v566
  %v2765 = vunpack.c.l.b16 %v567
  %v2766 = vunpack.c.h.b16 %v567
  %v2767 = vunpack.c.l.b16 %v568
  %v2768 = vunpack.c.h.b16 %v568
  %v2769 = vunpack.c.l.b16 %v569
  %v2770 = vunpack.c.h.b16 %v569
  %v2771 = vunpack.c.l.b16 %v570
  %v2772 = vunpack.c.h.b16 %v570
  %v2773 = vunpack.c.l.b16 %v571
  %v2774 = vunpack.c.h.b16 %v571
  %v2775 = vunpack.c.l.b16 %v572
  %v2776 = vunpack.c.h.b16 %v572
  %v2777 = vunpack.c.l.b16 %v573
  %v2778 = vunpack.c.h.b16 %v573
  %v2779 = vunpack.c.l.b16 %v574
  %v2780 = vunpack.c.h.b16 %v574
  %v2781 = vunpack.c.l.b16 %v575
  %v2782 = vunpack.c.h.b16 %v575
  %v2783 = vunpack.c.l.b16 %v576
  %v2784 = vunpack.c.h.b16 %v576
  %v2785 = vunpack.c.l.b16 %v577
  %v2786 = vunpack.c.h.b16 %v577
  %v2787 = vunpack.c.l.b16 %v578
  %v2788 = vunpack.c.h.b16 %v578
  %v2789 = vunpack.c.l.b16 %v579
  %v2790 = vunpack.c.h.b16 %v579
  %v2791 = vunpack.c.l.b16 %v580
  %v2792 = vunpack.c.h.b16 %v580
  %v2793 = vunpack.c.l.b16 %v581
  %v2794 = vunpack.c.h.b16 %v581
  %v2795 = vunpack.c.l.b16 %v582
  %v2796 = vunpack.c.h.b16 %v582
  %v2797 = vunpack.c.l.b16 %v583
  %v2798 = vunpack.c.h.b16 %v583
  %v2799 = vunpack.c.l.b16 %v584
  %v2800 = vunpack.c.h.b16 %v584
  %v2801 = vunpack.c.l.b16 %v585
  %v2802 = vunpack.c.h.b16 %v585
  %v2803 = vunpack.c.l.b16 %v586
  %v2804 = vunpack.c.h.b16 %v586
  %v2805 = vunpack.c.l.b16 %v587
  %v2806 = vunpack.c.h.b16 %v587
  %v2807 = vunpack.c.l.b16 %v588
  %v2808 = vunpack.c.h.b16 %v588
  %v2809 = vunpack.c.l.b16 %v589
  %v2810 = vunpack.c.h.b16 %v589
  %v2811 = vunpack.c.l.b16 %v590
  %v2812 = vunpack.c.h.b16 %v590
  %v2813 = vunpack.c.l.b16 %v591
  %v2814 = vunpack.c.h.b16 %v591
  %v2815 = vunpack.c.l.b16 %v592
  %v2816 = vunpack.c.h.b16 %v592
  %v2817 = vunpack.c.l.b16 %v593
  %v2818 = vunpack.c.h.b16 %v593
  %v2819 = vunpack.c.l.b16 %v594
  %v2820 = vunpack.c.h.b16 %v594
  %v2821 = vunpack.c.l.b16 %v595
  %v2822 = vunpack.c.h.b16 %v595
  %v2823 = vunpack.c.l.b16 %v596
  %v2824 = vunpack.c.h.b16 %v596
  %v2825 = vunpack.c.l.b16 %v597
  %v2826 = vunpack.c.h.b16 %v597
  %v2827 = vunpack.c.l.b16 %v598
  %v2828 = vunpack.c.h.b16 %v598
  %v2829 = vunpack.c.l.b16 %v599
  %v2830 = vunpack.c.h.b16 %v599
  %v2831 = vunpack.c.l.b16 %v600
  %v2832 = vunpack.c.h.b16 %v600
  %v2833 = vunpack.c.l.b16 %v601
  %v2834 = vunpack.c.h.b16 %v601
  %v2835 = vunpack.c.l.b16 %v602
  %v2836 = vunpack.c.h.b16 %v602
  %v2837 = vunpack.c.l.b16 %v603
  %v2838 = vunpack.c.h.b16 %v603
  %v2839 = vunpack.c.l.b16 %v604
  %v2840 = vunpack.c.h.b16 %v604
  %v2841 = vunpack.c.l.b16 %v605
  %v2842 = vunpack.c.h.b16 %v605
  %v2843 = vunpack.c.l.b16 %v606
  %v2844 = vunpack.c.h.b16 %v606
  %v2845 = vunpack.c.l.b16 %v607
  %v2846 = vunpack.c.h.b16 %v607
  %v2847 = vunpack.c.l.b16 %v608
  %v2848 = vunpack.c.h.b16 %v608
  %v2849 = vunpack.c.l.b16 %v609
  %v2850 = vunpack.c.h.b16 %v609
  %v2851 = vunpack.c.l.b16 %v610
  %v2852 = vunpack.c.h.b16 %v610
  %v2853 = vunpack.c.l.b16 %v611
  %v2854 = vunpack.c.h.b16 %v611
  %v2855 = vunpack.c.l.b16 %v612
  %v2856 = vunpack.c.h.b16 %v612
  %v2857 = vunpack.c.l.b16 %v613
  %v2858 = vunpack.c.h.b16 %v613
  %v2859 = vunpack.c.l.b16 %v614
  %v2860 = vunpack.c.h.b16 %v614
  %v2861 = vunpack.c.l.b16 %v615
  %v2862 = vunpack.c.h.b16 %v615
  %v2863 = vunpack.c.l.b16 %v616
  %v2864 = vunpack.c.h.b16 %v616
  %v2865 = vunpack.c.l.b16 %v617
  %v2866 = vunpack.c.h.b16 %v617
  %v2867 = vunpack.c.l.b16 %v618
  %v2868 = vunpack.c.h.b16 %v618
  %v2869 = vunpack.c.l.b16 %v619
  %v2870 = vunpack.c.h.b16 %v619
  %v2871 = vunpack.c.l.b16 %v620
  %v2872 = vunpack.c.h.b16 %v620
  %v2873 = vunpack.c.l.b16 %v621
  %v2874 = vunpack.c.h.b16 %v621
  %v2875 = vunpack.c.l.b16 %v622
  %v2876 = vunpack.c.h.b16 %v622
  %v2877 = vunpack.c.l.b16 %v623
  %v2878 = vunpack.c.h.b16 %v623
  %v2879 = vunpack.c.l.b16 %v624
  %v2880 = vunpack.c.h.b16 %v624
  %v2881 = vunpack.c.l.b16 %v625
  %v2882 = vunpack.c.h.b16 %v625
  %v2883 = vunpack.c.l.b16 %v626
  %v2884 = vunpack.c.h.b16 %v626
  %v2885 = vunpack.c.l.b16 %v627
  %v2886 = vunpack.c.h.b16 %v627
  %v2887 = vunpack.c.l.b16 %v628
  %v2888 = vunpack.c.h.b16 %v628
  %v2889 = vunpack.c.l.b16 %v629
  %v2890 = vunpack.c.h.b16 %v629
  %v2891 = vunpack.c.l.b16 %v630
  %v2892 = vunpack.c.h.b16 %v630
  %v2893 = vunpack.c.l.b16 %v631
  %v2894 = vunpack.c.h.b16 %v631
  %v2895 = vunpack.c.l.b16 %v632
  %v2896 = vunpack.c.h.b16 %v632
  %v2897 = vunpack.c.l.b16 %v633
  %v2898 = vunpack.c.h.b16 %v633
  %v2899 = vunpack.c.l.b16 %v634
  %v2900 = vunpack.c.h.b16 %v634
  %v2901 = vunpack.c.l.b16 %v635
  %v2902 = vunpack.c.h.b16 %v635
  %v2903 = vunpack.c.l.b16 %v636
  %v2904 = vunpack.c.h.b16 %v636
  %v2905 = vunpack.c.l.b16 %v637
  %v2906 = vunpack.c.h.b16 %v637
  %v2907 = vunpack.c.l.b16 %v638
  %v2908 = vunpack.c.h.b16 %v638
  %v2909 = vunpack.c.l.b16 %v639
  %v2910 = vunpack.c.h.b16 %v639
  %v2911 = vunpack.c.l.b16 %v640
  %v2912 = vunpack.c.h.b16 %v640
  %v2913 = vunpack.c.l.b16 %v641
  %v2914 = vunpack.c.h.b16 %v641
  %v2915 = vunpack.c.l.b16 %v642
  %v2916 = vunpack.c.h.b16 %v642
  %v2917 = vunpack.c.l.b16 %v643
  %v2918 = vunpack.c.h.b16 %v643
  %v2919 = vunpack.c.l.b16 %v644
  %v2920 = vunpack.c.h.b16 %v644
  %v2921 = vunpack.c.l.b16 %v645
  %v2922 = vunpack.c.h.b16 %v645
  %v2923 = vunpack.c.l.b16 %v646
  %v2924 = vunpack.c.h.b16 %v646
  %v2925 = vunpack.c.l.b16 %v647
  %v2926 = vunpack.c.h.b16 %v647
  %v2927 = vunpack.c.l.b16 %v648
  %v2928 = vunpack.c.h.b16 %v648
  %v2929 = vunpack.c.l.b16 %v649
  %v2930 = vunpack.c.h.b16 %v649
  %v2931 = vunpack.c.l.b16 %v650
  %v2932 = vunpack.c.h.b16 %v650
  %v2933 = vunpack.c.l.b16 %v651
  %v2934 = vunpack.c.h.b16 %v651
  %v2935 = vunpack.c.l.b16 %v652
  %v2936 = vunpack.c.h.b16 %v652
  %v2937 = vunpack.c.l.b16 %v653
  %v2938 = vunpack.c.h.b16 %v653
  %v2939 = vunpack.c.l.b16 %v654
  %v2940 = vunpack.c.h.b16 %v654
  %v2941 = vunpack.c.l.b16 %v655
  %v2942 = vunpack.c.h.b16 %v655
  %v2943 = vunpack.c.l.b16 %v656
  %v2944 = vunpack.c.h.b16 %v656
  %v2945 = vunpack.c.l.b16 %v657
  %v2946 = vunpack.c.h.b16 %v657
  %v2947 = vunpack.c.l.b16 %v658
  %v2948 = vunpack.c.h.b16 %v658
  %v2949 = vunpack.c.l.b16 %v659
  %v2950 = vunpack.c.h.b16 %v659
  %v2951 = vunpack.c.l.b16 %v660
  %v2952 = vunpack.c.h.b16 %v660
  %v2953 = vunpack.c.l.b16 %v661
  %v2954 = vunpack.c.h.b16 %v661
  %v2955 = vunpack.c.l.b16 %v662
  %v2956 = vunpack.c.h.b16 %v662
  %v2957 = vunpack.c.l.b16 %v663
  %v2958 = vunpack.c.h.b16 %v663
  %v2959 = vunpack.c.l.b16 %v664
  %v2960 = vunpack.c.h.b16 %v664
  %v2961 = vunpack.c.l.b16 %v665
  %v2962 = vunpack.c.h.b16 %v665
  %v2963 = vunpack.c.l.b16 %v666
  %v2964 = vunpack.c.h.b16 %v666
  %v2965 = vunpack.c.l.b16 %v667
  %v2966 = vunpack.c.h.b16 %v667
  %v2967 = vunpack.c.l.b16 %v668
  %v2968 = vunpack.c.h.b16 %v668
  %v2969 = vunpack.c.l.b16 %v669
  %v2970 = vunpack.c.h.b16 %v669
  %v2971 = vunpack.c.l.b16 %v670
  %v2972 = vunpack.c.h.b16 %v670
  %v2973 = vunpack.c.l.b16 %v671
  %v2974 = vunpack.c.h.b16 %v671
  %v2975 = vunpack.c.l.b16 %v672
  %v2976 = vunpack.c.h.b16 %v672
  %v2977 = vunpack.c.l.b16 %v673
  %v2978 = vunpack.c.h.b16 %v673
  %v2979 = vunpack.c.l.b16 %v674
  %v2980 = vunpack.c.h.b16 %v674
  %v2981 = vunpack.c.l.b16 %v675
  %v2982 = vunpack.c.h.b16 %v675
  %v2983 = vunpack.c.l.b16 %v676
  %v2984 = vunpack.c.h.b16 %v676
  %v2985 = vunpack.c.l.b16 %v677
  %v2986 = vunpack.c.h.b16 %v677
  %v2987 = vunpack.c.l.b16 %v678
  %v2988 = vunpack.c.h.b16 %v678
  %v2989 = vunpack.c.l.b16 %v679
  %v2990 = vunpack.c.h.b16 %v679
  %v2991 = vunpack.c.l.b16 %v680
  %v2992 = vunpack.c.h.b16 %v680
  %v2993 = vunpack.c.l.b16 %v681
  %v2994 = vunpack.c.h.b16 %v681
  %v2995 = vunpack.c.l.b16 %v682
  %v2996 = vunpack.c.h.b16 %v682
  %v2997 = vunpack.c.l.b16 %v683
  %v2998 = vunpack.c.h.b16 %v683
  %v2999 = vunpack.c.l.b16 %v684
  %v3000 = vunpack.c.h.b16 %v684
  %v3001 = vunpack.c.l.b16 %v685
  %v3002 = vunpack.c.h.b16 %v685
  %v3003 = vunpack.c.l.b16 %v686
  %v3004 = vunpack.c.h.b16 %v686
  %v3005 = vunpack.c.l.b16 %v687
  %v3006 = vunpack.c.h.b16 %v687
  %v3007 = vunpack.c.l.b16 %v688
  %v3008 = vunpack.c.h.b16 %v688
  %v3009 = vunpack.c.l.b16 %v689
  %v3010 = vunpack.c.h.b16 %v689
  %v3011 = vunpack.c.l.b16 %v690
  %v3012 = vunpack.c.h.b16 %v690
  %v3013 = vunpack.c.l.b16 %v691
  %v3014 = vunpack.c.h.b16 %v691
  %v3015 = vunpack.c.l.b16 %v692
  %v3016 = vunpack.c.h.b16 %v692
  %v3017 = vunpack.c.l.b16 %v693
  %v3018 = vunpack.c.h.b16 %v693
  %v3019 = vunpack.c.l.b16 %v694
  %v3020 = vunpack.c.h.b16 %v694
  %v3021 = vunpack.c.l.b16 %v695
  %v3022 = vunpack.c.h.b16 %v695
  %v3023 = vunpack.c.l.b16 %v696
  %v3024 = vunpack.c.h.b16 %v696
  %v3025 = vunpack.c.l.b16 %v697
  %v3026 = vunpack.c.h.b16 %v697
  %v3027 = vunpack.c.l.b16 %v698
  %v3028 = vunpack.c.h.b16 %v698
  %v3029 = vunpack.c.l.b16 %v699
  %v3030 = vunpack.c.h.b16 %v699
  %v3031 = vunpack.c.l.b16 %v700
  %v3032 = vunpack.c.h.b16 %v700
  %v3033 = vunpack.c.l.b16 %v701
  %v3034 = vunpack.c.h.b16 %v701
  %v3035 = vunpack.c.l.b16 %v702
  %v3036 = vunpack.c.h.b16 %v702
  %v3037 = vunpack.c.l.b16 %v703
  %v3038 = vunpack.c.h.b16 %v703
  %v3039 = vunpack.c.l.b16 %v704
  %v3040 = vunpack.c.h.b16 %v704
  %v3041 = vunpack.c.l.b16 %v705
  %v3042 = vunpack.c.h.b16 %v705
  %v3043 = vunpack.c.l.b16 %v706
  %v3044 = vunpack.c.h.b16 %v706
  %v3045 = vunpack.c.l.b16 %v707
  %v3046 = vunpack.c.h.b16 %v707
  %v3047 = vunpack.c.l.b16 %v708
  %v3048 = vunpack.c.h.b16 %v708
  %v3049 = vunpack.c.l.b16 %v709
  %v3050 = vunpack.c.h.b16 %v709
  %v3051 = vunpack.c.l.b16 %v710
  %v3052 = vunpack.c.h.b16 %v710
  %v3053 = vunpack.c.l.b16 %v711
  %v3054 = vunpack.c.h.b16 %v711
  %v3055 = vunpack.c.l.b16 %v712
  %v3056 = vunpack.c.h.b16 %v712
  %v3057 = vunpack.c.l.b16 %v713
  %v3058 = vunpack.c.h.b16 %v713
  %v3059 = vunpack.c.l.b16 %v714
  %v3060 = vunpack.c.h.b16 %v714
  %v3061 = vunpack.c.l.b16 %v715
  %v3062 = vunpack.c.h.b16 %v715
  %v3063 = vunpack.c.l.b16 %v716
  %v3064 = vunpack.c.h.b16 %v716
  %v3065 = vunpack.c.l.b16 %v717
  %v3066 = vunpack.c.h.b16 %v717
  %v3067 = vunpack.c.l.b16 %v718
  %v3068 = vunpack.c.h.b16 %v718
  %v3069 = vunpack.c.l.b16 %v719
  %v3070 = vunpack.c.h.b16 %v719
  %v3071 = vunpack.c.l.b16 %v720
  %v3072 = vunpack.c.h.b16 %v720
  %v3073 = vunpack.c.l.b16 %v721
  %v3074 = vunpack.c.h.b16 %v721
  %v3075 = vunpack.c.l.b16 %v722
  %v3076 = vunpack.c.h.b16 %v722
  %v3077 = vunpack.c.l.b16 %v723
  %v3078 = vunpack.c.h.b16 %v723
  %v3079 = vunpack.c.l.b16 %v724
  %v3080 = vunpack.c.h.b16 %v724
  %v3081 = vunpack.c.l.b16 %v725
  %v3082 = vunpack.c.h.b16 %v725
  %v3083 = vunpack.c.l.b16 %v726
  %v3084 = vunpack.c.h.b16 %v726
  %v3085 = vunpack.c.l.b16 %v727
  %v3086 = vunpack.c.h.b16 %v727
  %v3087 = vunpack.c.l.b16 %v728
  %v3088 = vunpack.c.h.b16 %v728
  %v3089 = vunpack.c.l.b16 %v729
  %v3090 = vunpack.c.h.b16 %v729
  %v3091 = vunpack.c.l.b16 %v730
  %v3092 = vunpack.c.h.b16 %v730
  %v3093 = vunpack.c.l.b16 %v731
  %v3094 = vunpack.c.h.b16 %v731
  %v3095 = vunpack.c.l.b16 %v732
  %v3096 = vunpack.c.h.b16 %v732
  %v3097 = vunpack.c.l.b16 %v733
  %v3098 = vunpack.c.h.b16 %v733
  %v3099 = vunpack.c.l.b16 %v734
  %v3100 = vunpack.c.h.b16 %v734
  %v3101 = vunpack.c.l.b16 %v735
  %v3102 = vunpack.c.h.b16 %v735
  %v3103 = vunpack.c.l.b16 %v736
  %v3104 = vunpack.c.h.b16 %v736
  %v3105 = vunpack.c.l.b16 %v737
  %v3106 = vunpack.c.h.b16 %v737
  %v3107 = vunpack.c.l.b16 %v738
  %v3108 = vunpack.c.h.b16 %v738
  %v3109 = vunpack.c.l.b16 %v739
  %v3110 = vunpack.c.h.b16 %v739
  %v3111 = vunpack.c.l.b16 %v740
  %v3112 = vunpack.c.h.b16 %v740
  %v3113 = vunpack.c.l.b16 %v741
  %v3114 = vunpack.c.h.b16 %v741
  %v3115 = vunpack.c.l.b16 %v742
  %v3116 = vunpack.c.h.b16 %v742
  %v3117 = vunpack.c.l.b16 %v743
  %v3118 = vunpack.c.h.b16 %v743
  %v3119 = vunpack.c.l.b16 %v744
  %v3120 = vunpack.c.h.b16 %v744
  %v3121 = vunpack.c.l.b16 %v745
  %v3122 = vunpack.c.h.b16 %v745
  %v3123 = vunpack.c.l.b16 %v746
  %v3124 = vunpack.c.h.b16 %v746
  %v3125 = vunpack.c.l.b16 %v747
  %v3126 = vunpack.c.h.b16 %v747
  %v3127 = vunpack.c.l.b16 %v748
  %v3128 = vunpack.c.h.b16 %v748
  %v3129 = vunpack.c.l.b16 %v749
  %v3130 = vunpack.c.h.b16 %v749
  %v3131 = vunpack.c.l.b16 %v750
  %v3132 = vunpack.c.h.b16 %v750
  %v3133 = vunpack.c.l.b16 %v751
  %v3134 = vunpack.c.h.b16 %v751
  %v3135 = vunpack.c.l.b16 %v752
  %v3136 = vunpack.c.h.b16 %v752
  %v3137 = vunpack.c.l.b16 %v753
  %v3138 = vunpack.c.h.b16 %v753
  %v3139 = vunpack.c.l.b16 %v754
  %v3140 = vunpack.c.h.b16 %v754
  %v3141 = vunpack.c.l.b16 %v755
  %v3142 = vunpack.c.h.b16 %v755
  %v3143 = vunpack.c.l.b16 %v756
  %v3144 = vunpack.c.h.b16 %v756
  %v3145 = vunpack.c.l.b16 %v757
  %v3146 = vunpack.c.h.b16 %v757
  %v3147 = vunpack.c.l.b16 %v758
  %v3148 = vunpack.c.h.b16 %v758
  %v3149 = vunpack.c.l.b16 %v759
  %v3150 = vunpack.c.h.b16 %v759
  %v3151 = vunpack.c.l.b16 %v760
  %v3152 = vunpack.c.h.b16 %v760
  %v3153 = vunpack.c.l.b16 %v761
  %v3154 = vunpack.c.h.b16 %v761
  %v3155 = vunpack.c.l.b16 %v762
  %v3156 = vunpack.c.h.b16 %v762
  %v3157 = vunpack.c.l.b16 %v763
  %v3158 = vunpack.c.h.b16 %v763
  %v3159 = vunpack.c.l.b16 %v764
  %v3160 = vunpack.c.h.b16 %v764
  %v3161 = vunpack.c.l.b16 %v765
  %v3162 = vunpack.c.h.b16 %v765
  %v3163 = vunpack.c.l.b16 %v766
  %v3164 = vunpack.c.h.b16 %v766
  %v3165 = vunpack.c.l.b16 %v767
  %v3166 = vunpack.c.h.b16 %v767
  %v3167 = vunpack.c.l.b16 %v768
  %v3168 = vunpack.c.h.b16 %v768
  %v3169 = vunpack.c.l.b16 %v769
  %v3170 = vunpack.c.h.b16 %v769
  %v3171 = vunpack.c.l.b16 %v770
  %v3172 = vunpack.c.h.b16 %v770
  %v3173 = vunpack.c.l.b16 %v771
  %v3174 = vunpack.c.h.b16 %v771
  %v3175 = vunpack.c.l.b16 %v772
  %v3176 = vunpack.c.h.b16 %v772
  %v3177 = vunpack.c.l.b16 %v773
  %v3178 = vunpack.c.h.b16 %v773
  %v3179 = vunpack.c.l.b16 %v774
  %v3180 = vunpack.c.h.b16 %v774
  %v3181 = vunpack.c.l.b16 %v775
  %v3182 = vunpack.c.h.b16 %v775
  %v3183 = vunpack.c.l.b16 %v776
  %v3184 = vunpack.c.h.b16 %v776
  %v3185 = vunpack.c.l.b16 %v777
  %v3186 = vunpack.c.h.b16 %v777
  %v3187 = vunpack.c.l.b16 %v778
  %v3188 = vunpack.c.h.b16 %v778
  %v3189 = vunpack.c.l.b16 %v779
  %v3190 = vunpack.c.h.b16 %v779
  %v3191 = vunpack.c.l.b16 %v780
  %v3192 = vunpack.c.h.b16 %v780
  %v3193 = vunpack.c.l.b16 %v781
  %v3194 = vunpack.c.h.b16 %v781
  %v3195 = vunpack.c.l.b16 %v782
  %v3196 = vunpack.c.h.b16 %v782
  %v3197 = vunpack.c.l.b16 %v783
  %v3198 = vunpack.c.h.b16 %v783
  %v3199 = vunpack.c.l.b16 %v784
  %v3200 = vunpack.c.h.b16 %v784
  %v3201 = vunpack.c.l.b16 %v785
  %v3202 = vunpack.c.h.b16 %v785
  %v3203 = vunpack.c.l.b16 %v786
  %v3204 = vunpack.c.h.b16 %v786
  %v3205 = vunpack.c.l.b16 %v787
  %v3206 = vunpack.c.h.b16 %v787
  %v3207 = vunpack.c.l.b16 %v788
  %v3208 = vunpack.c.h.b16 %v788
  %v3209 = vunpack.c.l.b16 %v789
  %v3210 = vunpack.c.h.b16 %v789
  %v3211 = vunpack.c.l.b16 %v790
  %v3212 = vunpack.c.h.b16 %v790
  %v3213 = vunpack.c.l.b16 %v791
  %v3214 = vunpack.c.h.b16 %v791
  %v3215 = vunpack.c.l.b16 %v792
  %v3216 = vunpack.c.h.b16 %v792
  %v3217 = vunpack.c.l.b16 %v793
  %v3218 = vunpack.c.h.b16 %v793
  %v3219 = vunpack.c.l.b16 %v794
  %v3220 = vunpack.c.h.b16 %v794
  %v3221 = vunpack.c.l.b16 %v795
  %v3222 = vunpack.c.h.b16 %v795
  %v3223 = vunpack.c.l.b16 %v796
  %v3224 = vunpack.c.h.b16 %v796
  %v3225 = vunpack.c.l.b16 %v797
  %v3226 = vunpack.c.h.b16 %v797
  %v3227 = vunpack.c.l.b16 %v798
  %v3228 = vunpack.c.h.b16 %v798
  %v3229 = vunpack.c.l.b16 %v799
  %v3230 = vunpack.c.h.b16 %v799
  %v3231 = vunpack.c.l.b16 %v800
  %v3232 = vunpack.c.h.b16 %v800
  %v3233 = vunpack.c.l.b16 %v801
  %v3234 = vunpack.c.h.b16 %v801
  %v3235 = vunpack.c.l.b16 %v802
  %v3236 = vunpack.c.h.b16 %v802
  %v3237 = vunpack.c.l.b16 %v803
  %v3238 = vunpack.c.h.b16 %v803
  %v3239 = vunpack.c.l.b16 %v804
  %v3240 = vunpack.c.h.b16 %v804
  %v3241 = vunpack.c.l.b16 %v805
  %v3242 = vunpack.c.h.b16 %v805
  %v3243 = vunpack.c.l.b16 %v806
  %v3244 = vunpack.c.h.b16 %v806
  %v3245 = vunpack.c.l.b16 %v807
  %v3246 = vunpack.c.h.b16 %v807
  %v3247 = vunpack.c.l.b16 %v808
  %v3248 = vunpack.c.h.b16 %v808
  %v3249 = vunpack.c.l.b16 %v809
  %v3250 = vunpack.c.h.b16 %v809
  %v3251 = vunpack.c.l.b16 %v810
  %v3252 = vunpack.c.h.b16 %v810
  %v3253 = vunpack.c.l.b16 %v811
  %v3254 = vunpack.c.h.b16 %v811
  %v3255 = vunpack.c.l.b16 %v812
  %v3256 = vunpack.c.h.b16 %v812
  %v3257 = vunpack.c.l.b16 %v813
  %v3258 = vunpack.c.h.b16 %v813
  %v3259 = vunpack.c.l.b16 %v814
  %v3260 = vunpack.c.h.b16 %v814
  %v3261 = vunpack.c.l.b16 %v815
  %v3262 = vunpack.c.h.b16 %v815
  %v3263 = vunpack.c.l.b16 %v816
  %v3264 = vunpack.c.h.b16 %v816
  %v3265 = vunpack.c.l.b16 %v817
  %v3266 = vunpack.c.h.b16 %v817
  %v3267 = vpack.c.b16 %v1703, %v1699
  %v3268 = vpack.c.b16 %v1704, %v1700
  %v3269 = vpack.c.b16 %v1705, %v1701
  %v3270 = vpack.c.b16 %v1706, %v1702
  %v3271 = vpack.c.b16 %v1711, %v1707
  %v3272 = vpack.c.b16 %v1712, %v1708
  %v3273 = vpack.c.b16 %v1713, %v1709
  %v3274 = vpack.c.b16 %v1714, %v1710
  %v3275 = vpack.c.b16 %v1719, %v1715
  %v3276 = vpack.c.b16 %v1720, %v1716
  %v3277 = vpack.c.b16 %v1721, %v1717
  %v3278 = vpack.c.b16 %v1722, %v1718
  %v3279 = vpack.c.b16 %v1727, %v1723
  %v3280 = vpack.c.b16 %v1728, %v1724
  %v3281 = vpack.c.b16 %v1729, %v1725
  %v3282 = vpack.c.b16 %v1730, %v1726
  %v3283 = vpack.c.b16 %v1735, %v1731
  %v3284 = vpack.c.b16 %v1736, %v1732
  %v3285 = vpack.c.b16 %v1737, %v1733
  %v3286 = vpack.c.b16 %v1738, %v1734
  %v3287 = vpack.c.b16 %v1743, %v1739
  %v3288 = vpack.c.b16 %v1744, %v1740
  %v3289 = vpack.c.b16 %v1745, %v1741
  %v3290 = vpack.c.b16 %v1746, %v1742
  %v3291 = vpack.c.b16 %v1751, %v1747
  %v3292 = vpack.c.b16 %v1752, %v1748
  %v3293 = vpack.c.b16 %v1753, %v1749
  %v3294 = vpack.c.b16 %v1754, %v1750
  %v3295 = vpack.c.b16 %v1759, %v1755
  %v3296 = vpack.c.b16 %v1760, %v1756
  %v3297 = vpack.c.b16 %v1761, %v1757
  %v3298 = vpack.c.b16 %v1762, %v1758
  %v3299 = vpack.c.b16 %v1767, %v1763
  %v3300 = vpack.c.b16 %v1768, %v1764
  %v3301 = vpack.c.b16 %v1769, %v1765
  %v3302 = vpack.c.b16 %v1770, %v1766
  %v3303 = vpack.c.b16 %v1775, %v1771
  %v3304 = vpack.c.b16 %v1776, %v1772
  %v3305 = vpack.c.b16 %v1777, %v1773
  %v3306 = vpack.c.b16 %v1778, %v1774
  %v3307 = vpack.c.b16 %v1783, %v1779
  %v3308 = vpack.c.b16 %v1784, %v1780
  %v3309 = vpack.c.b16 %v1785, %v1781
  %v3310 = vpack.c.b16 %v1786, %v1782
  %v3311 = vpack.c.b16 %v1791, %v1787
  %v3312 = vpack.c.b16 %v1792, %v1788
  %v3313 = vpack.c.b16 %v1793, %v1789
  %v3314 = vpack.c.b16 %v1794, %v1790
  %v3315 = vpack.c.b16 %v1799, %v1795
  %v3316 = vpack.c.b16 %v1800, %v1796
  %v3317 = vpack.c.b16 %v1801, %v1797
  %v3318 = vpack.c.b16 %v1802, %v1798
  %v3319 = vpack.c.b16 %v1807, %v1803
  %v3320 = vpack.c.b16 %v1808, %v1804
  %v3321 = vpack.c.b16 %v1809, %v1805
  %v3322 = vpack.c.b16 %v1810, %v1806
  %v3323 = vpack.c.b16 %v1815, %v1811
  %v3324 = vpack.c.b16 %v1816, %v1812
  %v3325 = vpack.c.b16 %v1817, %v1813
  %v3326 = vpack.c.b16 %v1818, %v1814
  %v3327 = vpack.c.b16 %v1823, %v1819
  %v3328 = vpack.c.b16 %v1824, %v1820
  %v3329 = vpack.c.b16 %v1825, %v1821
  %v3330 = vpack.c.b16 %v1826, %v1822
  %v3331 = vpack.c.b16 %v1831, %v1827
  %v3332 = vpack.c.b16 %v1832, %v1828
  %v3333 = vpack.c.b16 %v1833, %v1829
  %v3334 = vpack.c.b16 %v1834, %v1830
  %v3335 = vpack.c.b16 %v1839, %v1835
  %v3336 = vpack.c.b16 %v1840, %v1836
  %v3337 = vpack.c.b16 %v1841, %v1837
  %v3338 = vpack.c.b16 %v1842, %v1838
  %v3339 = vpack.c.b16 %v1847, %v1843
  %v3340 = vpack.c.b16 %v1848, %v1844
  %v3341 = vpack.c.b16 %v1849, %v1845
  %v3342 = vpack.c.b16 %v1850, %v1846
  %v3343 = vpack.c.b16 %v1855, %v1851
  %v3344 = vpack.c.b16 %v1856, %v1852
  %v3345 = vpack.c.b16 %v1857, %v1853
  %v3346 = vpack.c.b16 %v1858, %v1854
  %v3347 = vpack.c.b16 %v1863, %v1859
  %v3348 = vpack.c.b16 %v1864, %v1860
  %v3349 = vpack.c.b16 %v1865, %v1861
  %v3350 = vpack.c.b16 %v1866, %v1862
  %v3351 = vpack.c.b16 %v1871, %v1867
  %v3352 = vpack.c.b16 %v1872, %v1868
  %v3353 = vpack.c.b16 %v1873, %v1869
  %v3354 = vpack.c.b16 %v1874, %v1870
  %v3355 = vpack.c.b16 %v1879, %v1875
  %v3356 = vpack.c.b16 %v1880, %v1876
  %v3357 = vpack.c.b16 %v1881, %v1877
  %v3358 = vpack.c.b16 %v1882, %v1878
  %v3359 = vpack.c.b16 %v1887, %v1883
  %v3360 = vpack.c.b16 %v1888, %v1884
  %v3361 = vpack.c.b16 %v1889, %v1885
  %v3362 = vpack.c.b16 %v1890, %v1886
  %v3363 = vpack.c.b16 %v1895, %v1891
  %v3364 = vpack.c.b16 %v1896, %v1892
  %v3365 = vpack.c.b16 %v1897, %v1893
  %v3366 = vpack.c.b16 %v1898, %v1894
  %v3367 = vpack.c.b16 %v1903, %v1899
  %v3368 = vpack.c.b16 %v1904, %v1900
  %v3369 = vpack.c.b16 %v1905, %v1901
  %v3370 = vpack.c.b16 %v1906, %v1902
  %v3371 = vpack.c.b16 %v1911, %v1907
  %v3372 = vpack.c.b16 %v1912, %v1908
  %v3373 = vpack.c.b16 %v1913, %v1909
  %v3374 = vpack.c.b16 %v1914, %v1910
  %v3375 = vpack.c.b16 %v1919, %v1915
  %v3376 = vpack.c.b16 %v1920, %v1916
  %v3377 = vpack.c.b16 %v1921, %v1917
  %v3378 = vpack.c.b16 %v1922, %v1918
  %v3379 = vpack.c.b16 %v1927, %v1923
  %v3380 = vpack.c.b16 %v1928, %v1924
  %v3381 = vpack.c.b16 %v1929, %v1925
  %v3382 = vpack.c.b16 %v1930, %v1926
  %v3383 = vpack.c.b16 %v1935, %v1931
  %v3384 = vpack.c.b16 %v1936, %v1932
  %v3385 = vpack.c.b16 %v1937, %v1933
  %v3386 = vpack.c.b16 %v1938, %v1934
  %v3387 = vpack.c.b16 %v1943, %v1939
  %v3388 = vpack.c.b16 %v1944, %v1940
  %v3389 = vpack.c.b16 %v1945, %v1941
  %v3390 = vpack.c.b16 %v1946, %v1942
  %v3391 = vpack.c.b16 %v1951, %v1947
  %v3392 = vpack.c.b16 %v1952, %v1948
  %v3393 = vpack.c.b16 %v1953, %v1949
  %v3394 = vpack.c.b16 %v1954, %v1950
  %v3395 = vpack.c.b16 %v1959, %v1955
  %v3396 = vpack.c.b16 %v1960, %v1956
  %v3397 = vpack.c.b16 %v1961, %v1957
  %v3398 = vpack.c.b16 %v1962, %v1958
  %v3399 = vpack.c.b16 %v1967, %v1963
  %v3400 = vpack.c.b16 %v1968, %v1964
  %v3401 = vpack.c.b16 %v1969, %v1965
  %v3402 = vpack.c.b16 %v1970, %v1966
  %v3403 = vpack.c.b16 %v1975, %v1971
  %v3404 = vpack.c.b16 %v1976, %v1972
  %v3405 = vpack.c.b16 %v1977, %v1973
  %v3406 = vpack.c.b16 %v1978, %v1974
  %v3407 = vpack.c.b16 %v1983, %v1979
  %v3408 = vpack.c.b16 %v1984, %v1980
  %v3409 = vpack.c.b16 %v1985, %v1981
  %v3410 = vpack.c.b16 %v1986, %v1982
  %v3411 = vpack.c.b16 %v1991, %v1987
  %v3412 = vpack.c.b16 %v1992, %v1988
  %v3413 = vpack.c.b16 %v1993, %v1989
  %v3414 = vpack.c.b16 %v1994, %v1990
  %v3415 = vpack.c.b16 %v1999, %v1995
  %v3416 = vpack.c.b16 %v2000, %v1996
  %v3417 = vpack.c.b16 %v2001, %v1997
  %v3418 = vpack.c.b16 %v2002, %v1998
  %v3419 = vpack.c.b16 %v2007, %v2003
  %v3420 = vpack.c.b16 %v2008, %v2004
  %v3421 = vpack.c.b16 %v2009, %v2005
  %v3422 = vpack.c.b16 %v2010, %v2006
  %v3423 = vpack.c.b16 %v2015, %v2011
  %v3424 = vpack.c.b16 %v2016, %v2012
  %v3425 = vpack.c.b16 %v2017, %v2013
  %v3426 = vpack.c.b16 %v2018, %v2014
  %v3427 = vpack.c.b16 %v2023, %v2019
  %v3428 = vpack.c.b16 %v2024, %v2020
  %v3429 = vpack.c.b16 %v2025, %v2021
  %v3430 = vpack.c.b16 %v2026, %v2022
  %v3431 = vpack.c.b16 %v2031, %v2027
  %v3432 = vpack.c.b16 %v2032, %v2028
  %v3433 = vpack.c.b16 %v2033, %v2029
  %v3434 = vpack.c.b16 %v2034, %v2030
  %v3435 = vpack.c.b16 %v2039, %v2035
  %v3436 = vpack.c.b16 %v2040, %v2036
  %v3437 = vpack.c.b16 %v2041, %v2037
  %v3438 = vpack.c.b16 %v2042, %v2038
  %v3439 = vpack.c.b16 %v2047, %v2043
  %v3440 = vpack.c.b16 %v2048, %v2044
  %v3441 = vpack.c.b16 %v2049, %v2045
  %v3442 = vpack.c.b16 %v2050, %v2046
  %v3443 = vpack.c.b16 %v2055, %v2051
  %v3444 = vpack.c.b16 %v2056, %v2052
  %v3445 = vpack.c.b16 %v2057, %v2053
  %v3446 = vpack.c.b16 %v2058, %v2054
  %v3447 = vpack.c.b16 %v2063, %v2059
  %v3448 = vpack.c.b16 %v2064, %v2060
  %v3449 = vpack.c.b16 %v2065, %v2061
  %v3450 = vpack.c.b16 %v2066, %v2062
  %v3451 = vpack.c.b16 %v2071, %v2067
  %v3452 = vpack.c.b16 %v2072, %v2068
  %v3453 = vpack.c.b16 %v2073, %v2069
  %v3454 = vpack.c.b16 %v2074, %v2070
  %v3455 = vpack.c.b16 %v2079, %v2075
  %v3456 = vpack.c.b16 %v2080, %v2076
  %v3457 = vpack.c.b16 %v2081, %v2077
  %v3458 = vpack.c.b16 %v2082, %v2078
  %v3459 = vpack.c.b16 %v2087, %v2083
  %v3460 = vpack.c.b16 %v2088, %v2084
  %v3461 = vpack.c.b16 %v2089, %v2085
  %v3462 = vpack.c.b16 %v2090, %v2086
  %v3463 = vpack.c.b16 %v2095, %v2091
  %v3464 = vpack.c.b16 %v2096, %v2092
  %v3465 = vpack.c.b16 %v2097, %v2093
  %v3466 = vpack.c.b16 %v2098, %v2094
  %v3467 = vpack.c.b16 %v2103, %v2099
  %v3468 = vpack.c.b16 %v2104, %v2100
  %v3469 = vpack.c.b16 %v2105, %v2101
  %v3470 = vpack.c.b16 %v2106, %v2102
  %v3471 = vpack.c.b16 %v2111, %v2107
  %v3472 = vpack.c.b16 %v2112, %v2108
  %v3473 = vpack.c.b16 %v2113, %v2109
  %v3474 = vpack.c.b16 %v2114, %v2110
  %v3475 = vpack.c.b16 %v2119, %v2115
  %v3476 = vpack.c.b16 %v2120, %v2116
  %v3477 = vpack.c.b16 %v2121, %v2117
  %v3478 = vpack.c.b16 %v2122, %v2118
  %v3479 = vpack.c.b16 %v2127, %v2123
  %v3480 = vpack.c.b16 %v2128, %v2124
  %v3481 = vpack.c.b16 %v2129, %v2125
  %v3482 = vpack.c.b16 %v2130, %v2126
  %v3483 = vpack.c.b16 %v2135, %v2131
  %v3484 = vpack.c.b16 %v2136, %v2132
  %v3485 = vpack.c.b16 %v2137, %v2133
  %v3486 = vpack.c.b16 %v2138, %v2134
  %v3487 = vpack.c.b16 %v2143, %v2139
  %v3488 = vpack.c.b16 %v2144, %v2140
  %v3489 = vpack.c.b16 %v2145, %v2141
  %v3490 = vpack.c.b16 %v2146, %v2142
  %v3491 = vpack.c.b16 %v2151, %v2147
  %v3492 = vpack.c.b16 %v2152, %v2148
  %v3493 = vpack.c.b16 %v2153, %v2149
  %v3494 = vpack.c.b16 %v2154, %v2150
  %v3495 = vpack.c.b16 %v2159, %v2155
  %v3496 = vpack.c.b16 %v2160, %v2156
  %v3497 = vpack.c.b16 %v2161, %v2157
  %v3498 = vpack.c.b16 %v2162, %v2158
  %v3499 = vpack.c.b16 %v2167, %v2163
  %v3500 = vpack.c.b16 %v2168, %v2164
  %v3501 = vpack.c.b16 %v2169, %v2165
  %v3502 = vpack.c.b16 %v2170, %v2166
  %v3503 = vpack.c.b16 %v2175, %v2171
  %v3504 = vpack.c.b16 %v2176, %v2172
  %v3505 = vpack.c.b16 %v2177, %v2173
  %v3506 = vpack.c.b16 %v2178, %v2174
  %v3507 = vpack.c.b16 %v2183, %v2179
  %v3508 = vpack.c.b16 %v2184, %v2180
  %v3509 = vpack.c.b16 %v2185, %v2181
  %v3510 = vpack.c.b16 %v2186, %v2182
  %v3511 = vpack.c.b16 %v2191, %v2187
  %v3512 = vpack.c.b16 %v2192, %v2188
  %v3513 = vpack.c.b16 %v2193, %v2189
  %v3514 = vpack.c.b16 %v2194, %v2190
  %v3515 = vpack.c.b16 %v2199, %v2195
  %v3516 = vpack.c.b16 %v2200, %v2196
  %v3517 = vpack.c.b16 %v2201, %v2197
  %v3518 = vpack.c.b16 %v2202, %v2198
  %v3519 = vpack.c.b16 %v2207, %v2203
  %v3520 = vpack.c.b16 %v2208, %v2204
  %v3521 = vpack.c.b16 %v2209, %v2205
  %v3522 = vpack.c.b16 %v2210, %v2206
  %v3523 = vpack.c.b16 %v2215, %v2211
  %v3524 = vpack.c.b16 %v2216, %v2212
  %v3525 = vpack.c.b16 %v2217, %v2213
  %v3526 = vpack.c.b16 %v2218, %v2214
  %v3527 = vpack.c.b16 %v2223, %v2219
  %v3528 = vpack.c.b16 %v2224, %v2220
  %v3529 = vpack.c.b16 %v2225, %v2221
  %v3530 = vpack.c.b16 %v2226, %v2222
  %v3531 = vpack.c.b16 %v2231, %v2227
  %v3532 = vpack.c.b16 %v2232, %v2228
  %v3533 = vpack.c.b16 %v2233, %v2229
  %v3534 = vpack.c.b16 %v2234, %v2230
  %v3535 = vpack.c.b16 %v2239, %v2235
  %v3536 = vpack.c.b16 %v2240, %v2236
  %v3537 = vpack.c.b16 %v2241, %v2237
  %v3538 = vpack.c.b16 %v2242, %v2238
  %v3539 = vpack.c.b16 %v2247, %v2243
  %v3540 = vpack.c.b16 %v2248, %v2244
  %v3541 = vpack.c.b16 %v2249, %v2245
  %v3542 = vpack.c.b16 %v2250, %v2246
  %v3543 = vpack.c.b16 %v2255, %v2251
  %v3544 = vpack.c.b16 %v2256, %v2252
  %v3545 = vpack.c.b16 %v2257, %v2253
  %v3546 = vpack.c.b16 %v2258, %v2254
  %v3547 = vpack.c.b16 %v2263, %v2259
  %v3548 = vpack.c.b16 %v2264, %v2260
  %v3549 = vpack.c.b16 %v2265, %v2261
  %v3550 = vpack.c.b16 %v2266, %v2262
  %v3551 = vpack.c.b16 %v2271, %v2267
  %v3552 = vpack.c.b16 %v2272, %v2268
  %v3553 = vpack.c.b16 %v2273, %v2269
  %v3554 = vpack.c.b16 %v2274, %v2270
  %v3555 = vpack.c.b16 %v2279, %v2275
  %v3556 = vpack.c.b16 %v2280, %v2276
  %v3557 = vpack.c.b16 %v2281, %v2277
  %v3558 = vpack.c.b16 %v2282, %v2278
  %v3559 = vpack.c.b16 %v2287, %v2283
  %v3560 = vpack.c.b16 %v2288, %v2284
  %v3561 = vpack.c.b16 %v2289, %v2285
  %v3562 = vpack.c.b16 %v2290, %v2286
  %v3563 = vpack.c.b16 %v2295, %v2291
  %v3564 = vpack.c.b16 %v2296, %v2292
  %v3565 = vpack.c.b16 %v2297, %v2293
  %v3566 = vpack.c.b16 %v2298, %v2294
  %v3567 = vpack.c.b16 %v2303, %v2299
  %v3568 = vpack.c.b16 %v2304, %v2300
  %v3569 = vpack.c.b16 %v2305, %v2301
  %v3570 = vpack.c.b16 %v2306, %v2302
  %v3571 = vpack.c.b16 %v2311, %v2307
  %v3572 = vpack.c.b16 %v2312, %v2308
  %v3573 = vpack.c.b16 %v2313, %v2309
  %v3574 = vpack.c.b16 %v2314, %v2310
  %v3575 = vpack.c.b16 %v2319, %v2315
  %v3576 = vpack.c.b16 %v2320, %v2316
  %v3577 = vpack.c.b16 %v2321, %v2317
  %v3578 = vpack.c.b16 %v2322, %v2318
  %v3579 = vpack.c.b16 %v2327, %v2323
  %v3580 = vpack.c.b16 %v2328, %v2324
  %v3581 = vpack.c.b16 %v2329, %v2325
  %v3582 = vpack.c.b16 %v2330, %v2326
  %v3583 = vpack.c.b16 %v2335, %v2331
  %v3584 = vpack.c.b16 %v2336, %v2332
  %v3585 = vpack.c.b16 %v2337, %v2333
  %v3586 = vpack.c.b16 %v2338, %v2334
  %v3587 = vpack.c.b16 %v2343, %v2339
  %v3588 = vpack.c.b16 %v2344, %v2340
  %v3589 = vpack.c.b16 %v2345, %v2341
  %v3590 = vpack.c.b16 %v2346, %v2342
  %v3591 = vpack.c.b16 %v2351, %v2347
  %v3592 = vpack.c.b16 %v2352, %v2348
  %v3593 = vpack.c.b16 %v2353, %v2349
  %v3594 = vpack.c.b16 %v2354, %v2350
  %v3595 = vpack.c.b16 %v2359, %v2355
  %v3596 = vpack.c.b16 %v2360, %v2356
  %v3597 = vpack.c.b16 %v2361, %v2357
  %v3598 = vpack.c.b16 %v2362, %v2358
  %v3599 = vpack.c.b16 %v2367, %v2363
  %v3600 = vpack.c.b16 %v2368, %v2364
  %v3601 = vpack.c.b16 %v2369, %v2365
  %v3602 = vpack.c.b16 %v2370, %v2366
  %v3603 = vpack.c.b16 %v2375, %v2371
  %v3604 = vpack.c.b16 %v2376, %v2372
  %v3605 = vpack.c.b16 %v2377, %v2373
  %v3606 = vpack.c.b16 %v2378, %v2374
  %v3607 = vpack.c.b16 %v2383, %v2379
  %v3608 = vpack.c.b16 %v2384, %v2380
  %v3609 = vpack.c.b16 %v2385, %v2381
  %v3610 = vpack.c.b16 %v2386, %v2382
  %v3611 = vpack.c.b16 %v2391, %v2387
  %v3612 = vpack.c.b16 %v2392, %v2388
  %v3613 = vpack.c.b16 %v2393, %v2389
  %v3614 = vpack.c.b16 %v2394, %v2390
  %v3615 = vpack.c.b16 %v2399, %v2395
  %v3616 = vpack.c.b16 %v2400, %v2396
  %v3617 = vpack.c.b16 %v2401, %v2397
  %v3618 = vpack.c.b16 %v2402, %v2398
  %v3619 = vpack.c.b16 %v2407, %v2403
  %v3620 = vpack.c.b16 %v2408, %v2404
  %v3621 = vpack.c.b16 %v2409, %v2405
  %v3622 = vpack.c.b16 %v2410, %v2406
  %v3623 = vpack.c.b16 %v2415, %v2411
  %v3624 = vpack.c.b16 %v2416, %v2412
  %v3625 = vpack.c.b16 %v2417, %v2413
  %v3626 = vpack.c.b16 %v2418, %v2414
  %v3627 = vpack.c.b16 %v2423, %v2419
  %v3628 = vpack.c.b16 %v2424, %v2420
  %v3629 = vpack.c.b16 %v2425, %v2421
  %v3630 = vpack.c.b16 %v2426, %v2422
  %v3631 = vpack.c.b16 %v2431, %v2427
  %v3632 = vpack.c.b16 %v2432, %v2428
  %v3633 = vpack.c.b16 %v2433, %v2429
  %v3634 = vpack.c.b16 %v2434, %v2430
  %v3635 = vpack.c.b16 %v2439, %v2435
  %v3636 = vpack.c.b16 %v2440, %v2436
  %v3637 = vpack.c.b16 %v2441, %v2437
  %v3638 = vpack.c.b16 %v2442, %v2438
  %v3639 = vpack.c.b16 %v2447, %v2443
  %v3640 = vpack.c.b16 %v2448, %v2444
  %v3641 = vpack.c.b16 %v2449, %v2445
  %v3642 = vpack.c.b16 %v2450, %v2446
  %v3643 = vpack.c.b16 %v2455, %v2451
  %v3644 = vpack.c.b16 %v2456, %v2452
  %v3645 = vpack.c.b16 %v2457, %v2453
  %v3646 = vpack.c.b16 %v2458, %v2454
  %v3647 = vpack.c.b16 %v2463, %v2459
  %v3648 = vpack.c.b16 %v2464, %v2460
  %v3649 = vpack.c.b16 %v2465, %v2461
  %v3650 = vpack.c.b16 %v2466, %v2462
  %v3651 = vpack.c.b16 %v2471, %v2467
  %v3652 = vpack.c.b16 %v2472, %v2468
  %v3653 = vpack.c.b16 %v2473, %v2469
  %v3654 = vpack.c.b16 %v2474, %v2470
  %v3655 = vpack.c.b16 %v2479, %v2475
  %v3656 = vpack.c.b16 %v2480, %v2476
  %v3657 = vpack.c.b16 %v2481, %v2477
  %v3658 = vpack.c.b16 %v2482, %v2478
  %v3659 = vpack.c.b16 %v2487, %v2483
  %v3660 = vpack.c.b16 %v2488, %v2484
  %v3661 = vpack.c.b16 %v2489, %v2485
  %v3662 = vpack.c.b16 %v2490, %v2486
  %v3663 = vpack.c.b16 %v2495, %v2491
  %v3664 = vpack.c.b16 %v2496, %v2492
  %v3665 = vpack.c.b16 %v2497, %v2493
  %v3666 = vpack.c.b16 %v2498, %v2494
  %v3667 = vpack.c.b16 %v2503, %v2499
  %v3668 = vpack.c.b16 %v2504, %v2500
  %v3669 = vpack.c.b16 %v2505, %v2501
  %v3670 = vpack.c.b16 %v2506, %v2502
  %v3671 = vpack.c.b16 %v2511, %v2507
  %v3672 = vpack.c.b16 %v2512, %v2508
  %v3673 = vpack.c.b16 %v2513, %v2509
  %v3674 = vpack.c.b16 %v2514, %v2510
  %v3675 = vpack.c.b16 %v2519, %v2515
  %v3676 = vpack.c.b16 %v2520, %v2516
  %v3677 = vpack.c.b16 %v2521, %v2517
  %v3678 = vpack.c.b16 %v2522, %v2518
  %v3679 = vpack.c.b16 %v2527, %v2523
  %v3680 = vpack.c.b16 %v2528, %v2524
  %v3681 = vpack.c.b16 %v2529, %v2525
  %v3682 = vpack.c.b16 %v2530, %v2526
  %v3683 = vpack.c.b16 %v2535, %v2531
  %v3684 = vpack.c.b16 %v2536, %v2532
  %v3685 = vpack.c.b16 %v2537, %v2533
  %v3686 = vpack.c.b16 %v2538, %v2534
  %v3687 = vpack.c.b16 %v2543, %v2539
  %v3688 = vpack.c.b16 %v2544, %v2540
  %v3689 = vpack.c.b16 %v2545, %v2541
  %v3690 = vpack.c.b16 %v2546, %v2542
  %v3691 = vpack.c.b16 %v2551, %v2547
  %v3692 = vpack.c.b16 %v2552, %v2548
  %v3693 = vpack.c.b16 %v2553, %v2549
  %v3694 = vpack.c.b16 %v2554, %v2550
  %v3695 = vpack.c.b16 %v2559, %v2555
  %v3696 = vpack.c.b16 %v2560, %v2556
  %v3697 = vpack.c.b16 %v2561, %v2557
  %v3698 = vpack.c.b16 %v2562, %v2558
  %v3699 = vpack.c.b16 %v2567, %v2563
  %v3700 = vpack.c.b16 %v2568, %v2564
  %v3701 = vpack.c.b16 %v2569, %v2565
  %v3702 = vpack.c.b16 %v2570, %v2566
  %v3703 = vpack.c.b16 %v2575, %v2571
  %v3704 = vpack.c.b16 %v2576, %v2572
  %v3705 = vpack.c.b16 %v2577, %v2573
  %v3706 = vpack.c.b16 %v2578, %v2574
  %v3707 = vpack.c.b16 %v2583, %v2579
  %v3708 = vpack.c.b16 %v2584, %v2580
  %v3709 = vpack.c.b16 %v2585, %v2581
  %v3710 = vpack.c.b16 %v2586, %v2582
  %v3711 = vpack.c.b16 %v2591, %v2587
  %v3712 = vpack.c.b16 %v2592, %v2588
  %v3713 = vpack.c.b16 %v2593, %v2589
  %v3714 = vpack.c.b16 %v2594, %v2590
  %v3715 = vpack.c.b16 %v2599, %v2595
  %v3716 = vpack.c.b16 %v2600, %v2596
  %v3717 = vpack.c.b16 %v2601, %v2597
  %v3718 = vpack.c.b16 %v2602, %v2598
  %v3719 = vpack.c.b16 %v2607, %v2603
  %v3720 = vpack.c.b16 %v2608, %v2604
  %v3721 = vpack.c.b16 %v2609, %v2605
  %v3722 = vpack.c.b16 %v2610, %v2606
  %v3723 = vpack.c.b16 %v2615, %v2611
  %v3724 = vpack.c.b16 %v2616, %v2612
  %v3725 = vpack.c.b16 %v2617, %v2613
  %v3726 = vpack.c.b16 %v2618, %v2614
  %v3727 = vpack.c.b16 %v2623, %v2619
  %v3728 = vpack.c.b16 %v2624, %v2620
  %v3729 = vpack.c.b16 %v2625, %v2621
  %v3730 = vpack.c.b16 %v2626, %v2622
  %v3731 = vpack.c.b16 %v2631, %v2627
  %v3732 = vpack.c.b16 %v2632, %v2628
  %v3733 = vpack.c.b16 %v2633, %v2629
  %v3734 = vpack.c.b16 %v2634, %v2630
  %v3735 = vpack.c.b16 %v2639, %v2635
  %v3736 = vpack.c.b16 %v2640, %v2636
  %v3737 = vpack.c.b16 %v2641, %v2637
  %v3738 = vpack.c.b16 %v2642, %v2638
  %v3739 = vpack.c.b16 %v2647, %v2643
  %v3740 = vpack.c.b16 %v2648, %v2644
  %v3741 = vpack.c.b16 %v2649, %v2645
  %v3742 = vpack.c.b16 %v2650, %v2646
  %v3743 = vpack.c.b16 %v2655, %v2651
  %v3744 = vpack.c.b16 %v2656, %v2652
  %v3745 = vpack.c.b16 %v2657, %v2653
  %v3746 = vpack.c.b16 %v2658, %v2654
  %v3747 = vpack.c.b16 %v2663, %v2659
  %v3748 = vpack.c.b16 %v2664, %v2660
  %v3749 = vpack.c.b16 %v2665, %v2661
  %v3750 = vpack.c.b16 %v2666, %v2662
  %v3751 = vpack.c.b16 %v2671, %v2667
  %v3752 = vpack.c.b16 %v2672, %v2668
  %v3753 = vpack.c.b16 %v2673, %v2669
  %v3754 = vpack.c.b16 %v2674, %v2670
  %v3755 = vpack.c.b16 %v2679, %v2675
  %v3756 = vpack.c.b16 %v2680, %v2676
  %v3757 = vpack.c.b16 %v2681, %v2677
  %v3758 = vpack.c.b16 %v2682, %v2678
  %v3759 = vpack.c.b16 %v2687, %v2683
  %v3760 = vpack.c.b16 %v2688, %v2684
  %v3761 = vpack.c.b16 %v2689, %v2685
  %v3762 = vpack.c.b16 %v2690, %v2686
  %v3763 = vpack.c.b16 %v2695, %v2691
  %v3764 = vpack.c.b16 %v2696, %v2692
  %v3765 = vpack.c.b16 %v2697, %v2693
  %v3766 = vpack.c.b16 %v2698, %v2694
  %v3767 = vpack.c.b16 %v2703, %v2699
  %v3768 = vpack.c.b16 %v2704, %v2700
  %v3769 = vpack.c.b16 %v2705, %v2701
  %v3770 = vpack.c.b16 %v2706, %v2702
  %v3771 = vpack.c.b16 %v2711, %v2707
  %v3772 = vpack.c.b16 %v2712, %v2708
  %v3773 = vpack.c.b16 %v2713, %v2709
  %v3774 = vpack.c.b16 %v2714, %v2710
  %v3775 = vpack.c.b16 %v2719, %v2715
  %v3776 = vpack.c.b16 %v2720, %v2716
  %v3777 = vpack.c.b16 %v2721, %v2717
  %v3778 = vpack.c.b16 %v2722, %v2718
  %v3779 = vpack.c.b16 %v2727, %v2723
  %v3780 = vpack.c.b16 %v2728, %v2724
  %v3781 = vpack.c.b16 %v2729, %v2725
  %v3782 = vpack.c.b16 %v2730, %v2726
  %v3783 = vpack.c.b16 %v2735, %v2731
  %v3784 = vpack.c.b16 %v2736, %v2732
  %v3785 = vpack.c.b16 %v2737, %v2733
  %v3786 = vpack.c.b16 %v2738, %v2734
  %v3787 = vpack.c.b16 %v2743, %v2739
  %v3788 = vpack.c.b16 %v2744, %v2740
  %v3789 = vpack.c.b16 %v2745, %v2741
  %v3790 = vpack.c.b16 %v2746, %v2742
  %v3791 = vpack.c.b16 %v2751, %v2747
  %v3792 = vpack.c.b16 %v2752, %v2748
  %v3793 = vpack.c.b16 %v2753, %v2749
  %v3794 = vpack.c.b16 %v2754, %v2750
  %v3795 = vpack.c.b16 %v2759, %v2755
  %v3796 = vpack.c.b16 %v2760, %v2756
  %v3797 = vpack.c.b16 %v2761, %v2757
  %v3798 = vpack.c.b16 %v2762, %v2758
  %v3799 = vpack.c.b16 %v2767, %v2763
  %v3800 = vpack.c.b16 %v2768, %v2764
  %v3801 = vpack.c.b16 %v2769, %v2765
  %v3802 = vpack.c.b16 %v2770, %v2766
  %v3803 = vpack.c.b16 %v2775, %v2771
  %v3804 = vpack.c.b16 %v2776, %v2772
  %v3805 = vpack.c.b16 %v2777, %v2773
  %v3806 = vpack.c.b16 %v2778, %v2774
  %v3807 = vpack.c.b16 %v2783, %v2779
  %v3808 = vpack.c.b16 %v2784, %v2780
  %v3809 = vpack.c.b16 %v2785, %v2781
  %v3810 = vpack.c.b16 %v2786, %v2782
  %v3811 = vpack.c.b16 %v2791, %v2787
  %v3812 = vpack.c.b16 %v2792, %v2788
  %v3813 = vpack.c.b16 %v2793, %v2789
  %v3814 = vpack.c.b16 %v2794, %v2790
  %v3815 = vpack.c.b16 %v2799, %v2795
  %v3816 = vpack.c.b16 %v2800, %v2796
  %v3817 = vpack.c.b16 %v2801, %v2797
  %v3818 = vpack.c.b16 %v2802, %v2798
  %v3819 = vpack.c.b16 %v2807, %v2803
  %v3820 = vpack.c.b16 %v2808, %v2804
  %v3821 = vpack.c.b16 %v2809, %v2805
  %v3822 = vpack.c.b16 %v2810, %v2806
  %v3823 = vpack.c.b16 %v2815, %v2811
  %v3824 = vpack.c.b16 %v2816, %v2812
  %v3825 = vpack.c.b16 %v2817, %v2813
  %v3826 = vpack.c.b16 %v2818, %v2814
  %v3827 = vpack.c.b16 %v2823, %v2819
  %v3828 = vpack.c.b16 %v2824, %v2820
  %v3829 = vpack.c.b16 %v2825, %v2821
  %v3830 = vpack.c.b16 %v2826, %v2822
  %v3831 = vpack.c.b16 %v2831, %v2827
  %v3832 = vpack.c.b16 %v2832, %v2828
  %v3833 = vpack.c.b16 %v2833, %v2829
  %v3834 = vpack.c.b16 %v2834, %v2830
  %v3835 = vpack.c.b16 %v2839, %v2835
  %v3836 = vpack.c.b16 %v2840, %v2836
  %v3837 = vpack.c.b16 %v2841, %v2837
  %v3838 = vpack.c.b16 %v2842, %v2838
  %v3839 = vpack.c.b16 %v2847, %v2843
  %v3840 = vpack.c.b16 %v2848, %v2844
  %v3841 = vpack.c.b16 %v2849, %v2845
  %v3842 = vpack.c.b16 %v2850, %v2846
  %v3843 = vpack.c.b16 %v2855, %v2851
  %v3844 = vpack.c.b16 %v2856, %v2852
  %v3845 = vpack.c.b16 %v2857, %v2853
  %v3846 = vpack.c.b16 %v2858, %v2854
  %v3847 = vpack.c.b16 %v2863, %v2859
  %v3848 = vpack.c.b16 %v2864, %v2860
  %v3849 = vpack.c.b16 %v2865, %v2861
  %v3850 = vpack.c.b16 %v2866, %v2862
  %v3851 = vpack.c.b16 %v2871, %v2867
  %v3852 = vpack.c.b16 %v2872, %v2868
  %v3853 = vpack.c.b16 %v2873, %v2869
  %v3854 = vpack.c.b16 %v2874, %v2870
  %v3855 = vpack.c.b16 %v2879, %v2875
  %v3856 = vpack.c.b16 %v2880, %v2876
  %v3857 = vpack.c.b16 %v2881, %v2877
  %v3858 = vpack.c.b16 %v2882, %v2878
  %v3859 = vpack.c.b16 %v2887, %v2883
  %v3860 = vpack.c.b16 %v2888, %v2884
  %v3861 = vpack.c.b16 %v2889, %v2885
  %v3862 = vpack.c.b16 %v2890, %v2886
  %v3863 = vpack.c.b16 %v2895, %v2891
  %v3864 = vpack.c.b16 %v2896, %v2892
  %v3865 = vpack.c.b16 %v2897, %v2893
  %v3866 = vpack.c.b16 %v2898, %v2894
  %v3867 = vpack.c.b16 %v2903, %v2899
  %v3868 = vpack.c.b16 %v2904, %v2900
  %v3869 = vpack.c.b16 %v2905, %v2901
  %v3870 = vpack.c.b16 %v2906, %v2902
  %v3871 = vpack.c.b16 %v2911, %v2907
  %v3872 = vpack.c.b16 %v2912, %v2908
  %v3873 = vpack.c.b16 %v2913, %v2909
  %v3874 = vpack.c.b16 %v2914, %v2910
  %v3875 = vpack.c.b16 %v2919, %v2915
  %v3876 = vpack.c.b16 %v2920, %v2916
  %v3877 = vpack.c.b16 %v2921, %v2917
  %v3878 = vpack.c.b16 %v2922, %v2918
  %v3879 = vpack.c.b16 %v2927, %v2923
  %v3880 = vpack.c.b16 %v2928, %v2924
  %v3881 = vpack.c.b16 %v2929, %v2925
  %v3882 = vpack.c.b16 %v2930, %v2926
  %v3883 = vpack.c.b16 %v2935, %v2931
  %v3884 = vpack.c.b16 %v2936, %v2932
  %v3885 = vpack.c.b16 %v2937, %v2933
  %v3886 = vpack.c.b16 %v2938, %v2934
  %v3887 = vpack.c.b16 %v2943, %v2939
  %v3888 = vpack.c.b16 %v2944, %v2940
  %v3889 = vpack.c.b16 %v2945, %v2941
  %v3890 = vpack.c.b16 %v2946, %v2942
  %v3891 = vpack.c.b16 %v2951, %v2947
  %v3892 = vpack.c.b16 %v2952, %v2948
  %v3893 = vpack.c.b16 %v2953, %v2949
  %v3894 = vpack.c.b16 %v2954, %v2950
  %v3895 = vpack.c.b16 %v2959, %v2955
  %v3896 = vpack.c.b16 %v2960, %v2956
  %v3897 = vpack.c.b16 %v2961, %v2957
  %v3898 = vpack.c.b16 %v2962, %v2958
  %v3899 = vpack.c.b16 %v2967, %v2963
  %v3900 = vpack.c.b16 %v2968, %v2964
  %v3901 = vpack.c.b16 %v2969, %v2965
  %v3902 = vpack.c.b16 %v2970, %v2966
  %v3903 = vpack.c.b16 %v2975, %v2971
  %v3904 = vpack.c.b16 %v2976, %v2972
  %v3905 = vpack.c.b16 %v2977, %v2973
  %v3906 = vpack.c.b16 %v2978, %v2974
  %v3907 = vpack.c.b16 %v2983, %v2979
  %v3908 = vpack.c.b16 %v2984, %v2980
  %v3909 = vpack.c.b16 %v2985, %v2981
  %v3910 = vpack.c.b16 %v2986, %v2982
  %v3911 = vpack.c.b16 %v2991, %v2987
  %v3912 = vpack.c.b16 %v2992, %v2988
  %v3913 = vpack.c.b16 %v2993, %v2989
  %v3914 = vpack.c.b16 %v2994, %v2990
  %v3915 = vpack.c.b16 %v2999, %v2995
  %v3916 = vpack.c.b16 %v3000, %v2996
  %v3917 = vpack.c.b16 %v3001, %v2997
  %v3918 = vpack.c.b16 %v3002, %v2998
  %v3919 = vpack.c.b16 %v3007, %v3003
  %v3920 = vpack.c.b16 %v3008, %v3004
  %v3921 = vpack.c.b16 %v3009, %v3005
  %v3922 = vpack.c.b16 %v3010, %v3006
  %v3923 = vpack.c.b16 %v3015, %v3011
  %v3924 = vpack.c.b16 %v3016, %v3012
  %v3925 = vpack.c.b16 %v3017, %v3013
  %v3926 = vpack.c.b16 %v3018, %v3014
  %v3927 = vpack.c.b16 %v3023, %v3019
  %v3928 = vpack.c.b16 %v3024, %v3020
  %v3929 = vpack.c.b16 %v3025, %v3021
  %v3930 = vpack.c.b16 %v3026, %v3022
  %v3931 = vpack.c.b16 %v3031, %v3027
  %v3932 = vpack.c.b16 %v3032, %v3028
  %v3933 = vpack.c.b16 %v3033, %v3029
  %v3934 = vpack.c.b16 %v3034, %v3030
  %v3935 = vpack.c.b16 %v3039, %v3035
  %v3936 = vpack.c.b16 %v3040, %v3036
  %v3937 = vpack.c.b16 %v3041, %v3037
  %v3938 = vpack.c.b16 %v3042, %v3038
  %v3939 = vpack.c.b16 %v3047, %v3043
  %v3940 = vpack.c.b16 %v3048, %v3044
  %v3941 = vpack.c.b16 %v3049, %v3045
  %v3942 = vpack.c.b16 %v3050, %v3046
  %v3943 = vpack.c.b16 %v3055, %v3051
  %v3944 = vpack.c.b16 %v3056, %v3052
  %v3945 = vpack.c.b16 %v3057, %v3053
  %v3946 = vpack.c.b16 %v3058, %v3054
  %v3947 = vpack.c.b16 %v3063, %v3059
  %v3948 = vpack.c.b16 %v3064, %v3060
  %v3949 = vpack.c.b16 %v3065, %v3061
  %v3950 = vpack.c.b16 %v3066, %v3062
  %v3951 = vpack.c.b16 %v3071, %v3067
  %v3952 = vpack.c.b16 %v3072, %v3068
  %v3953 = vpack.c.b16 %v3073, %v3069
  %v3954 = vpack.c.b16 %v3074, %v3070
  %v3955 = vpack.c.b16 %v3079, %v3075
  %v3956 = vpack.c.b16 %v3080, %v3076
  %v3957 = vpack.c.b16 %v3081, %v3077
  %v3958 = vpack.c.b16 %v3082, %v3078
  %v3959 = vpack.c.b16 %v3087, %v3083
  %v3960 = vpack.c.b16 %v3088, %v3084
  %v3961 = vpack.c.b16 %v3089, %v3085
  %v3962 = vpack.c.b16 %v3090, %v3086
  %v3963 = vpack.c.b16 %v3095, %v3091
  %v3964 = vpack.c.b16 %v3096, %v3092
  %v3965 = vpack.c.b16 %v3097, %v3093
  %v3966 = vpack.c.b16 %v3098, %v3094
  %v3967 = vpack.c.b16 %v3103, %v3099
  %v3968 = vpack.c.b16 %v3104, %v3100
  %v3969 = vpack.c.b16 %v3105, %v3101
  %v3970 = vpack.c.b16 %v3106, %v3102
  %v3971 = vpack.c.b16 %v3111, %v3107
  %v3972 = vpack.c.b16 %v3112, %v3108
  %v3973 = vpack.c.b16 %v3113, %v3109
  %v3974 = vpack.c.b16 %v3114, %v3110
  %v3975 = vpack.c.b16 %v3119, %v3115
  %v3976 = vpack.c.b16 %v3120, %v3116
  %v3977 = vpack.c.b16 %v3121, %v3117
  %v3978 = vpack.c.b16 %v3122, %v3118
  %v3979 = vpack.c.b16 %v3127, %v3123
  %v3980 = vpack.c.b16 %v3128, %v3124
  %v3981 = vpack.c.b16 %v3129, %v3125
  %v3982 = vpack.c.b16 %v3130, %v3126
  %v3983 = vpack.c.b16 %v3135, %v3131
  %v3984 = vpack.c.b16 %v3136, %v3132
  %v3985 = vpack.c.b16 %v3137, %v3133
  %v3986 = vpack.c.b16 %v3138, %v3134
  %v3987 = vpack.c.b16 %v3143, %v3139
  %v3988 = vpack.c.b16 %v3144, %v3140
  %v3989 = vpack.c.b16 %v3145, %v3141
  %v3990 = vpack.c.b16 %v3146, %v3142
  %v3991 = vpack.c.b16 %v3151, %v3147
  %v3992 = vpack.c.b16 %v3152, %v3148
  %v3993 = vpack.c.b16 %v3153, %v3149
  %v3994 = vpack.c.b16 %v3154, %v3150
  %v3995 = vpack.c.b16 %v3159, %v3155
  %v3996 = vpack.c.b16 %v3160, %v3156
  %v3997 = vpack.c.b16 %v3161, %v3157
  %v3998 = vpack.c.b16 %v3162, %v3158
  %v3999 = vpack.c.b16 %v3167, %v3163
  %v4000 = vpack.c.b16 %v3168, %v3164
  %v4001 = vpack.c.b16 %v3169, %v3165
  %v4002 = vpack.c.b16 %v3170, %v3166
  %v4003 = vpack.c.b16 %v3175, %v3171
  %v4004 = vpack.c.b16 %v3176, %v3172
  %v4005 = vpack.c.b16 %v3177, %v3173
  %v4006 = vpack.c.b16 %v3178, %v3174
  %v4007 = vpack.c.b16 %v3183, %v3179
  %v4008 = vpack.c.b16 %v3184, %v3180
  %v4009 = vpack.c.b16 %v3185, %v3181
  %v4010 = vpack.c.b16 %v3186, %v3182
  %v4011 = vpack.c.b16 %v3191, %v3187
  %v4012 = vpack.c.b16 %v3192, %v3188
  %v4013 = vpack.c.b16 %v3193, %v3189
  %v4014 = vpack.c.b16 %v3194, %v3190
  %v4015 = vpack.c.b16 %v3199, %v3195
  %v4016 = vpack.c.b16 %v3200, %v3196
  %v4017 = vpack.c.b16 %v3201, %v3197
  %v4018 = vpack.c.b16 %v3202, %v3198
  %v4019 = vpack.c.b16 %v3207, %v3203
  %v4020 = vpack.c.b16 %v3208, %v3204
  %v4021 = vpack.c.b16 %v3209, %v3205
  %v4022 = vpack.c.b16 %v3210, %v3206
  %v4023 = vpack.c.b16 %v3215, %v3211
  %v4024 = vpack.c.b16 %v3216, %v3212
  %v4025 = vpack.c.b16 %v3217, %v3213
  %v4026 = vpack.c.b16 %v3218, %v3214
  %v4027 = vpack.c.b16 %v3223, %v3219
  %v4028 = vpack.c.b16 %v3224, %v3220
  %v4029 = vpack.c.b16 %v3225, %v3221
  %v4030 = vpack.c.b16 %v3226, %v3222
  %v4031 = vpack.c.b16 %v3231, %v3227
  %v4032 = vpack.c.b16 %v3232, %v3228
  %v4033 = vpack.c.b16 %v3233, %v3229
  %v4034 = vpack.c.b16 %v3234, %v3230
  %v4035 = vpack.c.b16 %v3239, %v3235
  %v4036 = vpack.c.b16 %v3240, %v3236
  %v4037 = vpack.c.b16 %v3241, %v3237
  %v4038 = vpack.c.b16 %v3242, %v3238
  %v4039 = vpack.c.b16 %v3247, %v3243
  %v4040 = vpack.c.b16 %v3248, %v3244
  %v4041 = vpack.c.b16 %v3249, %v3245
  %v4042 = vpack.c.b16 %v3250, %v3246
  %v4043 = vpack.c.b16 %v3255, %v3251
  %v4044 = vpack.c.b16 %v3256, %v3252
  %v4045 = vpack.c.b16 %v3257, %v3253
  %v4046 = vpack.c.b16 %v3258, %v3254
  %v4047 = vpack.c.b16 %v3263, %v3259
  %v4048 = vpack.c.b16 %v3264, %v3260
  %v4049 = vpack.c.b16 %v3265, %v3261
  %v4050 = vpack.c.b16 %v3266, %v3262
  %vm4835 = vcmask 523264
  %v4837 = vsel %vm4835, %v890, 0
  %4839 = vmatpush.bf16.msra.mxu0 %v3295
  %4840 = vmatpush.bf16.msra.mxu0 %v3291
  %4841 = vmatpush.bf16.msra.mxu0 %v3287
  %4842 = vmatpush.bf16.msra.mxu0 %v3283
  %4843 = vmatpush.bf16.msra.mxu0 %v3279
  %4844 = vmatpush.bf16.msra.mxu0 %v3275
  %4845 = vmatpush.bf16.msra.mxu0 %v3271
  %4846 = vmatpush.bf16.msra.mxu0 %v3267
  %4847 = vmatmul.bf16.gmra.mxu0 %v866
  %v4848 = vpop.f32.mrf.mxu0
  %v4849 = vadd.f32 %v820, %v4848
  %v4850 = vpop.f32.mrf.mxu0
  %4851 = vdwg.mxu0
  %4852 = vmatpush.bf16.msra.mxu0 %v3327
  %4853 = vmatpush.bf16.msra.mxu0 %v3323
  %4854 = vmatpush.bf16.msra.mxu0 %v3319
  %4855 = vmatpush.bf16.msra.mxu0 %v3315
  %4856 = vmatpush.bf16.msra.mxu0 %v3311
  %4857 = vmatpush.bf16.msra.mxu0 %v3307
  %4858 = vmatpush.bf16.msra.mxu0 %v3303
  %4859 = vmatpush.bf16.msra.mxu0 %v3299
  %4860 = vmatmul.bf16.gmra.mxu0 %v867
  %v4861 = vpop.f32.mrf.mxu0
  %v4862 = vadd.f32 %v4849, %v4861
  %v4863 = vpop.f32.mrf.mxu0
  %4864 = vdwg.mxu0
  %4865 = vmatpush.bf16.msra.mxu0 %v3359
  %4866 = vmatpush.bf16.msra.mxu0 %v3355
  %4867 = vmatpush.bf16.msra.mxu0 %v3351
  %4868 = vmatpush.bf16.msra.mxu0 %v3347
  %4869 = vmatpush.bf16.msra.mxu0 %v3343
  %4870 = vmatpush.bf16.msra.mxu0 %v3339
  %4871 = vmatpush.bf16.msra.mxu0 %v3335
  %4872 = vmatpush.bf16.msra.mxu0 %v3331
  %4873 = vmatmul.bf16.gmra.mxu0 %v868
  %v4874 = vpop.f32.mrf.mxu0
  %v4875 = vadd.f32 %v4862, %v4874
  %v4876 = vpop.f32.mrf.mxu0
  %4877 = vdwg.mxu0
  %4878 = vmatpush.bf16.msra.mxu0 %v3391
  %4879 = vmatpush.bf16.msra.mxu0 %v3387
  %4880 = vmatpush.bf16.msra.mxu0 %v3383
  %4881 = vmatpush.bf16.msra.mxu0 %v3379
  %4882 = vmatpush.bf16.msra.mxu0 %v3375
  %4883 = vmatpush.bf16.msra.mxu0 %v3371
  %4884 = vmatpush.bf16.msra.mxu0 %v3367
  %4885 = vmatpush.bf16.msra.mxu0 %v3363
  %4886 = vmatmul.bf16.gmra.mxu0 %v869
  %v4887 = vpop.f32.mrf.mxu0
  %v4888 = vadd.f32 %v4875, %v4887
  %v4889 = vpop.f32.mrf.mxu0
  %4890 = vdwg.mxu0
  %4891 = vmatpush.bf16.msra.mxu0 %v3423
  %4892 = vmatpush.bf16.msra.mxu0 %v3419
  %4893 = vmatpush.bf16.msra.mxu0 %v3415
  %4894 = vmatpush.bf16.msra.mxu0 %v3411
  %4895 = vmatpush.bf16.msra.mxu0 %v3407
  %4896 = vmatpush.bf16.msra.mxu0 %v3403
  %4897 = vmatpush.bf16.msra.mxu0 %v3399
  %4898 = vmatpush.bf16.msra.mxu0 %v3395
  %4899 = vmatmul.bf16.gmra.mxu0 %v870
  %v4900 = vpop.f32.mrf.mxu0
  %v4901 = vadd.f32 %v4888, %v4900
  %v4902 = vpop.f32.mrf.mxu0
  %4903 = vdwg.mxu0
  %4904 = vmatpush.bf16.msra.mxu0 %v3455
  %4905 = vmatpush.bf16.msra.mxu0 %v3451
  %4906 = vmatpush.bf16.msra.mxu0 %v3447
  %4907 = vmatpush.bf16.msra.mxu0 %v3443
  %4908 = vmatpush.bf16.msra.mxu0 %v3439
  %4909 = vmatpush.bf16.msra.mxu0 %v3435
  %4910 = vmatpush.bf16.msra.mxu0 %v3431
  %4911 = vmatpush.bf16.msra.mxu0 %v3427
  %4912 = vmatmul.bf16.gmra.mxu0 %v871
  %v4913 = vpop.f32.mrf.mxu0
  %v4914 = vadd.f32 %v4901, %v4913
  %v4915 = vpop.f32.mrf.mxu0
  %4916 = vdwg.mxu0
  %4917 = vmatpush.bf16.msra.mxu0 %v3487
  %4918 = vmatpush.bf16.msra.mxu0 %v3483
  %4919 = vmatpush.bf16.msra.mxu0 %v3479
  %4920 = vmatpush.bf16.msra.mxu0 %v3475
  %4921 = vmatpush.bf16.msra.mxu0 %v3471
  %4922 = vmatpush.bf16.msra.mxu0 %v3467
  %4923 = vmatpush.bf16.msra.mxu0 %v3463
  %4924 = vmatpush.bf16.msra.mxu0 %v3459
  %4925 = vmatmul.bf16.gmra.mxu0 %v872
  %v4926 = vpop.f32.mrf.mxu0
  %v4927 = vadd.f32 %v4914, %v4926
  %v4928 = vpop.f32.mrf.mxu0
  %4929 = vdwg.mxu0
  %4930 = vmatpush.bf16.msra.mxu0 %v3519
  %4931 = vmatpush.bf16.msra.mxu0 %v3515
  %4932 = vmatpush.bf16.msra.mxu0 %v3511
  %4933 = vmatpush.bf16.msra.mxu0 %v3507
  %4934 = vmatpush.bf16.msra.mxu0 %v3503
  %4935 = vmatpush.bf16.msra.mxu0 %v3499
  %4936 = vmatpush.bf16.msra.mxu0 %v3495
  %4937 = vmatpush.bf16.msra.mxu0 %v3491
  %4938 = vmatmul.bf16.gmra.mxu0 %v873
  %v4939 = vpop.f32.mrf.mxu0
  %v4940 = vadd.f32 %v4927, %v4939
  %v4941 = vpop.f32.mrf.mxu0
  %4942 = vdwg.mxu0
  %4943 = vmatpush.bf16.msra.mxu0 %v3551
  %4944 = vmatpush.bf16.msra.mxu0 %v3547
  %4945 = vmatpush.bf16.msra.mxu0 %v3543
  %4946 = vmatpush.bf16.msra.mxu0 %v3539
  %4947 = vmatpush.bf16.msra.mxu0 %v3535
  %4948 = vmatpush.bf16.msra.mxu0 %v3531
  %4949 = vmatpush.bf16.msra.mxu0 %v3527
  %4950 = vmatpush.bf16.msra.mxu0 %v3523
  %4951 = vmatmul.bf16.gmra.mxu0 %v874
  %v4952 = vpop.f32.mrf.mxu0
  %v4953 = vadd.f32 %v4940, %v4952
  %v4954 = vpop.f32.mrf.mxu0
  %4955 = vdwg.mxu0
  %4956 = vmatpush.bf16.msra.mxu0 %v3583
  %4957 = vmatpush.bf16.msra.mxu0 %v3579
  %4958 = vmatpush.bf16.msra.mxu0 %v3575
  %4959 = vmatpush.bf16.msra.mxu0 %v3571
  %4960 = vmatpush.bf16.msra.mxu0 %v3567
  %4961 = vmatpush.bf16.msra.mxu0 %v3563
  %4962 = vmatpush.bf16.msra.mxu0 %v3559
  %4963 = vmatpush.bf16.msra.mxu0 %v3555
  %4964 = vmatmul.bf16.gmra.mxu0 %v875
  %v4965 = vpop.f32.mrf.mxu0
  %v4966 = vadd.f32 %v4953, %v4965
  %v4967 = vpop.f32.mrf.mxu0
  %4968 = vdwg.mxu0
  %4969 = vmatpush.bf16.msra.mxu0 %v3615
  %4970 = vmatpush.bf16.msra.mxu0 %v3611
  %4971 = vmatpush.bf16.msra.mxu0 %v3607
  %4972 = vmatpush.bf16.msra.mxu0 %v3603
  %4973 = vmatpush.bf16.msra.mxu0 %v3599
  %4974 = vmatpush.bf16.msra.mxu0 %v3595
  %4975 = vmatpush.bf16.msra.mxu0 %v3591
  %4976 = vmatpush.bf16.msra.mxu0 %v3587
  %4977 = vmatmul.bf16.gmra.mxu0 %v876
  %v4978 = vpop.f32.mrf.mxu0
  %v4979 = vadd.f32 %v4966, %v4978
  %v4980 = vpop.f32.mrf.mxu0
  %4981 = vdwg.mxu0
  %4982 = vmatpush.bf16.msra.mxu0 %v3647
  %4983 = vmatpush.bf16.msra.mxu0 %v3643
  %4984 = vmatpush.bf16.msra.mxu0 %v3639
  %4985 = vmatpush.bf16.msra.mxu0 %v3635
  %4986 = vmatpush.bf16.msra.mxu0 %v3631
  %4987 = vmatpush.bf16.msra.mxu0 %v3627
  %4988 = vmatpush.bf16.msra.mxu0 %v3623
  %4989 = vmatpush.bf16.msra.mxu0 %v3619
  %4990 = vmatmul.bf16.gmra.mxu0 %v877
  %v4991 = vpop.f32.mrf.mxu0
  %v4992 = vadd.f32 %v4979, %v4991
  %v4993 = vpop.f32.mrf.mxu0
  %4994 = vdwg.mxu0
  %4995 = vmatpush.bf16.msra.mxu0 %v3679
  %4996 = vmatpush.bf16.msra.mxu0 %v3675
  %4997 = vmatpush.bf16.msra.mxu0 %v3671
  %4998 = vmatpush.bf16.msra.mxu0 %v3667
  %4999 = vmatpush.bf16.msra.mxu0 %v3663
  %5000 = vmatpush.bf16.msra.mxu0 %v3659
  %5001 = vmatpush.bf16.msra.mxu0 %v3655
  %5002 = vmatpush.bf16.msra.mxu0 %v3651
  %5003 = vmatmul.bf16.gmra.mxu0 %v878
  %v5004 = vpop.f32.mrf.mxu0
  %v5005 = vadd.f32 %v4992, %v5004
  %v5006 = vpop.f32.mrf.mxu0
  %5007 = vdwg.mxu0
  %5008 = vmatpush.bf16.msra.mxu0 %v3711
  %5009 = vmatpush.bf16.msra.mxu0 %v3707
  %5010 = vmatpush.bf16.msra.mxu0 %v3703
  %5011 = vmatpush.bf16.msra.mxu0 %v3699
  %5012 = vmatpush.bf16.msra.mxu0 %v3695
  %5013 = vmatpush.bf16.msra.mxu0 %v3691
  %5014 = vmatpush.bf16.msra.mxu0 %v3687
  %5015 = vmatpush.bf16.msra.mxu0 %v3683
  %5016 = vmatmul.bf16.gmra.mxu0 %v879
  %v5017 = vpop.f32.mrf.mxu0
  %v5018 = vadd.f32 %v5005, %v5017
  %v5019 = vpop.f32.mrf.mxu0
  %5020 = vdwg.mxu0
  %5021 = vmatpush.bf16.msra.mxu0 %v3743
  %5022 = vmatpush.bf16.msra.mxu0 %v3739
  %5023 = vmatpush.bf16.msra.mxu0 %v3735
  %5024 = vmatpush.bf16.msra.mxu0 %v3731
  %5025 = vmatpush.bf16.msra.mxu0 %v3727
  %5026 = vmatpush.bf16.msra.mxu0 %v3723
  %5027 = vmatpush.bf16.msra.mxu0 %v3719
  %5028 = vmatpush.bf16.msra.mxu0 %v3715
  %5029 = vmatmul.bf16.gmra.mxu0 %v880
  %v5030 = vpop.f32.mrf.mxu0
  %v5031 = vadd.f32 %v5018, %v5030
  %v5032 = vpop.f32.mrf.mxu0
  %5033 = vdwg.mxu0
  %5034 = vmatpush.bf16.msra.mxu0 %v3775
  %5035 = vmatpush.bf16.msra.mxu0 %v3771
  %5036 = vmatpush.bf16.msra.mxu0 %v3767
  %5037 = vmatpush.bf16.msra.mxu0 %v3763
  %5038 = vmatpush.bf16.msra.mxu0 %v3759
  %5039 = vmatpush.bf16.msra.mxu0 %v3755
  %5040 = vmatpush.bf16.msra.mxu0 %v3751
  %5041 = vmatpush.bf16.msra.mxu0 %v3747
  %5042 = vmatmul.bf16.gmra.mxu0 %v881
  %v5043 = vpop.f32.mrf.mxu0
  %v5044 = vadd.f32 %v5031, %v5043
  %v5045 = vpop.f32.mrf.mxu0
  %5046 = vdwg.mxu0
  %5047 = vmatpush.bf16.msra.mxu0 %v3807
  %5048 = vmatpush.bf16.msra.mxu0 %v3803
  %5049 = vmatpush.bf16.msra.mxu0 %v3799
  %5050 = vmatpush.bf16.msra.mxu0 %v3795
  %5051 = vmatpush.bf16.msra.mxu0 %v3791
  %5052 = vmatpush.bf16.msra.mxu0 %v3787
  %5053 = vmatpush.bf16.msra.mxu0 %v3783
  %5054 = vmatpush.bf16.msra.mxu0 %v3779
  %5055 = vmatmul.bf16.gmra.mxu0 %v882
  %v5056 = vpop.f32.mrf.mxu0
  %v5057 = vadd.f32 %v5044, %v5056
  %v5058 = vpop.f32.mrf.mxu0
  %5059 = vdwg.mxu0
  %5060 = vmatpush.bf16.msra.mxu0 %v3839
  %5061 = vmatpush.bf16.msra.mxu0 %v3835
  %5062 = vmatpush.bf16.msra.mxu0 %v3831
  %5063 = vmatpush.bf16.msra.mxu0 %v3827
  %5064 = vmatpush.bf16.msra.mxu0 %v3823
  %5065 = vmatpush.bf16.msra.mxu0 %v3819
  %5066 = vmatpush.bf16.msra.mxu0 %v3815
  %5067 = vmatpush.bf16.msra.mxu0 %v3811
  %5068 = vmatmul.bf16.gmra.mxu0 %v883
  %v5069 = vpop.f32.mrf.mxu0
  %v5070 = vadd.f32 %v5057, %v5069
  %v5071 = vpop.f32.mrf.mxu0
  %5072 = vdwg.mxu0
  %5073 = vmatpush.bf16.msra.mxu0 %v3871
  %5074 = vmatpush.bf16.msra.mxu0 %v3867
  %5075 = vmatpush.bf16.msra.mxu0 %v3863
  %5076 = vmatpush.bf16.msra.mxu0 %v3859
  %5077 = vmatpush.bf16.msra.mxu0 %v3855
  %5078 = vmatpush.bf16.msra.mxu0 %v3851
  %5079 = vmatpush.bf16.msra.mxu0 %v3847
  %5080 = vmatpush.bf16.msra.mxu0 %v3843
  %5081 = vmatmul.bf16.gmra.mxu0 %v884
  %v5082 = vpop.f32.mrf.mxu0
  %v5083 = vadd.f32 %v5070, %v5082
  %v5084 = vpop.f32.mrf.mxu0
  %5085 = vdwg.mxu0
  %5086 = vmatpush.bf16.msra.mxu0 %v3903
  %5087 = vmatpush.bf16.msra.mxu0 %v3899
  %5088 = vmatpush.bf16.msra.mxu0 %v3895
  %5089 = vmatpush.bf16.msra.mxu0 %v3891
  %5090 = vmatpush.bf16.msra.mxu0 %v3887
  %5091 = vmatpush.bf16.msra.mxu0 %v3883
  %5092 = vmatpush.bf16.msra.mxu0 %v3879
  %5093 = vmatpush.bf16.msra.mxu0 %v3875
  %5094 = vmatmul.bf16.gmra.mxu0 %v885
  %v5095 = vpop.f32.mrf.mxu0
  %v5096 = vadd.f32 %v5083, %v5095
  %v5097 = vpop.f32.mrf.mxu0
  %5098 = vdwg.mxu0
  %5099 = vmatpush.bf16.msra.mxu0 %v3935
  %5100 = vmatpush.bf16.msra.mxu0 %v3931
  %5101 = vmatpush.bf16.msra.mxu0 %v3927
  %5102 = vmatpush.bf16.msra.mxu0 %v3923
  %5103 = vmatpush.bf16.msra.mxu0 %v3919
  %5104 = vmatpush.bf16.msra.mxu0 %v3915
  %5105 = vmatpush.bf16.msra.mxu0 %v3911
  %5106 = vmatpush.bf16.msra.mxu0 %v3907
  %5107 = vmatmul.bf16.gmra.mxu0 %v886
  %v5108 = vpop.f32.mrf.mxu0
  %v5109 = vadd.f32 %v5096, %v5108
  %v5110 = vpop.f32.mrf.mxu0
  %5111 = vdwg.mxu0
  %5112 = vmatpush.bf16.msra.mxu0 %v3967
  %5113 = vmatpush.bf16.msra.mxu0 %v3963
  %5114 = vmatpush.bf16.msra.mxu0 %v3959
  %5115 = vmatpush.bf16.msra.mxu0 %v3955
  %5116 = vmatpush.bf16.msra.mxu0 %v3951
  %5117 = vmatpush.bf16.msra.mxu0 %v3947
  %5118 = vmatpush.bf16.msra.mxu0 %v3943
  %5119 = vmatpush.bf16.msra.mxu0 %v3939
  %5120 = vmatmul.bf16.gmra.mxu0 %v887
  %v5121 = vpop.f32.mrf.mxu0
  %v5122 = vadd.f32 %v5109, %v5121
  %v5123 = vpop.f32.mrf.mxu0
  %5124 = vdwg.mxu0
  %5125 = vmatpush.bf16.msra.mxu0 %v3999
  %5126 = vmatpush.bf16.msra.mxu0 %v3995
  %5127 = vmatpush.bf16.msra.mxu0 %v3991
  %5128 = vmatpush.bf16.msra.mxu0 %v3987
  %5129 = vmatpush.bf16.msra.mxu0 %v3983
  %5130 = vmatpush.bf16.msra.mxu0 %v3979
  %5131 = vmatpush.bf16.msra.mxu0 %v3975
  %5132 = vmatpush.bf16.msra.mxu0 %v3971
  %5133 = vmatmul.bf16.gmra.mxu0 %v888
  %v5134 = vpop.f32.mrf.mxu0
  %v5135 = vadd.f32 %v5122, %v5134
  %v5136 = vpop.f32.mrf.mxu0
  %5137 = vdwg.mxu0
  %5138 = vmatpush.bf16.msra.mxu0 %v4031
  %5139 = vmatpush.bf16.msra.mxu0 %v4027
  %5140 = vmatpush.bf16.msra.mxu0 %v4023
  %5141 = vmatpush.bf16.msra.mxu0 %v4019
  %5142 = vmatpush.bf16.msra.mxu0 %v4015
  %5143 = vmatpush.bf16.msra.mxu0 %v4011
  %5144 = vmatpush.bf16.msra.mxu0 %v4007
  %5145 = vmatpush.bf16.msra.mxu0 %v4003
  %5146 = vmatmul.bf16.gmra.mxu0 %v889
  %v5147 = vpop.f32.mrf.mxu0
  %v5148 = vadd.f32 %v5135, %v5147
  %v5149 = vpop.f32.mrf.mxu0
  %5150 = vdwg.mxu0
  %5151 = vmatpush.bf16.msra.mxu0 0
  %5152 = vmatpush.bf16.msra.mxu0 0
  %5153 = vmatpush.bf16.msra.mxu0 0
  %5154 = vmatpush.bf16.msra.mxu0 0
  %5155 = vmatpush.bf16.msra.mxu0 %v4047
  %5156 = vmatpush.bf16.msra.mxu0 %v4043
  %5157 = vmatpush.bf16.msra.mxu0 %v4039
  %5158 = vmatpush.bf16.msra.mxu0 %v4035
  %5159 = vmatmul.bf16.gmra.mxu0 %v4837
  %v5160 = vpop.f32.mrf.mxu0
  %v5161 = vadd.f32 %v5148, %v5160
  %v5162 = vpop.f32.mrf.mxu0
  %5163 = vdwg.mxu0
  %5164 = vmatpush.bf16.msra.mxu0 %v3296
  %5165 = vmatpush.bf16.msra.mxu0 %v3292
  %5166 = vmatpush.bf16.msra.mxu0 %v3288
  %5167 = vmatpush.bf16.msra.mxu0 %v3284
  %5168 = vmatpush.bf16.msra.mxu0 %v3280
  %5169 = vmatpush.bf16.msra.mxu0 %v3276
  %5170 = vmatpush.bf16.msra.mxu0 %v3272
  %5171 = vmatpush.bf16.msra.mxu0 %v3268
  %5172 = vmatmul.bf16.gmra.mxu0 %v866
  %v5173 = vpop.f32.mrf.mxu0
  %v5174 = vadd.f32 %v821, %v5173
  %v5175 = vpop.f32.mrf.mxu0
  %5176 = vdwg.mxu0
  %5177 = vmatpush.bf16.msra.mxu0 %v3328
  %5178 = vmatpush.bf16.msra.mxu0 %v3324
  %5179 = vmatpush.bf16.msra.mxu0 %v3320
  %5180 = vmatpush.bf16.msra.mxu0 %v3316
  %5181 = vmatpush.bf16.msra.mxu0 %v3312
  %5182 = vmatpush.bf16.msra.mxu0 %v3308
  %5183 = vmatpush.bf16.msra.mxu0 %v3304
  %5184 = vmatpush.bf16.msra.mxu0 %v3300
  %5185 = vmatmul.bf16.gmra.mxu0 %v867
  %v5186 = vpop.f32.mrf.mxu0
  %v5187 = vadd.f32 %v5174, %v5186
  %v5188 = vpop.f32.mrf.mxu0
  %5189 = vdwg.mxu0
  %5190 = vmatpush.bf16.msra.mxu0 %v3360
  %5191 = vmatpush.bf16.msra.mxu0 %v3356
  %5192 = vmatpush.bf16.msra.mxu0 %v3352
  %5193 = vmatpush.bf16.msra.mxu0 %v3348
  %5194 = vmatpush.bf16.msra.mxu0 %v3344
  %5195 = vmatpush.bf16.msra.mxu0 %v3340
  %5196 = vmatpush.bf16.msra.mxu0 %v3336
  %5197 = vmatpush.bf16.msra.mxu0 %v3332
  %5198 = vmatmul.bf16.gmra.mxu0 %v868
  %v5199 = vpop.f32.mrf.mxu0
  %v5200 = vadd.f32 %v5187, %v5199
  %v5201 = vpop.f32.mrf.mxu0
  %5202 = vdwg.mxu0
  %5203 = vmatpush.bf16.msra.mxu0 %v3392
  %5204 = vmatpush.bf16.msra.mxu0 %v3388
  %5205 = vmatpush.bf16.msra.mxu0 %v3384
  %5206 = vmatpush.bf16.msra.mxu0 %v3380
  %5207 = vmatpush.bf16.msra.mxu0 %v3376
  %5208 = vmatpush.bf16.msra.mxu0 %v3372
  %5209 = vmatpush.bf16.msra.mxu0 %v3368
  %5210 = vmatpush.bf16.msra.mxu0 %v3364
  %5211 = vmatmul.bf16.gmra.mxu0 %v869
  %v5212 = vpop.f32.mrf.mxu0
  %v5213 = vadd.f32 %v5200, %v5212
  %v5214 = vpop.f32.mrf.mxu0
  %5215 = vdwg.mxu0
  %5216 = vmatpush.bf16.msra.mxu0 %v3424
  %5217 = vmatpush.bf16.msra.mxu0 %v3420
  %5218 = vmatpush.bf16.msra.mxu0 %v3416
  %5219 = vmatpush.bf16.msra.mxu0 %v3412
  %5220 = vmatpush.bf16.msra.mxu0 %v3408
  %5221 = vmatpush.bf16.msra.mxu0 %v3404
  %5222 = vmatpush.bf16.msra.mxu0 %v3400
  %5223 = vmatpush.bf16.msra.mxu0 %v3396
  %5224 = vmatmul.bf16.gmra.mxu0 %v870
  %v5225 = vpop.f32.mrf.mxu0
  %v5226 = vadd.f32 %v5213, %v5225
  %v5227 = vpop.f32.mrf.mxu0
  %5228 = vdwg.mxu0
  %5229 = vmatpush.bf16.msra.mxu0 %v3456
  %5230 = vmatpush.bf16.msra.mxu0 %v3452
  %5231 = vmatpush.bf16.msra.mxu0 %v3448
  %5232 = vmatpush.bf16.msra.mxu0 %v3444
  %5233 = vmatpush.bf16.msra.mxu0 %v3440
  %5234 = vmatpush.bf16.msra.mxu0 %v3436
  %5235 = vmatpush.bf16.msra.mxu0 %v3432
  %5236 = vmatpush.bf16.msra.mxu0 %v3428
  %5237 = vmatmul.bf16.gmra.mxu0 %v871
  %v5238 = vpop.f32.mrf.mxu0
  %v5239 = vadd.f32 %v5226, %v5238
  %v5240 = vpop.f32.mrf.mxu0
  %5241 = vdwg.mxu0
  %5242 = vmatpush.bf16.msra.mxu0 %v3488
  %5243 = vmatpush.bf16.msra.mxu0 %v3484
  %5244 = vmatpush.bf16.msra.mxu0 %v3480
  %5245 = vmatpush.bf16.msra.mxu0 %v3476
  %5246 = vmatpush.bf16.msra.mxu0 %v3472
  %5247 = vmatpush.bf16.msra.mxu0 %v3468
  %5248 = vmatpush.bf16.msra.mxu0 %v3464
  %5249 = vmatpush.bf16.msra.mxu0 %v3460
  %5250 = vmatmul.bf16.gmra.mxu0 %v872
  %v5251 = vpop.f32.mrf.mxu0
  %v5252 = vadd.f32 %v5239, %v5251
  %v5253 = vpop.f32.mrf.mxu0
  %5254 = vdwg.mxu0
  %5255 = vmatpush.bf16.msra.mxu0 %v3520
  %5256 = vmatpush.bf16.msra.mxu0 %v3516
  %5257 = vmatpush.bf16.msra.mxu0 %v3512
  %5258 = vmatpush.bf16.msra.mxu0 %v3508
  %5259 = vmatpush.bf16.msra.mxu0 %v3504
  %5260 = vmatpush.bf16.msra.mxu0 %v3500
  %5261 = vmatpush.bf16.msra.mxu0 %v3496
  %5262 = vmatpush.bf16.msra.mxu0 %v3492
  %5263 = vmatmul.bf16.gmra.mxu0 %v873
  %v5264 = vpop.f32.mrf.mxu0
  %v5265 = vadd.f32 %v5252, %v5264
  %v5266 = vpop.f32.mrf.mxu0
  %5267 = vdwg.mxu0
  %5268 = vmatpush.bf16.msra.mxu0 %v3552
  %5269 = vmatpush.bf16.msra.mxu0 %v3548
  %5270 = vmatpush.bf16.msra.mxu0 %v3544
  %5271 = vmatpush.bf16.msra.mxu0 %v3540
  %5272 = vmatpush.bf16.msra.mxu0 %v3536
  %5273 = vmatpush.bf16.msra.mxu0 %v3532
  %5274 = vmatpush.bf16.msra.mxu0 %v3528
  %5275 = vmatpush.bf16.msra.mxu0 %v3524
  %5276 = vmatmul.bf16.gmra.mxu0 %v874
  %v5277 = vpop.f32.mrf.mxu0
  %v5278 = vadd.f32 %v5265, %v5277
  %v5279 = vpop.f32.mrf.mxu0
  %5280 = vdwg.mxu0
  %5281 = vmatpush.bf16.msra.mxu0 %v3584
  %5282 = vmatpush.bf16.msra.mxu0 %v3580
  %5283 = vmatpush.bf16.msra.mxu0 %v3576
  %5284 = vmatpush.bf16.msra.mxu0 %v3572
  %5285 = vmatpush.bf16.msra.mxu0 %v3568
  %5286 = vmatpush.bf16.msra.mxu0 %v3564
  %5287 = vmatpush.bf16.msra.mxu0 %v3560
  %5288 = vmatpush.bf16.msra.mxu0 %v3556
  %5289 = vmatmul.bf16.gmra.mxu0 %v875
  %v5290 = vpop.f32.mrf.mxu0
  %v5291 = vadd.f32 %v5278, %v5290
  %v5292 = vpop.f32.mrf.mxu0
  %5293 = vdwg.mxu0
  %5294 = vmatpush.bf16.msra.mxu0 %v3616
  %5295 = vmatpush.bf16.msra.mxu0 %v3612
  %5296 = vmatpush.bf16.msra.mxu0 %v3608
  %5297 = vmatpush.bf16.msra.mxu0 %v3604
  %5298 = vmatpush.bf16.msra.mxu0 %v3600
  %5299 = vmatpush.bf16.msra.mxu0 %v3596
  %5300 = vmatpush.bf16.msra.mxu0 %v3592
  %5301 = vmatpush.bf16.msra.mxu0 %v3588
  %5302 = vmatmul.bf16.gmra.mxu0 %v876
  %v5303 = vpop.f32.mrf.mxu0
  %v5304 = vadd.f32 %v5291, %v5303
  %v5305 = vpop.f32.mrf.mxu0
  %5306 = vdwg.mxu0
  %5307 = vmatpush.bf16.msra.mxu0 %v3648
  %5308 = vmatpush.bf16.msra.mxu0 %v3644
  %5309 = vmatpush.bf16.msra.mxu0 %v3640
  %5310 = vmatpush.bf16.msra.mxu0 %v3636
  %5311 = vmatpush.bf16.msra.mxu0 %v3632
  %5312 = vmatpush.bf16.msra.mxu0 %v3628
  %5313 = vmatpush.bf16.msra.mxu0 %v3624
  %5314 = vmatpush.bf16.msra.mxu0 %v3620
  %5315 = vmatmul.bf16.gmra.mxu0 %v877
  %v5316 = vpop.f32.mrf.mxu0
  %v5317 = vadd.f32 %v5304, %v5316
  %v5318 = vpop.f32.mrf.mxu0
  %5319 = vdwg.mxu0
  %5320 = vmatpush.bf16.msra.mxu0 %v3680
  %5321 = vmatpush.bf16.msra.mxu0 %v3676
  %5322 = vmatpush.bf16.msra.mxu0 %v3672
  %5323 = vmatpush.bf16.msra.mxu0 %v3668
  %5324 = vmatpush.bf16.msra.mxu0 %v3664
  %5325 = vmatpush.bf16.msra.mxu0 %v3660
  %5326 = vmatpush.bf16.msra.mxu0 %v3656
  %5327 = vmatpush.bf16.msra.mxu0 %v3652
  %5328 = vmatmul.bf16.gmra.mxu0 %v878
  %v5329 = vpop.f32.mrf.mxu0
  %v5330 = vadd.f32 %v5317, %v5329
  %v5331 = vpop.f32.mrf.mxu0
  %5332 = vdwg.mxu0
  %5333 = vmatpush.bf16.msra.mxu0 %v3712
  %5334 = vmatpush.bf16.msra.mxu0 %v3708
  %5335 = vmatpush.bf16.msra.mxu0 %v3704
  %5336 = vmatpush.bf16.msra.mxu0 %v3700
  %5337 = vmatpush.bf16.msra.mxu0 %v3696
  %5338 = vmatpush.bf16.msra.mxu0 %v3692
  %5339 = vmatpush.bf16.msra.mxu0 %v3688
  %5340 = vmatpush.bf16.msra.mxu0 %v3684
  %5341 = vmatmul.bf16.gmra.mxu0 %v879
  %v5342 = vpop.f32.mrf.mxu0
  %v5343 = vadd.f32 %v5330, %v5342
  %v5344 = vpop.f32.mrf.mxu0
  %5345 = vdwg.mxu0
  %5346 = vmatpush.bf16.msra.mxu0 %v3744
  %5347 = vmatpush.bf16.msra.mxu0 %v3740
  %5348 = vmatpush.bf16.msra.mxu0 %v3736
  %5349 = vmatpush.bf16.msra.mxu0 %v3732
  %5350 = vmatpush.bf16.msra.mxu0 %v3728
  %5351 = vmatpush.bf16.msra.mxu0 %v3724
  %5352 = vmatpush.bf16.msra.mxu0 %v3720
  %5353 = vmatpush.bf16.msra.mxu0 %v3716
  %5354 = vmatmul.bf16.gmra.mxu0 %v880
  %v5355 = vpop.f32.mrf.mxu0
  %v5356 = vadd.f32 %v5343, %v5355
  %v5357 = vpop.f32.mrf.mxu0
  %5358 = vdwg.mxu0
  %5359 = vmatpush.bf16.msra.mxu0 %v3776
  %5360 = vmatpush.bf16.msra.mxu0 %v3772
  %5361 = vmatpush.bf16.msra.mxu0 %v3768
  %5362 = vmatpush.bf16.msra.mxu0 %v3764
  %5363 = vmatpush.bf16.msra.mxu0 %v3760
  %5364 = vmatpush.bf16.msra.mxu0 %v3756
  %5365 = vmatpush.bf16.msra.mxu0 %v3752
  %5366 = vmatpush.bf16.msra.mxu0 %v3748
  %5367 = vmatmul.bf16.gmra.mxu0 %v881
  %v5368 = vpop.f32.mrf.mxu0
  %v5369 = vadd.f32 %v5356, %v5368
  %v5370 = vpop.f32.mrf.mxu0
  %5371 = vdwg.mxu0
  %5372 = vmatpush.bf16.msra.mxu0 %v3808
  %5373 = vmatpush.bf16.msra.mxu0 %v3804
  %5374 = vmatpush.bf16.msra.mxu0 %v3800
  %5375 = vmatpush.bf16.msra.mxu0 %v3796
  %5376 = vmatpush.bf16.msra.mxu0 %v3792
  %5377 = vmatpush.bf16.msra.mxu0 %v3788
  %5378 = vmatpush.bf16.msra.mxu0 %v3784
  %5379 = vmatpush.bf16.msra.mxu0 %v3780
  %5380 = vmatmul.bf16.gmra.mxu0 %v882
  %v5381 = vpop.f32.mrf.mxu0
  %v5382 = vadd.f32 %v5369, %v5381
  %v5383 = vpop.f32.mrf.mxu0
  %5384 = vdwg.mxu0
  %5385 = vmatpush.bf16.msra.mxu0 %v3840
  %5386 = vmatpush.bf16.msra.mxu0 %v3836
  %5387 = vmatpush.bf16.msra.mxu0 %v3832
  %5388 = vmatpush.bf16.msra.mxu0 %v3828
  %5389 = vmatpush.bf16.msra.mxu0 %v3824
  %5390 = vmatpush.bf16.msra.mxu0 %v3820
  %5391 = vmatpush.bf16.msra.mxu0 %v3816
  %5392 = vmatpush.bf16.msra.mxu0 %v3812
  %5393 = vmatmul.bf16.gmra.mxu0 %v883
  %v5394 = vpop.f32.mrf.mxu0
  %v5395 = vadd.f32 %v5382, %v5394
  %v5396 = vpop.f32.mrf.mxu0
  %5397 = vdwg.mxu0
  %5398 = vmatpush.bf16.msra.mxu0 %v3872
  %5399 = vmatpush.bf16.msra.mxu0 %v3868
  %5400 = vmatpush.bf16.msra.mxu0 %v3864
  %5401 = vmatpush.bf16.msra.mxu0 %v3860
  %5402 = vmatpush.bf16.msra.mxu0 %v3856
  %5403 = vmatpush.bf16.msra.mxu0 %v3852
  %5404 = vmatpush.bf16.msra.mxu0 %v3848
  %5405 = vmatpush.bf16.msra.mxu0 %v3844
  %5406 = vmatmul.bf16.gmra.mxu0 %v884
  %v5407 = vpop.f32.mrf.mxu0
  %v5408 = vadd.f32 %v5395, %v5407
  %v5409 = vpop.f32.mrf.mxu0
  %5410 = vdwg.mxu0
  %5411 = vmatpush.bf16.msra.mxu0 %v3904
  %5412 = vmatpush.bf16.msra.mxu0 %v3900
  %5413 = vmatpush.bf16.msra.mxu0 %v3896
  %5414 = vmatpush.bf16.msra.mxu0 %v3892
  %5415 = vmatpush.bf16.msra.mxu0 %v3888
  %5416 = vmatpush.bf16.msra.mxu0 %v3884
  %5417 = vmatpush.bf16.msra.mxu0 %v3880
  %5418 = vmatpush.bf16.msra.mxu0 %v3876
  %5419 = vmatmul.bf16.gmra.mxu0 %v885
  %v5420 = vpop.f32.mrf.mxu0
  %v5421 = vadd.f32 %v5408, %v5420
  %v5422 = vpop.f32.mrf.mxu0
  %5423 = vdwg.mxu0
  %5424 = vmatpush.bf16.msra.mxu0 %v3936
  %5425 = vmatpush.bf16.msra.mxu0 %v3932
  %5426 = vmatpush.bf16.msra.mxu0 %v3928
  %5427 = vmatpush.bf16.msra.mxu0 %v3924
  %5428 = vmatpush.bf16.msra.mxu0 %v3920
  %5429 = vmatpush.bf16.msra.mxu0 %v3916
  %5430 = vmatpush.bf16.msra.mxu0 %v3912
  %5431 = vmatpush.bf16.msra.mxu0 %v3908
  %5432 = vmatmul.bf16.gmra.mxu0 %v886
  %v5433 = vpop.f32.mrf.mxu0
  %v5434 = vadd.f32 %v5421, %v5433
  %v5435 = vpop.f32.mrf.mxu0
  %5436 = vdwg.mxu0
  %5437 = vmatpush.bf16.msra.mxu0 %v3968
  %5438 = vmatpush.bf16.msra.mxu0 %v3964
  %5439 = vmatpush.bf16.msra.mxu0 %v3960
  %5440 = vmatpush.bf16.msra.mxu0 %v3956
  %5441 = vmatpush.bf16.msra.mxu0 %v3952
  %5442 = vmatpush.bf16.msra.mxu0 %v3948
  %5443 = vmatpush.bf16.msra.mxu0 %v3944
  %5444 = vmatpush.bf16.msra.mxu0 %v3940
  %5445 = vmatmul.bf16.gmra.mxu0 %v887
  %v5446 = vpop.f32.mrf.mxu0
  %v5447 = vadd.f32 %v5434, %v5446
  %v5448 = vpop.f32.mrf.mxu0
  %5449 = vdwg.mxu0
  %5450 = vmatpush.bf16.msra.mxu0 %v4000
  %5451 = vmatpush.bf16.msra.mxu0 %v3996
  %5452 = vmatpush.bf16.msra.mxu0 %v3992
  %5453 = vmatpush.bf16.msra.mxu0 %v3988
  %5454 = vmatpush.bf16.msra.mxu0 %v3984
  %5455 = vmatpush.bf16.msra.mxu0 %v3980
  %5456 = vmatpush.bf16.msra.mxu0 %v3976
  %5457 = vmatpush.bf16.msra.mxu0 %v3972
  %5458 = vmatmul.bf16.gmra.mxu0 %v888
  %v5459 = vpop.f32.mrf.mxu0
  %v5460 = vadd.f32 %v5447, %v5459
  %v5461 = vpop.f32.mrf.mxu0
  %5462 = vdwg.mxu0
  %5463 = vmatpush.bf16.msra.mxu0 %v4032
  %5464 = vmatpush.bf16.msra.mxu0 %v4028
  %5465 = vmatpush.bf16.msra.mxu0 %v4024
  %5466 = vmatpush.bf16.msra.mxu0 %v4020
  %5467 = vmatpush.bf16.msra.mxu0 %v4016
  %5468 = vmatpush.bf16.msra.mxu0 %v4012
  %5469 = vmatpush.bf16.msra.mxu0 %v4008
  %5470 = vmatpush.bf16.msra.mxu0 %v4004
  %5471 = vmatmul.bf16.gmra.mxu0 %v889
  %v5472 = vpop.f32.mrf.mxu0
  %v5473 = vadd.f32 %v5460, %v5472
  %v5474 = vpop.f32.mrf.mxu0
  %5475 = vdwg.mxu0
  %5476 = vmatpush.bf16.msra.mxu0 0
  %5477 = vmatpush.bf16.msra.mxu0 0
  %5478 = vmatpush.bf16.msra.mxu0 0
  %5479 = vmatpush.bf16.msra.mxu0 0
  %5480 = vmatpush.bf16.msra.mxu0 %v4048
  %5481 = vmatpush.bf16.msra.mxu0 %v4044
  %5482 = vmatpush.bf16.msra.mxu0 %v4040
  %5483 = vmatpush.bf16.msra.mxu0 %v4036
  %5484 = vmatmul.bf16.gmra.mxu0 %v4837
  %v5485 = vpop.f32.mrf.mxu0
  %v5486 = vadd.f32 %v5473, %v5485
  %v5487 = vpop.f32.mrf.mxu0
  %5488 = vdwg.mxu0
  %5489 = vmatpush.bf16.msra.mxu0 %v3297
  %5490 = vmatpush.bf16.msra.mxu0 %v3293
  %5491 = vmatpush.bf16.msra.mxu0 %v3289
  %5492 = vmatpush.bf16.msra.mxu0 %v3285
  %5493 = vmatpush.bf16.msra.mxu0 %v3281
  %5494 = vmatpush.bf16.msra.mxu0 %v3277
  %5495 = vmatpush.bf16.msra.mxu0 %v3273
  %5496 = vmatpush.bf16.msra.mxu0 %v3269
  %5497 = vmatmul.bf16.gmra.mxu0 %v866
  %v5498 = vpop.f32.mrf.mxu0
  %v5499 = vadd.f32 %v822, %v5498
  %v5500 = vpop.f32.mrf.mxu0
  %5501 = vdwg.mxu0
  %5502 = vmatpush.bf16.msra.mxu0 %v3329
  %5503 = vmatpush.bf16.msra.mxu0 %v3325
  %5504 = vmatpush.bf16.msra.mxu0 %v3321
  %5505 = vmatpush.bf16.msra.mxu0 %v3317
  %5506 = vmatpush.bf16.msra.mxu0 %v3313
  %5507 = vmatpush.bf16.msra.mxu0 %v3309
  %5508 = vmatpush.bf16.msra.mxu0 %v3305
  %5509 = vmatpush.bf16.msra.mxu0 %v3301
  %5510 = vmatmul.bf16.gmra.mxu0 %v867
  %v5511 = vpop.f32.mrf.mxu0
  %v5512 = vadd.f32 %v5499, %v5511
  %v5513 = vpop.f32.mrf.mxu0
  %5514 = vdwg.mxu0
  %5515 = vmatpush.bf16.msra.mxu0 %v3361
  %5516 = vmatpush.bf16.msra.mxu0 %v3357
  %5517 = vmatpush.bf16.msra.mxu0 %v3353
  %5518 = vmatpush.bf16.msra.mxu0 %v3349
  %5519 = vmatpush.bf16.msra.mxu0 %v3345
  %5520 = vmatpush.bf16.msra.mxu0 %v3341
  %5521 = vmatpush.bf16.msra.mxu0 %v3337
  %5522 = vmatpush.bf16.msra.mxu0 %v3333
  %5523 = vmatmul.bf16.gmra.mxu0 %v868
  %v5524 = vpop.f32.mrf.mxu0
  %v5525 = vadd.f32 %v5512, %v5524
  %v5526 = vpop.f32.mrf.mxu0
  %5527 = vdwg.mxu0
  %5528 = vmatpush.bf16.msra.mxu0 %v3393
  %5529 = vmatpush.bf16.msra.mxu0 %v3389
  %5530 = vmatpush.bf16.msra.mxu0 %v3385
  %5531 = vmatpush.bf16.msra.mxu0 %v3381
  %5532 = vmatpush.bf16.msra.mxu0 %v3377
  %5533 = vmatpush.bf16.msra.mxu0 %v3373
  %5534 = vmatpush.bf16.msra.mxu0 %v3369
  %5535 = vmatpush.bf16.msra.mxu0 %v3365
  %5536 = vmatmul.bf16.gmra.mxu0 %v869
  %v5537 = vpop.f32.mrf.mxu0
  %v5538 = vadd.f32 %v5525, %v5537
  %v5539 = vpop.f32.mrf.mxu0
  %5540 = vdwg.mxu0
  %5541 = vmatpush.bf16.msra.mxu0 %v3425
  %5542 = vmatpush.bf16.msra.mxu0 %v3421
  %5543 = vmatpush.bf16.msra.mxu0 %v3417
  %5544 = vmatpush.bf16.msra.mxu0 %v3413
  %5545 = vmatpush.bf16.msra.mxu0 %v3409
  %5546 = vmatpush.bf16.msra.mxu0 %v3405
  %5547 = vmatpush.bf16.msra.mxu0 %v3401
  %5548 = vmatpush.bf16.msra.mxu0 %v3397
  %5549 = vmatmul.bf16.gmra.mxu0 %v870
  %v5550 = vpop.f32.mrf.mxu0
  %v5551 = vadd.f32 %v5538, %v5550
  %v5552 = vpop.f32.mrf.mxu0
  %5553 = vdwg.mxu0
  %5554 = vmatpush.bf16.msra.mxu0 %v3457
  %5555 = vmatpush.bf16.msra.mxu0 %v3453
  %5556 = vmatpush.bf16.msra.mxu0 %v3449
  %5557 = vmatpush.bf16.msra.mxu0 %v3445
  %5558 = vmatpush.bf16.msra.mxu0 %v3441
  %5559 = vmatpush.bf16.msra.mxu0 %v3437
  %5560 = vmatpush.bf16.msra.mxu0 %v3433
  %5561 = vmatpush.bf16.msra.mxu0 %v3429
  %5562 = vmatmul.bf16.gmra.mxu0 %v871
  %v5563 = vpop.f32.mrf.mxu0
  %v5564 = vadd.f32 %v5551, %v5563
  %v5565 = vpop.f32.mrf.mxu0
  %5566 = vdwg.mxu0
  %5567 = vmatpush.bf16.msra.mxu0 %v3489
  %5568 = vmatpush.bf16.msra.mxu0 %v3485
  %5569 = vmatpush.bf16.msra.mxu0 %v3481
  %5570 = vmatpush.bf16.msra.mxu0 %v3477
  %5571 = vmatpush.bf16.msra.mxu0 %v3473
  %5572 = vmatpush.bf16.msra.mxu0 %v3469
  %5573 = vmatpush.bf16.msra.mxu0 %v3465
  %5574 = vmatpush.bf16.msra.mxu0 %v3461
  %5575 = vmatmul.bf16.gmra.mxu0 %v872
  %v5576 = vpop.f32.mrf.mxu0
  %v5577 = vadd.f32 %v5564, %v5576
  %v5578 = vpop.f32.mrf.mxu0
  %5579 = vdwg.mxu0
  %5580 = vmatpush.bf16.msra.mxu0 %v3521
  %5581 = vmatpush.bf16.msra.mxu0 %v3517
  %5582 = vmatpush.bf16.msra.mxu0 %v3513
  %5583 = vmatpush.bf16.msra.mxu0 %v3509
  %5584 = vmatpush.bf16.msra.mxu0 %v3505
  %5585 = vmatpush.bf16.msra.mxu0 %v3501
  %5586 = vmatpush.bf16.msra.mxu0 %v3497
  %5587 = vmatpush.bf16.msra.mxu0 %v3493
  %5588 = vmatmul.bf16.gmra.mxu0 %v873
  %v5589 = vpop.f32.mrf.mxu0
  %v5590 = vadd.f32 %v5577, %v5589
  %v5591 = vpop.f32.mrf.mxu0
  %5592 = vdwg.mxu0
  %5593 = vmatpush.bf16.msra.mxu0 %v3553
  %5594 = vmatpush.bf16.msra.mxu0 %v3549
  %5595 = vmatpush.bf16.msra.mxu0 %v3545
  %5596 = vmatpush.bf16.msra.mxu0 %v3541
  %5597 = vmatpush.bf16.msra.mxu0 %v3537
  %5598 = vmatpush.bf16.msra.mxu0 %v3533
  %5599 = vmatpush.bf16.msra.mxu0 %v3529
  %5600 = vmatpush.bf16.msra.mxu0 %v3525
  %5601 = vmatmul.bf16.gmra.mxu0 %v874
  %v5602 = vpop.f32.mrf.mxu0
  %v5603 = vadd.f32 %v5590, %v5602
  %v5604 = vpop.f32.mrf.mxu0
  %5605 = vdwg.mxu0
  %5606 = vmatpush.bf16.msra.mxu0 %v3585
  %5607 = vmatpush.bf16.msra.mxu0 %v3581
  %5608 = vmatpush.bf16.msra.mxu0 %v3577
  %5609 = vmatpush.bf16.msra.mxu0 %v3573
  %5610 = vmatpush.bf16.msra.mxu0 %v3569
  %5611 = vmatpush.bf16.msra.mxu0 %v3565
  %5612 = vmatpush.bf16.msra.mxu0 %v3561
  %5613 = vmatpush.bf16.msra.mxu0 %v3557
  %5614 = vmatmul.bf16.gmra.mxu0 %v875
  %v5615 = vpop.f32.mrf.mxu0
  %v5616 = vadd.f32 %v5603, %v5615
  %v5617 = vpop.f32.mrf.mxu0
  %5618 = vdwg.mxu0
  %5619 = vmatpush.bf16.msra.mxu0 %v3617
  %5620 = vmatpush.bf16.msra.mxu0 %v3613
  %5621 = vmatpush.bf16.msra.mxu0 %v3609
  %5622 = vmatpush.bf16.msra.mxu0 %v3605
  %5623 = vmatpush.bf16.msra.mxu0 %v3601
  %5624 = vmatpush.bf16.msra.mxu0 %v3597
  %5625 = vmatpush.bf16.msra.mxu0 %v3593
  %5626 = vmatpush.bf16.msra.mxu0 %v3589
  %5627 = vmatmul.bf16.gmra.mxu0 %v876
  %v5628 = vpop.f32.mrf.mxu0
  %v5629 = vadd.f32 %v5616, %v5628
  %v5630 = vpop.f32.mrf.mxu0
  %5631 = vdwg.mxu0
  %5632 = vmatpush.bf16.msra.mxu0 %v3649
  %5633 = vmatpush.bf16.msra.mxu0 %v3645
  %5634 = vmatpush.bf16.msra.mxu0 %v3641
  %5635 = vmatpush.bf16.msra.mxu0 %v3637
  %5636 = vmatpush.bf16.msra.mxu0 %v3633
  %5637 = vmatpush.bf16.msra.mxu0 %v3629
  %5638 = vmatpush.bf16.msra.mxu0 %v3625
  %5639 = vmatpush.bf16.msra.mxu0 %v3621
  %5640 = vmatmul.bf16.gmra.mxu0 %v877
  %v5641 = vpop.f32.mrf.mxu0
  %v5642 = vadd.f32 %v5629, %v5641
  %v5643 = vpop.f32.mrf.mxu0
  %5644 = vdwg.mxu0
  %5645 = vmatpush.bf16.msra.mxu0 %v3681
  %5646 = vmatpush.bf16.msra.mxu0 %v3677
  %5647 = vmatpush.bf16.msra.mxu0 %v3673
  %5648 = vmatpush.bf16.msra.mxu0 %v3669
  %5649 = vmatpush.bf16.msra.mxu0 %v3665
  %5650 = vmatpush.bf16.msra.mxu0 %v3661
  %5651 = vmatpush.bf16.msra.mxu0 %v3657
  %5652 = vmatpush.bf16.msra.mxu0 %v3653
  %5653 = vmatmul.bf16.gmra.mxu0 %v878
  %v5654 = vpop.f32.mrf.mxu0
  %v5655 = vadd.f32 %v5642, %v5654
  %v5656 = vpop.f32.mrf.mxu0
  %5657 = vdwg.mxu0
  %5658 = vmatpush.bf16.msra.mxu0 %v3713
  %5659 = vmatpush.bf16.msra.mxu0 %v3709
  %5660 = vmatpush.bf16.msra.mxu0 %v3705
  %5661 = vmatpush.bf16.msra.mxu0 %v3701
  %5662 = vmatpush.bf16.msra.mxu0 %v3697
  %5663 = vmatpush.bf16.msra.mxu0 %v3693
  %5664 = vmatpush.bf16.msra.mxu0 %v3689
  %5665 = vmatpush.bf16.msra.mxu0 %v3685
  %5666 = vmatmul.bf16.gmra.mxu0 %v879
  %v5667 = vpop.f32.mrf.mxu0
  %v5668 = vadd.f32 %v5655, %v5667
  %v5669 = vpop.f32.mrf.mxu0
  %5670 = vdwg.mxu0
  %5671 = vmatpush.bf16.msra.mxu0 %v3745
  %5672 = vmatpush.bf16.msra.mxu0 %v3741
  %5673 = vmatpush.bf16.msra.mxu0 %v3737
  %5674 = vmatpush.bf16.msra.mxu0 %v3733
  %5675 = vmatpush.bf16.msra.mxu0 %v3729
  %5676 = vmatpush.bf16.msra.mxu0 %v3725
  %5677 = vmatpush.bf16.msra.mxu0 %v3721
  %5678 = vmatpush.bf16.msra.mxu0 %v3717
  %5679 = vmatmul.bf16.gmra.mxu0 %v880
  %v5680 = vpop.f32.mrf.mxu0
  %v5681 = vadd.f32 %v5668, %v5680
  %v5682 = vpop.f32.mrf.mxu0
  %5683 = vdwg.mxu0
  %5684 = vmatpush.bf16.msra.mxu0 %v3777
  %5685 = vmatpush.bf16.msra.mxu0 %v3773
  %5686 = vmatpush.bf16.msra.mxu0 %v3769
  %5687 = vmatpush.bf16.msra.mxu0 %v3765
  %5688 = vmatpush.bf16.msra.mxu0 %v3761
  %5689 = vmatpush.bf16.msra.mxu0 %v3757
  %5690 = vmatpush.bf16.msra.mxu0 %v3753
  %5691 = vmatpush.bf16.msra.mxu0 %v3749
  %5692 = vmatmul.bf16.gmra.mxu0 %v881
  %v5693 = vpop.f32.mrf.mxu0
  %v5694 = vadd.f32 %v5681, %v5693
  %v5695 = vpop.f32.mrf.mxu0
  %5696 = vdwg.mxu0
  %5697 = vmatpush.bf16.msra.mxu0 %v3809
  %5698 = vmatpush.bf16.msra.mxu0 %v3805
  %5699 = vmatpush.bf16.msra.mxu0 %v3801
  %5700 = vmatpush.bf16.msra.mxu0 %v3797
  %5701 = vmatpush.bf16.msra.mxu0 %v3793
  %5702 = vmatpush.bf16.msra.mxu0 %v3789
  %5703 = vmatpush.bf16.msra.mxu0 %v3785
  %5704 = vmatpush.bf16.msra.mxu0 %v3781
  %5705 = vmatmul.bf16.gmra.mxu0 %v882
  %v5706 = vpop.f32.mrf.mxu0
  %v5707 = vadd.f32 %v5694, %v5706
  %v5708 = vpop.f32.mrf.mxu0
  %5709 = vdwg.mxu0
  %5710 = vmatpush.bf16.msra.mxu0 %v3841
  %5711 = vmatpush.bf16.msra.mxu0 %v3837
  %5712 = vmatpush.bf16.msra.mxu0 %v3833
  %5713 = vmatpush.bf16.msra.mxu0 %v3829
  %5714 = vmatpush.bf16.msra.mxu0 %v3825
  %5715 = vmatpush.bf16.msra.mxu0 %v3821
  %5716 = vmatpush.bf16.msra.mxu0 %v3817
  %5717 = vmatpush.bf16.msra.mxu0 %v3813
  %5718 = vmatmul.bf16.gmra.mxu0 %v883
  %v5719 = vpop.f32.mrf.mxu0
  %v5720 = vadd.f32 %v5707, %v5719
  %v5721 = vpop.f32.mrf.mxu0
  %5722 = vdwg.mxu0
  %5723 = vmatpush.bf16.msra.mxu0 %v3873
  %5724 = vmatpush.bf16.msra.mxu0 %v3869
  %5725 = vmatpush.bf16.msra.mxu0 %v3865
  %5726 = vmatpush.bf16.msra.mxu0 %v3861
  %5727 = vmatpush.bf16.msra.mxu0 %v3857
  %5728 = vmatpush.bf16.msra.mxu0 %v3853
  %5729 = vmatpush.bf16.msra.mxu0 %v3849
  %5730 = vmatpush.bf16.msra.mxu0 %v3845
  %5731 = vmatmul.bf16.gmra.mxu0 %v884
  %v5732 = vpop.f32.mrf.mxu0
  %v5733 = vadd.f32 %v5720, %v5732
  %v5734 = vpop.f32.mrf.mxu0
  %5735 = vdwg.mxu0
  %5736 = vmatpush.bf16.msra.mxu0 %v3905
  %5737 = vmatpush.bf16.msra.mxu0 %v3901
  %5738 = vmatpush.bf16.msra.mxu0 %v3897
  %5739 = vmatpush.bf16.msra.mxu0 %v3893
  %5740 = vmatpush.bf16.msra.mxu0 %v3889
  %5741 = vmatpush.bf16.msra.mxu0 %v3885
  %5742 = vmatpush.bf16.msra.mxu0 %v3881
  %5743 = vmatpush.bf16.msra.mxu0 %v3877
  %5744 = vmatmul.bf16.gmra.mxu0 %v885
  %v5745 = vpop.f32.mrf.mxu0
  %v5746 = vadd.f32 %v5733, %v5745
  %v5747 = vpop.f32.mrf.mxu0
  %5748 = vdwg.mxu0
  %5749 = vmatpush.bf16.msra.mxu0 %v3937
  %5750 = vmatpush.bf16.msra.mxu0 %v3933
  %5751 = vmatpush.bf16.msra.mxu0 %v3929
  %5752 = vmatpush.bf16.msra.mxu0 %v3925
  %5753 = vmatpush.bf16.msra.mxu0 %v3921
  %5754 = vmatpush.bf16.msra.mxu0 %v3917
  %5755 = vmatpush.bf16.msra.mxu0 %v3913
  %5756 = vmatpush.bf16.msra.mxu0 %v3909
  %5757 = vmatmul.bf16.gmra.mxu0 %v886
  %v5758 = vpop.f32.mrf.mxu0
  %v5759 = vadd.f32 %v5746, %v5758
  %v5760 = vpop.f32.mrf.mxu0
  %5761 = vdwg.mxu0
  %5762 = vmatpush.bf16.msra.mxu0 %v3969
  %5763 = vmatpush.bf16.msra.mxu0 %v3965
  %5764 = vmatpush.bf16.msra.mxu0 %v3961
  %5765 = vmatpush.bf16.msra.mxu0 %v3957
  %5766 = vmatpush.bf16.msra.mxu0 %v3953
  %5767 = vmatpush.bf16.msra.mxu0 %v3949
  %5768 = vmatpush.bf16.msra.mxu0 %v3945
  %5769 = vmatpush.bf16.msra.mxu0 %v3941
  %5770 = vmatmul.bf16.gmra.mxu0 %v887
  %v5771 = vpop.f32.mrf.mxu0
  %v5772 = vadd.f32 %v5759, %v5771
  %v5773 = vpop.f32.mrf.mxu0
  %5774 = vdwg.mxu0
  %5775 = vmatpush.bf16.msra.mxu0 %v4001
  %5776 = vmatpush.bf16.msra.mxu0 %v3997
  %5777 = vmatpush.bf16.msra.mxu0 %v3993
  %5778 = vmatpush.bf16.msra.mxu0 %v3989
  %5779 = vmatpush.bf16.msra.mxu0 %v3985
  %5780 = vmatpush.bf16.msra.mxu0 %v3981
  %5781 = vmatpush.bf16.msra.mxu0 %v3977
  %5782 = vmatpush.bf16.msra.mxu0 %v3973
  %5783 = vmatmul.bf16.gmra.mxu0 %v888
  %v5784 = vpop.f32.mrf.mxu0
  %v5785 = vadd.f32 %v5772, %v5784
  %v5786 = vpop.f32.mrf.mxu0
  %5787 = vdwg.mxu0
  %5788 = vmatpush.bf16.msra.mxu0 %v4033
  %5789 = vmatpush.bf16.msra.mxu0 %v4029
  %5790 = vmatpush.bf16.msra.mxu0 %v4025
  %5791 = vmatpush.bf16.msra.mxu0 %v4021
  %5792 = vmatpush.bf16.msra.mxu0 %v4017
  %5793 = vmatpush.bf16.msra.mxu0 %v4013
  %5794 = vmatpush.bf16.msra.mxu0 %v4009
  %5795 = vmatpush.bf16.msra.mxu0 %v4005
  %5796 = vmatmul.bf16.gmra.mxu0 %v889
  %v5797 = vpop.f32.mrf.mxu0
  %v5798 = vadd.f32 %v5785, %v5797
  %v5799 = vpop.f32.mrf.mxu0
  %5800 = vdwg.mxu0
  %5801 = vmatpush.bf16.msra.mxu0 0
  %5802 = vmatpush.bf16.msra.mxu0 0
  %5803 = vmatpush.bf16.msra.mxu0 0
  %5804 = vmatpush.bf16.msra.mxu0 0
  %5805 = vmatpush.bf16.msra.mxu0 %v4049
  %5806 = vmatpush.bf16.msra.mxu0 %v4045
  %5807 = vmatpush.bf16.msra.mxu0 %v4041
  %5808 = vmatpush.bf16.msra.mxu0 %v4037
  %5809 = vmatmul.bf16.gmra.mxu0 %v4837
  %v5810 = vpop.f32.mrf.mxu0
  %v5811 = vadd.f32 %v5798, %v5810
  %v5812 = vpop.f32.mrf.mxu0
  %5813 = vdwg.mxu0
  %5814 = vmatpush.bf16.msra.mxu0 %v3298
  %5815 = vmatpush.bf16.msra.mxu0 %v3294
  %5816 = vmatpush.bf16.msra.mxu0 %v3290
  %5817 = vmatpush.bf16.msra.mxu0 %v3286
  %5818 = vmatpush.bf16.msra.mxu0 %v3282
  %5819 = vmatpush.bf16.msra.mxu0 %v3278
  %5820 = vmatpush.bf16.msra.mxu0 %v3274
  %5821 = vmatpush.bf16.msra.mxu0 %v3270
  %5822 = vmatmul.bf16.gmra.mxu0 %v866
  %v5823 = vpop.f32.mrf.mxu0
  %v5824 = vadd.f32 %v823, %v5823
  %v5825 = vpop.f32.mrf.mxu0
  %5826 = vdwg.mxu0
  %5827 = vmatpush.bf16.msra.mxu0 %v3330
  %5828 = vmatpush.bf16.msra.mxu0 %v3326
  %5829 = vmatpush.bf16.msra.mxu0 %v3322
  %5830 = vmatpush.bf16.msra.mxu0 %v3318
  %5831 = vmatpush.bf16.msra.mxu0 %v3314
  %5832 = vmatpush.bf16.msra.mxu0 %v3310
  %5833 = vmatpush.bf16.msra.mxu0 %v3306
  %5834 = vmatpush.bf16.msra.mxu0 %v3302
  %5835 = vmatmul.bf16.gmra.mxu0 %v867
  %v5836 = vpop.f32.mrf.mxu0
  %v5837 = vadd.f32 %v5824, %v5836
  %v5838 = vpop.f32.mrf.mxu0
  %5839 = vdwg.mxu0
  %5840 = vmatpush.bf16.msra.mxu0 %v3362
  %5841 = vmatpush.bf16.msra.mxu0 %v3358
  %5842 = vmatpush.bf16.msra.mxu0 %v3354
  %5843 = vmatpush.bf16.msra.mxu0 %v3350
  %5844 = vmatpush.bf16.msra.mxu0 %v3346
  %5845 = vmatpush.bf16.msra.mxu0 %v3342
  %5846 = vmatpush.bf16.msra.mxu0 %v3338
  %5847 = vmatpush.bf16.msra.mxu0 %v3334
  %5848 = vmatmul.bf16.gmra.mxu0 %v868
  %v5849 = vpop.f32.mrf.mxu0
  %v5850 = vadd.f32 %v5837, %v5849
  %v5851 = vpop.f32.mrf.mxu0
  %5852 = vdwg.mxu0
  %5853 = vmatpush.bf16.msra.mxu0 %v3394
  %5854 = vmatpush.bf16.msra.mxu0 %v3390
  %5855 = vmatpush.bf16.msra.mxu0 %v3386
  %5856 = vmatpush.bf16.msra.mxu0 %v3382
  %5857 = vmatpush.bf16.msra.mxu0 %v3378
  %5858 = vmatpush.bf16.msra.mxu0 %v3374
  %5859 = vmatpush.bf16.msra.mxu0 %v3370
  %5860 = vmatpush.bf16.msra.mxu0 %v3366
  %5861 = vmatmul.bf16.gmra.mxu0 %v869
  %v5862 = vpop.f32.mrf.mxu0
  %v5863 = vadd.f32 %v5850, %v5862
  %v5864 = vpop.f32.mrf.mxu0
  %5865 = vdwg.mxu0
  %5866 = vmatpush.bf16.msra.mxu0 %v3426
  %5867 = vmatpush.bf16.msra.mxu0 %v3422
  %5868 = vmatpush.bf16.msra.mxu0 %v3418
  %5869 = vmatpush.bf16.msra.mxu0 %v3414
  %5870 = vmatpush.bf16.msra.mxu0 %v3410
  %5871 = vmatpush.bf16.msra.mxu0 %v3406
  %5872 = vmatpush.bf16.msra.mxu0 %v3402
  %5873 = vmatpush.bf16.msra.mxu0 %v3398
  %5874 = vmatmul.bf16.gmra.mxu0 %v870
  %v5875 = vpop.f32.mrf.mxu0
  %v5876 = vadd.f32 %v5863, %v5875
  %v5877 = vpop.f32.mrf.mxu0
  %5878 = vdwg.mxu0
  %5879 = vmatpush.bf16.msra.mxu0 %v3458
  %5880 = vmatpush.bf16.msra.mxu0 %v3454
  %5881 = vmatpush.bf16.msra.mxu0 %v3450
  %5882 = vmatpush.bf16.msra.mxu0 %v3446
  %5883 = vmatpush.bf16.msra.mxu0 %v3442
  %5884 = vmatpush.bf16.msra.mxu0 %v3438
  %5885 = vmatpush.bf16.msra.mxu0 %v3434
  %5886 = vmatpush.bf16.msra.mxu0 %v3430
  %5887 = vmatmul.bf16.gmra.mxu0 %v871
  %v5888 = vpop.f32.mrf.mxu0
  %v5889 = vadd.f32 %v5876, %v5888
  %v5890 = vpop.f32.mrf.mxu0
  %5891 = vdwg.mxu0
  %5892 = vmatpush.bf16.msra.mxu0 %v3490
  %5893 = vmatpush.bf16.msra.mxu0 %v3486
  %5894 = vmatpush.bf16.msra.mxu0 %v3482
  %5895 = vmatpush.bf16.msra.mxu0 %v3478
  %5896 = vmatpush.bf16.msra.mxu0 %v3474
  %5897 = vmatpush.bf16.msra.mxu0 %v3470
  %5898 = vmatpush.bf16.msra.mxu0 %v3466
  %5899 = vmatpush.bf16.msra.mxu0 %v3462
  %5900 = vmatmul.bf16.gmra.mxu0 %v872
  %v5901 = vpop.f32.mrf.mxu0
  %v5902 = vadd.f32 %v5889, %v5901
  %v5903 = vpop.f32.mrf.mxu0
  %5904 = vdwg.mxu0
  %5905 = vmatpush.bf16.msra.mxu0 %v3522
  %5906 = vmatpush.bf16.msra.mxu0 %v3518
  %5907 = vmatpush.bf16.msra.mxu0 %v3514
  %5908 = vmatpush.bf16.msra.mxu0 %v3510
  %5909 = vmatpush.bf16.msra.mxu0 %v3506
  %5910 = vmatpush.bf16.msra.mxu0 %v3502
  %5911 = vmatpush.bf16.msra.mxu0 %v3498
  %5912 = vmatpush.bf16.msra.mxu0 %v3494
  %5913 = vmatmul.bf16.gmra.mxu0 %v873
  %v5914 = vpop.f32.mrf.mxu0
  %v5915 = vadd.f32 %v5902, %v5914
  %v5916 = vpop.f32.mrf.mxu0
  %5917 = vdwg.mxu0
  %5918 = vmatpush.bf16.msra.mxu0 %v3554
  %5919 = vmatpush.bf16.msra.mxu0 %v3550
  %5920 = vmatpush.bf16.msra.mxu0 %v3546
  %5921 = vmatpush.bf16.msra.mxu0 %v3542
  %5922 = vmatpush.bf16.msra.mxu0 %v3538
  %5923 = vmatpush.bf16.msra.mxu0 %v3534
  %5924 = vmatpush.bf16.msra.mxu0 %v3530
  %5925 = vmatpush.bf16.msra.mxu0 %v3526
  %5926 = vmatmul.bf16.gmra.mxu0 %v874
  %v5927 = vpop.f32.mrf.mxu0
  %v5928 = vadd.f32 %v5915, %v5927
  %v5929 = vpop.f32.mrf.mxu0
  %5930 = vdwg.mxu0
  %5931 = vmatpush.bf16.msra.mxu0 %v3586
  %5932 = vmatpush.bf16.msra.mxu0 %v3582
  %5933 = vmatpush.bf16.msra.mxu0 %v3578
  %5934 = vmatpush.bf16.msra.mxu0 %v3574
  %5935 = vmatpush.bf16.msra.mxu0 %v3570
  %5936 = vmatpush.bf16.msra.mxu0 %v3566
  %5937 = vmatpush.bf16.msra.mxu0 %v3562
  %5938 = vmatpush.bf16.msra.mxu0 %v3558
  %5939 = vmatmul.bf16.gmra.mxu0 %v875
  %v5940 = vpop.f32.mrf.mxu0
  %v5941 = vadd.f32 %v5928, %v5940
  %v5942 = vpop.f32.mrf.mxu0
  %5943 = vdwg.mxu0
  %5944 = vmatpush.bf16.msra.mxu0 %v3618
  %5945 = vmatpush.bf16.msra.mxu0 %v3614
  %5946 = vmatpush.bf16.msra.mxu0 %v3610
  %5947 = vmatpush.bf16.msra.mxu0 %v3606
  %5948 = vmatpush.bf16.msra.mxu0 %v3602
  %5949 = vmatpush.bf16.msra.mxu0 %v3598
  %5950 = vmatpush.bf16.msra.mxu0 %v3594
  %5951 = vmatpush.bf16.msra.mxu0 %v3590
  %5952 = vmatmul.bf16.gmra.mxu0 %v876
  %v5953 = vpop.f32.mrf.mxu0
  %v5954 = vadd.f32 %v5941, %v5953
  %v5955 = vpop.f32.mrf.mxu0
  %5956 = vdwg.mxu0
  %5957 = vmatpush.bf16.msra.mxu0 %v3650
  %5958 = vmatpush.bf16.msra.mxu0 %v3646
  %5959 = vmatpush.bf16.msra.mxu0 %v3642
  %5960 = vmatpush.bf16.msra.mxu0 %v3638
  %5961 = vmatpush.bf16.msra.mxu0 %v3634
  %5962 = vmatpush.bf16.msra.mxu0 %v3630
  %5963 = vmatpush.bf16.msra.mxu0 %v3626
  %5964 = vmatpush.bf16.msra.mxu0 %v3622
  %5965 = vmatmul.bf16.gmra.mxu0 %v877
  %v5966 = vpop.f32.mrf.mxu0
  %v5967 = vadd.f32 %v5954, %v5966
  %v5968 = vpop.f32.mrf.mxu0
  %5969 = vdwg.mxu0
  %5970 = vmatpush.bf16.msra.mxu0 %v3682
  %5971 = vmatpush.bf16.msra.mxu0 %v3678
  %5972 = vmatpush.bf16.msra.mxu0 %v3674
  %5973 = vmatpush.bf16.msra.mxu0 %v3670
  %5974 = vmatpush.bf16.msra.mxu0 %v3666
  %5975 = vmatpush.bf16.msra.mxu0 %v3662
  %5976 = vmatpush.bf16.msra.mxu0 %v3658
  %5977 = vmatpush.bf16.msra.mxu0 %v3654
  %5978 = vmatmul.bf16.gmra.mxu0 %v878
  %v5979 = vpop.f32.mrf.mxu0
  %v5980 = vadd.f32 %v5967, %v5979
  %v5981 = vpop.f32.mrf.mxu0
  %5982 = vdwg.mxu0
  %5983 = vmatpush.bf16.msra.mxu0 %v3714
  %5984 = vmatpush.bf16.msra.mxu0 %v3710
  %5985 = vmatpush.bf16.msra.mxu0 %v3706
  %5986 = vmatpush.bf16.msra.mxu0 %v3702
  %5987 = vmatpush.bf16.msra.mxu0 %v3698
  %5988 = vmatpush.bf16.msra.mxu0 %v3694
  %5989 = vmatpush.bf16.msra.mxu0 %v3690
  %5990 = vmatpush.bf16.msra.mxu0 %v3686
  %5991 = vmatmul.bf16.gmra.mxu0 %v879
  %v5992 = vpop.f32.mrf.mxu0
  %v5993 = vadd.f32 %v5980, %v5992
  %v5994 = vpop.f32.mrf.mxu0
  %5995 = vdwg.mxu0
  %5996 = vmatpush.bf16.msra.mxu0 %v3746
  %5997 = vmatpush.bf16.msra.mxu0 %v3742
  %5998 = vmatpush.bf16.msra.mxu0 %v3738
  %5999 = vmatpush.bf16.msra.mxu0 %v3734
  %6000 = vmatpush.bf16.msra.mxu0 %v3730
  %6001 = vmatpush.bf16.msra.mxu0 %v3726
  %6002 = vmatpush.bf16.msra.mxu0 %v3722
  %6003 = vmatpush.bf16.msra.mxu0 %v3718
  %6004 = vmatmul.bf16.gmra.mxu0 %v880
  %v6005 = vpop.f32.mrf.mxu0
  %v6006 = vadd.f32 %v5993, %v6005
  %v6007 = vpop.f32.mrf.mxu0
  %6008 = vdwg.mxu0
  %6009 = vmatpush.bf16.msra.mxu0 %v3778
  %6010 = vmatpush.bf16.msra.mxu0 %v3774
  %6011 = vmatpush.bf16.msra.mxu0 %v3770
  %6012 = vmatpush.bf16.msra.mxu0 %v3766
  %6013 = vmatpush.bf16.msra.mxu0 %v3762
  %6014 = vmatpush.bf16.msra.mxu0 %v3758
  %6015 = vmatpush.bf16.msra.mxu0 %v3754
  %6016 = vmatpush.bf16.msra.mxu0 %v3750
  %6017 = vmatmul.bf16.gmra.mxu0 %v881
  %v6018 = vpop.f32.mrf.mxu0
  %v6019 = vadd.f32 %v6006, %v6018
  %v6020 = vpop.f32.mrf.mxu0
  %6021 = vdwg.mxu0
  %6022 = vmatpush.bf16.msra.mxu0 %v3810
  %6023 = vmatpush.bf16.msra.mxu0 %v3806
  %6024 = vmatpush.bf16.msra.mxu0 %v3802
  %6025 = vmatpush.bf16.msra.mxu0 %v3798
  %6026 = vmatpush.bf16.msra.mxu0 %v3794
  %6027 = vmatpush.bf16.msra.mxu0 %v3790
  %6028 = vmatpush.bf16.msra.mxu0 %v3786
  %6029 = vmatpush.bf16.msra.mxu0 %v3782
  %6030 = vmatmul.bf16.gmra.mxu0 %v882
  %v6031 = vpop.f32.mrf.mxu0
  %v6032 = vadd.f32 %v6019, %v6031
  %v6033 = vpop.f32.mrf.mxu0
  %6034 = vdwg.mxu0
  %6035 = vmatpush.bf16.msra.mxu0 %v3842
  %6036 = vmatpush.bf16.msra.mxu0 %v3838
  %6037 = vmatpush.bf16.msra.mxu0 %v3834
  %6038 = vmatpush.bf16.msra.mxu0 %v3830
  %6039 = vmatpush.bf16.msra.mxu0 %v3826
  %6040 = vmatpush.bf16.msra.mxu0 %v3822
  %6041 = vmatpush.bf16.msra.mxu0 %v3818
  %6042 = vmatpush.bf16.msra.mxu0 %v3814
  %6043 = vmatmul.bf16.gmra.mxu0 %v883
  %v6044 = vpop.f32.mrf.mxu0
  %v6045 = vadd.f32 %v6032, %v6044
  %v6046 = vpop.f32.mrf.mxu0
  %6047 = vdwg.mxu0
  %6048 = vmatpush.bf16.msra.mxu0 %v3874
  %6049 = vmatpush.bf16.msra.mxu0 %v3870
  %6050 = vmatpush.bf16.msra.mxu0 %v3866
  %6051 = vmatpush.bf16.msra.mxu0 %v3862
  %6052 = vmatpush.bf16.msra.mxu0 %v3858
  %6053 = vmatpush.bf16.msra.mxu0 %v3854
  %6054 = vmatpush.bf16.msra.mxu0 %v3850
  %6055 = vmatpush.bf16.msra.mxu0 %v3846
  %6056 = vmatmul.bf16.gmra.mxu0 %v884
  %v6057 = vpop.f32.mrf.mxu0
  %v6058 = vadd.f32 %v6045, %v6057
  %v6059 = vpop.f32.mrf.mxu0
  %6060 = vdwg.mxu0
  %6061 = vmatpush.bf16.msra.mxu0 %v3906
  %6062 = vmatpush.bf16.msra.mxu0 %v3902
  %6063 = vmatpush.bf16.msra.mxu0 %v3898
  %6064 = vmatpush.bf16.msra.mxu0 %v3894
  %6065 = vmatpush.bf16.msra.mxu0 %v3890
  %6066 = vmatpush.bf16.msra.mxu0 %v3886
  %6067 = vmatpush.bf16.msra.mxu0 %v3882
  %6068 = vmatpush.bf16.msra.mxu0 %v3878
  %6069 = vmatmul.bf16.gmra.mxu0 %v885
  %v6070 = vpop.f32.mrf.mxu0
  %v6071 = vadd.f32 %v6058, %v6070
  %v6072 = vpop.f32.mrf.mxu0
  %6073 = vdwg.mxu0
  %6074 = vmatpush.bf16.msra.mxu0 %v3938
  %6075 = vmatpush.bf16.msra.mxu0 %v3934
  %6076 = vmatpush.bf16.msra.mxu0 %v3930
  %6077 = vmatpush.bf16.msra.mxu0 %v3926
  %6078 = vmatpush.bf16.msra.mxu0 %v3922
  %6079 = vmatpush.bf16.msra.mxu0 %v3918
  %6080 = vmatpush.bf16.msra.mxu0 %v3914
  %6081 = vmatpush.bf16.msra.mxu0 %v3910
  %6082 = vmatmul.bf16.gmra.mxu0 %v886
  %v6083 = vpop.f32.mrf.mxu0
  %v6084 = vadd.f32 %v6071, %v6083
  %v6085 = vpop.f32.mrf.mxu0
  %6086 = vdwg.mxu0
  %6087 = vmatpush.bf16.msra.mxu0 %v3970
  %6088 = vmatpush.bf16.msra.mxu0 %v3966
  %6089 = vmatpush.bf16.msra.mxu0 %v3962
  %6090 = vmatpush.bf16.msra.mxu0 %v3958
  %6091 = vmatpush.bf16.msra.mxu0 %v3954
  %6092 = vmatpush.bf16.msra.mxu0 %v3950
  %6093 = vmatpush.bf16.msra.mxu0 %v3946
  %6094 = vmatpush.bf16.msra.mxu0 %v3942
  %6095 = vmatmul.bf16.gmra.mxu0 %v887
  %v6096 = vpop.f32.mrf.mxu0
  %v6097 = vadd.f32 %v6084, %v6096
  %v6098 = vpop.f32.mrf.mxu0
  %6099 = vdwg.mxu0
  %6100 = vmatpush.bf16.msra.mxu0 %v4002
  %6101 = vmatpush.bf16.msra.mxu0 %v3998
  %6102 = vmatpush.bf16.msra.mxu0 %v3994
  %6103 = vmatpush.bf16.msra.mxu0 %v3990
  %6104 = vmatpush.bf16.msra.mxu0 %v3986
  %6105 = vmatpush.bf16.msra.mxu0 %v3982
  %6106 = vmatpush.bf16.msra.mxu0 %v3978
  %6107 = vmatpush.bf16.msra.mxu0 %v3974
  %6108 = vmatmul.bf16.gmra.mxu0 %v888
  %v6109 = vpop.f32.mrf.mxu0
  %v6110 = vadd.f32 %v6097, %v6109
  %v6111 = vpop.f32.mrf.mxu0
  %6112 = vdwg.mxu0
  %6113 = vmatpush.bf16.msra.mxu0 %v4034
  %6114 = vmatpush.bf16.msra.mxu0 %v4030
  %6115 = vmatpush.bf16.msra.mxu0 %v4026
  %6116 = vmatpush.bf16.msra.mxu0 %v4022
  %6117 = vmatpush.bf16.msra.mxu0 %v4018
  %6118 = vmatpush.bf16.msra.mxu0 %v4014
  %6119 = vmatpush.bf16.msra.mxu0 %v4010
  %6120 = vmatpush.bf16.msra.mxu0 %v4006
  %6121 = vmatmul.bf16.gmra.mxu0 %v889
  %v6122 = vpop.f32.mrf.mxu0
  %v6123 = vadd.f32 %v6110, %v6122
  %v6124 = vpop.f32.mrf.mxu0
  %6125 = vdwg.mxu0
  %6126 = vmatpush.bf16.msra.mxu0 0
  %6127 = vmatpush.bf16.msra.mxu0 0
  %6128 = vmatpush.bf16.msra.mxu0 0
  %6129 = vmatpush.bf16.msra.mxu0 0
  %6130 = vmatpush.bf16.msra.mxu0 %v4050
  %6131 = vmatpush.bf16.msra.mxu0 %v4046
  %6132 = vmatpush.bf16.msra.mxu0 %v4042
  %6133 = vmatpush.bf16.msra.mxu0 %v4038
  %6134 = vmatmul.bf16.gmra.mxu0 %v4837
  %v6135 = vpop.f32.mrf.mxu0
  %v6136 = vadd.f32 %v6123, %v6135
  %v6137 = vpop.f32.mrf.mxu0
  %6138 = vdwg.mxu0
  %v6139 = vmax.f32 %v5161, 0.0
  %v6140 = vmax.f32 %v5486, 0.0
  %v6141 = vmax.f32 %v5811, 0.0
  %v6142 = vmax.f32 %v6136, 0.0
  %v6143 = vpack.c.bf16 %v6139, %v6139
  %v6144 = vpack.c.bf16 %v6140, %v6140
  %v6145 = vpack.c.bf16 %v6141, %v6141
  %v6146 = vpack.c.bf16 %v6142, %v6142
  %v6147 = vld [vmem:[%s3] sm:$0xff]
  %v6148 = vld [vmem:[%s3 + $0x8] sm:$0xff]
  %v6149 = vld [vmem:[%s3 + $0x10] sm:$0xff]
  %v6150 = vld [vmem:[%s3 + $0x18] sm:$0xff]
  %v6151 = vld [vmem:[%s3 + $0x20] sm:$0xff]
  %v6152 = vld [vmem:[%s3 + $0x28] sm:$0xff]
  %v6153 = vld [vmem:[%s3 + $0x30] sm:$0xff]
  %v6154 = vld [vmem:[%s3 + $0x38] sm:$0xff]
  %v6155 = vld [vmem:[%s3 + $0x40] sm:$0xff]
  %v6156 = vld [vmem:[%s3 + $0x48] sm:$0xff]
  %v6157 = vld [vmem:[%s3 + $0x50] sm:$0xff]
  %v6158 = vld [vmem:[%s3 + $0x58] sm:$0xff]
  %v6159 = vld [vmem:[%s3 + $0x60] sm:$0xff]
  %v6160 = vld [vmem:[%s3 + $0x68] sm:$0xff]
  %v6161 = vld [vmem:[%s3 + $0x70] sm:$0xff]
  %v6162 = vld [vmem:[%s3 + $0x78] sm:$0xff]
  %v6163 = vld [vmem:[%s3 + $0x80] sm:$0xff]
  %v6164 = vld [vmem:[%s3 + $0x88] sm:$0xff]
  %v6165 = vld [vmem:[%s3 + $0x90] sm:$0xff]
  %v6166 = vld [vmem:[%s3 + $0x98] sm:$0xff]
  %v6167 = vld [vmem:[%s3 + $0xa0] sm:$0xff]
  %v6168 = vld [vmem:[%s3 + $0xa8] sm:$0xff]
  %v6169 = vld [vmem:[%s3 + $0xb0] sm:$0xff]
  %v6170 = vld [vmem:[%s3 + $0xb8] sm:$0xff]
  %v6171 = vld [vmem:[%s3 + $0xc0] sm:$0xff]
  %v6172 = vld [vmem:[%s3 + $0xc8] sm:$0xff]
  %v6173 = vld [vmem:[%s3 + $0xd0] sm:$0xff]
  %v6174 = vld [vmem:[%s3 + $0xd8] sm:$0xff]
  %v6175 = vld [vmem:[%s3 + $0xe0] sm:$0xff]
  %v6176 = vld [vmem:[%s3 + $0xe8] sm:$0xff]
  %v6177 = vld [vmem:[%s3 + $0xf0] sm:$0xff]
  %v6178 = vld [vmem:[%s3 + $0xf8] sm:$0xff]
  %v6179 = vld [vmem:[%s3 + $0x100] sm:$0xff]
  %v6180 = vld [vmem:[%s3 + $0x108] sm:$0xff]
  %v6181 = vld [vmem:[%s3 + $0x110] sm:$0xff]
  %v6182 = vld [vmem:[%s3 + $0x118] sm:$0xff]
  %v6183 = vld [vmem:[%s3 + $0x120] sm:$0xff]
  %v6184 = vld [vmem:[%s3 + $0x128] sm:$0xff]
  %v6185 = vld [vmem:[%s3 + $0x130] sm:$0xff]
  %v6186 = vld [vmem:[%s3 + $0x138] sm:$0xff]
  %v6187 = vld [vmem:[%s3 + $0x140] sm:$0xff]
  %v6188 = vld [vmem:[%s3 + $0x148] sm:$0xff]
  %v6189 = vld [vmem:[%s3 + $0x150] sm:$0xff]
  %v6190 = vld [vmem:[%s3 + $0x158] sm:$0xff]
  %v6191 = vld [vmem:[%s3 + $0x160] sm:$0xff]
  %v6192 = vld [vmem:[%s3 + $0x168] sm:$0xff]
  %v6193 = vld [vmem:[%s3 + $0x170] sm:$0xff]
  %v6194 = vld [vmem:[%s3 + $0x178] sm:$0xff]
  %v6195 = vld [vmem:[%s3 + $0x180] sm:$0xff]
  %v6196 = vld [vmem:[%s3 + $0x188] sm:$0xff]
  %v6197 = vld [vmem:[%s3 + $0x190] sm:$0xff]
  %v6198 = vld [vmem:[%s3 + $0x198] sm:$0xff]
  %v6199 = vld [vmem:[%s3 + $0x1a0] sm:$0xff]
  %v6200 = vld [vmem:[%s3 + $0x1a8] sm:$0xff]
  %v6201 = vld [vmem:[%s3 + $0x1b0] sm:$0xff]
  %v6202 = vld [vmem:[%s3 + $0x1b8] sm:$0xff]
  %v6203 = vld [vmem:[%s3 + $0x1c0] sm:$0xff]
  %v6204 = vld [vmem:[%s3 + $0x1c8] sm:$0xff]
  %v6205 = vld [vmem:[%s3 + $0x1d0] sm:$0xff]
  %v6206 = vld [vmem:[%s3 + $0x1d8] sm:$0xff]
  %v6207 = vld [vmem:[%s3 + $0x1e0] sm:$0xff]
  %v6208 = vld [vmem:[%s3 + $0x1e8] sm:$0xff]
  %v6209 = vld [vmem:[%s3 + $0x1f0] sm:$0xff]
  %v6210 = vld [vmem:[%s3 + $0x1f8] sm:$0xff]
  %v6211 = vld [vmem:[%s3 + $0x200] sm:$0xff]
  %v6212 = vld [vmem:[%s3 + $0x208] sm:$0xff]
  %v6213 = vld [vmem:[%s3 + $0x210] sm:$0xff]
  %v6214 = vld [vmem:[%s3 + $0x218] sm:$0xff]
  %v6215 = vld [vmem:[%s3 + $0x220] sm:$0xff]
  %v6216 = vld [vmem:[%s3 + $0x228] sm:$0xff]
  %v6217 = vld [vmem:[%s3 + $0x230] sm:$0xff]
  %v6218 = vld [vmem:[%s3 + $0x238] sm:$0xff]
  %v6219 = vld [vmem:[%s3 + $0x240] sm:$0xff]
  %v6220 = vld [vmem:[%s3 + $0x248] sm:$0xff]
  %v6221 = vld [vmem:[%s3 + $0x250] sm:$0xff]
  %v6222 = vld [vmem:[%s3 + $0x258] sm:$0xff]
  %v6223 = vld [vmem:[%s3 + $0x260] sm:$0xff]
  %v6224 = vld [vmem:[%s3 + $0x268] sm:$0xff]
  %v6225 = vld [vmem:[%s3 + $0x270] sm:$0xff]
  %v6226 = vld [vmem:[%s3 + $0x278] sm:$0xff]
  %v6227 = vld [vmem:[%s3 + $0x280] sm:$0xff]
  %v6228 = vld [vmem:[%s3 + $0x288] sm:$0xff]
  %v6229 = vld [vmem:[%s3 + $0x290] sm:$0xff]
  %v6230 = vld [vmem:[%s3 + $0x298] sm:$0xff]
  %v6231 = vld [vmem:[%s3 + $0x2a0] sm:$0xff]
  %v6232 = vld [vmem:[%s3 + $0x2a8] sm:$0xff]
  %v6233 = vld [vmem:[%s3 + $0x2b0] sm:$0xff]
  %v6234 = vld [vmem:[%s3 + $0x2b8] sm:$0xff]
  %v6235 = vld [vmem:[%s3 + $0x2c0] sm:$0xff]
  %v6236 = vld [vmem:[%s3 + $0x2c8] sm:$0xff]
  %v6237 = vld [vmem:[%s3 + $0x2d0] sm:$0xff]
  %v6238 = vld [vmem:[%s3 + $0x2d8] sm:$0xff]
  %v6239 = vld [vmem:[%s3 + $0x2e0] sm:$0xff]
  %v6240 = vld [vmem:[%s3 + $0x2e8] sm:$0xff]
  %v6241 = vld [vmem:[%s3 + $0x2f0] sm:$0xff]
  %v6242 = vld [vmem:[%s3 + $0x2f8] sm:$0xff]
  %v6243 = vld [vmem:[%s3 + $0x300] sm:$0xff]
  %v6244 = vld [vmem:[%s3 + $0x308] sm:$0xff]
  %v6245 = vld [vmem:[%s3 + $0x310] sm:$0xff]
  %v6246 = vld [vmem:[%s3 + $0x318] sm:$0xff]
  %v6247 = vld [vmem:[%s3 + $0x320] sm:$0xff]
  %v6248 = vld [vmem:[%s3 + $0x328] sm:$0xff]
  %v6249 = vld [vmem:[%s3 + $0x330] sm:$0xff]
  %v6250 = vld [vmem:[%s3 + $0x338] sm:$0xff]
  %v6251 = vld [vmem:[%s3 + $0x340] sm:$0xff]
  %v6252 = vld [vmem:[%s3 + $0x348] sm:$0xff]
  %v6253 = vld [vmem:[%s3 + $0x350] sm:$0xff]
  %v6254 = vld [vmem:[%s3 + $0x358] sm:$0xff]
  %v6255 = vld [vmem:[%s3 + $0x360] sm:$0xff]
  %v6256 = vld [vmem:[%s3 + $0x368] sm:$0xff]
  %v6257 = vld [vmem:[%s3 + $0x370] sm:$0xff]
  %v6258 = vld [vmem:[%s3 + $0x378] sm:$0xff]
  %v6259 = vld [vmem:[%s3 + $0x380] sm:$0xff]
  %v6260 = vld [vmem:[%s3 + $0x388] sm:$0xff]
  %v6261 = vld [vmem:[%s3 + $0x390] sm:$0xff]
  %v6262 = vld [vmem:[%s3 + $0x398] sm:$0xff]
  %v6263 = vld [vmem:[%s3 + $0x3a0] sm:$0xff]
  %v6264 = vld [vmem:[%s3 + $0x3a8] sm:$0xff]
  %v6265 = vld [vmem:[%s3 + $0x3b0] sm:$0xff]
  %v6266 = vld [vmem:[%s3 + $0x3b8] sm:$0xff]
  %v6267 = vld [vmem:[%s3 + $0x3c0] sm:$0xff]
  %v6268 = vld [vmem:[%s3 + $0x3c8] sm:$0xff]
  %v6269 = vld [vmem:[%s3 + $0x3d0] sm:$0xff]
  %v6270 = vld [vmem:[%s3 + $0x3d8] sm:$0xff]
  %v6271 = vld [vmem:[%s3 + $0x3e0] sm:$0xff]
  %v6272 = vld [vmem:[%s3 + $0x3e8] sm:$0xff]
  %v6273 = vld [vmem:[%s3 + $0x3f0] sm:$0xff]
  %v6274 = vld [vmem:[%s3 + $0x3f8] sm:$0xff]
  %v6275 = vld [vmem:[%s3 + $0x400] sm:$0xff]
  %v6276 = vld [vmem:[%s3 + $0x408] sm:$0xff]
  %v6277 = vld [vmem:[%s3 + $0x410] sm:$0xff]
  %v6278 = vld [vmem:[%s3 + $0x418] sm:$0xff]
  %v6279 = vld [vmem:[%s3 + $0x420] sm:$0xff]
  %v6280 = vld [vmem:[%s3 + $0x428] sm:$0xff]
  %v6281 = vld [vmem:[%s3 + $0x430] sm:$0xff]
  %v6282 = vld [vmem:[%s3 + $0x438] sm:$0xff]
  %v6283 = vld [vmem:[%s3 + $0x440] sm:$0xff]
  %v6284 = vld [vmem:[%s3 + $0x448] sm:$0xff]
  %v6285 = vld [vmem:[%s3 + $0x450] sm:$0xff]
  %v6286 = vld [vmem:[%s3 + $0x458] sm:$0xff]
  %v6287 = vld [vmem:[%s3 + $0x460] sm:$0xff]
  %v6288 = vld [vmem:[%s3 + $0x468] sm:$0xff]
  %v6289 = vld [vmem:[%s3 + $0x470] sm:$0xff]
  %v6290 = vld [vmem:[%s3 + $0x478] sm:$0xff]
  %v6291 = vld [vmem:[%s3 + $0x480] sm:$0xff]
  %v6292 = vld [vmem:[%s3 + $0x488] sm:$0xff]
  %v6293 = vld [vmem:[%s3 + $0x490] sm:$0xff]
  %v6294 = vld [vmem:[%s3 + $0x498] sm:$0xff]
  %v6295 = vld [vmem:[%s3 + $0x4a0] sm:$0xff]
  %v6296 = vld [vmem:[%s3 + $0x4a8] sm:$0xff]
  %v6297 = vld [vmem:[%s3 + $0x4b0] sm:$0xff]
  %v6298 = vld [vmem:[%s3 + $0x4b8] sm:$0xff]
  %v6299 = vld [vmem:[%s3 + $0x4c0] sm:$0xff]
  %v6300 = vld [vmem:[%s3 + $0x4c8] sm:$0xff]
  %v6301 = vld [vmem:[%s3 + $0x4d0] sm:$0xff]
  %v6302 = vld [vmem:[%s3 + $0x4d8] sm:$0xff]
  %v6303 = vld [vmem:[%s3 + $0x4e0] sm:$0xff]
  %v6304 = vld [vmem:[%s3 + $0x4e8] sm:$0xff]
  %v6305 = vld [vmem:[%s3 + $0x4f0] sm:$0xff]
  %v6306 = vld [vmem:[%s3 + $0x4f8] sm:$0xff]
  %v6307 = vld [vmem:[%s3 + $0x500] sm:$0xff]
  %v6308 = vld [vmem:[%s3 + $0x508] sm:$0xff]
  %v6309 = vld [vmem:[%s3 + $0x510] sm:$0xff]
  %v6310 = vld [vmem:[%s3 + $0x518] sm:$0xff]
  %v6311 = vld [vmem:[%s3 + $0x520] sm:$0xff]
  %v6312 = vld [vmem:[%s3 + $0x528] sm:$0xff]
  %v6313 = vld [vmem:[%s3 + $0x530] sm:$0xff]
  %v6314 = vld [vmem:[%s3 + $0x538] sm:$0xff]
  %v6315 = vld [vmem:[%s3 + $0x540] sm:$0xff]
  %v6316 = vld [vmem:[%s3 + $0x548] sm:$0xff]
  %v6317 = vld [vmem:[%s3 + $0x550] sm:$0xff]
  %v6318 = vld [vmem:[%s3 + $0x558] sm:$0xff]
  %v6319 = vld [vmem:[%s3 + $0x560] sm:$0xff]
  %v6320 = vld [vmem:[%s3 + $0x568] sm:$0xff]
  %v6321 = vld [vmem:[%s3 + $0x570] sm:$0xff]
  %v6322 = vld [vmem:[%s3 + $0x578] sm:$0xff]
  %v6323 = vld [vmem:[%s3 + $0x580] sm:$0xff]
  %v6324 = vld [vmem:[%s3 + $0x588] sm:$0xff]
  %v6325 = vld [vmem:[%s3 + $0x590] sm:$0xff]
  %v6326 = vld [vmem:[%s3 + $0x598] sm:$0xff]
  %v6327 = vld [vmem:[%s3 + $0x5a0] sm:$0xff]
  %v6328 = vld [vmem:[%s3 + $0x5a8] sm:$0xff]
  %v6329 = vld [vmem:[%s3 + $0x5b0] sm:$0xff]
  %v6330 = vld [vmem:[%s3 + $0x5b8] sm:$0xff]
  %v6331 = vld [vmem:[%s3 + $0x5c0] sm:$0xff]
  %v6332 = vld [vmem:[%s3 + $0x5c8] sm:$0xff]
  %v6333 = vld [vmem:[%s3 + $0x5d0] sm:$0xff]
  %v6334 = vld [vmem:[%s3 + $0x5d8] sm:$0xff]
  %v6335 = vld [vmem:[%s3 + $0x5e0] sm:$0xff]
  %v6336 = vld [vmem:[%s3 + $0x5e8] sm:$0xff]
  %v6337 = vld [vmem:[%s3 + $0x5f0] sm:$0xff]
  %v6338 = vld [vmem:[%s3 + $0x5f8] sm:$0xff]
  %v6339 = vld [vmem:[%s3 + $0x600] sm:$0xff]
  %v6340 = vld [vmem:[%s3 + $0x608] sm:$0xff]
  %v6341 = vld [vmem:[%s3 + $0x610] sm:$0xff]
  %v6342 = vld [vmem:[%s3 + $0x618] sm:$0xff]
  %v6343 = vld [vmem:[%s3 + $0x620] sm:$0xff]
  %v6344 = vld [vmem:[%s3 + $0x628] sm:$0xff]
  %v6345 = vld [vmem:[%s3 + $0x630] sm:$0xff]
  %v6346 = vld [vmem:[%s3 + $0x638] sm:$0xff]
  %v6347 = vld [vmem:[%s3 + $0x640] sm:$0xff]
  %v6348 = vld [vmem:[%s3 + $0x648] sm:$0xff]
  %v6349 = vld [vmem:[%s3 + $0x650] sm:$0xff]
  %v6350 = vld [vmem:[%s3 + $0x658] sm:$0xff]
  %v6351 = vld [vmem:[%s3 + $0x660] sm:$0xff]
  %v6352 = vld [vmem:[%s3 + $0x668] sm:$0xff]
  %v6353 = vld [vmem:[%s3 + $0x670] sm:$0xff]
  %v6354 = vld [vmem:[%s3 + $0x678] sm:$0xff]
  %v6355 = vld [vmem:[%s3 + $0x680] sm:$0xff]
  %v6356 = vld [vmem:[%s3 + $0x688] sm:$0xff]
  %v6357 = vld [vmem:[%s3 + $0x690] sm:$0xff]
  %v6358 = vld [vmem:[%s3 + $0x698] sm:$0xff]
  %v6359 = vld [vmem:[%s3 + $0x6a0] sm:$0xff]
  %v6360 = vld [vmem:[%s3 + $0x6a8] sm:$0xff]
  %v6361 = vld [vmem:[%s3 + $0x6b0] sm:$0xff]
  %v6362 = vld [vmem:[%s3 + $0x6b8] sm:$0xff]
  %v6363 = vld [vmem:[%s3 + $0x6c0] sm:$0xff]
  %v6364 = vld [vmem:[%s3 + $0x6c8] sm:$0xff]
  %v6365 = vld [vmem:[%s3 + $0x6d0] sm:$0xff]
  %v6366 = vld [vmem:[%s3 + $0x6d8] sm:$0xff]
  %v6367 = vld [vmem:[%s3 + $0x6e0] sm:$0xff]
  %v6368 = vld [vmem:[%s3 + $0x6e8] sm:$0xff]
  %v6369 = vld [vmem:[%s3 + $0x6f0] sm:$0xff]
  %v6370 = vld [vmem:[%s3 + $0x6f8] sm:$0xff]
  %v6371 = vld [vmem:[%s3 + $0x700] sm:$0xff]
  %v6372 = vld [vmem:[%s3 + $0x708] sm:$0xff]
  %v6373 = vld [vmem:[%s3 + $0x710] sm:$0xff]
  %v6374 = vld [vmem:[%s3 + $0x718] sm:$0xff]
  %v6375 = vld [vmem:[%s3 + $0x720] sm:$0xff]
  %v6376 = vld [vmem:[%s3 + $0x728] sm:$0xff]
  %v6377 = vld [vmem:[%s3 + $0x730] sm:$0xff]
  %v6378 = vld [vmem:[%s3 + $0x738] sm:$0xff]
  %v6379 = vld [vmem:[%s3 + $0x740] sm:$0xff]
  %v6380 = vld [vmem:[%s3 + $0x748] sm:$0xff]
  %v6381 = vld [vmem:[%s3 + $0x750] sm:$0xff]
  %v6382 = vld [vmem:[%s3 + $0x758] sm:$0xff]
  %v6383 = vld [vmem:[%s3 + $0x760] sm:$0xff]
  %v6384 = vld [vmem:[%s3 + $0x768] sm:$0xff]
  %v6385 = vld [vmem:[%s3 + $0x770] sm:$0xff]
  %v6386 = vld [vmem:[%s3 + $0x778] sm:$0xff]
  %v6387 = vld [vmem:[%s3 + $0x780] sm:$0xff]
  %v6388 = vld [vmem:[%s3 + $0x788] sm:$0xff]
  %v6389 = vld [vmem:[%s3 + $0x790] sm:$0xff]
  %v6390 = vld [vmem:[%s3 + $0x798] sm:$0xff]
  %v6391 = vld [vmem:[%s3 + $0x7a0] sm:$0xff]
  %v6392 = vld [vmem:[%s3 + $0x7a8] sm:$0xff]
  %v6393 = vld [vmem:[%s3 + $0x7b0] sm:$0xff]
  %v6394 = vld [vmem:[%s3 + $0x7b8] sm:$0xff]
  %v6395 = vld [vmem:[%s3 + $0x7c0] sm:$0xff]
  %v6396 = vld [vmem:[%s3 + $0x7c8] sm:$0xff]
  %v6397 = vld [vmem:[%s3 + $0x7d0] sm:$0xff]
  %v6398 = vld [vmem:[%s3 + $0x7d8] sm:$0xff]
  %v6399 = vld [vmem:[%s3 + $0x7e0] sm:$0xff]
  %v6400 = vld [vmem:[%s3 + $0x7e8] sm:$0xff]
  %v6401 = vld [vmem:[%s3 + $0x7f0] sm:$0xff]
  %v6402 = vld [vmem:[%s3 + $0x7f8] sm:$0xff]
  %v6403 = vld [vmem:[%s4] sm:$0xff]
  %v6405 = vperm.slane %v6403, 0
  %v6406 = vperm.slane %v6403, 1
  %v6407 = vperm.slane %v6403, 2
  %v6408 = vperm.slane %v6403, 3
  %v6409 = vperm.slane %v6403, 4
  %v6410 = vperm.slane %v6403, 5
  %v6411 = vperm.slane %v6403, 6
  %v6412 = vperm.slane %v6403, 7
  %v6677 = vunpack.c.l.b16 %v6147
  %v6678 = vunpack.c.h.b16 %v6147
  %v6679 = vunpack.c.l.b16 %v6148
  %v6680 = vunpack.c.h.b16 %v6148
  %v6681 = vunpack.c.l.b16 %v6149
  %v6682 = vunpack.c.h.b16 %v6149
  %v6683 = vunpack.c.l.b16 %v6150
  %v6684 = vunpack.c.h.b16 %v6150
  %v6685 = vunpack.c.l.b16 %v6151
  %v6686 = vunpack.c.h.b16 %v6151
  %v6687 = vunpack.c.l.b16 %v6152
  %v6688 = vunpack.c.h.b16 %v6152
  %v6689 = vunpack.c.l.b16 %v6153
  %v6690 = vunpack.c.h.b16 %v6153
  %v6691 = vunpack.c.l.b16 %v6154
  %v6692 = vunpack.c.h.b16 %v6154
  %v6693 = vunpack.c.l.b16 %v6155
  %v6694 = vunpack.c.h.b16 %v6155
  %v6695 = vunpack.c.l.b16 %v6156
  %v6696 = vunpack.c.h.b16 %v6156
  %v6697 = vunpack.c.l.b16 %v6157
  %v6698 = vunpack.c.h.b16 %v6157
  %v6699 = vunpack.c.l.b16 %v6158
  %v6700 = vunpack.c.h.b16 %v6158
  %v6701 = vunpack.c.l.b16 %v6159
  %v6702 = vunpack.c.h.b16 %v6159
  %v6703 = vunpack.c.l.b16 %v6160
  %v6704 = vunpack.c.h.b16 %v6160
  %v6705 = vunpack.c.l.b16 %v6161
  %v6706 = vunpack.c.h.b16 %v6161
  %v6707 = vunpack.c.l.b16 %v6162
  %v6708 = vunpack.c.h.b16 %v6162
  %v6709 = vunpack.c.l.b16 %v6163
  %v6710 = vunpack.c.h.b16 %v6163
  %v6711 = vunpack.c.l.b16 %v6164
  %v6712 = vunpack.c.h.b16 %v6164
  %v6713 = vunpack.c.l.b16 %v6165
  %v6714 = vunpack.c.h.b16 %v6165
  %v6715 = vunpack.c.l.b16 %v6166
  %v6716 = vunpack.c.h.b16 %v6166
  %v6717 = vunpack.c.l.b16 %v6167
  %v6718 = vunpack.c.h.b16 %v6167
  %v6719 = vunpack.c.l.b16 %v6168
  %v6720 = vunpack.c.h.b16 %v6168
  %v6721 = vunpack.c.l.b16 %v6169
  %v6722 = vunpack.c.h.b16 %v6169
  %v6723 = vunpack.c.l.b16 %v6170
  %v6724 = vunpack.c.h.b16 %v6170
  %v6725 = vunpack.c.l.b16 %v6171
  %v6726 = vunpack.c.h.b16 %v6171
  %v6727 = vunpack.c.l.b16 %v6172
  %v6728 = vunpack.c.h.b16 %v6172
  %v6729 = vunpack.c.l.b16 %v6173
  %v6730 = vunpack.c.h.b16 %v6173
  %v6731 = vunpack.c.l.b16 %v6174
  %v6732 = vunpack.c.h.b16 %v6174
  %v6733 = vunpack.c.l.b16 %v6175
  %v6734 = vunpack.c.h.b16 %v6175
  %v6735 = vunpack.c.l.b16 %v6176
  %v6736 = vunpack.c.h.b16 %v6176
  %v6737 = vunpack.c.l.b16 %v6177
  %v6738 = vunpack.c.h.b16 %v6177
  %v6739 = vunpack.c.l.b16 %v6178
  %v6740 = vunpack.c.h.b16 %v6178
  %v6741 = vunpack.c.l.b16 %v6179
  %v6742 = vunpack.c.h.b16 %v6179
  %v6743 = vunpack.c.l.b16 %v6180
  %v6744 = vunpack.c.h.b16 %v6180
  %v6745 = vunpack.c.l.b16 %v6181
  %v6746 = vunpack.c.h.b16 %v6181
  %v6747 = vunpack.c.l.b16 %v6182
  %v6748 = vunpack.c.h.b16 %v6182
  %v6749 = vunpack.c.l.b16 %v6183
  %v6750 = vunpack.c.h.b16 %v6183
  %v6751 = vunpack.c.l.b16 %v6184
  %v6752 = vunpack.c.h.b16 %v6184
  %v6753 = vunpack.c.l.b16 %v6185
  %v6754 = vunpack.c.h.b16 %v6185
  %v6755 = vunpack.c.l.b16 %v6186
  %v6756 = vunpack.c.h.b16 %v6186
  %v6757 = vunpack.c.l.b16 %v6187
  %v6758 = vunpack.c.h.b16 %v6187
  %v6759 = vunpack.c.l.b16 %v6188
  %v6760 = vunpack.c.h.b16 %v6188
  %v6761 = vunpack.c.l.b16 %v6189
  %v6762 = vunpack.c.h.b16 %v6189
  %v6763 = vunpack.c.l.b16 %v6190
  %v6764 = vunpack.c.h.b16 %v6190
  %v6765 = vunpack.c.l.b16 %v6191
  %v6766 = vunpack.c.h.b16 %v6191
  %v6767 = vunpack.c.l.b16 %v6192
  %v6768 = vunpack.c.h.b16 %v6192
  %v6769 = vunpack.c.l.b16 %v6193
  %v6770 = vunpack.c.h.b16 %v6193
  %v6771 = vunpack.c.l.b16 %v6194
  %v6772 = vunpack.c.h.b16 %v6194
  %v6773 = vunpack.c.l.b16 %v6195
  %v6774 = vunpack.c.h.b16 %v6195
  %v6775 = vunpack.c.l.b16 %v6196
  %v6776 = vunpack.c.h.b16 %v6196
  %v6777 = vunpack.c.l.b16 %v6197
  %v6778 = vunpack.c.h.b16 %v6197
  %v6779 = vunpack.c.l.b16 %v6198
  %v6780 = vunpack.c.h.b16 %v6198
  %v6781 = vunpack.c.l.b16 %v6199
  %v6782 = vunpack.c.h.b16 %v6199
  %v6783 = vunpack.c.l.b16 %v6200
  %v6784 = vunpack.c.h.b16 %v6200
  %v6785 = vunpack.c.l.b16 %v6201
  %v6786 = vunpack.c.h.b16 %v6201
  %v6787 = vunpack.c.l.b16 %v6202
  %v6788 = vunpack.c.h.b16 %v6202
  %v6789 = vunpack.c.l.b16 %v6203
  %v6790 = vunpack.c.h.b16 %v6203
  %v6791 = vunpack.c.l.b16 %v6204
  %v6792 = vunpack.c.h.b16 %v6204
  %v6793 = vunpack.c.l.b16 %v6205
  %v6794 = vunpack.c.h.b16 %v6205
  %v6795 = vunpack.c.l.b16 %v6206
  %v6796 = vunpack.c.h.b16 %v6206
  %v6797 = vunpack.c.l.b16 %v6207
  %v6798 = vunpack.c.h.b16 %v6207
  %v6799 = vunpack.c.l.b16 %v6208
  %v6800 = vunpack.c.h.b16 %v6208
  %v6801 = vunpack.c.l.b16 %v6209
  %v6802 = vunpack.c.h.b16 %v6209
  %v6803 = vunpack.c.l.b16 %v6210
  %v6804 = vunpack.c.h.b16 %v6210
  %v6805 = vunpack.c.l.b16 %v6211
  %v6806 = vunpack.c.h.b16 %v6211
  %v6807 = vunpack.c.l.b16 %v6212
  %v6808 = vunpack.c.h.b16 %v6212
  %v6809 = vunpack.c.l.b16 %v6213
  %v6810 = vunpack.c.h.b16 %v6213
  %v6811 = vunpack.c.l.b16 %v6214
  %v6812 = vunpack.c.h.b16 %v6214
  %v6813 = vunpack.c.l.b16 %v6215
  %v6814 = vunpack.c.h.b16 %v6215
  %v6815 = vunpack.c.l.b16 %v6216
  %v6816 = vunpack.c.h.b16 %v6216
  %v6817 = vunpack.c.l.b16 %v6217
  %v6818 = vunpack.c.h.b16 %v6217
  %v6819 = vunpack.c.l.b16 %v6218
  %v6820 = vunpack.c.h.b16 %v6218
  %v6821 = vunpack.c.l.b16 %v6219
  %v6822 = vunpack.c.h.b16 %v6219
  %v6823 = vunpack.c.l.b16 %v6220
  %v6824 = vunpack.c.h.b16 %v6220
  %v6825 = vunpack.c.l.b16 %v6221
  %v6826 = vunpack.c.h.b16 %v6221
  %v6827 = vunpack.c.l.b16 %v6222
  %v6828 = vunpack.c.h.b16 %v6222
  %v6829 = vunpack.c.l.b16 %v6223
  %v6830 = vunpack.c.h.b16 %v6223
  %v6831 = vunpack.c.l.b16 %v6224
  %v6832 = vunpack.c.h.b16 %v6224
  %v6833 = vunpack.c.l.b16 %v6225
  %v6834 = vunpack.c.h.b16 %v6225
  %v6835 = vunpack.c.l.b16 %v6226
  %v6836 = vunpack.c.h.b16 %v6226
  %v6837 = vunpack.c.l.b16 %v6227
  %v6838 = vunpack.c.h.b16 %v6227
  %v6839 = vunpack.c.l.b16 %v6228
  %v6840 = vunpack.c.h.b16 %v6228
  %v6841 = vunpack.c.l.b16 %v6229
  %v6842 = vunpack.c.h.b16 %v6229
  %v6843 = vunpack.c.l.b16 %v6230
  %v6844 = vunpack.c.h.b16 %v6230
  %v6845 = vunpack.c.l.b16 %v6231
  %v6846 = vunpack.c.h.b16 %v6231
  %v6847 = vunpack.c.l.b16 %v6232
  %v6848 = vunpack.c.h.b16 %v6232
  %v6849 = vunpack.c.l.b16 %v6233
  %v6850 = vunpack.c.h.b16 %v6233
  %v6851 = vunpack.c.l.b16 %v6234
  %v6852 = vunpack.c.h.b16 %v6234
  %v6853 = vunpack.c.l.b16 %v6235
  %v6854 = vunpack.c.h.b16 %v6235
  %v6855 = vunpack.c.l.b16 %v6236
  %v6856 = vunpack.c.h.b16 %v6236
  %v6857 = vunpack.c.l.b16 %v6237
  %v6858 = vunpack.c.h.b16 %v6237
  %v6859 = vunpack.c.l.b16 %v6238
  %v6860 = vunpack.c.h.b16 %v6238
  %v6861 = vunpack.c.l.b16 %v6239
  %v6862 = vunpack.c.h.b16 %v6239
  %v6863 = vunpack.c.l.b16 %v6240
  %v6864 = vunpack.c.h.b16 %v6240
  %v6865 = vunpack.c.l.b16 %v6241
  %v6866 = vunpack.c.h.b16 %v6241
  %v6867 = vunpack.c.l.b16 %v6242
  %v6868 = vunpack.c.h.b16 %v6242
  %v6869 = vunpack.c.l.b16 %v6243
  %v6870 = vunpack.c.h.b16 %v6243
  %v6871 = vunpack.c.l.b16 %v6244
  %v6872 = vunpack.c.h.b16 %v6244
  %v6873 = vunpack.c.l.b16 %v6245
  %v6874 = vunpack.c.h.b16 %v6245
  %v6875 = vunpack.c.l.b16 %v6246
  %v6876 = vunpack.c.h.b16 %v6246
  %v6877 = vunpack.c.l.b16 %v6247
  %v6878 = vunpack.c.h.b16 %v6247
  %v6879 = vunpack.c.l.b16 %v6248
  %v6880 = vunpack.c.h.b16 %v6248
  %v6881 = vunpack.c.l.b16 %v6249
  %v6882 = vunpack.c.h.b16 %v6249
  %v6883 = vunpack.c.l.b16 %v6250
  %v6884 = vunpack.c.h.b16 %v6250
  %v6885 = vunpack.c.l.b16 %v6251
  %v6886 = vunpack.c.h.b16 %v6251
  %v6887 = vunpack.c.l.b16 %v6252
  %v6888 = vunpack.c.h.b16 %v6252
  %v6889 = vunpack.c.l.b16 %v6253
  %v6890 = vunpack.c.h.b16 %v6253
  %v6891 = vunpack.c.l.b16 %v6254
  %v6892 = vunpack.c.h.b16 %v6254
  %v6893 = vunpack.c.l.b16 %v6255
  %v6894 = vunpack.c.h.b16 %v6255
  %v6895 = vunpack.c.l.b16 %v6256
  %v6896 = vunpack.c.h.b16 %v6256
  %v6897 = vunpack.c.l.b16 %v6257
  %v6898 = vunpack.c.h.b16 %v6257
  %v6899 = vunpack.c.l.b16 %v6258
  %v6900 = vunpack.c.h.b16 %v6258
  %v6901 = vunpack.c.l.b16 %v6259
  %v6902 = vunpack.c.h.b16 %v6259
  %v6903 = vunpack.c.l.b16 %v6260
  %v6904 = vunpack.c.h.b16 %v6260
  %v6905 = vunpack.c.l.b16 %v6261
  %v6906 = vunpack.c.h.b16 %v6261
  %v6907 = vunpack.c.l.b16 %v6262
  %v6908 = vunpack.c.h.b16 %v6262
  %v6909 = vunpack.c.l.b16 %v6263
  %v6910 = vunpack.c.h.b16 %v6263
  %v6911 = vunpack.c.l.b16 %v6264
  %v6912 = vunpack.c.h.b16 %v6264
  %v6913 = vunpack.c.l.b16 %v6265
  %v6914 = vunpack.c.h.b16 %v6265
  %v6915 = vunpack.c.l.b16 %v6266
  %v6916 = vunpack.c.h.b16 %v6266
  %v6917 = vunpack.c.l.b16 %v6267
  %v6918 = vunpack.c.h.b16 %v6267
  %v6919 = vunpack.c.l.b16 %v6268
  %v6920 = vunpack.c.h.b16 %v6268
  %v6921 = vunpack.c.l.b16 %v6269
  %v6922 = vunpack.c.h.b16 %v6269
  %v6923 = vunpack.c.l.b16 %v6270
  %v6924 = vunpack.c.h.b16 %v6270
  %v6925 = vunpack.c.l.b16 %v6271
  %v6926 = vunpack.c.h.b16 %v6271
  %v6927 = vunpack.c.l.b16 %v6272
  %v6928 = vunpack.c.h.b16 %v6272
  %v6929 = vunpack.c.l.b16 %v6273
  %v6930 = vunpack.c.h.b16 %v6273
  %v6931 = vunpack.c.l.b16 %v6274
  %v6932 = vunpack.c.h.b16 %v6274
  %v6933 = vunpack.c.l.b16 %v6275
  %v6934 = vunpack.c.h.b16 %v6275
  %v6935 = vunpack.c.l.b16 %v6276
  %v6936 = vunpack.c.h.b16 %v6276
  %v6937 = vunpack.c.l.b16 %v6277
  %v6938 = vunpack.c.h.b16 %v6277
  %v6939 = vunpack.c.l.b16 %v6278
  %v6940 = vunpack.c.h.b16 %v6278
  %v6941 = vunpack.c.l.b16 %v6279
  %v6942 = vunpack.c.h.b16 %v6279
  %v6943 = vunpack.c.l.b16 %v6280
  %v6944 = vunpack.c.h.b16 %v6280
  %v6945 = vunpack.c.l.b16 %v6281
  %v6946 = vunpack.c.h.b16 %v6281
  %v6947 = vunpack.c.l.b16 %v6282
  %v6948 = vunpack.c.h.b16 %v6282
  %v6949 = vunpack.c.l.b16 %v6283
  %v6950 = vunpack.c.h.b16 %v6283
  %v6951 = vunpack.c.l.b16 %v6284
  %v6952 = vunpack.c.h.b16 %v6284
  %v6953 = vunpack.c.l.b16 %v6285
  %v6954 = vunpack.c.h.b16 %v6285
  %v6955 = vunpack.c.l.b16 %v6286
  %v6956 = vunpack.c.h.b16 %v6286
  %v6957 = vunpack.c.l.b16 %v6287
  %v6958 = vunpack.c.h.b16 %v6287
  %v6959 = vunpack.c.l.b16 %v6288
  %v6960 = vunpack.c.h.b16 %v6288
  %v6961 = vunpack.c.l.b16 %v6289
  %v6962 = vunpack.c.h.b16 %v6289
  %v6963 = vunpack.c.l.b16 %v6290
  %v6964 = vunpack.c.h.b16 %v6290
  %v6965 = vunpack.c.l.b16 %v6291
  %v6966 = vunpack.c.h.b16 %v6291
  %v6967 = vunpack.c.l.b16 %v6292
  %v6968 = vunpack.c.h.b16 %v6292
  %v6969 = vunpack.c.l.b16 %v6293
  %v6970 = vunpack.c.h.b16 %v6293
  %v6971 = vunpack.c.l.b16 %v6294
  %v6972 = vunpack.c.h.b16 %v6294
  %v6973 = vunpack.c.l.b16 %v6295
  %v6974 = vunpack.c.h.b16 %v6295
  %v6975 = vunpack.c.l.b16 %v6296
  %v6976 = vunpack.c.h.b16 %v6296
  %v6977 = vunpack.c.l.b16 %v6297
  %v6978 = vunpack.c.h.b16 %v6297
  %v6979 = vunpack.c.l.b16 %v6298
  %v6980 = vunpack.c.h.b16 %v6298
  %v6981 = vunpack.c.l.b16 %v6299
  %v6982 = vunpack.c.h.b16 %v6299
  %v6983 = vunpack.c.l.b16 %v6300
  %v6984 = vunpack.c.h.b16 %v6300
  %v6985 = vunpack.c.l.b16 %v6301
  %v6986 = vunpack.c.h.b16 %v6301
  %v6987 = vunpack.c.l.b16 %v6302
  %v6988 = vunpack.c.h.b16 %v6302
  %v6989 = vunpack.c.l.b16 %v6303
  %v6990 = vunpack.c.h.b16 %v6303
  %v6991 = vunpack.c.l.b16 %v6304
  %v6992 = vunpack.c.h.b16 %v6304
  %v6993 = vunpack.c.l.b16 %v6305
  %v6994 = vunpack.c.h.b16 %v6305
  %v6995 = vunpack.c.l.b16 %v6306
  %v6996 = vunpack.c.h.b16 %v6306
  %v6997 = vunpack.c.l.b16 %v6307
  %v6998 = vunpack.c.h.b16 %v6307
  %v6999 = vunpack.c.l.b16 %v6308
  %v7000 = vunpack.c.h.b16 %v6308
  %v7001 = vunpack.c.l.b16 %v6309
  %v7002 = vunpack.c.h.b16 %v6309
  %v7003 = vunpack.c.l.b16 %v6310
  %v7004 = vunpack.c.h.b16 %v6310
  %v7005 = vunpack.c.l.b16 %v6311
  %v7006 = vunpack.c.h.b16 %v6311
  %v7007 = vunpack.c.l.b16 %v6312
  %v7008 = vunpack.c.h.b16 %v6312
  %v7009 = vunpack.c.l.b16 %v6313
  %v7010 = vunpack.c.h.b16 %v6313
  %v7011 = vunpack.c.l.b16 %v6314
  %v7012 = vunpack.c.h.b16 %v6314
  %v7013 = vunpack.c.l.b16 %v6315
  %v7014 = vunpack.c.h.b16 %v6315
  %v7015 = vunpack.c.l.b16 %v6316
  %v7016 = vunpack.c.h.b16 %v6316
  %v7017 = vunpack.c.l.b16 %v6317
  %v7018 = vunpack.c.h.b16 %v6317
  %v7019 = vunpack.c.l.b16 %v6318
  %v7020 = vunpack.c.h.b16 %v6318
  %v7021 = vunpack.c.l.b16 %v6319
  %v7022 = vunpack.c.h.b16 %v6319
  %v7023 = vunpack.c.l.b16 %v6320
  %v7024 = vunpack.c.h.b16 %v6320
  %v7025 = vunpack.c.l.b16 %v6321
  %v7026 = vunpack.c.h.b16 %v6321
  %v7027 = vunpack.c.l.b16 %v6322
  %v7028 = vunpack.c.h.b16 %v6322
  %v7029 = vunpack.c.l.b16 %v6323
  %v7030 = vunpack.c.h.b16 %v6323
  %v7031 = vunpack.c.l.b16 %v6324
  %v7032 = vunpack.c.h.b16 %v6324
  %v7033 = vunpack.c.l.b16 %v6325
  %v7034 = vunpack.c.h.b16 %v6325
  %v7035 = vunpack.c.l.b16 %v6326
  %v7036 = vunpack.c.h.b16 %v6326
  %v7037 = vunpack.c.l.b16 %v6327
  %v7038 = vunpack.c.h.b16 %v6327
  %v7039 = vunpack.c.l.b16 %v6328
  %v7040 = vunpack.c.h.b16 %v6328
  %v7041 = vunpack.c.l.b16 %v6329
  %v7042 = vunpack.c.h.b16 %v6329
  %v7043 = vunpack.c.l.b16 %v6330
  %v7044 = vunpack.c.h.b16 %v6330
  %v7045 = vunpack.c.l.b16 %v6331
  %v7046 = vunpack.c.h.b16 %v6331
  %v7047 = vunpack.c.l.b16 %v6332
  %v7048 = vunpack.c.h.b16 %v6332
  %v7049 = vunpack.c.l.b16 %v6333
  %v7050 = vunpack.c.h.b16 %v6333
  %v7051 = vunpack.c.l.b16 %v6334
  %v7052 = vunpack.c.h.b16 %v6334
  %v7053 = vunpack.c.l.b16 %v6335
  %v7054 = vunpack.c.h.b16 %v6335
  %v7055 = vunpack.c.l.b16 %v6336
  %v7056 = vunpack.c.h.b16 %v6336
  %v7057 = vunpack.c.l.b16 %v6337
  %v7058 = vunpack.c.h.b16 %v6337
  %v7059 = vunpack.c.l.b16 %v6338
  %v7060 = vunpack.c.h.b16 %v6338
  %v7061 = vunpack.c.l.b16 %v6339
  %v7062 = vunpack.c.h.b16 %v6339
  %v7063 = vunpack.c.l.b16 %v6340
  %v7064 = vunpack.c.h.b16 %v6340
  %v7065 = vunpack.c.l.b16 %v6341
  %v7066 = vunpack.c.h.b16 %v6341
  %v7067 = vunpack.c.l.b16 %v6342
  %v7068 = vunpack.c.h.b16 %v6342
  %v7069 = vunpack.c.l.b16 %v6343
  %v7070 = vunpack.c.h.b16 %v6343
  %v7071 = vunpack.c.l.b16 %v6344
  %v7072 = vunpack.c.h.b16 %v6344
  %v7073 = vunpack.c.l.b16 %v6345
  %v7074 = vunpack.c.h.b16 %v6345
  %v7075 = vunpack.c.l.b16 %v6346
  %v7076 = vunpack.c.h.b16 %v6346
  %v7077 = vunpack.c.l.b16 %v6347
  %v7078 = vunpack.c.h.b16 %v6347
  %v7079 = vunpack.c.l.b16 %v6348
  %v7080 = vunpack.c.h.b16 %v6348
  %v7081 = vunpack.c.l.b16 %v6349
  %v7082 = vunpack.c.h.b16 %v6349
  %v7083 = vunpack.c.l.b16 %v6350
  %v7084 = vunpack.c.h.b16 %v6350
  %v7085 = vunpack.c.l.b16 %v6351
  %v7086 = vunpack.c.h.b16 %v6351
  %v7087 = vunpack.c.l.b16 %v6352
  %v7088 = vunpack.c.h.b16 %v6352
  %v7089 = vunpack.c.l.b16 %v6353
  %v7090 = vunpack.c.h.b16 %v6353
  %v7091 = vunpack.c.l.b16 %v6354
  %v7092 = vunpack.c.h.b16 %v6354
  %v7093 = vunpack.c.l.b16 %v6355
  %v7094 = vunpack.c.h.b16 %v6355
  %v7095 = vunpack.c.l.b16 %v6356
  %v7096 = vunpack.c.h.b16 %v6356
  %v7097 = vunpack.c.l.b16 %v6357
  %v7098 = vunpack.c.h.b16 %v6357
  %v7099 = vunpack.c.l.b16 %v6358
  %v7100 = vunpack.c.h.b16 %v6358
  %v7101 = vunpack.c.l.b16 %v6359
  %v7102 = vunpack.c.h.b16 %v6359
  %v7103 = vunpack.c.l.b16 %v6360
  %v7104 = vunpack.c.h.b16 %v6360
  %v7105 = vunpack.c.l.b16 %v6361
  %v7106 = vunpack.c.h.b16 %v6361
  %v7107 = vunpack.c.l.b16 %v6362
  %v7108 = vunpack.c.h.b16 %v6362
  %v7109 = vunpack.c.l.b16 %v6363
  %v7110 = vunpack.c.h.b16 %v6363
  %v7111 = vunpack.c.l.b16 %v6364
  %v7112 = vunpack.c.h.b16 %v6364
  %v7113 = vunpack.c.l.b16 %v6365
  %v7114 = vunpack.c.h.b16 %v6365
  %v7115 = vunpack.c.l.b16 %v6366
  %v7116 = vunpack.c.h.b16 %v6366
  %v7117 = vunpack.c.l.b16 %v6367
  %v7118 = vunpack.c.h.b16 %v6367
  %v7119 = vunpack.c.l.b16 %v6368
  %v7120 = vunpack.c.h.b16 %v6368
  %v7121 = vunpack.c.l.b16 %v6369
  %v7122 = vunpack.c.h.b16 %v6369
  %v7123 = vunpack.c.l.b16 %v6370
  %v7124 = vunpack.c.h.b16 %v6370
  %v7125 = vunpack.c.l.b16 %v6371
  %v7126 = vunpack.c.h.b16 %v6371
  %v7127 = vunpack.c.l.b16 %v6372
  %v7128 = vunpack.c.h.b16 %v6372
  %v7129 = vunpack.c.l.b16 %v6373
  %v7130 = vunpack.c.h.b16 %v6373
  %v7131 = vunpack.c.l.b16 %v6374
  %v7132 = vunpack.c.h.b16 %v6374
  %v7133 = vunpack.c.l.b16 %v6375
  %v7134 = vunpack.c.h.b16 %v6375
  %v7135 = vunpack.c.l.b16 %v6376
  %v7136 = vunpack.c.h.b16 %v6376
  %v7137 = vunpack.c.l.b16 %v6377
  %v7138 = vunpack.c.h.b16 %v6377
  %v7139 = vunpack.c.l.b16 %v6378
  %v7140 = vunpack.c.h.b16 %v6378
  %v7141 = vunpack.c.l.b16 %v6379
  %v7142 = vunpack.c.h.b16 %v6379
  %v7143 = vunpack.c.l.b16 %v6380
  %v7144 = vunpack.c.h.b16 %v6380
  %v7145 = vunpack.c.l.b16 %v6381
  %v7146 = vunpack.c.h.b16 %v6381
  %v7147 = vunpack.c.l.b16 %v6382
  %v7148 = vunpack.c.h.b16 %v6382
  %v7149 = vunpack.c.l.b16 %v6383
  %v7150 = vunpack.c.h.b16 %v6383
  %v7151 = vunpack.c.l.b16 %v6384
  %v7152 = vunpack.c.h.b16 %v6384
  %v7153 = vunpack.c.l.b16 %v6385
  %v7154 = vunpack.c.h.b16 %v6385
  %v7155 = vunpack.c.l.b16 %v6386
  %v7156 = vunpack.c.h.b16 %v6386
  %v7157 = vunpack.c.l.b16 %v6387
  %v7158 = vunpack.c.h.b16 %v6387
  %v7159 = vunpack.c.l.b16 %v6388
  %v7160 = vunpack.c.h.b16 %v6388
  %v7161 = vunpack.c.l.b16 %v6389
  %v7162 = vunpack.c.h.b16 %v6389
  %v7163 = vunpack.c.l.b16 %v6390
  %v7164 = vunpack.c.h.b16 %v6390
  %v7165 = vunpack.c.l.b16 %v6391
  %v7166 = vunpack.c.h.b16 %v6391
  %v7167 = vunpack.c.l.b16 %v6392
  %v7168 = vunpack.c.h.b16 %v6392
  %v7169 = vunpack.c.l.b16 %v6393
  %v7170 = vunpack.c.h.b16 %v6393
  %v7171 = vunpack.c.l.b16 %v6394
  %v7172 = vunpack.c.h.b16 %v6394
  %v7173 = vunpack.c.l.b16 %v6395
  %v7174 = vunpack.c.h.b16 %v6395
  %v7175 = vunpack.c.l.b16 %v6396
  %v7176 = vunpack.c.h.b16 %v6396
  %v7177 = vunpack.c.l.b16 %v6397
  %v7178 = vunpack.c.h.b16 %v6397
  %v7179 = vunpack.c.l.b16 %v6398
  %v7180 = vunpack.c.h.b16 %v6398
  %v7181 = vunpack.c.l.b16 %v6399
  %v7182 = vunpack.c.h.b16 %v6399
  %v7183 = vunpack.c.l.b16 %v6400
  %v7184 = vunpack.c.h.b16 %v6400
  %v7185 = vunpack.c.l.b16 %v6401
  %v7186 = vunpack.c.h.b16 %v6401
  %v7187 = vunpack.c.l.b16 %v6402
  %v7188 = vunpack.c.h.b16 %v6402
  %v7189 = vpack.c.b16 %v6685, %v6677
  %v7190 = vpack.c.b16 %v6686, %v6678
  %v7191 = vpack.c.b16 %v6687, %v6679
  %v7192 = vpack.c.b16 %v6688, %v6680
  %v7193 = vpack.c.b16 %v6689, %v6681
  %v7194 = vpack.c.b16 %v6690, %v6682
  %v7195 = vpack.c.b16 %v6691, %v6683
  %v7196 = vpack.c.b16 %v6692, %v6684
  %v7197 = vpack.c.b16 %v6701, %v6693
  %v7198 = vpack.c.b16 %v6702, %v6694
  %v7199 = vpack.c.b16 %v6703, %v6695
  %v7200 = vpack.c.b16 %v6704, %v6696
  %v7201 = vpack.c.b16 %v6705, %v6697
  %v7202 = vpack.c.b16 %v6706, %v6698
  %v7203 = vpack.c.b16 %v6707, %v6699
  %v7204 = vpack.c.b16 %v6708, %v6700
  %v7205 = vpack.c.b16 %v6717, %v6709
  %v7206 = vpack.c.b16 %v6718, %v6710
  %v7207 = vpack.c.b16 %v6719, %v6711
  %v7208 = vpack.c.b16 %v6720, %v6712
  %v7209 = vpack.c.b16 %v6721, %v6713
  %v7210 = vpack.c.b16 %v6722, %v6714
  %v7211 = vpack.c.b16 %v6723, %v6715
  %v7212 = vpack.c.b16 %v6724, %v6716
  %v7213 = vpack.c.b16 %v6733, %v6725
  %v7214 = vpack.c.b16 %v6734, %v6726
  %v7215 = vpack.c.b16 %v6735, %v6727
  %v7216 = vpack.c.b16 %v6736, %v6728
  %v7217 = vpack.c.b16 %v6737, %v6729
  %v7218 = vpack.c.b16 %v6738, %v6730
  %v7219 = vpack.c.b16 %v6739, %v6731
  %v7220 = vpack.c.b16 %v6740, %v6732
  %v7221 = vpack.c.b16 %v6749, %v6741
  %v7222 = vpack.c.b16 %v6750, %v6742
  %v7223 = vpack.c.b16 %v6751, %v6743
  %v7224 = vpack.c.b16 %v6752, %v6744
  %v7225 = vpack.c.b16 %v6753, %v6745
  %v7226 = vpack.c.b16 %v6754, %v6746
  %v7227 = vpack.c.b16 %v6755, %v6747
  %v7228 = vpack.c.b16 %v6756, %v6748
  %v7229 = vpack.c.b16 %v6765, %v6757
  %v7230 = vpack.c.b16 %v6766, %v6758
  %v7231 = vpack.c.b16 %v6767, %v6759
  %v7232 = vpack.c.b16 %v6768, %v6760
  %v7233 = vpack.c.b16 %v6769, %v6761
  %v7234 = vpack.c.b16 %v6770, %v6762
  %v7235 = vpack.c.b16 %v6771, %v6763
  %v7236 = vpack.c.b16 %v6772, %v6764
  %v7237 = vpack.c.b16 %v6781, %v6773
  %v7238 = vpack.c.b16 %v6782, %v6774
  %v7239 = vpack.c.b16 %v6783, %v6775
  %v7240 = vpack.c.b16 %v6784, %v6776
  %v7241 = vpack.c.b16 %v6785, %v6777
  %v7242 = vpack.c.b16 %v6786, %v6778
  %v7243 = vpack.c.b16 %v6787, %v6779
  %v7244 = vpack.c.b16 %v6788, %v6780
  %v7245 = vpack.c.b16 %v6797, %v6789
  %v7246 = vpack.c.b16 %v6798, %v6790
  %v7247 = vpack.c.b16 %v6799, %v6791
  %v7248 = vpack.c.b16 %v6800, %v6792
  %v7249 = vpack.c.b16 %v6801, %v6793
  %v7250 = vpack.c.b16 %v6802, %v6794
  %v7251 = vpack.c.b16 %v6803, %v6795
  %v7252 = vpack.c.b16 %v6804, %v6796
  %v7253 = vpack.c.b16 %v6813, %v6805
  %v7254 = vpack.c.b16 %v6814, %v6806
  %v7255 = vpack.c.b16 %v6815, %v6807
  %v7256 = vpack.c.b16 %v6816, %v6808
  %v7257 = vpack.c.b16 %v6817, %v6809
  %v7258 = vpack.c.b16 %v6818, %v6810
  %v7259 = vpack.c.b16 %v6819, %v6811
  %v7260 = vpack.c.b16 %v6820, %v6812
  %v7261 = vpack.c.b16 %v6829, %v6821
  %v7262 = vpack.c.b16 %v6830, %v6822
  %v7263 = vpack.c.b16 %v6831, %v6823
  %v7264 = vpack.c.b16 %v6832, %v6824
  %v7265 = vpack.c.b16 %v6833, %v6825
  %v7266 = vpack.c.b16 %v6834, %v6826
  %v7267 = vpack.c.b16 %v6835, %v6827
  %v7268 = vpack.c.b16 %v6836, %v6828
  %v7269 = vpack.c.b16 %v6845, %v6837
  %v7270 = vpack.c.b16 %v6846, %v6838
  %v7271 = vpack.c.b16 %v6847, %v6839
  %v7272 = vpack.c.b16 %v6848, %v6840
  %v7273 = vpack.c.b16 %v6849, %v6841
  %v7274 = vpack.c.b16 %v6850, %v6842
  %v7275 = vpack.c.b16 %v6851, %v6843
  %v7276 = vpack.c.b16 %v6852, %v6844
  %v7277 = vpack.c.b16 %v6861, %v6853
  %v7278 = vpack.c.b16 %v6862, %v6854
  %v7279 = vpack.c.b16 %v6863, %v6855
  %v7280 = vpack.c.b16 %v6864, %v6856
  %v7281 = vpack.c.b16 %v6865, %v6857
  %v7282 = vpack.c.b16 %v6866, %v6858
  %v7283 = vpack.c.b16 %v6867, %v6859
  %v7284 = vpack.c.b16 %v6868, %v6860
  %v7285 = vpack.c.b16 %v6877, %v6869
  %v7286 = vpack.c.b16 %v6878, %v6870
  %v7287 = vpack.c.b16 %v6879, %v6871
  %v7288 = vpack.c.b16 %v6880, %v6872
  %v7289 = vpack.c.b16 %v6881, %v6873
  %v7290 = vpack.c.b16 %v6882, %v6874
  %v7291 = vpack.c.b16 %v6883, %v6875
  %v7292 = vpack.c.b16 %v6884, %v6876
  %v7293 = vpack.c.b16 %v6893, %v6885
  %v7294 = vpack.c.b16 %v6894, %v6886
  %v7295 = vpack.c.b16 %v6895, %v6887
  %v7296 = vpack.c.b16 %v6896, %v6888
  %v7297 = vpack.c.b16 %v6897, %v6889
  %v7298 = vpack.c.b16 %v6898, %v6890
  %v7299 = vpack.c.b16 %v6899, %v6891
  %v7300 = vpack.c.b16 %v6900, %v6892
  %v7301 = vpack.c.b16 %v6909, %v6901
  %v7302 = vpack.c.b16 %v6910, %v6902
  %v7303 = vpack.c.b16 %v6911, %v6903
  %v7304 = vpack.c.b16 %v6912, %v6904
  %v7305 = vpack.c.b16 %v6913, %v6905
  %v7306 = vpack.c.b16 %v6914, %v6906
  %v7307 = vpack.c.b16 %v6915, %v6907
  %v7308 = vpack.c.b16 %v6916, %v6908
  %v7309 = vpack.c.b16 %v6925, %v6917
  %v7310 = vpack.c.b16 %v6926, %v6918
  %v7311 = vpack.c.b16 %v6927, %v6919
  %v7312 = vpack.c.b16 %v6928, %v6920
  %v7313 = vpack.c.b16 %v6929, %v6921
  %v7314 = vpack.c.b16 %v6930, %v6922
  %v7315 = vpack.c.b16 %v6931, %v6923
  %v7316 = vpack.c.b16 %v6932, %v6924
  %v7317 = vpack.c.b16 %v6941, %v6933
  %v7318 = vpack.c.b16 %v6942, %v6934
  %v7319 = vpack.c.b16 %v6943, %v6935
  %v7320 = vpack.c.b16 %v6944, %v6936
  %v7321 = vpack.c.b16 %v6945, %v6937
  %v7322 = vpack.c.b16 %v6946, %v6938
  %v7323 = vpack.c.b16 %v6947, %v6939
  %v7324 = vpack.c.b16 %v6948, %v6940
  %v7325 = vpack.c.b16 %v6957, %v6949
  %v7326 = vpack.c.b16 %v6958, %v6950
  %v7327 = vpack.c.b16 %v6959, %v6951
  %v7328 = vpack.c.b16 %v6960, %v6952
  %v7329 = vpack.c.b16 %v6961, %v6953
  %v7330 = vpack.c.b16 %v6962, %v6954
  %v7331 = vpack.c.b16 %v6963, %v6955
  %v7332 = vpack.c.b16 %v6964, %v6956
  %v7333 = vpack.c.b16 %v6973, %v6965
  %v7334 = vpack.c.b16 %v6974, %v6966
  %v7335 = vpack.c.b16 %v6975, %v6967
  %v7336 = vpack.c.b16 %v6976, %v6968
  %v7337 = vpack.c.b16 %v6977, %v6969
  %v7338 = vpack.c.b16 %v6978, %v6970
  %v7339 = vpack.c.b16 %v6979, %v6971
  %v7340 = vpack.c.b16 %v6980, %v6972
  %v7341 = vpack.c.b16 %v6989, %v6981
  %v7342 = vpack.c.b16 %v6990, %v6982
  %v7343 = vpack.c.b16 %v6991, %v6983
  %v7344 = vpack.c.b16 %v6992, %v6984
  %v7345 = vpack.c.b16 %v6993, %v6985
  %v7346 = vpack.c.b16 %v6994, %v6986
  %v7347 = vpack.c.b16 %v6995, %v6987
  %v7348 = vpack.c.b16 %v6996, %v6988
  %v7349 = vpack.c.b16 %v7005, %v6997
  %v7350 = vpack.c.b16 %v7006, %v6998
  %v7351 = vpack.c.b16 %v7007, %v6999
  %v7352 = vpack.c.b16 %v7008, %v7000
  %v7353 = vpack.c.b16 %v7009, %v7001
  %v7354 = vpack.c.b16 %v7010, %v7002
  %v7355 = vpack.c.b16 %v7011, %v7003
  %v7356 = vpack.c.b16 %v7012, %v7004
  %v7357 = vpack.c.b16 %v7021, %v7013
  %v7358 = vpack.c.b16 %v7022, %v7014
  %v7359 = vpack.c.b16 %v7023, %v7015
  %v7360 = vpack.c.b16 %v7024, %v7016
  %v7361 = vpack.c.b16 %v7025, %v7017
  %v7362 = vpack.c.b16 %v7026, %v7018
  %v7363 = vpack.c.b16 %v7027, %v7019
  %v7364 = vpack.c.b16 %v7028, %v7020
  %v7365 = vpack.c.b16 %v7037, %v7029
  %v7366 = vpack.c.b16 %v7038, %v7030
  %v7367 = vpack.c.b16 %v7039, %v7031
  %v7368 = vpack.c.b16 %v7040, %v7032
  %v7369 = vpack.c.b16 %v7041, %v7033
  %v7370 = vpack.c.b16 %v7042, %v7034
  %v7371 = vpack.c.b16 %v7043, %v7035
  %v7372 = vpack.c.b16 %v7044, %v7036
  %v7373 = vpack.c.b16 %v7053, %v7045
  %v7374 = vpack.c.b16 %v7054, %v7046
  %v7375 = vpack.c.b16 %v7055, %v7047
  %v7376 = vpack.c.b16 %v7056, %v7048
  %v7377 = vpack.c.b16 %v7057, %v7049
  %v7378 = vpack.c.b16 %v7058, %v7050
  %v7379 = vpack.c.b16 %v7059, %v7051
  %v7380 = vpack.c.b16 %v7060, %v7052
  %v7381 = vpack.c.b16 %v7069, %v7061
  %v7382 = vpack.c.b16 %v7070, %v7062
  %v7383 = vpack.c.b16 %v7071, %v7063
  %v7384 = vpack.c.b16 %v7072, %v7064
  %v7385 = vpack.c.b16 %v7073, %v7065
  %v7386 = vpack.c.b16 %v7074, %v7066
  %v7387 = vpack.c.b16 %v7075, %v7067
  %v7388 = vpack.c.b16 %v7076, %v7068
  %v7389 = vpack.c.b16 %v7085, %v7077
  %v7390 = vpack.c.b16 %v7086, %v7078
  %v7391 = vpack.c.b16 %v7087, %v7079
  %v7392 = vpack.c.b16 %v7088, %v7080
  %v7393 = vpack.c.b16 %v7089, %v7081
  %v7394 = vpack.c.b16 %v7090, %v7082
  %v7395 = vpack.c.b16 %v7091, %v7083
  %v7396 = vpack.c.b16 %v7092, %v7084
  %v7397 = vpack.c.b16 %v7101, %v7093
  %v7398 = vpack.c.b16 %v7102, %v7094
  %v7399 = vpack.c.b16 %v7103, %v7095
  %v7400 = vpack.c.b16 %v7104, %v7096
  %v7401 = vpack.c.b16 %v7105, %v7097
  %v7402 = vpack.c.b16 %v7106, %v7098
  %v7403 = vpack.c.b16 %v7107, %v7099
  %v7404 = vpack.c.b16 %v7108, %v7100
  %v7405 = vpack.c.b16 %v7117, %v7109
  %v7406 = vpack.c.b16 %v7118, %v7110
  %v7407 = vpack.c.b16 %v7119, %v7111
  %v7408 = vpack.c.b16 %v7120, %v7112
  %v7409 = vpack.c.b16 %v7121, %v7113
  %v7410 = vpack.c.b16 %v7122, %v7114
  %v7411 = vpack.c.b16 %v7123, %v7115
  %v7412 = vpack.c.b16 %v7124, %v7116
  %v7413 = vpack.c.b16 %v7133, %v7125
  %v7414 = vpack.c.b16 %v7134, %v7126
  %v7415 = vpack.c.b16 %v7135, %v7127
  %v7416 = vpack.c.b16 %v7136, %v7128
  %v7417 = vpack.c.b16 %v7137, %v7129
  %v7418 = vpack.c.b16 %v7138, %v7130
  %v7419 = vpack.c.b16 %v7139, %v7131
  %v7420 = vpack.c.b16 %v7140, %v7132
  %v7421 = vpack.c.b16 %v7149, %v7141
  %v7422 = vpack.c.b16 %v7150, %v7142
  %v7423 = vpack.c.b16 %v7151, %v7143
  %v7424 = vpack.c.b16 %v7152, %v7144
  %v7425 = vpack.c.b16 %v7153, %v7145
  %v7426 = vpack.c.b16 %v7154, %v7146
  %v7427 = vpack.c.b16 %v7155, %v7147
  %v7428 = vpack.c.b16 %v7156, %v7148
  %v7429 = vpack.c.b16 %v7165, %v7157
  %v7430 = vpack.c.b16 %v7166, %v7158
  %v7431 = vpack.c.b16 %v7167, %v7159
  %v7432 = vpack.c.b16 %v7168, %v7160
  %v7433 = vpack.c.b16 %v7169, %v7161
  %v7434 = vpack.c.b16 %v7170, %v7162
  %v7435 = vpack.c.b16 %v7171, %v7163
  %v7436 = vpack.c.b16 %v7172, %v7164
  %v7437 = vpack.c.b16 %v7181, %v7173
  %v7438 = vpack.c.b16 %v7182, %v7174
  %v7439 = vpack.c.b16 %v7183, %v7175
  %v7440 = vpack.c.b16 %v7184, %v7176
  %v7441 = vpack.c.b16 %v7185, %v7177
  %v7442 = vpack.c.b16 %v7186, %v7178
  %v7443 = vpack.c.b16 %v7187, %v7179
  %v7444 = vpack.c.b16 %v7188, %v7180
  %7701 = vmatpush.bf16.msra.mxu0 %v7245
  %7702 = vmatpush.bf16.msra.mxu0 %v7237
  %7703 = vmatpush.bf16.msra.mxu0 %v7229
  %7704 = vmatpush.bf16.msra.mxu0 %v7221
  %7705 = vmatpush.bf16.msra.mxu0 %v7213
  %7706 = vmatpush.bf16.msra.mxu0 %v7205
  %7707 = vmatpush.bf16.msra.mxu0 %v7197
  %7708 = vmatpush.bf16.msra.mxu0 %v7189
  %7709 = vmatmul.bf16.gmra.mxu0 %v6143
  %v7710 = vpop.f32.mrf.mxu0
  %v7711 = vadd.f32 %v6405, %v7710
  %v7712 = vpop.f32.mrf.mxu0
  %7713 = vdwg.mxu0
  %7714 = vmatpush.bf16.msra.mxu0 %v7309
  %7715 = vmatpush.bf16.msra.mxu0 %v7301
  %7716 = vmatpush.bf16.msra.mxu0 %v7293
  %7717 = vmatpush.bf16.msra.mxu0 %v7285
  %7718 = vmatpush.bf16.msra.mxu0 %v7277
  %7719 = vmatpush.bf16.msra.mxu0 %v7269
  %7720 = vmatpush.bf16.msra.mxu0 %v7261
  %7721 = vmatpush.bf16.msra.mxu0 %v7253
  %7722 = vmatmul.bf16.gmra.mxu0 %v6144
  %v7723 = vpop.f32.mrf.mxu0
  %v7724 = vadd.f32 %v7711, %v7723
  %v7725 = vpop.f32.mrf.mxu0
  %7726 = vdwg.mxu0
  %7727 = vmatpush.bf16.msra.mxu0 %v7373
  %7728 = vmatpush.bf16.msra.mxu0 %v7365
  %7729 = vmatpush.bf16.msra.mxu0 %v7357
  %7730 = vmatpush.bf16.msra.mxu0 %v7349
  %7731 = vmatpush.bf16.msra.mxu0 %v7341
  %7732 = vmatpush.bf16.msra.mxu0 %v7333
  %7733 = vmatpush.bf16.msra.mxu0 %v7325
  %7734 = vmatpush.bf16.msra.mxu0 %v7317
  %7735 = vmatmul.bf16.gmra.mxu0 %v6145
  %v7736 = vpop.f32.mrf.mxu0
  %v7737 = vadd.f32 %v7724, %v7736
  %v7738 = vpop.f32.mrf.mxu0
  %7739 = vdwg.mxu0
  %7740 = vmatpush.bf16.msra.mxu0 %v7437
  %7741 = vmatpush.bf16.msra.mxu0 %v7429
  %7742 = vmatpush.bf16.msra.mxu0 %v7421
  %7743 = vmatpush.bf16.msra.mxu0 %v7413
  %7744 = vmatpush.bf16.msra.mxu0 %v7405
  %7745 = vmatpush.bf16.msra.mxu0 %v7397
  %7746 = vmatpush.bf16.msra.mxu0 %v7389
  %7747 = vmatpush.bf16.msra.mxu0 %v7381
  %7748 = vmatmul.bf16.gmra.mxu0 %v6146
  %v7749 = vpop.f32.mrf.mxu0
  %v7750 = vadd.f32 %v7737, %v7749
  %v7751 = vpop.f32.mrf.mxu0
  %7752 = vdwg.mxu0
  %7753 = vmatpush.bf16.msra.mxu0 %v7246
  %7754 = vmatpush.bf16.msra.mxu0 %v7238
  %7755 = vmatpush.bf16.msra.mxu0 %v7230
  %7756 = vmatpush.bf16.msra.mxu0 %v7222
  %7757 = vmatpush.bf16.msra.mxu0 %v7214
  %7758 = vmatpush.bf16.msra.mxu0 %v7206
  %7759 = vmatpush.bf16.msra.mxu0 %v7198
  %7760 = vmatpush.bf16.msra.mxu0 %v7190
  %7761 = vmatmul.bf16.gmra.mxu0 %v6143
  %v7762 = vpop.f32.mrf.mxu0
  %v7763 = vadd.f32 %v6406, %v7762
  %v7764 = vpop.f32.mrf.mxu0
  %7765 = vdwg.mxu0
  %7766 = vmatpush.bf16.msra.mxu0 %v7310
  %7767 = vmatpush.bf16.msra.mxu0 %v7302
  %7768 = vmatpush.bf16.msra.mxu0 %v7294
  %7769 = vmatpush.bf16.msra.mxu0 %v7286
  %7770 = vmatpush.bf16.msra.mxu0 %v7278
  %7771 = vmatpush.bf16.msra.mxu0 %v7270
  %7772 = vmatpush.bf16.msra.mxu0 %v7262
  %7773 = vmatpush.bf16.msra.mxu0 %v7254
  %7774 = vmatmul.bf16.gmra.mxu0 %v6144
  %v7775 = vpop.f32.mrf.mxu0
  %v7776 = vadd.f32 %v7763, %v7775
  %v7777 = vpop.f32.mrf.mxu0
  %7778 = vdwg.mxu0
  %7779 = vmatpush.bf16.msra.mxu0 %v7374
  %7780 = vmatpush.bf16.msra.mxu0 %v7366
  %7781 = vmatpush.bf16.msra.mxu0 %v7358
  %7782 = vmatpush.bf16.msra.mxu0 %v7350
  %7783 = vmatpush.bf16.msra.mxu0 %v7342
  %7784 = vmatpush.bf16.msra.mxu0 %v7334
  %7785 = vmatpush.bf16.msra.mxu0 %v7326
  %7786 = vmatpush.bf16.msra.mxu0 %v7318
  %7787 = vmatmul.bf16.gmra.mxu0 %v6145
  %v7788 = vpop.f32.mrf.mxu0
  %v7789 = vadd.f32 %v7776, %v7788
  %v7790 = vpop.f32.mrf.mxu0
  %7791 = vdwg.mxu0
  %7792 = vmatpush.bf16.msra.mxu0 %v7438
  %7793 = vmatpush.bf16.msra.mxu0 %v7430
  %7794 = vmatpush.bf16.msra.mxu0 %v7422
  %7795 = vmatpush.bf16.msra.mxu0 %v7414
  %7796 = vmatpush.bf16.msra.mxu0 %v7406
  %7797 = vmatpush.bf16.msra.mxu0 %v7398
  %7798 = vmatpush.bf16.msra.mxu0 %v7390
  %7799 = vmatpush.bf16.msra.mxu0 %v7382
  %7800 = vmatmul.bf16.gmra.mxu0 %v6146
  %v7801 = vpop.f32.mrf.mxu0
  %v7802 = vadd.f32 %v7789, %v7801
  %v7803 = vpop.f32.mrf.mxu0
  %7804 = vdwg.mxu0
  %7805 = vmatpush.bf16.msra.mxu0 %v7247
  %7806 = vmatpush.bf16.msra.mxu0 %v7239
  %7807 = vmatpush.bf16.msra.mxu0 %v7231
  %7808 = vmatpush.bf16.msra.mxu0 %v7223
  %7809 = vmatpush.bf16.msra.mxu0 %v7215
  %7810 = vmatpush.bf16.msra.mxu0 %v7207
  %7811 = vmatpush.bf16.msra.mxu0 %v7199
  %7812 = vmatpush.bf16.msra.mxu0 %v7191
  %7813 = vmatmul.bf16.gmra.mxu0 %v6143
  %v7814 = vpop.f32.mrf.mxu0
  %v7815 = vadd.f32 %v6407, %v7814
  %v7816 = vpop.f32.mrf.mxu0
  %7817 = vdwg.mxu0
  %7818 = vmatpush.bf16.msra.mxu0 %v7311
  %7819 = vmatpush.bf16.msra.mxu0 %v7303
  %7820 = vmatpush.bf16.msra.mxu0 %v7295
  %7821 = vmatpush.bf16.msra.mxu0 %v7287
  %7822 = vmatpush.bf16.msra.mxu0 %v7279
  %7823 = vmatpush.bf16.msra.mxu0 %v7271
  %7824 = vmatpush.bf16.msra.mxu0 %v7263
  %7825 = vmatpush.bf16.msra.mxu0 %v7255
  %7826 = vmatmul.bf16.gmra.mxu0 %v6144
  %v7827 = vpop.f32.mrf.mxu0
  %v7828 = vadd.f32 %v7815, %v7827
  %v7829 = vpop.f32.mrf.mxu0
  %7830 = vdwg.mxu0
  %7831 = vmatpush.bf16.msra.mxu0 %v7375
  %7832 = vmatpush.bf16.msra.mxu0 %v7367
  %7833 = vmatpush.bf16.msra.mxu0 %v7359
  %7834 = vmatpush.bf16.msra.mxu0 %v7351
  %7835 = vmatpush.bf16.msra.mxu0 %v7343
  %7836 = vmatpush.bf16.msra.mxu0 %v7335
  %7837 = vmatpush.bf16.msra.mxu0 %v7327
  %7838 = vmatpush.bf16.msra.mxu0 %v7319
  %7839 = vmatmul.bf16.gmra.mxu0 %v6145
  %v7840 = vpop.f32.mrf.mxu0
  %v7841 = vadd.f32 %v7828, %v7840
  %v7842 = vpop.f32.mrf.mxu0
  %7843 = vdwg.mxu0
  %7844 = vmatpush.bf16.msra.mxu0 %v7439
  %7845 = vmatpush.bf16.msra.mxu0 %v7431
  %7846 = vmatpush.bf16.msra.mxu0 %v7423
  %7847 = vmatpush.bf16.msra.mxu0 %v7415
  %7848 = vmatpush.bf16.msra.mxu0 %v7407
  %7849 = vmatpush.bf16.msra.mxu0 %v7399
  %7850 = vmatpush.bf16.msra.mxu0 %v7391
  %7851 = vmatpush.bf16.msra.mxu0 %v7383
  %7852 = vmatmul.bf16.gmra.mxu0 %v6146
  %v7853 = vpop.f32.mrf.mxu0
  %v7854 = vadd.f32 %v7841, %v7853
  %v7855 = vpop.f32.mrf.mxu0
  %7856 = vdwg.mxu0
  %7857 = vmatpush.bf16.msra.mxu0 %v7248
  %7858 = vmatpush.bf16.msra.mxu0 %v7240
  %7859 = vmatpush.bf16.msra.mxu0 %v7232
  %7860 = vmatpush.bf16.msra.mxu0 %v7224
  %7861 = vmatpush.bf16.msra.mxu0 %v7216
  %7862 = vmatpush.bf16.msra.mxu0 %v7208
  %7863 = vmatpush.bf16.msra.mxu0 %v7200
  %7864 = vmatpush.bf16.msra.mxu0 %v7192
  %7865 = vmatmul.bf16.gmra.mxu0 %v6143
  %v7866 = vpop.f32.mrf.mxu0
  %v7867 = vadd.f32 %v6408, %v7866
  %v7868 = vpop.f32.mrf.mxu0
  %7869 = vdwg.mxu0
  %7870 = vmatpush.bf16.msra.mxu0 %v7312
  %7871 = vmatpush.bf16.msra.mxu0 %v7304
  %7872 = vmatpush.bf16.msra.mxu0 %v7296
  %7873 = vmatpush.bf16.msra.mxu0 %v7288
  %7874 = vmatpush.bf16.msra.mxu0 %v7280
  %7875 = vmatpush.bf16.msra.mxu0 %v7272
  %7876 = vmatpush.bf16.msra.mxu0 %v7264
  %7877 = vmatpush.bf16.msra.mxu0 %v7256
  %7878 = vmatmul.bf16.gmra.mxu0 %v6144
  %v7879 = vpop.f32.mrf.mxu0
  %v7880 = vadd.f32 %v7867, %v7879
  %v7881 = vpop.f32.mrf.mxu0
  %7882 = vdwg.mxu0
  %7883 = vmatpush.bf16.msra.mxu0 %v7376
  %7884 = vmatpush.bf16.msra.mxu0 %v7368
  %7885 = vmatpush.bf16.msra.mxu0 %v7360
  %7886 = vmatpush.bf16.msra.mxu0 %v7352
  %7887 = vmatpush.bf16.msra.mxu0 %v7344
  %7888 = vmatpush.bf16.msra.mxu0 %v7336
  %7889 = vmatpush.bf16.msra.mxu0 %v7328
  %7890 = vmatpush.bf16.msra.mxu0 %v7320
  %7891 = vmatmul.bf16.gmra.mxu0 %v6145
  %v7892 = vpop.f32.mrf.mxu0
  %v7893 = vadd.f32 %v7880, %v7892
  %v7894 = vpop.f32.mrf.mxu0
  %7895 = vdwg.mxu0
  %7896 = vmatpush.bf16.msra.mxu0 %v7440
  %7897 = vmatpush.bf16.msra.mxu0 %v7432
  %7898 = vmatpush.bf16.msra.mxu0 %v7424
  %7899 = vmatpush.bf16.msra.mxu0 %v7416
  %7900 = vmatpush.bf16.msra.mxu0 %v7408
  %7901 = vmatpush.bf16.msra.mxu0 %v7400
  %7902 = vmatpush.bf16.msra.mxu0 %v7392
  %7903 = vmatpush.bf16.msra.mxu0 %v7384
  %7904 = vmatmul.bf16.gmra.mxu0 %v6146
  %v7905 = vpop.f32.mrf.mxu0
  %v7906 = vadd.f32 %v7893, %v7905
  %v7907 = vpop.f32.mrf.mxu0
  %7908 = vdwg.mxu0
  %7909 = vmatpush.bf16.msra.mxu0 %v7249
  %7910 = vmatpush.bf16.msra.mxu0 %v7241
  %7911 = vmatpush.bf16.msra.mxu0 %v7233
  %7912 = vmatpush.bf16.msra.mxu0 %v7225
  %7913 = vmatpush.bf16.msra.mxu0 %v7217
  %7914 = vmatpush.bf16.msra.mxu0 %v7209
  %7915 = vmatpush.bf16.msra.mxu0 %v7201
  %7916 = vmatpush.bf16.msra.mxu0 %v7193
  %7917 = vmatmul.bf16.gmra.mxu0 %v6143
  %v7918 = vpop.f32.mrf.mxu0
  %v7919 = vadd.f32 %v6409, %v7918
  %v7920 = vpop.f32.mrf.mxu0
  %7921 = vdwg.mxu0
  %7922 = vmatpush.bf16.msra.mxu0 %v7313
  %7923 = vmatpush.bf16.msra.mxu0 %v7305
  %7924 = vmatpush.bf16.msra.mxu0 %v7297
  %7925 = vmatpush.bf16.msra.mxu0 %v7289
  %7926 = vmatpush.bf16.msra.mxu0 %v7281
  %7927 = vmatpush.bf16.msra.mxu0 %v7273
  %7928 = vmatpush.bf16.msra.mxu0 %v7265
  %7929 = vmatpush.bf16.msra.mxu0 %v7257
  %7930 = vmatmul.bf16.gmra.mxu0 %v6144
  %v7931 = vpop.f32.mrf.mxu0
  %v7932 = vadd.f32 %v7919, %v7931
  %v7933 = vpop.f32.mrf.mxu0
  %7934 = vdwg.mxu0
  %7935 = vmatpush.bf16.msra.mxu0 %v7377
  %7936 = vmatpush.bf16.msra.mxu0 %v7369
  %7937 = vmatpush.bf16.msra.mxu0 %v7361
  %7938 = vmatpush.bf16.msra.mxu0 %v7353
  %7939 = vmatpush.bf16.msra.mxu0 %v7345
  %7940 = vmatpush.bf16.msra.mxu0 %v7337
  %7941 = vmatpush.bf16.msra.mxu0 %v7329
  %7942 = vmatpush.bf16.msra.mxu0 %v7321
  %7943 = vmatmul.bf16.gmra.mxu0 %v6145
  %v7944 = vpop.f32.mrf.mxu0
  %v7945 = vadd.f32 %v7932, %v7944
  %v7946 = vpop.f32.mrf.mxu0
  %7947 = vdwg.mxu0
  %7948 = vmatpush.bf16.msra.mxu0 %v7441
  %7949 = vmatpush.bf16.msra.mxu0 %v7433
  %7950 = vmatpush.bf16.msra.mxu0 %v7425
  %7951 = vmatpush.bf16.msra.mxu0 %v7417
  %7952 = vmatpush.bf16.msra.mxu0 %v7409
  %7953 = vmatpush.bf16.msra.mxu0 %v7401
  %7954 = vmatpush.bf16.msra.mxu0 %v7393
  %7955 = vmatpush.bf16.msra.mxu0 %v7385
  %7956 = vmatmul.bf16.gmra.mxu0 %v6146
  %v7957 = vpop.f32.mrf.mxu0
  %v7958 = vadd.f32 %v7945, %v7957
  %v7959 = vpop.f32.mrf.mxu0
  %7960 = vdwg.mxu0
  %7961 = vmatpush.bf16.msra.mxu0 %v7250
  %7962 = vmatpush.bf16.msra.mxu0 %v7242
  %7963 = vmatpush.bf16.msra.mxu0 %v7234
  %7964 = vmatpush.bf16.msra.mxu0 %v7226
  %7965 = vmatpush.bf16.msra.mxu0 %v7218
  %7966 = vmatpush.bf16.msra.mxu0 %v7210
  %7967 = vmatpush.bf16.msra.mxu0 %v7202
  %7968 = vmatpush.bf16.msra.mxu0 %v7194
  %7969 = vmatmul.bf16.gmra.mxu0 %v6143
  %v7970 = vpop.f32.mrf.mxu0
  %v7971 = vadd.f32 %v6410, %v7970
  %v7972 = vpop.f32.mrf.mxu0
  %7973 = vdwg.mxu0
  %7974 = vmatpush.bf16.msra.mxu0 %v7314
  %7975 = vmatpush.bf16.msra.mxu0 %v7306
  %7976 = vmatpush.bf16.msra.mxu0 %v7298
  %7977 = vmatpush.bf16.msra.mxu0 %v7290
  %7978 = vmatpush.bf16.msra.mxu0 %v7282
  %7979 = vmatpush.bf16.msra.mxu0 %v7274
  %7980 = vmatpush.bf16.msra.mxu0 %v7266
  %7981 = vmatpush.bf16.msra.mxu0 %v7258
  %7982 = vmatmul.bf16.gmra.mxu0 %v6144
  %v7983 = vpop.f32.mrf.mxu0
  %v7984 = vadd.f32 %v7971, %v7983
  %v7985 = vpop.f32.mrf.mxu0
  %7986 = vdwg.mxu0
  %7987 = vmatpush.bf16.msra.mxu0 %v7378
  %7988 = vmatpush.bf16.msra.mxu0 %v7370
  %7989 = vmatpush.bf16.msra.mxu0 %v7362
  %7990 = vmatpush.bf16.msra.mxu0 %v7354
  %7991 = vmatpush.bf16.msra.mxu0 %v7346
  %7992 = vmatpush.bf16.msra.mxu0 %v7338
  %7993 = vmatpush.bf16.msra.mxu0 %v7330
  %7994 = vmatpush.bf16.msra.mxu0 %v7322
  %7995 = vmatmul.bf16.gmra.mxu0 %v6145
  %v7996 = vpop.f32.mrf.mxu0
  %v7997 = vadd.f32 %v7984, %v7996
  %v7998 = vpop.f32.mrf.mxu0
  %7999 = vdwg.mxu0
  %8000 = vmatpush.bf16.msra.mxu0 %v7442
  %8001 = vmatpush.bf16.msra.mxu0 %v7434
  %8002 = vmatpush.bf16.msra.mxu0 %v7426
  %8003 = vmatpush.bf16.msra.mxu0 %v7418
  %8004 = vmatpush.bf16.msra.mxu0 %v7410
  %8005 = vmatpush.bf16.msra.mxu0 %v7402
  %8006 = vmatpush.bf16.msra.mxu0 %v7394
  %8007 = vmatpush.bf16.msra.mxu0 %v7386
  %8008 = vmatmul.bf16.gmra.mxu0 %v6146
  %v8009 = vpop.f32.mrf.mxu0
  %v8010 = vadd.f32 %v7997, %v8009
  %v8011 = vpop.f32.mrf.mxu0
  %8012 = vdwg.mxu0
  %8013 = vmatpush.bf16.msra.mxu0 %v7251
  %8014 = vmatpush.bf16.msra.mxu0 %v7243
  %8015 = vmatpush.bf16.msra.mxu0 %v7235
  %8016 = vmatpush.bf16.msra.mxu0 %v7227
  %8017 = vmatpush.bf16.msra.mxu0 %v7219
  %8018 = vmatpush.bf16.msra.mxu0 %v7211
  %8019 = vmatpush.bf16.msra.mxu0 %v7203
  %8020 = vmatpush.bf16.msra.mxu0 %v7195
  %8021 = vmatmul.bf16.gmra.mxu0 %v6143
  %v8022 = vpop.f32.mrf.mxu0
  %v8023 = vadd.f32 %v6411, %v8022
  %v8024 = vpop.f32.mrf.mxu0
  %8025 = vdwg.mxu0
  %8026 = vmatpush.bf16.msra.mxu0 %v7315
  %8027 = vmatpush.bf16.msra.mxu0 %v7307
  %8028 = vmatpush.bf16.msra.mxu0 %v7299
  %8029 = vmatpush.bf16.msra.mxu0 %v7291
  %8030 = vmatpush.bf16.msra.mxu0 %v7283
  %8031 = vmatpush.bf16.msra.mxu0 %v7275
  %8032 = vmatpush.bf16.msra.mxu0 %v7267
  %8033 = vmatpush.bf16.msra.mxu0 %v7259
  %8034 = vmatmul.bf16.gmra.mxu0 %v6144
  %v8035 = vpop.f32.mrf.mxu0
  %v8036 = vadd.f32 %v8023, %v8035
  %v8037 = vpop.f32.mrf.mxu0
  %8038 = vdwg.mxu0
  %8039 = vmatpush.bf16.msra.mxu0 %v7379
  %8040 = vmatpush.bf16.msra.mxu0 %v7371
  %8041 = vmatpush.bf16.msra.mxu0 %v7363
  %8042 = vmatpush.bf16.msra.mxu0 %v7355
  %8043 = vmatpush.bf16.msra.mxu0 %v7347
  %8044 = vmatpush.bf16.msra.mxu0 %v7339
  %8045 = vmatpush.bf16.msra.mxu0 %v7331
  %8046 = vmatpush.bf16.msra.mxu0 %v7323
  %8047 = vmatmul.bf16.gmra.mxu0 %v6145
  %v8048 = vpop.f32.mrf.mxu0
  %v8049 = vadd.f32 %v8036, %v8048
  %v8050 = vpop.f32.mrf.mxu0
  %8051 = vdwg.mxu0
  %8052 = vmatpush.bf16.msra.mxu0 %v7443
  %8053 = vmatpush.bf16.msra.mxu0 %v7435
  %8054 = vmatpush.bf16.msra.mxu0 %v7427
  %8055 = vmatpush.bf16.msra.mxu0 %v7419
  %8056 = vmatpush.bf16.msra.mxu0 %v7411
  %8057 = vmatpush.bf16.msra.mxu0 %v7403
  %8058 = vmatpush.bf16.msra.mxu0 %v7395
  %8059 = vmatpush.bf16.msra.mxu0 %v7387
  %8060 = vmatmul.bf16.gmra.mxu0 %v6146
  %v8061 = vpop.f32.mrf.mxu0
  %v8062 = vadd.f32 %v8049, %v8061
  %v8063 = vpop.f32.mrf.mxu0
  %8064 = vdwg.mxu0
  %8065 = vmatpush.bf16.msra.mxu0 %v7252
  %8066 = vmatpush.bf16.msra.mxu0 %v7244
  %8067 = vmatpush.bf16.msra.mxu0 %v7236
  %8068 = vmatpush.bf16.msra.mxu0 %v7228
  %8069 = vmatpush.bf16.msra.mxu0 %v7220
  %8070 = vmatpush.bf16.msra.mxu0 %v7212
  %8071 = vmatpush.bf16.msra.mxu0 %v7204
  %8072 = vmatpush.bf16.msra.mxu0 %v7196
  %8073 = vmatmul.bf16.gmra.mxu0 %v6143
  %v8074 = vpop.f32.mrf.mxu0
  %v8075 = vadd.f32 %v6412, %v8074
  %v8076 = vpop.f32.mrf.mxu0
  %8077 = vdwg.mxu0
  %8078 = vmatpush.bf16.msra.mxu0 %v7316
  %8079 = vmatpush.bf16.msra.mxu0 %v7308
  %8080 = vmatpush.bf16.msra.mxu0 %v7300
  %8081 = vmatpush.bf16.msra.mxu0 %v7292
  %8082 = vmatpush.bf16.msra.mxu0 %v7284
  %8083 = vmatpush.bf16.msra.mxu0 %v7276
  %8084 = vmatpush.bf16.msra.mxu0 %v7268
  %8085 = vmatpush.bf16.msra.mxu0 %v7260
  %8086 = vmatmul.bf16.gmra.mxu0 %v6144
  %v8087 = vpop.f32.mrf.mxu0
  %v8088 = vadd.f32 %v8075, %v8087
  %v8089 = vpop.f32.mrf.mxu0
  %8090 = vdwg.mxu0
  %8091 = vmatpush.bf16.msra.mxu0 %v7380
  %8092 = vmatpush.bf16.msra.mxu0 %v7372
  %8093 = vmatpush.bf16.msra.mxu0 %v7364
  %8094 = vmatpush.bf16.msra.mxu0 %v7356
  %8095 = vmatpush.bf16.msra.mxu0 %v7348
  %8096 = vmatpush.bf16.msra.mxu0 %v7340
  %8097 = vmatpush.bf16.msra.mxu0 %v7332
  %8098 = vmatpush.bf16.msra.mxu0 %v7324
  %8099 = vmatmul.bf16.gmra.mxu0 %v6145
  %v8100 = vpop.f32.mrf.mxu0
  %v8101 = vadd.f32 %v8088, %v8100
  %v8102 = vpop.f32.mrf.mxu0
  %8103 = vdwg.mxu0
  %8104 = vmatpush.bf16.msra.mxu0 %v7444
  %8105 = vmatpush.bf16.msra.mxu0 %v7436
  %8106 = vmatpush.bf16.msra.mxu0 %v7428
  %8107 = vmatpush.bf16.msra.mxu0 %v7420
  %8108 = vmatpush.bf16.msra.mxu0 %v7412
  %8109 = vmatpush.bf16.msra.mxu0 %v7404
  %8110 = vmatpush.bf16.msra.mxu0 %v7396
  %8111 = vmatpush.bf16.msra.mxu0 %v7388
  %8112 = vmatmul.bf16.gmra.mxu0 %v6146
  %v8113 = vpop.f32.mrf.mxu0
  %v8114 = vadd.f32 %v8101, %v8113
  %v8115 = vpop.f32.mrf.mxu0
  %8116 = vdwg.mxu0
  %8117 = vst [vmem:[%s5] sm:$0xff] %v7750
  %8118 = vst [vmem:[%s5 + $0x8] sm:$0xff] %v7802
  %8119 = vst [vmem:[%s5 + $0x10] sm:$0xff] %v7854
  %8120 = vst [vmem:[%s5 + $0x18] sm:$0xff] %v7906
  %8121 = vst [vmem:[%s5 + $0x20] sm:$0xff] %v7958
  %8122 = vst [vmem:[%s5 + $0x28] sm:$0xff] %v8010
  %8123 = vst [vmem:[%s5 + $0x30] sm:$0xff] %v8062
  %8124 = vst [vmem:[%s5 + $0x38] sm:$0xff] %v8114
  // Predicated region
  $region22: #{dqn_lstm_forward.8} parent=0 // pred_check
    _
  $region23: #{dqn_lstm_forward.8} parent=0 // pred_check_branch
    %8126 = sbr.rel (0) target = $region25
  $region24: #{dqn_lstm_forward.8} parent=0 // pred_region
    _
  $region25: #{dqn_lstm_forward.8} parent=0 // pred_fallthru
    _
  // Predicated region
  $region26: #{dqn_lstm_forward.8} parent=0 // pred_check
    _
  $region27: #{dqn_lstm_forward.8} parent=0 // pred_check_branch
    %8128 = sbr.rel (0) target = $region29
  $region28: #{dqn_lstm_forward.8} parent=0 // pred_region
    _
  $region29: #{dqn_lstm_forward.8} parent=0 // pred_fallthru
    _

</llo_original>
